<compile_context>
chip_gen: v7x
topology: tpu7x:2x2x1
jax: 0.10.0
libtpu: 0.0.40
codegen_flags: <defaults>
</compile_context>

<pallas_src>
import math
from functools import partial

import jax
import jax.numpy as jnp
from jax import lax
from jax.experimental import pallas as pl
from jax.experimental.pallas import tpu as pltpu

_VMEM = pl.BlockSpec(memory_space=pltpu.MemorySpace.VMEM)


# ================================ Pallas kernel ===================================
def _convlstm_cell_kernel(comb_ref, c_ref, w_ref, b_ref, h_out_ref, c_out_ref,
                          pad_ref):
    """Fused ConvLSTMCell step.

    comb_ref : (B, H, W, Cin+Hd)  bf16   concat([x_t, h_cur], channel-last)
    c_ref    : (B, H, W, Hd)      f32    current cell state
    w_ref    : (KH*KW*(Cin+Hd), 4*Hd) bf16   conv weight, im2col-flattened (kh,kw,c)
    b_ref    : (1, 4*Hd)          f32    conv bias
    outputs  : h_next, c_next as (B, H, W, Hd) f32
    pad_ref  : VMEM scratch (B, H+2p, W+2p, Cin+Hd) bf16  zero-padded input
    """
    B, H, W, Ctot = comb_ref.shape
    Hd = c_ref.shape[-1]
    KH = pad_ref.shape[1] - H + 1          # odd kernels (padding = k // 2, 'same')
    KW = pad_ref.shape[2] - W + 1
    ph, pw = KH // 2, KW // 2
    M = B * H * W

    # --- 1) zero 'same'-padding of [x_t, h_cur] into a bf16 VMEM scratch ---------
    pad_ref[...] = jnp.zeros_like(pad_ref)
    pad_ref[:, ph:ph + H, pw:pw + W, :] = comb_ref[...].astype(pad_ref.dtype)

    # --- 2) im2col -> single lane-dense MXU matmul (bf16 in, f32 accumulate) -----
    cols = []
    for kh in range(KH):
        for kw in range(KW):
            cols.append(pad_ref[:, kh:kh + H, kw:kw + W, :].reshape(M, Ctot))
    patches = jnp.concatenate(cols, axis=-1)                 # (M, KH*KW*Ctot) bf16
    acc = jnp.dot(patches, w_ref[...],
                  preferred_element_type=jnp.float32)        # (M, 4*Hd) f32
    acc = acc + b_ref[...]

    # --- 3) gates: one sigmoid over [i|f|o], one tanh over g (f32 VPU/EUP math) --
    sig = jax.nn.sigmoid(acc[:, :3 * Hd])
    g = jnp.tanh(acc[:, 3 * Hd:])
    i = sig[:, 0 * Hd:1 * Hd]
    f = sig[:, 1 * Hd:2 * Hd]
    o = sig[:, 2 * Hd:3 * Hd]

    # --- 4) LSTM state update (f32) -----------------------------------------------
    c_cur = c_ref[...].reshape(M, Hd)
    c_next = f * c_cur + i * g
    h_next = o * jnp.tanh(c_next)

    c_out_ref[...] = c_next.reshape(B, H, W, Hd)
    h_out_ref[...] = h_next.reshape(B, H, W, Hd)


def convlstm_cell_step(combined_nhwc_bf16, c_nhwc, w_flat_bf16, bias, kernel_size):
    """One fused pallas_call: returns (h_next, c_next) in NHWC f32."""
    B, H, W, Ctot = combined_nhwc_bf16.shape
    Hd = c_nhwc.shape[-1]
    KH, KW = kernel_size
    out_sd = jax.ShapeDtypeStruct((B, H, W, Hd), jnp.float32)
    h_next, c_next = pl.pallas_call(
        _convlstm_cell_kernel,
        out_shape=(out_sd, out_sd),
        in_specs=[_VMEM, _VMEM, _VMEM, _VMEM],
        out_specs=(_VMEM, _VMEM),
        scratch_shapes=[
            pltpu.VMEM((B, H + 2 * (KH // 2), W + 2 * (KW // 2), Ctot),
                       jnp.bfloat16),
        ],
    )(combined_nhwc_bf16, c_nhwc, w_flat_bf16, bias)
    return h_next, c_next


# ================================ module wrapper ==================================
def init_params(key, input_dim, hidden_dim, kernel_size=(3, 3), bias=True):
    """nn.Conv2d(input_dim+hidden_dim -> 4*hidden_dim, kernel, padding=k//2)."""
    kh, kw = kernel_size
    cin = input_dim + hidden_dim
    k1, k2 = jax.random.split(key)
    fan_in = kh * kw * cin
    w_hwio = jax.random.normal(k1, (kh, kw, cin, 4 * hidden_dim),
                               jnp.float32) / math.sqrt(fan_in)
    b = (jax.random.normal(k2, (1, 4 * hidden_dim), jnp.float32) * 0.01
         if bias else jnp.zeros((1, 4 * hidden_dim), jnp.float32))
    return {
        # bf16 weights fed straight to the MXU (accumulation stays f32 in-kernel)
        "w_flat_bf16": w_hwio.reshape(kh * kw * cin,
                                      4 * hidden_dim).astype(jnp.bfloat16),
        "b": b,
    }


def convlstm_cell_forward(params, input_tensor, cur_state, kernel_size=(3, 3)):
    """Mirror of ConvLSTMCell.forward: NCHW in, (h_next, c_next) NCHW out."""
    h_cur, c_cur = cur_state
    x = jnp.transpose(input_tensor, (0, 2, 3, 1))            # NHWC
    h = jnp.transpose(h_cur, (0, 2, 3, 1))
    c = jnp.transpose(c_cur, (0, 2, 3, 1))
    combined = jnp.concatenate([x, h], axis=-1)              # torch.cat([x, h], dim=1)
    combined = combined.astype(jnp.bfloat16)                 # MXU inputs in bf16
    h_next, c_next = convlstm_cell_step(combined, c, params["w_flat_bf16"],
                                        params["b"], kernel_size)
    return (jnp.transpose(h_next, (0, 3, 1, 2)),
            jnp.transpose(c_next, (0, 3, 1, 2)))


def init_hidden(batch_size, hidden_dim, height, width):
    shape = (batch_size, hidden_dim, height, width)
    return (jnp.zeros(shape, jnp.float32), jnp.zeros(shape, jnp.float32))


# ================================ pure-JAX reference ==============================
def _reference_cell(params, input_tensor, cur_state, kernel_size=(3, 3)):
    h_cur, c_cur = cur_state
    x = jnp.transpose(input_tensor, (0, 2, 3, 1))
    h = jnp.transpose(h_cur, (0, 2, 3, 1))
    c = jnp.transpose(c_cur, (0, 2, 3, 1))
    combined = jnp.concatenate([x, h], axis=-1)
    kh, kw = kernel_size
    Hd = h.shape[-1]
    w = params["w_flat_bf16"].astype(jnp.float32).reshape(
        kh, kw, combined.shape[-1], 4 * Hd)
    conv = lax.conv_general_dilated(
        combined, w, window_strides=(1, 1),
        padding=((kh // 2, kh // 2), (kw // 2, kw // 2)),
        dimension_numbers=("NHWC", "HWIO", "NHWC"))
    conv = conv + params["b"].reshape(1, 1, 1, -1)
    i = jax.nn.sigmoid(conv[..., 0 * Hd:1 * Hd])
    f = jax.nn.sigmoid(conv[..., 1 * Hd:2 * Hd])
    o = jax.nn.sigmoid(conv[..., 2 * Hd:3 * Hd])
    g = jnp.tanh(conv[..., 3 * Hd:4 * Hd])
    c_next = f * c + i * g
    h_next = o * jnp.tanh(c_next)
    return (jnp.transpose(h_next, (0, 3, 1, 2)),
            jnp.transpose(c_next, (0, 3, 1, 2)))


# ======================================= demo =====================================
if __name__ == "__main__":
    key = jax.random.PRNGKey(0)
    kx, kh, kc, kp = jax.random.split(key, 4)

    # small shapes consistent with the module: B=2, Cin=4, hidden=32, 16x16, k=3x3
    B, Cin, Hd, H, W = 2, 4, 32, 16, 16
    KSIZE = (3, 3)

    x = jax.random.normal(kx, (B, Cin, H, W), jnp.float32)
    h0 = jax.random.normal(kh, (B, Hd, H, W), jnp.float32)
    c0 = jax.random.normal(kc, (B, Hd, H, W), jnp.float32)
    params = init_params(kp, Cin, Hd, KSIZE, bias=True)

    fwd = jax.jit(partial(convlstm_cell_forward, kernel_size=KSIZE))
    h1, c1 = fwd(params, x, (h0, c0))
    h1 = jax.block_until_ready(h1)
    c1 = jax.block_until_ready(c1)

    assert h1.shape == (B, Hd, H, W), h1.shape
    assert c1.shape == (B, Hd, H, W), c1.shape
    assert bool(jnp.all(jnp.isfinite(h1))) and bool(jnp.all(jnp.isfinite(c1)))

    # cross-check against a plain-JAX reference (f32 conv); tolerance covers the
    # bf16 rounding of the MXU inputs (accumulation and gate math are f32).
    h_ref, c_ref = _reference_cell(params, x, (h0, c0), KSIZE)
    err = max(float(jnp.max(jnp.abs(h1 - h_ref))),
              float(jnp.max(jnp.abs(c1 - c_ref))))
    assert err < 3e-2, f"mismatch vs reference: {err}"

    print("KERNEL_OK")
</pallas_src>

<mosaic_0001>
module attributes {stable_mosaic.version = 11 : i64} {
  func.func @_convlstm_cell_kernel(%arg0: memref<2x16x16x36xbf16, #tpu.memory_space<vmem>>, %arg1: memref<2x16x16x32xf32, #tpu.memory_space<vmem>>, %arg2: memref<324x128xbf16, #tpu.memory_space<vmem>>, %arg3: memref<1x128xf32, #tpu.memory_space<vmem>>, %arg4: memref<2x16x16x32xf32, #tpu.memory_space<vmem>>, %arg5: memref<2x16x16x32xf32, #tpu.memory_space<vmem>>, %arg6: memref<2x18x18x36xbf16, #tpu.memory_space<vmem>>) attributes {dimension_semantics = [], scalar_prefetch = 0 : i64, scratch_operands = 1 : i64, tpu.core_type = #tpu.core_type<tc>} {
    %cst = arith.constant 0.000000e+00 : bf16
    %0 = vector.broadcast %cst : bf16 to vector<2x18x18x36xbf16>
    %c0 = arith.constant 0 : index
    %c0_0 = arith.constant 0 : index
    %c0_1 = arith.constant 0 : index
    %c0_2 = arith.constant 0 : index
    %1 = vector.load %arg6[%c0, %c0_0, %c0_1, %c0_2] : memref<2x18x18x36xbf16, #tpu.memory_space<vmem>>, vector<2x18x18x36xbf16>
    tpu.vector_store %arg6[%c0, %c0_0, %c0_1, %c0_2], %0 {strides = array<i32>} : memref<2x18x18x36xbf16, #tpu.memory_space<vmem>>, vector<2x18x18x36xbf16>,
    %c0_3 = arith.constant 0 : index
    %c0_4 = arith.constant 0 : index
    %c0_5 = arith.constant 0 : index
    %c0_6 = arith.constant 0 : index
    %2 = vector.load %arg0[%c0_3, %c0_4, %c0_5, %c0_6] : memref<2x16x16x36xbf16, #tpu.memory_space<vmem>>, vector<2x16x16x36xbf16>
    %c0_7 = arith.constant 0 : index
    %c1 = arith.constant 1 : index
    %c1_8 = arith.constant 1 : index
    %c0_9 = arith.constant 0 : index
    %3 = vector.load %arg6[%c0_7, %c1, %c1_8, %c0_9] : memref<2x18x18x36xbf16, #tpu.memory_space<vmem>>, vector<2x16x16x36xbf16>
    tpu.vector_store %arg6[%c0_7, %c1, %c1_8, %c0_9], %2 {strides = array<i32>} : memref<2x18x18x36xbf16, #tpu.memory_space<vmem>>, vector<2x16x16x36xbf16>,
    %c0_10 = arith.constant 0 : index
    %c0_11 = arith.constant 0 : index
    %c0_12 = arith.constant 0 : index
    %c0_13 = arith.constant 0 : index
    %4 = vector.load %arg6[%c0_10, %c0_11, %c0_12, %c0_13] : memref<2x18x18x36xbf16, #tpu.memory_space<vmem>>, vector<2x16x16x36xbf16>
    %5 = vector.shape_cast %4 : vector<2x16x16x36xbf16> to vector<512x36xbf16>
    %c0_14 = arith.constant 0 : index
    %c0_15 = arith.constant 0 : index
    %c1_16 = arith.constant 1 : index
    %c0_17 = arith.constant 0 : index
    %6 = vector.load %arg6[%c0_14, %c0_15, %c1_16, %c0_17] : memref<2x18x18x36xbf16, #tpu.memory_space<vmem>>, vector<2x16x16x36xbf16>
    %7 = vector.shape_cast %6 : vector<2x16x16x36xbf16> to vector<512x36xbf16>
    %c0_18 = arith.constant 0 : index
    %c0_19 = arith.constant 0 : index
    %c2 = arith.constant 2 : index
    %c0_20 = arith.constant 0 : index
    %8 = vector.load %arg6[%c0_18, %c0_19, %c2, %c0_20] : memref<2x18x18x36xbf16, #tpu.memory_space<vmem>>, vector<2x16x16x36xbf16>
    %9 = vector.shape_cast %8 : vector<2x16x16x36xbf16> to vector<512x36xbf16>
    %c0_21 = arith.constant 0 : index
    %c1_22 = arith.constant 1 : index
    %c0_23 = arith.constant 0 : index
    %c0_24 = arith.constant 0 : index
    %10 = vector.load %arg6[%c0_21, %c1_22, %c0_23, %c0_24] : memref<2x18x18x36xbf16, #tpu.memory_space<vmem>>, vector<2x16x16x36xbf16>
    %11 = vector.shape_cast %10 : vector<2x16x16x36xbf16> to vector<512x36xbf16>
    %c0_25 = arith.constant 0 : index
    %c1_26 = arith.constant 1 : index
    %c1_27 = arith.constant 1 : index
    %c0_28 = arith.constant 0 : index
    %12 = vector.load %arg6[%c0_25, %c1_26, %c1_27, %c0_28] : memref<2x18x18x36xbf16, #tpu.memory_space<vmem>>, vector<2x16x16x36xbf16>
    %13 = vector.shape_cast %12 : vector<2x16x16x36xbf16> to vector<512x36xbf16>
    %c0_29 = arith.constant 0 : index
    %c1_30 = arith.constant 1 : index
    %c2_31 = arith.constant 2 : index
    %c0_32 = arith.constant 0 : index
    %14 = vector.load %arg6[%c0_29, %c1_30, %c2_31, %c0_32] : memref<2x18x18x36xbf16, #tpu.memory_space<vmem>>, vector<2x16x16x36xbf16>
    %15 = vector.shape_cast %14 : vector<2x16x16x36xbf16> to vector<512x36xbf16>
    %c0_33 = arith.constant 0 : index
    %c2_34 = arith.constant 2 : index
    %c0_35 = arith.constant 0 : index
    %c0_36 = arith.constant 0 : index
    %16 = vector.load %arg6[%c0_33, %c2_34, %c0_35, %c0_36] : memref<2x18x18x36xbf16, #tpu.memory_space<vmem>>, vector<2x16x16x36xbf16>
    %17 = vector.shape_cast %16 : vector<2x16x16x36xbf16> to vector<512x36xbf16>
    %c0_37 = arith.constant 0 : index
    %c2_38 = arith.constant 2 : index
    %c1_39 = arith.constant 1 : index
    %c0_40 = arith.constant 0 : index
    %18 = vector.load %arg6[%c0_37, %c2_38, %c1_39, %c0_40] : memref<2x18x18x36xbf16, #tpu.memory_space<vmem>>, vector<2x16x16x36xbf16>
    %19 = vector.shape_cast %18 : vector<2x16x16x36xbf16> to vector<512x36xbf16>
    %c0_41 = arith.constant 0 : index
    %c2_42 = arith.constant 2 : index
    %c2_43 = arith.constant 2 : index
    %c0_44 = arith.constant 0 : index
    %20 = vector.load %arg6[%c0_41, %c2_42, %c2_43, %c0_44] : memref<2x18x18x36xbf16, #tpu.memory_space<vmem>>, vector<2x16x16x36xbf16>
    %21 = vector.shape_cast %20 : vector<2x16x16x36xbf16> to vector<512x36xbf16>
    %22 = tpu.concatenate %5, %7, %9, %11, %13, %15, %17, %19, %21 in 1 : vector<512x36xbf16>, vector<512x36xbf16>, vector<512x36xbf16>, vector<512x36xbf16>, vector<512x36xbf16>, vector<512x36xbf16>, vector<512x36xbf16>, vector<512x36xbf16>, vector<512x36xbf16> -> vector<512x324xbf16>
    %c0_45 = arith.constant 0 : index
    %c0_46 = arith.constant 0 : index
    %23 = vector.load %arg2[%c0_45, %c0_46] : memref<324x128xbf16, #tpu.memory_space<vmem>>, vector<324x128xbf16>
    %cst_47 = arith.constant dense<0.000000e+00> : vector<512x128xf32>
    %24 = tpu.matmul %22, %23, %cst_47 {dimension_numbers = #tpu.dot_dimension_numbers<[1], [0], [0], [1], [0, 0, 1, 1], [], []>} : vector<512x324xbf16>, vector<324x128xbf16>, vector<512x128xf32> -> vector<512x128xf32>
    %c0_48 = arith.constant 0 : index
    %c0_49 = arith.constant 0 : index
    %25 = vector.load %arg3[%c0_48, %c0_49] : memref<1x128xf32, #tpu.memory_space<vmem>>, vector<1x128xf32>
    %26 = vector.broadcast %25 : vector<1x128xf32> to vector<512x128xf32>
    %27 = arith.addf %24, %26 : vector<512x128xf32>
    %28 = vector.extract_strided_slice %27 {offsets = [0, 0], sizes = [512, 96], strides = [1, 1]} : vector<512x128xf32> to vector<512x96xf32>
    %29 = arith.negf %28 : vector<512x96xf32>
    %30 = math.exp %29 : vector<512x96xf32>
    %cst_50 = arith.constant 1.000000e+00 : f32
    %31 = vector.broadcast %cst_50 : f32 to vector<512x96xf32>
    %32 = arith.addf %31, %30 : vector<512x96xf32>
    %33 = arith.divf %31, %32 : vector<512x96xf32>
    %34 = vector.extract_strided_slice %27 {offsets = [0, 96], sizes = [512, 32], strides = [1, 1]} : vector<512x128xf32> to vector<512x32xf32>
    %35 = math.tanh %34 : vector<512x32xf32>
    %36 = vector.extract_strided_slice %33 {offsets = [0, 0], sizes = [512, 32], strides = [1, 1]} : vector<512x96xf32> to vector<512x32xf32>
    %37 = vector.extract_strided_slice %33 {offsets = [0, 32], sizes = [512, 32], strides = [1, 1]} : vector<512x96xf32> to vector<512x32xf32>
    %38 = vector.extract_strided_slice %33 {offsets = [0, 64], sizes = [512, 32], strides = [1, 1]} : vector<512x96xf32> to vector<512x32xf32>
    %c0_51 = arith.constant 0 : index
    %c0_52 = arith.constant 0 : index
    %c0_53 = arith.constant 0 : index
    %c0_54 = arith.constant 0 : index
    %39 = vector.load %arg1[%c0_51, %c0_52, %c0_53, %c0_54] : memref<2x16x16x32xf32, #tpu.memory_space<vmem>>, vector<2x16x16x32xf32>
    %40 = vector.shape_cast %39 : vector<2x16x16x32xf32> to vector<512x32xf32>
    %41 = arith.mulf %37, %40 : vector<512x32xf32>
    %42 = arith.mulf %36, %35 : vector<512x32xf32>
    %43 = arith.addf %41, %42 : vector<512x32xf32>
    %44 = math.tanh %43 : vector<512x32xf32>
    %45 = arith.mulf %38, %44 : vector<512x32xf32>
    %46 = vector.shape_cast %43 : vector<512x32xf32> to vector<2x16x16x32xf32>
    %c0_55 = arith.constant 0 : index
    %c0_56 = arith.constant 0 : index
    %c0_57 = arith.constant 0 : index
    %c0_58 = arith.constant 0 : index
    %47 = vector.load %arg5[%c0_55, %c0_56, %c0_57, %c0_58] : memref<2x16x16x32xf32, #tpu.memory_space<vmem>>, vector<2x16x16x32xf32>
    tpu.vector_store %arg5[%c0_55, %c0_56, %c0_57, %c0_58], %46 {strides = array<i32>} : memref<2x16x16x32xf32, #tpu.memory_space<vmem>>, vector<2x16x16x32xf32>,
    %48 = vector.shape_cast %45 : vector<512x32xf32> to vector<2x16x16x32xf32>
    %c0_59 = arith.constant 0 : index
    %c0_60 = arith.constant 0 : index
    %c0_61 = arith.constant 0 : index
    %c0_62 = arith.constant 0 : index
    %49 = vector.load %arg4[%c0_59, %c0_60, %c0_61, %c0_62] : memref<2x16x16x32xf32, #tpu.memory_space<vmem>>, vector<2x16x16x32xf32>
    tpu.vector_store %arg4[%c0_59, %c0_60, %c0_61, %c0_62], %48 {strides = array<i32>} : memref<2x16x16x32xf32, #tpu.memory_space<vmem>>, vector<2x16x16x32xf32>,
    return
  }
}

</mosaic_0001>

<llo_original>
// kernel: convlstm_cell_forward.1
$region0: #{convlstm_cell_forward.1}
  #allocation0 [shape = 'u32[]', space=smem, size = 0x4, offset = 0x4, fixed_abs, tag = 'smem constant byte address 0x4 - core index']
  #allocation1 [shape = 'u32[144,128]{1,0:T(1,128)}', space=vmem, size = 0x12000, scoped, tag = 'internal scratch']
  #allocation2 [shape = 'bf16[2,18,18,36]{3,2,1,0:T(8,128)(2,1)}', space=vmem, size = 0x36000, scoped, tag = 'scratch operand']
  %s0 = inlined_call_operand.vmem [shape: bf16[2,16,16,36], index: 0, kind: input, shape index: {}]
  %s1 = inlined_call_operand.vmem [shape: f32[2,16,16,32], index: 1, kind: input, shape index: {}]
  %s2 = inlined_call_operand.vmem [shape: bf16[324,128], index: 2, kind: input, shape index: {}]
  %s3 = inlined_call_operand.vmem [shape: f32[1,128], index: 3, kind: input, shape index: {}]
  %s4 = inlined_call_operand.hbm [shape: f32[2,16,16,32], index: 4, kind: output, shape index: {0}]
  %s5 = inlined_call_operand.hbm [shape: f32[2,16,16,32], index: 5, kind: output, shape index: {1}]
  %6 = xla_tuple %s4, %s5
  %s7 = sld [smem:[#allocation0]]
  $region34: #{convlstm_cell_forward.1} parent=0
    _
  %s9 = ssub.s32 1, %s7
  %s10 = scalar_select 0, %s9, %s7
  $region1: #{convlstm_cell_forward.1} parent=0
    #allocation3 [shape = 'u8[262144]{0}', space=vmem, size = 0x40000, scoped, tag = 'output window, operand 0, single buffered']
    #allocation4 [shape = 's32[1]{0}', space=sflag, size = 0x4, scoped, tag = 'scoped memory for convlstm_cell_forward.1']
    #allocation5 [shape = 'u8[262144]{0}', space=vmem, size = 0x40000, scoped, tag = 'output window, operand 1, single buffered']
    #allocation6 [shape = 's32[1]{0}', space=sflag, size = 0x4, scoped, tag = 'scoped memory for convlstm_cell_forward.1']
    %11 = vsyncpa [#allocation4], 0
    %12 = vsyncpa [#allocation6], 0
    // Predicated region
    $region2: #{convlstm_cell_forward.1} parent=1 // pred_check
      _
    $region3: #{convlstm_cell_forward.1} parent=1 // pred_check_branch
      %14 = sbr.rel (0) target = $region5
    $region4: #{convlstm_cell_forward.1} parent=1 // pred_region
      _
    $region5: #{convlstm_cell_forward.1} parent=1 // pred_fallthru
      _
    // Predicated region
    $region6: #{convlstm_cell_forward.1} parent=1 // pred_check
      _
    $region7: #{convlstm_cell_forward.1} parent=1 // pred_check_branch
      %16 = sbr.rel (0) target = $region9
    $region8: #{convlstm_cell_forward.1} parent=1 // pred_region
      _
    $region9: #{convlstm_cell_forward.1} parent=1 // pred_fallthru
      _
    // Predicated region
    $region10: #{convlstm_cell_forward.1} parent=1 // pred_check
      _
    $region11: #{convlstm_cell_forward.1} parent=1 // pred_check_branch
      %18 = sbr.rel (0) target = $region13
    $region12: #{convlstm_cell_forward.1} parent=1 // pred_region
      _
    $region13: #{convlstm_cell_forward.1} parent=1 // pred_fallthru
      _
    // Predicated region
    $region14: #{convlstm_cell_forward.1} parent=1 // pred_check
      _
    $region15: #{convlstm_cell_forward.1} parent=1 // pred_check_branch
      %20 = sbr.rel (0) target = $region17
    $region16: #{convlstm_cell_forward.1} parent=1 // pred_region
      _
    $region17: #{convlstm_cell_forward.1} parent=1 // pred_fallthru
      _
    %vm22 = vcmask 289792
    %23 = vst.msk [vmem:[#allocation2] sm:$0xf] %vm22, 0
    %24 = vst.msk [vmem:[#allocation2 + $0x4] sm:$0xf] %vm22, 0
    %vm25 = vcmask 286720
    %26 = vst.msk [vmem:[#allocation2 + $0x8] sm:$0x1] %vm25, 0
    %27 = vst.msk [vmem:[#allocation2 + $0xc] sm:$0xf] %vm22, 0
    %28 = vst.msk [vmem:[#allocation2 + $0x10] sm:$0xf] %vm22, 0
    %29 = vst.msk [vmem:[#allocation2 + $0x14] sm:$0x1] %vm25, 0
    %30 = vst.msk [vmem:[#allocation2 + $0x18] sm:$0xf] %vm22, 0
    %31 = vst.msk [vmem:[#allocation2 + $0x1c] sm:$0xf] %vm22, 0
    %32 = vst.msk [vmem:[#allocation2 + $0x20] sm:$0x1] %vm25, 0
    %33 = vst.msk [vmem:[#allocation2 + $0x24] sm:$0xf] %vm22, 0
    %34 = vst.msk [vmem:[#allocation2 + $0x28] sm:$0xf] %vm22, 0
    %35 = vst.msk [vmem:[#allocation2 + $0x2c] sm:$0x1] %vm25, 0
    %36 = vst.msk [vmem:[#allocation2 + $0x30] sm:$0xf] %vm22, 0
    %37 = vst.msk [vmem:[#allocation2 + $0x34] sm:$0xf] %vm22, 0
    %38 = vst.msk [vmem:[#allocation2 + $0x38] sm:$0x1] %vm25, 0
    %39 = vst.msk [vmem:[#allocation2 + $0x3c] sm:$0xf] %vm22, 0
    %40 = vst.msk [vmem:[#allocation2 + $0x40] sm:$0xf] %vm22, 0
    %41 = vst.msk [vmem:[#allocation2 + $0x44] sm:$0x1] %vm25, 0
    %42 = vst.msk [vmem:[#allocation2 + $0x48] sm:$0xf] %vm22, 0
    %43 = vst.msk [vmem:[#allocation2 + $0x4c] sm:$0xf] %vm22, 0
    %44 = vst.msk [vmem:[#allocation2 + $0x50] sm:$0x1] %vm25, 0
    %45 = vst.msk [vmem:[#allocation2 + $0x54] sm:$0xf] %vm22, 0
    %46 = vst.msk [vmem:[#allocation2 + $0x58] sm:$0xf] %vm22, 0
    %47 = vst.msk [vmem:[#allocation2 + $0x5c] sm:$0x1] %vm25, 0
    %48 = vst.msk [vmem:[#allocation2 + $0x60] sm:$0xf] %vm22, 0
    %49 = vst.msk [vmem:[#allocation2 + $0x64] sm:$0xf] %vm22, 0
    %50 = vst.msk [vmem:[#allocation2 + $0x68] sm:$0x1] %vm25, 0
    %51 = vst.msk [vmem:[#allocation2 + $0x6c] sm:$0xf] %vm22, 0
    %52 = vst.msk [vmem:[#allocation2 + $0x70] sm:$0xf] %vm22, 0
    %53 = vst.msk [vmem:[#allocation2 + $0x74] sm:$0x1] %vm25, 0
    %54 = vst.msk [vmem:[#allocation2 + $0x78] sm:$0xf] %vm22, 0
    %55 = vst.msk [vmem:[#allocation2 + $0x7c] sm:$0xf] %vm22, 0
    %56 = vst.msk [vmem:[#allocation2 + $0x80] sm:$0x1] %vm25, 0
    %57 = vst.msk [vmem:[#allocation2 + $0x84] sm:$0xf] %vm22, 0
    %58 = vst.msk [vmem:[#allocation2 + $0x88] sm:$0xf] %vm22, 0
    %59 = vst.msk [vmem:[#allocation2 + $0x8c] sm:$0x1] %vm25, 0
    %60 = vst.msk [vmem:[#allocation2 + $0x90] sm:$0xf] %vm22, 0
    %61 = vst.msk [vmem:[#allocation2 + $0x94] sm:$0xf] %vm22, 0
    %62 = vst.msk [vmem:[#allocation2 + $0x98] sm:$0x1] %vm25, 0
    %63 = vst.msk [vmem:[#allocation2 + $0x9c] sm:$0xf] %vm22, 0
    %64 = vst.msk [vmem:[#allocation2 + $0xa0] sm:$0xf] %vm22, 0
    %65 = vst.msk [vmem:[#allocation2 + $0xa4] sm:$0x1] %vm25, 0
    %66 = vst.msk [vmem:[#allocation2 + $0xa8] sm:$0xf] %vm22, 0
    %67 = vst.msk [vmem:[#allocation2 + $0xac] sm:$0xf] %vm22, 0
    %68 = vst.msk [vmem:[#allocation2 + $0xb0] sm:$0x1] %vm25, 0
    %69 = vst.msk [vmem:[#allocation2 + $0xb4] sm:$0xf] %vm22, 0
    %70 = vst.msk [vmem:[#allocation2 + $0xb8] sm:$0xf] %vm22, 0
    %71 = vst.msk [vmem:[#allocation2 + $0xbc] sm:$0x1] %vm25, 0
    %72 = vst.msk [vmem:[#allocation2 + $0xc0] sm:$0xf] %vm22, 0
    %73 = vst.msk [vmem:[#allocation2 + $0xc4] sm:$0xf] %vm22, 0
    %74 = vst.msk [vmem:[#allocation2 + $0xc8] sm:$0x1] %vm25, 0
    %75 = vst.msk [vmem:[#allocation2 + $0xcc] sm:$0xf] %vm22, 0
    %76 = vst.msk [vmem:[#allocation2 + $0xd0] sm:$0xf] %vm22, 0
    %77 = vst.msk [vmem:[#allocation2 + $0xd4] sm:$0x1] %vm25, 0
    %78 = vst.msk [vmem:[#allocation2 + $0xd8] sm:$0xf] %vm22, 0
    %79 = vst.msk [vmem:[#allocation2 + $0xdc] sm:$0xf] %vm22, 0
    %80 = vst.msk [vmem:[#allocation2 + $0xe0] sm:$0x1] %vm25, 0
    %81 = vst.msk [vmem:[#allocation2 + $0xe4] sm:$0xf] %vm22, 0
    %82 = vst.msk [vmem:[#allocation2 + $0xe8] sm:$0xf] %vm22, 0
    %83 = vst.msk [vmem:[#allocation2 + $0xec] sm:$0x1] %vm25, 0
    %84 = vst.msk [vmem:[#allocation2 + $0xf0] sm:$0xf] %vm22, 0
    %85 = vst.msk [vmem:[#allocation2 + $0xf4] sm:$0xf] %vm22, 0
    %86 = vst.msk [vmem:[#allocation2 + $0xf8] sm:$0x1] %vm25, 0
    %87 = vst.msk [vmem:[#allocation2 + $0xfc] sm:$0xf] %vm22, 0
    %88 = vst.msk [vmem:[#allocation2 + $0x100] sm:$0xf] %vm22, 0
    %89 = vst.msk [vmem:[#allocation2 + $0x104] sm:$0x1] %vm25, 0
    %90 = vst.msk [vmem:[#allocation2 + $0x108] sm:$0xf] %vm22, 0
    %91 = vst.msk [vmem:[#allocation2 + $0x10c] sm:$0xf] %vm22, 0
    %92 = vst.msk [vmem:[#allocation2 + $0x110] sm:$0x1] %vm25, 0
    %93 = vst.msk [vmem:[#allocation2 + $0x114] sm:$0xf] %vm22, 0
    %94 = vst.msk [vmem:[#allocation2 + $0x118] sm:$0xf] %vm22, 0
    %95 = vst.msk [vmem:[#allocation2 + $0x11c] sm:$0x1] %vm25, 0
    %96 = vst.msk [vmem:[#allocation2 + $0x120] sm:$0xf] %vm22, 0
    %97 = vst.msk [vmem:[#allocation2 + $0x124] sm:$0xf] %vm22, 0
    %98 = vst.msk [vmem:[#allocation2 + $0x128] sm:$0x1] %vm25, 0
    %99 = vst.msk [vmem:[#allocation2 + $0x12c] sm:$0xf] %vm22, 0
    %100 = vst.msk [vmem:[#allocation2 + $0x130] sm:$0xf] %vm22, 0
    %101 = vst.msk [vmem:[#allocation2 + $0x134] sm:$0x1] %vm25, 0
    %102 = vst.msk [vmem:[#allocation2 + $0x138] sm:$0xf] %vm22, 0
    %103 = vst.msk [vmem:[#allocation2 + $0x13c] sm:$0xf] %vm22, 0
    %104 = vst.msk [vmem:[#allocation2 + $0x140] sm:$0x1] %vm25, 0
    %105 = vst.msk [vmem:[#allocation2 + $0x144] sm:$0xf] %vm22, 0
    %106 = vst.msk [vmem:[#allocation2 + $0x148] sm:$0xf] %vm22, 0
    %107 = vst.msk [vmem:[#allocation2 + $0x14c] sm:$0x1] %vm25, 0
    %108 = vst.msk [vmem:[#allocation2 + $0x150] sm:$0xf] %vm22, 0
    %109 = vst.msk [vmem:[#allocation2 + $0x154] sm:$0xf] %vm22, 0
    %110 = vst.msk [vmem:[#allocation2 + $0x158] sm:$0x1] %vm25, 0
    %111 = vst.msk [vmem:[#allocation2 + $0x15c] sm:$0xf] %vm22, 0
    %112 = vst.msk [vmem:[#allocation2 + $0x160] sm:$0xf] %vm22, 0
    %113 = vst.msk [vmem:[#allocation2 + $0x164] sm:$0x1] %vm25, 0
    %114 = vst.msk [vmem:[#allocation2 + $0x168] sm:$0xf] %vm22, 0
    %115 = vst.msk [vmem:[#allocation2 + $0x16c] sm:$0xf] %vm22, 0
    %116 = vst.msk [vmem:[#allocation2 + $0x170] sm:$0x1] %vm25, 0
    %117 = vst.msk [vmem:[#allocation2 + $0x174] sm:$0xf] %vm22, 0
    %118 = vst.msk [vmem:[#allocation2 + $0x178] sm:$0xf] %vm22, 0
    %119 = vst.msk [vmem:[#allocation2 + $0x17c] sm:$0x1] %vm25, 0
    %120 = vst.msk [vmem:[#allocation2 + $0x180] sm:$0xf] %vm22, 0
    %121 = vst.msk [vmem:[#allocation2 + $0x184] sm:$0xf] %vm22, 0
    %122 = vst.msk [vmem:[#allocation2 + $0x188] sm:$0x1] %vm25, 0
    %123 = vst.msk [vmem:[#allocation2 + $0x18c] sm:$0xf] %vm22, 0
    %124 = vst.msk [vmem:[#allocation2 + $0x190] sm:$0xf] %vm22, 0
    %125 = vst.msk [vmem:[#allocation2 + $0x194] sm:$0x1] %vm25, 0
    %126 = vst.msk [vmem:[#allocation2 + $0x198] sm:$0xf] %vm22, 0
    %127 = vst.msk [vmem:[#allocation2 + $0x19c] sm:$0xf] %vm22, 0
    %128 = vst.msk [vmem:[#allocation2 + $0x1a0] sm:$0x1] %vm25, 0
    %129 = vst.msk [vmem:[#allocation2 + $0x1a4] sm:$0xf] %vm22, 0
    %130 = vst.msk [vmem:[#allocation2 + $0x1a8] sm:$0xf] %vm22, 0
    %131 = vst.msk [vmem:[#allocation2 + $0x1ac] sm:$0x1] %vm25, 0
    %v132 = vld [vmem:[%s0] sm:$0xf]
    %v133 = vld [vmem:[%s0 + $0x4] sm:$0xf]
    %v134 = vld [vmem:[%s0 + $0x8] sm:$0xf]
    %v135 = vld [vmem:[%s0 + $0xc] sm:$0xf]
    %v136 = vld [vmem:[%s0 + $0x10] sm:$0xf]
    %v137 = vld [vmem:[%s0 + $0x14] sm:$0xf]
    %v138 = vld [vmem:[%s0 + $0x18] sm:$0xf]
    %v139 = vld [vmem:[%s0 + $0x1c] sm:$0xf]
    %v140 = vld [vmem:[%s0 + $0x20] sm:$0xf]
    %v141 = vld [vmem:[%s0 + $0x24] sm:$0xf]
    %v142 = vld [vmem:[%s0 + $0x28] sm:$0xf]
    %v143 = vld [vmem:[%s0 + $0x2c] sm:$0xf]
    %v144 = vld [vmem:[%s0 + $0x30] sm:$0xf]
    %v145 = vld [vmem:[%s0 + $0x34] sm:$0xf]
    %v146 = vld [vmem:[%s0 + $0x38] sm:$0xf]
    %v147 = vld [vmem:[%s0 + $0x3c] sm:$0xf]
    %v148 = vld [vmem:[%s0 + $0x40] sm:$0xf]
    %v149 = vld [vmem:[%s0 + $0x44] sm:$0xf]
    %v150 = vld [vmem:[%s0 + $0x48] sm:$0xf]
    %v151 = vld [vmem:[%s0 + $0x4c] sm:$0xf]
    %v152 = vld [vmem:[%s0 + $0x50] sm:$0xf]
    %v153 = vld [vmem:[%s0 + $0x54] sm:$0xf]
    %v154 = vld [vmem:[%s0 + $0x58] sm:$0xf]
    %v155 = vld [vmem:[%s0 + $0x5c] sm:$0xf]
    %v156 = vld [vmem:[%s0 + $0x60] sm:$0xf]
    %v157 = vld [vmem:[%s0 + $0x64] sm:$0xf]
    %v158 = vld [vmem:[%s0 + $0x68] sm:$0xf]
    %v159 = vld [vmem:[%s0 + $0x6c] sm:$0xf]
    %v160 = vld [vmem:[%s0 + $0x70] sm:$0xf]
    %v161 = vld [vmem:[%s0 + $0x74] sm:$0xf]
    %v162 = vld [vmem:[%s0 + $0x78] sm:$0xf]
    %v163 = vld [vmem:[%s0 + $0x7c] sm:$0xf]
    %v164 = vld [vmem:[%s0 + $0x80] sm:$0xf]
    %v165 = vld [vmem:[%s0 + $0x84] sm:$0xf]
    %v166 = vld [vmem:[%s0 + $0x88] sm:$0xf]
    %v167 = vld [vmem:[%s0 + $0x8c] sm:$0xf]
    %v168 = vld [vmem:[%s0 + $0x90] sm:$0xf]
    %v169 = vld [vmem:[%s0 + $0x94] sm:$0xf]
    %v170 = vld [vmem:[%s0 + $0x98] sm:$0xf]
    %v171 = vld [vmem:[%s0 + $0x9c] sm:$0xf]
    %v172 = vld [vmem:[%s0 + $0xa0] sm:$0xf]
    %v173 = vld [vmem:[%s0 + $0xa4] sm:$0xf]
    %v174 = vld [vmem:[%s0 + $0xa8] sm:$0xf]
    %v175 = vld [vmem:[%s0 + $0xac] sm:$0xf]
    %v176 = vld [vmem:[%s0 + $0xb0] sm:$0xf]
    %v177 = vld [vmem:[%s0 + $0xb4] sm:$0xf]
    %v178 = vld [vmem:[%s0 + $0xb8] sm:$0xf]
    %v179 = vld [vmem:[%s0 + $0xbc] sm:$0xf]
    %v180 = vld [vmem:[%s0 + $0xc0] sm:$0xf]
    %v181 = vld [vmem:[%s0 + $0xc4] sm:$0xf]
    %v182 = vld [vmem:[%s0 + $0xc8] sm:$0xf]
    %v183 = vld [vmem:[%s0 + $0xcc] sm:$0xf]
    %v184 = vld [vmem:[%s0 + $0xd0] sm:$0xf]
    %v185 = vld [vmem:[%s0 + $0xd4] sm:$0xf]
    %v186 = vld [vmem:[%s0 + $0xd8] sm:$0xf]
    %v187 = vld [vmem:[%s0 + $0xdc] sm:$0xf]
    %v188 = vld [vmem:[%s0 + $0xe0] sm:$0xf]
    %v189 = vld [vmem:[%s0 + $0xe4] sm:$0xf]
    %v190 = vld [vmem:[%s0 + $0xe8] sm:$0xf]
    %v191 = vld [vmem:[%s0 + $0xec] sm:$0xf]
    %v192 = vld [vmem:[%s0 + $0xf0] sm:$0xf]
    %v193 = vld [vmem:[%s0 + $0xf4] sm:$0xf]
    %v194 = vld [vmem:[%s0 + $0xf8] sm:$0xf]
    %v195 = vld [vmem:[%s0 + $0xfc] sm:$0xf]
    %vm196 = vsmask.f32 256
    %vm197 = vsmask.f32 4368
    %vm198 = vmor %vm196, %vm197
    %v200 = vshrl.u32 %v132, 16
    %v202 = vrot.slane %v200, 7
    %v203 = vshll.u32 %v132, 16
    %v205 = vor.u32 %v202, %v203
    %v206 = vrot.slane %v202, 4
    %v208 = vshrl.u32 %v133, 16
    %v210 = vrot.slane %v208, 7
    %v211 = vshll.u32 %v133, 16
    %v213 = vor.u32 %v210, %v211
    %v214 = vsel %vm198, %v206, %v213
    %v215 = vrot.slane %v210, 4
    %v217 = vshrl.u32 %v134, 16
    %v219 = vrot.slane %v217, 7
    %v220 = vshll.u32 %v134, 16
    %v222 = vor.u32 %v219, %v220
    %v223 = vrot.slane %v219, 4
    %v225 = vshrl.u32 %v135, 16
    %v227 = vrot.slane %v225, 7
    %v228 = vshll.u32 %v135, 16
    %v230 = vor.u32 %v227, %v228
    %v231 = vsel %vm198, %v223, %v230
    %v232 = vrot.slane %v227, 4
    %v234 = vshrl.u32 %v136, 16
    %v236 = vrot.slane %v234, 7
    %v237 = vshll.u32 %v136, 16
    %v239 = vor.u32 %v236, %v237
    %v240 = vrot.slane %v236, 4
    %v242 = vshrl.u32 %v137, 16
    %v244 = vrot.slane %v242, 7
    %v245 = vshll.u32 %v137, 16
    %v247 = vor.u32 %v244, %v245
    %v248 = vsel %vm198, %v240, %v247
    %v249 = vrot.slane %v244, 4
    %v251 = vshrl.u32 %v138, 16
    %v253 = vrot.slane %v251, 7
    %v254 = vshll.u32 %v138, 16
    %v256 = vor.u32 %v253, %v254
    %v257 = vrot.slane %v253, 4
    %v259 = vshrl.u32 %v139, 16
    %v261 = vrot.slane %v259, 7
    %v262 = vshll.u32 %v139, 16
    %v264 = vor.u32 %v261, %v262
    %v265 = vsel %vm198, %v257, %v264
    %v266 = vrot.slane %v261, 4
    %v268 = vshrl.u32 %v140, 16
    %v270 = vrot.slane %v268, 7
    %v271 = vshll.u32 %v140, 16
    %v273 = vor.u32 %v270, %v271
    %v274 = vrot.slane %v270, 4
    %v276 = vshrl.u32 %v141, 16
    %v278 = vrot.slane %v276, 7
    %v279 = vshll.u32 %v141, 16
    %v281 = vor.u32 %v278, %v279
    %v282 = vsel %vm198, %v274, %v281
    %v283 = vrot.slane %v278, 4
    %v285 = vshrl.u32 %v142, 16
    %v287 = vrot.slane %v285, 7
    %v288 = vshll.u32 %v142, 16
    %v290 = vor.u32 %v287, %v288
    %v291 = vrot.slane %v287, 4
    %v293 = vshrl.u32 %v143, 16
    %v295 = vrot.slane %v293, 7
    %v296 = vshll.u32 %v143, 16
    %v298 = vor.u32 %v295, %v296
    %v299 = vsel %vm198, %v291, %v298
    %v300 = vrot.slane %v295, 4
    %v302 = vshrl.u32 %v144, 16
    %v304 = vrot.slane %v302, 7
    %v305 = vshll.u32 %v144, 16
    %v307 = vor.u32 %v304, %v305
    %v308 = vrot.slane %v304, 4
    %v310 = vshrl.u32 %v145, 16
    %v312 = vrot.slane %v310, 7
    %v313 = vshll.u32 %v145, 16
    %v315 = vor.u32 %v312, %v313
    %v316 = vsel %vm198, %v308, %v315
    %v317 = vrot.slane %v312, 4
    %v319 = vshrl.u32 %v146, 16
    %v321 = vrot.slane %v319, 7
    %v322 = vshll.u32 %v146, 16
    %v324 = vor.u32 %v321, %v322
    %v325 = vrot.slane %v321, 4
    %v327 = vshrl.u32 %v147, 16
    %v329 = vrot.slane %v327, 7
    %v330 = vshll.u32 %v147, 16
    %v332 = vor.u32 %v329, %v330
    %v333 = vsel %vm198, %v325, %v332
    %v334 = vrot.slane %v329, 4
    %v336 = vshrl.u32 %v148, 16
    %v338 = vrot.slane %v336, 7
    %v339 = vshll.u32 %v148, 16
    %v341 = vor.u32 %v338, %v339
    %v342 = vrot.slane %v338, 4
    %v344 = vshrl.u32 %v149, 16
    %v346 = vrot.slane %v344, 7
    %v347 = vshll.u32 %v149, 16
    %v349 = vor.u32 %v346, %v347
    %v350 = vsel %vm198, %v342, %v349
    %v351 = vrot.slane %v346, 4
    %v353 = vshrl.u32 %v150, 16
    %v355 = vrot.slane %v353, 7
    %v356 = vshll.u32 %v150, 16
    %v358 = vor.u32 %v355, %v356
    %v359 = vrot.slane %v355, 4
    %v361 = vshrl.u32 %v151, 16
    %v363 = vrot.slane %v361, 7
    %v364 = vshll.u32 %v151, 16
    %v366 = vor.u32 %v363, %v364
    %v367 = vsel %vm198, %v359, %v366
    %v368 = vrot.slane %v363, 4
    %v370 = vshrl.u32 %v152, 16
    %v372 = vrot.slane %v370, 7
    %v373 = vshll.u32 %v152, 16
    %v375 = vor.u32 %v372, %v373
    %v376 = vrot.slane %v372, 4
    %v378 = vshrl.u32 %v153, 16
    %v380 = vrot.slane %v378, 7
    %v381 = vshll.u32 %v153, 16
    %v383 = vor.u32 %v380, %v381
    %v384 = vsel %vm198, %v376, %v383
    %v385 = vrot.slane %v380, 4
    %v387 = vshrl.u32 %v154, 16
    %v389 = vrot.slane %v387, 7
    %v390 = vshll.u32 %v154, 16
    %v392 = vor.u32 %v389, %v390
    %v393 = vrot.slane %v389, 4
    %v395 = vshrl.u32 %v155, 16
    %v397 = vrot.slane %v395, 7
    %v398 = vshll.u32 %v155, 16
    %v400 = vor.u32 %v397, %v398
    %v401 = vsel %vm198, %v393, %v400
    %v402 = vrot.slane %v397, 4
    %v404 = vshrl.u32 %v156, 16
    %v406 = vrot.slane %v404, 7
    %v407 = vshll.u32 %v156, 16
    %v409 = vor.u32 %v406, %v407
    %v410 = vrot.slane %v406, 4
    %v412 = vshrl.u32 %v157, 16
    %v414 = vrot.slane %v412, 7
    %v415 = vshll.u32 %v157, 16
    %v417 = vor.u32 %v414, %v415
    %v418 = vsel %vm198, %v410, %v417
    %v419 = vrot.slane %v414, 4
    %v421 = vshrl.u32 %v158, 16
    %v423 = vrot.slane %v421, 7
    %v424 = vshll.u32 %v158, 16
    %v426 = vor.u32 %v423, %v424
    %v427 = vrot.slane %v423, 4
    %v429 = vshrl.u32 %v159, 16
    %v431 = vrot.slane %v429, 7
    %v432 = vshll.u32 %v159, 16
    %v434 = vor.u32 %v431, %v432
    %v435 = vsel %vm198, %v427, %v434
    %v436 = vrot.slane %v431, 4
    %v438 = vshrl.u32 %v160, 16
    %v440 = vrot.slane %v438, 7
    %v441 = vshll.u32 %v160, 16
    %v443 = vor.u32 %v440, %v441
    %v444 = vrot.slane %v440, 4
    %v446 = vshrl.u32 %v161, 16
    %v448 = vrot.slane %v446, 7
    %v449 = vshll.u32 %v161, 16
    %v451 = vor.u32 %v448, %v449
    %v452 = vsel %vm198, %v444, %v451
    %v453 = vrot.slane %v448, 4
    %v455 = vshrl.u32 %v162, 16
    %v457 = vrot.slane %v455, 7
    %v458 = vshll.u32 %v162, 16
    %v460 = vor.u32 %v457, %v458
    %v461 = vrot.slane %v457, 4
    %v463 = vshrl.u32 %v163, 16
    %v465 = vrot.slane %v463, 7
    %v466 = vshll.u32 %v163, 16
    %v468 = vor.u32 %v465, %v466
    %v469 = vsel %vm198, %v461, %v468
    %v470 = vrot.slane %v465, 4
    %v472 = vshrl.u32 %v164, 16
    %v474 = vrot.slane %v472, 7
    %v475 = vshll.u32 %v164, 16
    %v477 = vor.u32 %v474, %v475
    %v478 = vrot.slane %v474, 4
    %v480 = vshrl.u32 %v165, 16
    %v482 = vrot.slane %v480, 7
    %v483 = vshll.u32 %v165, 16
    %v485 = vor.u32 %v482, %v483
    %v486 = vsel %vm198, %v478, %v485
    %v487 = vrot.slane %v482, 4
    %v489 = vshrl.u32 %v166, 16
    %v491 = vrot.slane %v489, 7
    %v492 = vshll.u32 %v166, 16
    %v494 = vor.u32 %v491, %v492
    %v495 = vrot.slane %v491, 4
    %v497 = vshrl.u32 %v167, 16
    %v499 = vrot.slane %v497, 7
    %v500 = vshll.u32 %v167, 16
    %v502 = vor.u32 %v499, %v500
    %v503 = vsel %vm198, %v495, %v502
    %v504 = vrot.slane %v499, 4
    %v506 = vshrl.u32 %v168, 16
    %v508 = vrot.slane %v506, 7
    %v509 = vshll.u32 %v168, 16
    %v511 = vor.u32 %v508, %v509
    %v512 = vrot.slane %v508, 4
    %v514 = vshrl.u32 %v169, 16
    %v516 = vrot.slane %v514, 7
    %v517 = vshll.u32 %v169, 16
    %v519 = vor.u32 %v516, %v517
    %v520 = vsel %vm198, %v512, %v519
    %v521 = vrot.slane %v516, 4
    %v523 = vshrl.u32 %v170, 16
    %v525 = vrot.slane %v523, 7
    %v526 = vshll.u32 %v170, 16
    %v528 = vor.u32 %v525, %v526
    %v529 = vrot.slane %v525, 4
    %v531 = vshrl.u32 %v171, 16
    %v533 = vrot.slane %v531, 7
    %v534 = vshll.u32 %v171, 16
    %v536 = vor.u32 %v533, %v534
    %v537 = vsel %vm198, %v529, %v536
    %v538 = vrot.slane %v533, 4
    %v540 = vshrl.u32 %v172, 16
    %v542 = vrot.slane %v540, 7
    %v543 = vshll.u32 %v172, 16
    %v545 = vor.u32 %v542, %v543
    %v546 = vrot.slane %v542, 4
    %v548 = vshrl.u32 %v173, 16
    %v550 = vrot.slane %v548, 7
    %v551 = vshll.u32 %v173, 16
    %v553 = vor.u32 %v550, %v551
    %v554 = vsel %vm198, %v546, %v553
    %v555 = vrot.slane %v550, 4
    %v557 = vshrl.u32 %v174, 16
    %v559 = vrot.slane %v557, 7
    %v560 = vshll.u32 %v174, 16
    %v562 = vor.u32 %v559, %v560
    %v563 = vrot.slane %v559, 4
    %v565 = vshrl.u32 %v175, 16
    %v567 = vrot.slane %v565, 7
    %v568 = vshll.u32 %v175, 16
    %v570 = vor.u32 %v567, %v568
    %v571 = vsel %vm198, %v563, %v570
    %v572 = vrot.slane %v567, 4
    %v574 = vshrl.u32 %v176, 16
    %v576 = vrot.slane %v574, 7
    %v577 = vshll.u32 %v176, 16
    %v579 = vor.u32 %v576, %v577
    %v580 = vrot.slane %v576, 4
    %v582 = vshrl.u32 %v177, 16
    %v584 = vrot.slane %v582, 7
    %v585 = vshll.u32 %v177, 16
    %v587 = vor.u32 %v584, %v585
    %v588 = vsel %vm198, %v580, %v587
    %v589 = vrot.slane %v584, 4
    %v591 = vshrl.u32 %v178, 16
    %v593 = vrot.slane %v591, 7
    %v594 = vshll.u32 %v178, 16
    %v596 = vor.u32 %v593, %v594
    %v597 = vrot.slane %v593, 4
    %v599 = vshrl.u32 %v179, 16
    %v601 = vrot.slane %v599, 7
    %v602 = vshll.u32 %v179, 16
    %v604 = vor.u32 %v601, %v602
    %v605 = vsel %vm198, %v597, %v604
    %v606 = vrot.slane %v601, 4
    %v608 = vshrl.u32 %v180, 16
    %v610 = vrot.slane %v608, 7
    %v611 = vshll.u32 %v180, 16
    %v613 = vor.u32 %v610, %v611
    %v614 = vrot.slane %v610, 4
    %v616 = vshrl.u32 %v181, 16
    %v618 = vrot.slane %v616, 7
    %v619 = vshll.u32 %v181, 16
    %v621 = vor.u32 %v618, %v619
    %v622 = vsel %vm198, %v614, %v621
    %v623 = vrot.slane %v618, 4
    %v625 = vshrl.u32 %v182, 16
    %v627 = vrot.slane %v625, 7
    %v628 = vshll.u32 %v182, 16
    %v630 = vor.u32 %v627, %v628
    %v631 = vrot.slane %v627, 4
    %v633 = vshrl.u32 %v183, 16
    %v635 = vrot.slane %v633, 7
    %v636 = vshll.u32 %v183, 16
    %v638 = vor.u32 %v635, %v636
    %v639 = vsel %vm198, %v631, %v638
    %v640 = vrot.slane %v635, 4
    %v642 = vshrl.u32 %v184, 16
    %v644 = vrot.slane %v642, 7
    %v645 = vshll.u32 %v184, 16
    %v647 = vor.u32 %v644, %v645
    %v648 = vrot.slane %v644, 4
    %v650 = vshrl.u32 %v185, 16
    %v652 = vrot.slane %v650, 7
    %v653 = vshll.u32 %v185, 16
    %v655 = vor.u32 %v652, %v653
    %v656 = vsel %vm198, %v648, %v655
    %v657 = vrot.slane %v652, 4
    %v659 = vshrl.u32 %v186, 16
    %v661 = vrot.slane %v659, 7
    %v662 = vshll.u32 %v186, 16
    %v664 = vor.u32 %v661, %v662
    %v665 = vrot.slane %v661, 4
    %v667 = vshrl.u32 %v187, 16
    %v669 = vrot.slane %v667, 7
    %v670 = vshll.u32 %v187, 16
    %v672 = vor.u32 %v669, %v670
    %v673 = vsel %vm198, %v665, %v672
    %v674 = vrot.slane %v669, 4
    %v676 = vshrl.u32 %v188, 16
    %v678 = vrot.slane %v676, 7
    %v679 = vshll.u32 %v188, 16
    %v681 = vor.u32 %v678, %v679
    %v682 = vrot.slane %v678, 4
    %v684 = vshrl.u32 %v189, 16
    %v686 = vrot.slane %v684, 7
    %v687 = vshll.u32 %v189, 16
    %v689 = vor.u32 %v686, %v687
    %v690 = vsel %vm198, %v682, %v689
    %v691 = vrot.slane %v686, 4
    %v693 = vshrl.u32 %v190, 16
    %v695 = vrot.slane %v693, 7
    %v696 = vshll.u32 %v190, 16
    %v698 = vor.u32 %v695, %v696
    %v699 = vrot.slane %v695, 4
    %v701 = vshrl.u32 %v191, 16
    %v703 = vrot.slane %v701, 7
    %v704 = vshll.u32 %v191, 16
    %v706 = vor.u32 %v703, %v704
    %v707 = vsel %vm198, %v699, %v706
    %v708 = vrot.slane %v703, 4
    %v710 = vshrl.u32 %v192, 16
    %v712 = vrot.slane %v710, 7
    %v713 = vshll.u32 %v192, 16
    %v715 = vor.u32 %v712, %v713
    %v716 = vrot.slane %v712, 4
    %v718 = vshrl.u32 %v193, 16
    %v720 = vrot.slane %v718, 7
    %v721 = vshll.u32 %v193, 16
    %v723 = vor.u32 %v720, %v721
    %v724 = vsel %vm198, %v716, %v723
    %v725 = vrot.slane %v720, 4
    %v727 = vshrl.u32 %v194, 16
    %v729 = vrot.slane %v727, 7
    %v730 = vshll.u32 %v194, 16
    %v732 = vor.u32 %v729, %v730
    %v733 = vrot.slane %v729, 4
    %v735 = vshrl.u32 %v195, 16
    %v737 = vrot.slane %v735, 7
    %v738 = vshll.u32 %v195, 16
    %v740 = vor.u32 %v737, %v738
    %v741 = vsel %vm198, %v733, %v740
    %v742 = vrot.slane %v737, 4
    %s839 = scalar_lea.vmem [#allocation2], 12
    %vm840 = vcmask 289792
    %vm841 = vsmask.f32 7938
    %vm842 = vmand %vm840, %vm841
    %v843 = vld [vmem:[%s839] sm:$0xf]
    %v844 = vsel %vm842, %v205, %v843
    %845 = vst [vmem:[%s839] sm:$0xf] %v844
    %846 = vst.msk [vmem:[%s839 + $0x4] sm:$0xf] %vm22, %v214
    %vm847 = vcmask 286720
    %vm848 = vmand %vm847, %vm196
    %v849 = vld [vmem:[%s839 + $0x8] sm:$0x1]
    %v850 = vsel %vm848, %v215, %v849
    %851 = vst [vmem:[%s839 + $0x8] sm:$0x1] %v850
    %v852 = vld [vmem:[%s839 + $0xc] sm:$0xf]
    %v853 = vsel %vm842, %v222, %v852
    %854 = vst [vmem:[%s839 + $0xc] sm:$0xf] %v853
    %855 = vst.msk [vmem:[%s839 + $0x10] sm:$0xf] %vm22, %v231
    %v856 = vld [vmem:[%s839 + $0x14] sm:$0x1]
    %v857 = vsel %vm848, %v232, %v856
    %858 = vst [vmem:[%s839 + $0x14] sm:$0x1] %v857
    %v859 = vld [vmem:[%s839 + $0x18] sm:$0xf]
    %v860 = vsel %vm842, %v239, %v859
    %861 = vst [vmem:[%s839 + $0x18] sm:$0xf] %v860
    %862 = vst.msk [vmem:[%s839 + $0x1c] sm:$0xf] %vm22, %v248
    %v863 = vld [vmem:[%s839 + $0x20] sm:$0x1]
    %v864 = vsel %vm848, %v249, %v863
    %865 = vst [vmem:[%s839 + $0x20] sm:$0x1] %v864
    %v866 = vld [vmem:[%s839 + $0x24] sm:$0xf]
    %v867 = vsel %vm842, %v256, %v866
    %868 = vst [vmem:[%s839 + $0x24] sm:$0xf] %v867
    %869 = vst.msk [vmem:[%s839 + $0x28] sm:$0xf] %vm22, %v265
    %v870 = vld [vmem:[%s839 + $0x2c] sm:$0x1]
    %v871 = vsel %vm848, %v266, %v870
    %872 = vst [vmem:[%s839 + $0x2c] sm:$0x1] %v871
    %v873 = vld [vmem:[%s839 + $0x30] sm:$0xf]
    %v874 = vsel %vm842, %v273, %v873
    %875 = vst [vmem:[%s839 + $0x30] sm:$0xf] %v874
    %876 = vst.msk [vmem:[%s839 + $0x34] sm:$0xf] %vm22, %v282
    %v877 = vld [vmem:[%s839 + $0x38] sm:$0x1]
    %v878 = vsel %vm848, %v283, %v877
    %879 = vst [vmem:[%s839 + $0x38] sm:$0x1] %v878
    %v880 = vld [vmem:[%s839 + $0x3c] sm:$0xf]
    %v881 = vsel %vm842, %v290, %v880
    %882 = vst [vmem:[%s839 + $0x3c] sm:$0xf] %v881
    %883 = vst.msk [vmem:[%s839 + $0x40] sm:$0xf] %vm22, %v299
    %v884 = vld [vmem:[%s839 + $0x44] sm:$0x1]
    %v885 = vsel %vm848, %v300, %v884
    %886 = vst [vmem:[%s839 + $0x44] sm:$0x1] %v885
    %v887 = vld [vmem:[%s839 + $0x48] sm:$0xf]
    %v888 = vsel %vm842, %v307, %v887
    %889 = vst [vmem:[%s839 + $0x48] sm:$0xf] %v888
    %890 = vst.msk [vmem:[%s839 + $0x4c] sm:$0xf] %vm22, %v316
    %v891 = vld [vmem:[%s839 + $0x50] sm:$0x1]
    %v892 = vsel %vm848, %v317, %v891
    %893 = vst [vmem:[%s839 + $0x50] sm:$0x1] %v892
    %v894 = vld [vmem:[%s839 + $0x54] sm:$0xf]
    %v895 = vsel %vm842, %v324, %v894
    %896 = vst [vmem:[%s839 + $0x54] sm:$0xf] %v895
    %897 = vst.msk [vmem:[%s839 + $0x58] sm:$0xf] %vm22, %v333
    %v898 = vld [vmem:[%s839 + $0x5c] sm:$0x1]
    %v899 = vsel %vm848, %v334, %v898
    %900 = vst [vmem:[%s839 + $0x5c] sm:$0x1] %v899
    %v901 = vld [vmem:[%s839 + $0x60] sm:$0xf]
    %v902 = vsel %vm842, %v341, %v901
    %903 = vst [vmem:[%s839 + $0x60] sm:$0xf] %v902
    %904 = vst.msk [vmem:[%s839 + $0x64] sm:$0xf] %vm22, %v350
    %v905 = vld [vmem:[%s839 + $0x68] sm:$0x1]
    %v906 = vsel %vm848, %v351, %v905
    %907 = vst [vmem:[%s839 + $0x68] sm:$0x1] %v906
    %v908 = vld [vmem:[%s839 + $0x6c] sm:$0xf]
    %v909 = vsel %vm842, %v358, %v908
    %910 = vst [vmem:[%s839 + $0x6c] sm:$0xf] %v909
    %911 = vst.msk [vmem:[%s839 + $0x70] sm:$0xf] %vm22, %v367
    %v912 = vld [vmem:[%s839 + $0x74] sm:$0x1]
    %v913 = vsel %vm848, %v368, %v912
    %914 = vst [vmem:[%s839 + $0x74] sm:$0x1] %v913
    %v915 = vld [vmem:[%s839 + $0x78] sm:$0xf]
    %v916 = vsel %vm842, %v375, %v915
    %917 = vst [vmem:[%s839 + $0x78] sm:$0xf] %v916
    %918 = vst.msk [vmem:[%s839 + $0x7c] sm:$0xf] %vm22, %v384
    %v919 = vld [vmem:[%s839 + $0x80] sm:$0x1]
    %v920 = vsel %vm848, %v385, %v919
    %921 = vst [vmem:[%s839 + $0x80] sm:$0x1] %v920
    %v922 = vld [vmem:[%s839 + $0x84] sm:$0xf]
    %v923 = vsel %vm842, %v392, %v922
    %924 = vst [vmem:[%s839 + $0x84] sm:$0xf] %v923
    %925 = vst.msk [vmem:[%s839 + $0x88] sm:$0xf] %vm22, %v401
    %v926 = vld [vmem:[%s839 + $0x8c] sm:$0x1]
    %v927 = vsel %vm848, %v402, %v926
    %928 = vst [vmem:[%s839 + $0x8c] sm:$0x1] %v927
    %v929 = vld [vmem:[%s839 + $0x90] sm:$0xf]
    %v930 = vsel %vm842, %v409, %v929
    %931 = vst [vmem:[%s839 + $0x90] sm:$0xf] %v930
    %932 = vst.msk [vmem:[%s839 + $0x94] sm:$0xf] %vm22, %v418
    %v933 = vld [vmem:[%s839 + $0x98] sm:$0x1]
    %v934 = vsel %vm848, %v419, %v933
    %935 = vst [vmem:[%s839 + $0x98] sm:$0x1] %v934
    %v936 = vld [vmem:[%s839 + $0x9c] sm:$0xf]
    %v937 = vsel %vm842, %v426, %v936
    %938 = vst [vmem:[%s839 + $0x9c] sm:$0xf] %v937
    %939 = vst.msk [vmem:[%s839 + $0xa0] sm:$0xf] %vm22, %v435
    %v940 = vld [vmem:[%s839 + $0xa4] sm:$0x1]
    %v941 = vsel %vm848, %v436, %v940
    %942 = vst [vmem:[%s839 + $0xa4] sm:$0x1] %v941
    %v943 = vld [vmem:[%s839 + $0xa8] sm:$0xf]
    %v944 = vsel %vm842, %v443, %v943
    %945 = vst [vmem:[%s839 + $0xa8] sm:$0xf] %v944
    %946 = vst.msk [vmem:[%s839 + $0xac] sm:$0xf] %vm22, %v452
    %v947 = vld [vmem:[%s839 + $0xb0] sm:$0x1]
    %v948 = vsel %vm848, %v453, %v947
    %949 = vst [vmem:[%s839 + $0xb0] sm:$0x1] %v948
    %v950 = vld [vmem:[%s839 + $0xb4] sm:$0xf]
    %v951 = vsel %vm842, %v460, %v950
    %952 = vst [vmem:[%s839 + $0xb4] sm:$0xf] %v951
    %953 = vst.msk [vmem:[%s839 + $0xb8] sm:$0xf] %vm22, %v469
    %v954 = vld [vmem:[%s839 + $0xbc] sm:$0x1]
    %v955 = vsel %vm848, %v470, %v954
    %956 = vst [vmem:[%s839 + $0xbc] sm:$0x1] %v955
    %v957 = vld [vmem:[%s839 + $0xd8] sm:$0xf]
    %v958 = vsel %vm842, %v477, %v957
    %959 = vst [vmem:[%s839 + $0xd8] sm:$0xf] %v958
    %960 = vst.msk [vmem:[%s839 + $0xdc] sm:$0xf] %vm22, %v486
    %v961 = vld [vmem:[%s839 + $0xe0] sm:$0x1]
    %v962 = vsel %vm848, %v487, %v961
    %963 = vst [vmem:[%s839 + $0xe0] sm:$0x1] %v962
    %v964 = vld [vmem:[%s839 + $0xe4] sm:$0xf]
    %v965 = vsel %vm842, %v494, %v964
    %966 = vst [vmem:[%s839 + $0xe4] sm:$0xf] %v965
    %967 = vst.msk [vmem:[%s839 + $0xe8] sm:$0xf] %vm22, %v503
    %v968 = vld [vmem:[%s839 + $0xec] sm:$0x1]
    %v969 = vsel %vm848, %v504, %v968
    %970 = vst [vmem:[%s839 + $0xec] sm:$0x1] %v969
    %v971 = vld [vmem:[%s839 + $0xf0] sm:$0xf]
    %v972 = vsel %vm842, %v511, %v971
    %973 = vst [vmem:[%s839 + $0xf0] sm:$0xf] %v972
    %974 = vst.msk [vmem:[%s839 + $0xf4] sm:$0xf] %vm22, %v520
    %v975 = vld [vmem:[%s839 + $0xf8] sm:$0x1]
    %v976 = vsel %vm848, %v521, %v975
    %977 = vst [vmem:[%s839 + $0xf8] sm:$0x1] %v976
    %v978 = vld [vmem:[%s839 + $0xfc] sm:$0xf]
    %v979 = vsel %vm842, %v528, %v978
    %980 = vst [vmem:[%s839 + $0xfc] sm:$0xf] %v979
    %981 = vst.msk [vmem:[%s839 + $0x100] sm:$0xf] %vm22, %v537
    %v982 = vld [vmem:[%s839 + $0x104] sm:$0x1]
    %v983 = vsel %vm848, %v538, %v982
    %984 = vst [vmem:[%s839 + $0x104] sm:$0x1] %v983
    %v985 = vld [vmem:[%s839 + $0x108] sm:$0xf]
    %v986 = vsel %vm842, %v545, %v985
    %987 = vst [vmem:[%s839 + $0x108] sm:$0xf] %v986
    %988 = vst.msk [vmem:[%s839 + $0x10c] sm:$0xf] %vm22, %v554
    %v989 = vld [vmem:[%s839 + $0x110] sm:$0x1]
    %v990 = vsel %vm848, %v555, %v989
    %991 = vst [vmem:[%s839 + $0x110] sm:$0x1] %v990
    %v992 = vld [vmem:[%s839 + $0x114] sm:$0xf]
    %v993 = vsel %vm842, %v562, %v992
    %994 = vst [vmem:[%s839 + $0x114] sm:$0xf] %v993
    %995 = vst.msk [vmem:[%s839 + $0x118] sm:$0xf] %vm22, %v571
    %v996 = vld [vmem:[%s839 + $0x11c] sm:$0x1]
    %v997 = vsel %vm848, %v572, %v996
    %998 = vst [vmem:[%s839 + $0x11c] sm:$0x1] %v997
    %v999 = vld [vmem:[%s839 + $0x120] sm:$0xf]
    %v1000 = vsel %vm842, %v579, %v999
    %1001 = vst [vmem:[%s839 + $0x120] sm:$0xf] %v1000
    %1002 = vst.msk [vmem:[%s839 + $0x124] sm:$0xf] %vm22, %v588
    %v1003 = vld [vmem:[%s839 + $0x128] sm:$0x1]
    %v1004 = vsel %vm848, %v589, %v1003
    %1005 = vst [vmem:[%s839 + $0x128] sm:$0x1] %v1004
    %v1006 = vld [vmem:[%s839 + $0x12c] sm:$0xf]
    %v1007 = vsel %vm842, %v596, %v1006
    %1008 = vst [vmem:[%s839 + $0x12c] sm:$0xf] %v1007
    %1009 = vst.msk [vmem:[%s839 + $0x130] sm:$0xf] %vm22, %v605
    %v1010 = vld [vmem:[%s839 + $0x134] sm:$0x1]
    %v1011 = vsel %vm848, %v606, %v1010
    %1012 = vst [vmem:[%s839 + $0x134] sm:$0x1] %v1011
    %v1013 = vld [vmem:[%s839 + $0x138] sm:$0xf]
    %v1014 = vsel %vm842, %v613, %v1013
    %1015 = vst [vmem:[%s839 + $0x138] sm:$0xf] %v1014
    %1016 = vst.msk [vmem:[%s839 + $0x13c] sm:$0xf] %vm22, %v622
    %v1017 = vld [vmem:[%s839 + $0x140] sm:$0x1]
    %v1018 = vsel %vm848, %v623, %v1017
    %1019 = vst [vmem:[%s839 + $0x140] sm:$0x1] %v1018
    %v1020 = vld [vmem:[%s839 + $0x144] sm:$0xf]
    %v1021 = vsel %vm842, %v630, %v1020
    %1022 = vst [vmem:[%s839 + $0x144] sm:$0xf] %v1021
    %1023 = vst.msk [vmem:[%s839 + $0x148] sm:$0xf] %vm22, %v639
    %v1024 = vld [vmem:[%s839 + $0x14c] sm:$0x1]
    %v1025 = vsel %vm848, %v640, %v1024
    %1026 = vst [vmem:[%s839 + $0x14c] sm:$0x1] %v1025
    %v1027 = vld [vmem:[%s839 + $0x150] sm:$0xf]
    %v1028 = vsel %vm842, %v647, %v1027
    %1029 = vst [vmem:[%s839 + $0x150] sm:$0xf] %v1028
    %1030 = vst.msk [vmem:[%s839 + $0x154] sm:$0xf] %vm22, %v656
    %v1031 = vld [vmem:[%s839 + $0x158] sm:$0x1]
    %v1032 = vsel %vm848, %v657, %v1031
    %1033 = vst [vmem:[%s839 + $0x158] sm:$0x1] %v1032
    %v1034 = vld [vmem:[%s839 + $0x15c] sm:$0xf]
    %v1035 = vsel %vm842, %v664, %v1034
    %1036 = vst [vmem:[%s839 + $0x15c] sm:$0xf] %v1035
    %1037 = vst.msk [vmem:[%s839 + $0x160] sm:$0xf] %vm22, %v673
    %v1038 = vld [vmem:[%s839 + $0x164] sm:$0x1]
    %v1039 = vsel %vm848, %v674, %v1038
    %1040 = vst [vmem:[%s839 + $0x164] sm:$0x1] %v1039
    %v1041 = vld [vmem:[%s839 + $0x168] sm:$0xf]
    %v1042 = vsel %vm842, %v681, %v1041
    %1043 = vst [vmem:[%s839 + $0x168] sm:$0xf] %v1042
    %1044 = vst.msk [vmem:[%s839 + $0x16c] sm:$0xf] %vm22, %v690
    %v1045 = vld [vmem:[%s839 + $0x170] sm:$0x1]
    %v1046 = vsel %vm848, %v691, %v1045
    %1047 = vst [vmem:[%s839 + $0x170] sm:$0x1] %v1046
    %v1048 = vld [vmem:[%s839 + $0x174] sm:$0xf]
    %v1049 = vsel %vm842, %v698, %v1048
    %1050 = vst [vmem:[%s839 + $0x174] sm:$0xf] %v1049
    %1051 = vst.msk [vmem:[%s839 + $0x178] sm:$0xf] %vm22, %v707
    %v1052 = vld [vmem:[%s839 + $0x17c] sm:$0x1]
    %v1053 = vsel %vm848, %v708, %v1052
    %1054 = vst [vmem:[%s839 + $0x17c] sm:$0x1] %v1053
    %v1055 = vld [vmem:[%s839 + $0x180] sm:$0xf]
    %v1056 = vsel %vm842, %v715, %v1055
    %1057 = vst [vmem:[%s839 + $0x180] sm:$0xf] %v1056
    %1058 = vst.msk [vmem:[%s839 + $0x184] sm:$0xf] %vm22, %v724
    %v1059 = vld [vmem:[%s839 + $0x188] sm:$0x1]
    %v1060 = vsel %vm848, %v725, %v1059
    %1061 = vst [vmem:[%s839 + $0x188] sm:$0x1] %v1060
    %v1062 = vld [vmem:[%s839 + $0x18c] sm:$0xf]
    %v1063 = vsel %vm842, %v732, %v1062
    %1064 = vst [vmem:[%s839 + $0x18c] sm:$0xf] %v1063
    %1065 = vst.msk [vmem:[%s839 + $0x190] sm:$0xf] %vm22, %v741
    %v1066 = vld [vmem:[%s839 + $0x194] sm:$0x1]
    %v1067 = vsel %vm848, %v742, %v1066
    %1068 = vst [vmem:[%s839 + $0x194] sm:$0x1] %v1067
    %v1069 = vld [vmem:[#allocation2] sm:$0xf]
    %v1070 = vld [vmem:[#allocation2 + $0x4] sm:$0xf]
    %v1071 = vld [vmem:[#allocation2 + $0xc] sm:$0xf]
    %v1072 = vld [vmem:[#allocation2 + $0x10] sm:$0xf]
    %v1073 = vld [vmem:[#allocation2 + $0x18] sm:$0xf]
    %v1074 = vld [vmem:[#allocation2 + $0x1c] sm:$0xf]
    %v1075 = vld [vmem:[#allocation2 + $0x24] sm:$0xf]
    %v1076 = vld [vmem:[#allocation2 + $0x28] sm:$0xf]
    %v1077 = vld [vmem:[#allocation2 + $0x30] sm:$0xf]
    %v1078 = vld [vmem:[#allocation2 + $0x34] sm:$0xf]
    %v1079 = vld [vmem:[#allocation2 + $0x3c] sm:$0xf]
    %v1080 = vld [vmem:[#allocation2 + $0x40] sm:$0xf]
    %v1081 = vld [vmem:[#allocation2 + $0x48] sm:$0xf]
    %v1082 = vld [vmem:[#allocation2 + $0x4c] sm:$0xf]
    %v1083 = vld [vmem:[#allocation2 + $0x54] sm:$0xf]
    %v1084 = vld [vmem:[#allocation2 + $0x58] sm:$0xf]
    %v1085 = vld [vmem:[#allocation2 + $0x60] sm:$0xf]
    %v1086 = vld [vmem:[#allocation2 + $0x64] sm:$0xf]
    %v1087 = vld [vmem:[#allocation2 + $0x6c] sm:$0xf]
    %v1088 = vld [vmem:[#allocation2 + $0x70] sm:$0xf]
    %v1089 = vld [vmem:[#allocation2 + $0x78] sm:$0xf]
    %v1090 = vld [vmem:[#allocation2 + $0x7c] sm:$0xf]
    %v1091 = vld [vmem:[#allocation2 + $0x84] sm:$0xf]
    %v1092 = vld [vmem:[#allocation2 + $0x88] sm:$0xf]
    %v1093 = vld [vmem:[#allocation2 + $0x90] sm:$0xf]
    %v1094 = vld [vmem:[#allocation2 + $0x94] sm:$0xf]
    %v1095 = vld [vmem:[#allocation2 + $0x9c] sm:$0xf]
    %v1096 = vld [vmem:[#allocation2 + $0xa0] sm:$0xf]
    %v1097 = vld [vmem:[#allocation2 + $0xa8] sm:$0xf]
    %v1098 = vld [vmem:[#allocation2 + $0xac] sm:$0xf]
    %v1099 = vld [vmem:[#allocation2 + $0xb4] sm:$0xf]
    %v1100 = vld [vmem:[#allocation2 + $0xb8] sm:$0xf]
    %v1101 = vld [vmem:[#allocation2 + $0xd8] sm:$0xf]
    %v1102 = vld [vmem:[#allocation2 + $0xdc] sm:$0xf]
    %v1103 = vld [vmem:[#allocation2 + $0xe4] sm:$0xf]
    %v1104 = vld [vmem:[#allocation2 + $0xe8] sm:$0xf]
    %v1105 = vld [vmem:[#allocation2 + $0xf0] sm:$0xf]
    %v1106 = vld [vmem:[#allocation2 + $0xf4] sm:$0xf]
    %v1107 = vld [vmem:[#allocation2 + $0xfc] sm:$0xf]
    %v1108 = vld [vmem:[#allocation2 + $0x100] sm:$0xf]
    %v1109 = vld [vmem:[#allocation2 + $0x108] sm:$0xf]
    %v1110 = vld [vmem:[#allocation2 + $0x10c] sm:$0xf]
    %v1111 = vld [vmem:[#allocation2 + $0x114] sm:$0xf]
    %v1112 = vld [vmem:[#allocation2 + $0x118] sm:$0xf]
    %v1113 = vld [vmem:[#allocation2 + $0x120] sm:$0xf]
    %v1114 = vld [vmem:[#allocation2 + $0x124] sm:$0xf]
    %v1115 = vld [vmem:[#allocation2 + $0x12c] sm:$0xf]
    %v1116 = vld [vmem:[#allocation2 + $0x130] sm:$0xf]
    %v1117 = vld [vmem:[#allocation2 + $0x138] sm:$0xf]
    %v1118 = vld [vmem:[#allocation2 + $0x13c] sm:$0xf]
    %v1119 = vld [vmem:[#allocation2 + $0x144] sm:$0xf]
    %v1120 = vld [vmem:[#allocation2 + $0x148] sm:$0xf]
    %v1121 = vld [vmem:[#allocation2 + $0x150] sm:$0xf]
    %v1122 = vld [vmem:[#allocation2 + $0x154] sm:$0xf]
    %v1123 = vld [vmem:[#allocation2 + $0x15c] sm:$0xf]
    %v1124 = vld [vmem:[#allocation2 + $0x160] sm:$0xf]
    %v1125 = vld [vmem:[#allocation2 + $0x168] sm:$0xf]
    %v1126 = vld [vmem:[#allocation2 + $0x16c] sm:$0xf]
    %v1127 = vld [vmem:[#allocation2 + $0x174] sm:$0xf]
    %v1128 = vld [vmem:[#allocation2 + $0x178] sm:$0xf]
    %v1129 = vld [vmem:[#allocation2 + $0x180] sm:$0xf]
    %v1130 = vld [vmem:[#allocation2 + $0x184] sm:$0xf]
    %v1131 = vld [vmem:[#allocation2 + $0x18c] sm:$0xf]
    %v1132 = vld [vmem:[#allocation2 + $0x190] sm:$0xf]
    %v1133 = vld [vmem:[#allocation2 + $0x8] sm:$0x1]
    %v1134 = vld [vmem:[#allocation2 + $0x14] sm:$0x1]
    %v1135 = vld [vmem:[#allocation2 + $0x20] sm:$0x1]
    %v1136 = vld [vmem:[#allocation2 + $0x2c] sm:$0x1]
    %v1137 = vld [vmem:[#allocation2 + $0x38] sm:$0x1]
    %v1138 = vld [vmem:[#allocation2 + $0x44] sm:$0x1]
    %v1139 = vld [vmem:[#allocation2 + $0x50] sm:$0x1]
    %v1140 = vld [vmem:[#allocation2 + $0x5c] sm:$0x1]
    %v1141 = vld [vmem:[#allocation2 + $0x68] sm:$0x1]
    %v1142 = vld [vmem:[#allocation2 + $0x74] sm:$0x1]
    %v1143 = vld [vmem:[#allocation2 + $0x80] sm:$0x1]
    %v1144 = vld [vmem:[#allocation2 + $0x8c] sm:$0x1]
    %v1145 = vld [vmem:[#allocation2 + $0x98] sm:$0x1]
    %v1146 = vld [vmem:[#allocation2 + $0xa4] sm:$0x1]
    %v1147 = vld [vmem:[#allocation2 + $0xb0] sm:$0x1]
    %v1148 = vld [vmem:[#allocation2 + $0xbc] sm:$0x1]
    %v1149 = vld [vmem:[#allocation2 + $0xe0] sm:$0x1]
    %v1150 = vld [vmem:[#allocation2 + $0xec] sm:$0x1]
    %v1151 = vld [vmem:[#allocation2 + $0xf8] sm:$0x1]
    %v1152 = vld [vmem:[#allocation2 + $0x104] sm:$0x1]
    %v1153 = vld [vmem:[#allocation2 + $0x110] sm:$0x1]
    %v1154 = vld [vmem:[#allocation2 + $0x11c] sm:$0x1]
    %v1155 = vld [vmem:[#allocation2 + $0x128] sm:$0x1]
    %v1156 = vld [vmem:[#allocation2 + $0x134] sm:$0x1]
    %v1157 = vld [vmem:[#allocation2 + $0x140] sm:$0x1]
    %v1158 = vld [vmem:[#allocation2 + $0x14c] sm:$0x1]
    %v1159 = vld [vmem:[#allocation2 + $0x158] sm:$0x1]
    %v1160 = vld [vmem:[#allocation2 + $0x164] sm:$0x1]
    %v1161 = vld [vmem:[#allocation2 + $0x170] sm:$0x1]
    %v1162 = vld [vmem:[#allocation2 + $0x17c] sm:$0x1]
    %v1163 = vld [vmem:[#allocation2 + $0x188] sm:$0x1]
    %v1164 = vld [vmem:[#allocation2 + $0x194] sm:$0x1]
    %vm1165 = vsmask.f32 3328
    %vm1166 = vsmask.f32 7440
    %vm1167 = vmor %vm1165, %vm1166
    %v1169 = vshrl.u32 %v1069, 16
    %v1171 = vrot.slane %v1169, 4
    %v1172 = vshll.u32 %v1069, 16
    %v1174 = vrot.slane %v1172, 5
    %v1175 = vor.u32 %v1171, %v1174
    %v1176 = vrot.slane %v1175, 4
    %v1178 = vshll.u32 %v1070, 16
    %v1180 = vrot.slane %v1178, 5
    %v1181 = vsel %vm1167, %v1176, %v1180
    %v1182 = vshrl.u32 %v1070, 16
    %v1184 = vrot.slane %v1182, 4
    %v1185 = vor.u32 %v1184, %v1180
    %v1186 = vrot.slane %v1185, 4
    %v1188 = vshll.u32 %v1133, 16
    %v1190 = vrot.slane %v1188, 5
    %v1191 = vsel %vm1167, %v1186, %v1190
    %v1193 = vshrl.u32 %v1071, 16
    %v1195 = vrot.slane %v1193, 4
    %v1196 = vshll.u32 %v1071, 16
    %v1198 = vrot.slane %v1196, 5
    %v1199 = vor.u32 %v1195, %v1198
    %v1200 = vrot.slane %v1199, 4
    %v1202 = vshll.u32 %v1072, 16
    %v1204 = vrot.slane %v1202, 5
    %v1205 = vsel %vm1167, %v1200, %v1204
    %v1206 = vshrl.u32 %v1072, 16
    %v1208 = vrot.slane %v1206, 4
    %v1209 = vor.u32 %v1208, %v1204
    %v1210 = vrot.slane %v1209, 4
    %v1212 = vshll.u32 %v1134, 16
    %v1214 = vrot.slane %v1212, 5
    %v1215 = vsel %vm1167, %v1210, %v1214
    %v1217 = vshrl.u32 %v1073, 16
    %v1219 = vrot.slane %v1217, 4
    %v1220 = vshll.u32 %v1073, 16
    %v1222 = vrot.slane %v1220, 5
    %v1223 = vor.u32 %v1219, %v1222
    %v1224 = vrot.slane %v1223, 4
    %v1226 = vshll.u32 %v1074, 16
    %v1228 = vrot.slane %v1226, 5
    %v1229 = vsel %vm1167, %v1224, %v1228
    %v1230 = vshrl.u32 %v1074, 16
    %v1232 = vrot.slane %v1230, 4
    %v1233 = vor.u32 %v1232, %v1228
    %v1234 = vrot.slane %v1233, 4
    %v1236 = vshll.u32 %v1135, 16
    %v1238 = vrot.slane %v1236, 5
    %v1239 = vsel %vm1167, %v1234, %v1238
    %v1241 = vshrl.u32 %v1075, 16
    %v1243 = vrot.slane %v1241, 4
    %v1244 = vshll.u32 %v1075, 16
    %v1246 = vrot.slane %v1244, 5
    %v1247 = vor.u32 %v1243, %v1246
    %v1248 = vrot.slane %v1247, 4
    %v1250 = vshll.u32 %v1076, 16
    %v1252 = vrot.slane %v1250, 5
    %v1253 = vsel %vm1167, %v1248, %v1252
    %v1254 = vshrl.u32 %v1076, 16
    %v1256 = vrot.slane %v1254, 4
    %v1257 = vor.u32 %v1256, %v1252
    %v1258 = vrot.slane %v1257, 4
    %v1260 = vshll.u32 %v1136, 16
    %v1262 = vrot.slane %v1260, 5
    %v1263 = vsel %vm1167, %v1258, %v1262
    %v1265 = vshrl.u32 %v1077, 16
    %v1267 = vrot.slane %v1265, 4
    %v1268 = vshll.u32 %v1077, 16
    %v1270 = vrot.slane %v1268, 5
    %v1271 = vor.u32 %v1267, %v1270
    %v1272 = vrot.slane %v1271, 4
    %v1274 = vshll.u32 %v1078, 16
    %v1276 = vrot.slane %v1274, 5
    %v1277 = vsel %vm1167, %v1272, %v1276
    %v1278 = vshrl.u32 %v1078, 16
    %v1280 = vrot.slane %v1278, 4
    %v1281 = vor.u32 %v1280, %v1276
    %v1282 = vrot.slane %v1281, 4
    %v1284 = vshll.u32 %v1137, 16
    %v1286 = vrot.slane %v1284, 5
    %v1287 = vsel %vm1167, %v1282, %v1286
    %v1289 = vshrl.u32 %v1079, 16
    %v1291 = vrot.slane %v1289, 4
    %v1292 = vshll.u32 %v1079, 16
    %v1294 = vrot.slane %v1292, 5
    %v1295 = vor.u32 %v1291, %v1294
    %v1296 = vrot.slane %v1295, 4
    %v1298 = vshll.u32 %v1080, 16
    %v1300 = vrot.slane %v1298, 5
    %v1301 = vsel %vm1167, %v1296, %v1300
    %v1302 = vshrl.u32 %v1080, 16
    %v1304 = vrot.slane %v1302, 4
    %v1305 = vor.u32 %v1304, %v1300
    %v1306 = vrot.slane %v1305, 4
    %v1308 = vshll.u32 %v1138, 16
    %v1310 = vrot.slane %v1308, 5
    %v1311 = vsel %vm1167, %v1306, %v1310
    %v1313 = vshrl.u32 %v1081, 16
    %v1315 = vrot.slane %v1313, 4
    %v1316 = vshll.u32 %v1081, 16
    %v1318 = vrot.slane %v1316, 5
    %v1319 = vor.u32 %v1315, %v1318
    %v1320 = vrot.slane %v1319, 4
    %v1322 = vshll.u32 %v1082, 16
    %v1324 = vrot.slane %v1322, 5
    %v1325 = vsel %vm1167, %v1320, %v1324
    %v1326 = vshrl.u32 %v1082, 16
    %v1328 = vrot.slane %v1326, 4
    %v1329 = vor.u32 %v1328, %v1324
    %v1330 = vrot.slane %v1329, 4
    %v1332 = vshll.u32 %v1139, 16
    %v1334 = vrot.slane %v1332, 5
    %v1335 = vsel %vm1167, %v1330, %v1334
    %v1337 = vshrl.u32 %v1083, 16
    %v1339 = vrot.slane %v1337, 4
    %v1340 = vshll.u32 %v1083, 16
    %v1342 = vrot.slane %v1340, 5
    %v1343 = vor.u32 %v1339, %v1342
    %v1344 = vrot.slane %v1343, 4
    %v1346 = vshll.u32 %v1084, 16
    %v1348 = vrot.slane %v1346, 5
    %v1349 = vsel %vm1167, %v1344, %v1348
    %v1350 = vshrl.u32 %v1084, 16
    %v1352 = vrot.slane %v1350, 4
    %v1353 = vor.u32 %v1352, %v1348
    %v1354 = vrot.slane %v1353, 4
    %v1356 = vshll.u32 %v1140, 16
    %v1358 = vrot.slane %v1356, 5
    %v1359 = vsel %vm1167, %v1354, %v1358
    %v1361 = vshrl.u32 %v1085, 16
    %v1363 = vrot.slane %v1361, 4
    %v1364 = vshll.u32 %v1085, 16
    %v1366 = vrot.slane %v1364, 5
    %v1367 = vor.u32 %v1363, %v1366
    %v1368 = vrot.slane %v1367, 4
    %v1370 = vshll.u32 %v1086, 16
    %v1372 = vrot.slane %v1370, 5
    %v1373 = vsel %vm1167, %v1368, %v1372
    %v1374 = vshrl.u32 %v1086, 16
    %v1376 = vrot.slane %v1374, 4
    %v1377 = vor.u32 %v1376, %v1372
    %v1378 = vrot.slane %v1377, 4
    %v1380 = vshll.u32 %v1141, 16
    %v1382 = vrot.slane %v1380, 5
    %v1383 = vsel %vm1167, %v1378, %v1382
    %v1385 = vshrl.u32 %v1087, 16
    %v1387 = vrot.slane %v1385, 4
    %v1388 = vshll.u32 %v1087, 16
    %v1390 = vrot.slane %v1388, 5
    %v1391 = vor.u32 %v1387, %v1390
    %v1392 = vrot.slane %v1391, 4
    %v1394 = vshll.u32 %v1088, 16
    %v1396 = vrot.slane %v1394, 5
    %v1397 = vsel %vm1167, %v1392, %v1396
    %v1398 = vshrl.u32 %v1088, 16
    %v1400 = vrot.slane %v1398, 4
    %v1401 = vor.u32 %v1400, %v1396
    %v1402 = vrot.slane %v1401, 4
    %v1404 = vshll.u32 %v1142, 16
    %v1406 = vrot.slane %v1404, 5
    %v1407 = vsel %vm1167, %v1402, %v1406
    %v1409 = vshrl.u32 %v1089, 16
    %v1411 = vrot.slane %v1409, 4
    %v1412 = vshll.u32 %v1089, 16
    %v1414 = vrot.slane %v1412, 5
    %v1415 = vor.u32 %v1411, %v1414
    %v1416 = vrot.slane %v1415, 4
    %v1418 = vshll.u32 %v1090, 16
    %v1420 = vrot.slane %v1418, 5
    %v1421 = vsel %vm1167, %v1416, %v1420
    %v1422 = vshrl.u32 %v1090, 16
    %v1424 = vrot.slane %v1422, 4
    %v1425 = vor.u32 %v1424, %v1420
    %v1426 = vrot.slane %v1425, 4
    %v1428 = vshll.u32 %v1143, 16
    %v1430 = vrot.slane %v1428, 5
    %v1431 = vsel %vm1167, %v1426, %v1430
    %v1433 = vshrl.u32 %v1091, 16
    %v1435 = vrot.slane %v1433, 4
    %v1436 = vshll.u32 %v1091, 16
    %v1438 = vrot.slane %v1436, 5
    %v1439 = vor.u32 %v1435, %v1438
    %v1440 = vrot.slane %v1439, 4
    %v1442 = vshll.u32 %v1092, 16
    %v1444 = vrot.slane %v1442, 5
    %v1445 = vsel %vm1167, %v1440, %v1444
    %v1446 = vshrl.u32 %v1092, 16
    %v1448 = vrot.slane %v1446, 4
    %v1449 = vor.u32 %v1448, %v1444
    %v1450 = vrot.slane %v1449, 4
    %v1452 = vshll.u32 %v1144, 16
    %v1454 = vrot.slane %v1452, 5
    %v1455 = vsel %vm1167, %v1450, %v1454
    %v1457 = vshrl.u32 %v1093, 16
    %v1459 = vrot.slane %v1457, 4
    %v1460 = vshll.u32 %v1093, 16
    %v1462 = vrot.slane %v1460, 5
    %v1463 = vor.u32 %v1459, %v1462
    %v1464 = vrot.slane %v1463, 4
    %v1466 = vshll.u32 %v1094, 16
    %v1468 = vrot.slane %v1466, 5
    %v1469 = vsel %vm1167, %v1464, %v1468
    %v1470 = vshrl.u32 %v1094, 16
    %v1472 = vrot.slane %v1470, 4
    %v1473 = vor.u32 %v1472, %v1468
    %v1474 = vrot.slane %v1473, 4
    %v1476 = vshll.u32 %v1145, 16
    %v1478 = vrot.slane %v1476, 5
    %v1479 = vsel %vm1167, %v1474, %v1478
    %v1481 = vshrl.u32 %v1095, 16
    %v1483 = vrot.slane %v1481, 4
    %v1484 = vshll.u32 %v1095, 16
    %v1486 = vrot.slane %v1484, 5
    %v1487 = vor.u32 %v1483, %v1486
    %v1488 = vrot.slane %v1487, 4
    %v1490 = vshll.u32 %v1096, 16
    %v1492 = vrot.slane %v1490, 5
    %v1493 = vsel %vm1167, %v1488, %v1492
    %v1494 = vshrl.u32 %v1096, 16
    %v1496 = vrot.slane %v1494, 4
    %v1497 = vor.u32 %v1496, %v1492
    %v1498 = vrot.slane %v1497, 4
    %v1500 = vshll.u32 %v1146, 16
    %v1502 = vrot.slane %v1500, 5
    %v1503 = vsel %vm1167, %v1498, %v1502
    %v1505 = vshrl.u32 %v1097, 16
    %v1507 = vrot.slane %v1505, 4
    %v1508 = vshll.u32 %v1097, 16
    %v1510 = vrot.slane %v1508, 5
    %v1511 = vor.u32 %v1507, %v1510
    %v1512 = vrot.slane %v1511, 4
    %v1514 = vshll.u32 %v1098, 16
    %v1516 = vrot.slane %v1514, 5
    %v1517 = vsel %vm1167, %v1512, %v1516
    %v1518 = vshrl.u32 %v1098, 16
    %v1520 = vrot.slane %v1518, 4
    %v1521 = vor.u32 %v1520, %v1516
    %v1522 = vrot.slane %v1521, 4
    %v1524 = vshll.u32 %v1147, 16
    %v1526 = vrot.slane %v1524, 5
    %v1527 = vsel %vm1167, %v1522, %v1526
    %v1529 = vshrl.u32 %v1099, 16
    %v1531 = vrot.slane %v1529, 4
    %v1532 = vshll.u32 %v1099, 16
    %v1534 = vrot.slane %v1532, 5
    %v1535 = vor.u32 %v1531, %v1534
    %v1536 = vrot.slane %v1535, 4
    %v1538 = vshll.u32 %v1100, 16
    %v1540 = vrot.slane %v1538, 5
    %v1541 = vsel %vm1167, %v1536, %v1540
    %v1542 = vshrl.u32 %v1100, 16
    %v1544 = vrot.slane %v1542, 4
    %v1545 = vor.u32 %v1544, %v1540
    %v1546 = vrot.slane %v1545, 4
    %v1548 = vshll.u32 %v1148, 16
    %v1550 = vrot.slane %v1548, 5
    %v1551 = vsel %vm1167, %v1546, %v1550
    %v1553 = vshrl.u32 %v1101, 16
    %v1555 = vrot.slane %v1553, 4
    %v1556 = vshll.u32 %v1101, 16
    %v1558 = vrot.slane %v1556, 5
    %v1559 = vor.u32 %v1555, %v1558
    %v1560 = vrot.slane %v1559, 4
    %v1562 = vshll.u32 %v1102, 16
    %v1564 = vrot.slane %v1562, 5
    %v1565 = vsel %vm1167, %v1560, %v1564
    %v1566 = vshrl.u32 %v1102, 16
    %v1568 = vrot.slane %v1566, 4
    %v1569 = vor.u32 %v1568, %v1564
    %v1570 = vrot.slane %v1569, 4
    %v1572 = vshll.u32 %v1149, 16
    %v1574 = vrot.slane %v1572, 5
    %v1575 = vsel %vm1167, %v1570, %v1574
    %v1577 = vshrl.u32 %v1103, 16
    %v1579 = vrot.slane %v1577, 4
    %v1580 = vshll.u32 %v1103, 16
    %v1582 = vrot.slane %v1580, 5
    %v1583 = vor.u32 %v1579, %v1582
    %v1584 = vrot.slane %v1583, 4
    %v1586 = vshll.u32 %v1104, 16
    %v1588 = vrot.slane %v1586, 5
    %v1589 = vsel %vm1167, %v1584, %v1588
    %v1590 = vshrl.u32 %v1104, 16
    %v1592 = vrot.slane %v1590, 4
    %v1593 = vor.u32 %v1592, %v1588
    %v1594 = vrot.slane %v1593, 4
    %v1596 = vshll.u32 %v1150, 16
    %v1598 = vrot.slane %v1596, 5
    %v1599 = vsel %vm1167, %v1594, %v1598
    %v1601 = vshrl.u32 %v1105, 16
    %v1603 = vrot.slane %v1601, 4
    %v1604 = vshll.u32 %v1105, 16
    %v1606 = vrot.slane %v1604, 5
    %v1607 = vor.u32 %v1603, %v1606
    %v1608 = vrot.slane %v1607, 4
    %v1610 = vshll.u32 %v1106, 16
    %v1612 = vrot.slane %v1610, 5
    %v1613 = vsel %vm1167, %v1608, %v1612
    %v1614 = vshrl.u32 %v1106, 16
    %v1616 = vrot.slane %v1614, 4
    %v1617 = vor.u32 %v1616, %v1612
    %v1618 = vrot.slane %v1617, 4
    %v1620 = vshll.u32 %v1151, 16
    %v1622 = vrot.slane %v1620, 5
    %v1623 = vsel %vm1167, %v1618, %v1622
    %v1625 = vshrl.u32 %v1107, 16
    %v1627 = vrot.slane %v1625, 4
    %v1628 = vshll.u32 %v1107, 16
    %v1630 = vrot.slane %v1628, 5
    %v1631 = vor.u32 %v1627, %v1630
    %v1632 = vrot.slane %v1631, 4
    %v1634 = vshll.u32 %v1108, 16
    %v1636 = vrot.slane %v1634, 5
    %v1637 = vsel %vm1167, %v1632, %v1636
    %v1638 = vshrl.u32 %v1108, 16
    %v1640 = vrot.slane %v1638, 4
    %v1641 = vor.u32 %v1640, %v1636
    %v1642 = vrot.slane %v1641, 4
    %v1644 = vshll.u32 %v1152, 16
    %v1646 = vrot.slane %v1644, 5
    %v1647 = vsel %vm1167, %v1642, %v1646
    %v1649 = vshrl.u32 %v1109, 16
    %v1651 = vrot.slane %v1649, 4
    %v1652 = vshll.u32 %v1109, 16
    %v1654 = vrot.slane %v1652, 5
    %v1655 = vor.u32 %v1651, %v1654
    %v1656 = vrot.slane %v1655, 4
    %v1658 = vshll.u32 %v1110, 16
    %v1660 = vrot.slane %v1658, 5
    %v1661 = vsel %vm1167, %v1656, %v1660
    %v1662 = vshrl.u32 %v1110, 16
    %v1664 = vrot.slane %v1662, 4
    %v1665 = vor.u32 %v1664, %v1660
    %v1666 = vrot.slane %v1665, 4
    %v1668 = vshll.u32 %v1153, 16
    %v1670 = vrot.slane %v1668, 5
    %v1671 = vsel %vm1167, %v1666, %v1670
    %v1673 = vshrl.u32 %v1111, 16
    %v1675 = vrot.slane %v1673, 4
    %v1676 = vshll.u32 %v1111, 16
    %v1678 = vrot.slane %v1676, 5
    %v1679 = vor.u32 %v1675, %v1678
    %v1680 = vrot.slane %v1679, 4
    %v1682 = vshll.u32 %v1112, 16
    %v1684 = vrot.slane %v1682, 5
    %v1685 = vsel %vm1167, %v1680, %v1684
    %v1686 = vshrl.u32 %v1112, 16
    %v1688 = vrot.slane %v1686, 4
    %v1689 = vor.u32 %v1688, %v1684
    %v1690 = vrot.slane %v1689, 4
    %v1692 = vshll.u32 %v1154, 16
    %v1694 = vrot.slane %v1692, 5
    %v1695 = vsel %vm1167, %v1690, %v1694
    %v1697 = vshrl.u32 %v1113, 16
    %v1699 = vrot.slane %v1697, 4
    %v1700 = vshll.u32 %v1113, 16
    %v1702 = vrot.slane %v1700, 5
    %v1703 = vor.u32 %v1699, %v1702
    %v1704 = vrot.slane %v1703, 4
    %v1706 = vshll.u32 %v1114, 16
    %v1708 = vrot.slane %v1706, 5
    %v1709 = vsel %vm1167, %v1704, %v1708
    %v1710 = vshrl.u32 %v1114, 16
    %v1712 = vrot.slane %v1710, 4
    %v1713 = vor.u32 %v1712, %v1708
    %v1714 = vrot.slane %v1713, 4
    %v1716 = vshll.u32 %v1155, 16
    %v1718 = vrot.slane %v1716, 5
    %v1719 = vsel %vm1167, %v1714, %v1718
    %v1721 = vshrl.u32 %v1115, 16
    %v1723 = vrot.slane %v1721, 4
    %v1724 = vshll.u32 %v1115, 16
    %v1726 = vrot.slane %v1724, 5
    %v1727 = vor.u32 %v1723, %v1726
    %v1728 = vrot.slane %v1727, 4
    %v1730 = vshll.u32 %v1116, 16
    %v1732 = vrot.slane %v1730, 5
    %v1733 = vsel %vm1167, %v1728, %v1732
    %v1734 = vshrl.u32 %v1116, 16
    %v1736 = vrot.slane %v1734, 4
    %v1737 = vor.u32 %v1736, %v1732
    %v1738 = vrot.slane %v1737, 4
    %v1740 = vshll.u32 %v1156, 16
    %v1742 = vrot.slane %v1740, 5
    %v1743 = vsel %vm1167, %v1738, %v1742
    %v1745 = vshrl.u32 %v1117, 16
    %v1747 = vrot.slane %v1745, 4
    %v1748 = vshll.u32 %v1117, 16
    %v1750 = vrot.slane %v1748, 5
    %v1751 = vor.u32 %v1747, %v1750
    %v1752 = vrot.slane %v1751, 4
    %v1754 = vshll.u32 %v1118, 16
    %v1756 = vrot.slane %v1754, 5
    %v1757 = vsel %vm1167, %v1752, %v1756
    %v1758 = vshrl.u32 %v1118, 16
    %v1760 = vrot.slane %v1758, 4
    %v1761 = vor.u32 %v1760, %v1756
    %v1762 = vrot.slane %v1761, 4
    %v1764 = vshll.u32 %v1157, 16
    %v1766 = vrot.slane %v1764, 5
    %v1767 = vsel %vm1167, %v1762, %v1766
    %v1769 = vshrl.u32 %v1119, 16
    %v1771 = vrot.slane %v1769, 4
    %v1772 = vshll.u32 %v1119, 16
    %v1774 = vrot.slane %v1772, 5
    %v1775 = vor.u32 %v1771, %v1774
    %v1776 = vrot.slane %v1775, 4
    %v1778 = vshll.u32 %v1120, 16
    %v1780 = vrot.slane %v1778, 5
    %v1781 = vsel %vm1167, %v1776, %v1780
    %v1782 = vshrl.u32 %v1120, 16
    %v1784 = vrot.slane %v1782, 4
    %v1785 = vor.u32 %v1784, %v1780
    %v1786 = vrot.slane %v1785, 4
    %v1788 = vshll.u32 %v1158, 16
    %v1790 = vrot.slane %v1788, 5
    %v1791 = vsel %vm1167, %v1786, %v1790
    %v1793 = vshrl.u32 %v1121, 16
    %v1795 = vrot.slane %v1793, 4
    %v1796 = vshll.u32 %v1121, 16
    %v1798 = vrot.slane %v1796, 5
    %v1799 = vor.u32 %v1795, %v1798
    %v1800 = vrot.slane %v1799, 4
    %v1802 = vshll.u32 %v1122, 16
    %v1804 = vrot.slane %v1802, 5
    %v1805 = vsel %vm1167, %v1800, %v1804
    %v1806 = vshrl.u32 %v1122, 16
    %v1808 = vrot.slane %v1806, 4
    %v1809 = vor.u32 %v1808, %v1804
    %v1810 = vrot.slane %v1809, 4
    %v1812 = vshll.u32 %v1159, 16
    %v1814 = vrot.slane %v1812, 5
    %v1815 = vsel %vm1167, %v1810, %v1814
    %v1817 = vshrl.u32 %v1123, 16
    %v1819 = vrot.slane %v1817, 4
    %v1820 = vshll.u32 %v1123, 16
    %v1822 = vrot.slane %v1820, 5
    %v1823 = vor.u32 %v1819, %v1822
    %v1824 = vrot.slane %v1823, 4
    %v1826 = vshll.u32 %v1124, 16
    %v1828 = vrot.slane %v1826, 5
    %v1829 = vsel %vm1167, %v1824, %v1828
    %v1830 = vshrl.u32 %v1124, 16
    %v1832 = vrot.slane %v1830, 4
    %v1833 = vor.u32 %v1832, %v1828
    %v1834 = vrot.slane %v1833, 4
    %v1836 = vshll.u32 %v1160, 16
    %v1838 = vrot.slane %v1836, 5
    %v1839 = vsel %vm1167, %v1834, %v1838
    %v1841 = vshrl.u32 %v1125, 16
    %v1843 = vrot.slane %v1841, 4
    %v1844 = vshll.u32 %v1125, 16
    %v1846 = vrot.slane %v1844, 5
    %v1847 = vor.u32 %v1843, %v1846
    %v1848 = vrot.slane %v1847, 4
    %v1850 = vshll.u32 %v1126, 16
    %v1852 = vrot.slane %v1850, 5
    %v1853 = vsel %vm1167, %v1848, %v1852
    %v1854 = vshrl.u32 %v1126, 16
    %v1856 = vrot.slane %v1854, 4
    %v1857 = vor.u32 %v1856, %v1852
    %v1858 = vrot.slane %v1857, 4
    %v1860 = vshll.u32 %v1161, 16
    %v1862 = vrot.slane %v1860, 5
    %v1863 = vsel %vm1167, %v1858, %v1862
    %v1865 = vshrl.u32 %v1127, 16
    %v1867 = vrot.slane %v1865, 4
    %v1868 = vshll.u32 %v1127, 16
    %v1870 = vrot.slane %v1868, 5
    %v1871 = vor.u32 %v1867, %v1870
    %v1872 = vrot.slane %v1871, 4
    %v1874 = vshll.u32 %v1128, 16
    %v1876 = vrot.slane %v1874, 5
    %v1877 = vsel %vm1167, %v1872, %v1876
    %v1878 = vshrl.u32 %v1128, 16
    %v1880 = vrot.slane %v1878, 4
    %v1881 = vor.u32 %v1880, %v1876
    %v1882 = vrot.slane %v1881, 4
    %v1884 = vshll.u32 %v1162, 16
    %v1886 = vrot.slane %v1884, 5
    %v1887 = vsel %vm1167, %v1882, %v1886
    %v1889 = vshrl.u32 %v1129, 16
    %v1891 = vrot.slane %v1889, 4
    %v1892 = vshll.u32 %v1129, 16
    %v1894 = vrot.slane %v1892, 5
    %v1895 = vor.u32 %v1891, %v1894
    %v1896 = vrot.slane %v1895, 4
    %v1898 = vshll.u32 %v1130, 16
    %v1900 = vrot.slane %v1898, 5
    %v1901 = vsel %vm1167, %v1896, %v1900
    %v1902 = vshrl.u32 %v1130, 16
    %v1904 = vrot.slane %v1902, 4
    %v1905 = vor.u32 %v1904, %v1900
    %v1906 = vrot.slane %v1905, 4
    %v1908 = vshll.u32 %v1163, 16
    %v1910 = vrot.slane %v1908, 5
    %v1911 = vsel %vm1167, %v1906, %v1910
    %v1913 = vshrl.u32 %v1131, 16
    %v1915 = vrot.slane %v1913, 4
    %v1916 = vshll.u32 %v1131, 16
    %v1918 = vrot.slane %v1916, 5
    %v1919 = vor.u32 %v1915, %v1918
    %v1920 = vrot.slane %v1919, 4
    %v1922 = vshll.u32 %v1132, 16
    %v1924 = vrot.slane %v1922, 5
    %v1925 = vsel %vm1167, %v1920, %v1924
    %v1926 = vshrl.u32 %v1132, 16
    %v1928 = vrot.slane %v1926, 4
    %v1929 = vor.u32 %v1928, %v1924
    %v1930 = vrot.slane %v1929, 4
    %v1932 = vshll.u32 %v1164, 16
    %v1934 = vrot.slane %v1932, 5
    %v1935 = vsel %vm1167, %v1930, %v1934
    %v1936 = vld [vmem:[#allocation2] sm:$0xe]
    %v1937 = vld [vmem:[#allocation2 + $0xc] sm:$0xe]
    %v1938 = vld [vmem:[#allocation2 + $0x18] sm:$0xe]
    %v1939 = vld [vmem:[#allocation2 + $0x24] sm:$0xe]
    %v1940 = vld [vmem:[#allocation2 + $0x30] sm:$0xe]
    %v1941 = vld [vmem:[#allocation2 + $0x3c] sm:$0xe]
    %v1942 = vld [vmem:[#allocation2 + $0x48] sm:$0xe]
    %v1943 = vld [vmem:[#allocation2 + $0x54] sm:$0xe]
    %v1944 = vld [vmem:[#allocation2 + $0x60] sm:$0xe]
    %v1945 = vld [vmem:[#allocation2 + $0x6c] sm:$0xe]
    %v1946 = vld [vmem:[#allocation2 + $0x78] sm:$0xe]
    %v1947 = vld [vmem:[#allocation2 + $0x84] sm:$0xe]
    %v1948 = vld [vmem:[#allocation2 + $0x90] sm:$0xe]
    %v1949 = vld [vmem:[#allocation2 + $0x9c] sm:$0xe]
    %v1950 = vld [vmem:[#allocation2 + $0xa8] sm:$0xe]
    %v1951 = vld [vmem:[#allocation2 + $0xb4] sm:$0xe]
    %v1952 = vld [vmem:[#allocation2 + $0xd8] sm:$0xe]
    %v1953 = vld [vmem:[#allocation2 + $0xe4] sm:$0xe]
    %v1954 = vld [vmem:[#allocation2 + $0xf0] sm:$0xe]
    %v1955 = vld [vmem:[#allocation2 + $0xfc] sm:$0xe]
    %v1956 = vld [vmem:[#allocation2 + $0x108] sm:$0xe]
    %v1957 = vld [vmem:[#allocation2 + $0x114] sm:$0xe]
    %v1958 = vld [vmem:[#allocation2 + $0x120] sm:$0xe]
    %v1959 = vld [vmem:[#allocation2 + $0x12c] sm:$0xe]
    %v1960 = vld [vmem:[#allocation2 + $0x138] sm:$0xe]
    %v1961 = vld [vmem:[#allocation2 + $0x144] sm:$0xe]
    %v1962 = vld [vmem:[#allocation2 + $0x150] sm:$0xe]
    %v1963 = vld [vmem:[#allocation2 + $0x15c] sm:$0xe]
    %v1964 = vld [vmem:[#allocation2 + $0x168] sm:$0xe]
    %v1965 = vld [vmem:[#allocation2 + $0x174] sm:$0xe]
    %v1966 = vld [vmem:[#allocation2 + $0x180] sm:$0xe]
    %v1967 = vld [vmem:[#allocation2 + $0x18c] sm:$0xe]
    %vm2064 = vcmask 1042432
    %vm2065 = vcmask 1046532
    %vm2066 = vmor %vm2064, %vm2065
    %v2067 = vrot.slane %v1936, 5
    %v2068 = vrot.slane %v2067, 4
    %v2069 = vrot.slane %v1070, 5
    %v2070 = vsel %vm2066, %v2068, %v2069
    %v2071 = vrot.slane %v2069, 4
    %v2072 = vrot.slane %v1133, 5
    %v2073 = vsel %vm2066, %v2071, %v2072
    %v2074 = vrot.slane %v1937, 5
    %v2075 = vrot.slane %v2074, 4
    %v2076 = vrot.slane %v1072, 5
    %v2077 = vsel %vm2066, %v2075, %v2076
    %v2078 = vrot.slane %v2076, 4
    %v2079 = vrot.slane %v1134, 5
    %v2080 = vsel %vm2066, %v2078, %v2079
    %v2081 = vrot.slane %v1938, 5
    %v2082 = vrot.slane %v2081, 4
    %v2083 = vrot.slane %v1074, 5
    %v2084 = vsel %vm2066, %v2082, %v2083
    %v2085 = vrot.slane %v2083, 4
    %v2086 = vrot.slane %v1135, 5
    %v2087 = vsel %vm2066, %v2085, %v2086
    %v2088 = vrot.slane %v1939, 5
    %v2089 = vrot.slane %v2088, 4
    %v2090 = vrot.slane %v1076, 5
    %v2091 = vsel %vm2066, %v2089, %v2090
    %v2092 = vrot.slane %v2090, 4
    %v2093 = vrot.slane %v1136, 5
    %v2094 = vsel %vm2066, %v2092, %v2093
    %v2095 = vrot.slane %v1940, 5
    %v2096 = vrot.slane %v2095, 4
    %v2097 = vrot.slane %v1078, 5
    %v2098 = vsel %vm2066, %v2096, %v2097
    %v2099 = vrot.slane %v2097, 4
    %v2100 = vrot.slane %v1137, 5
    %v2101 = vsel %vm2066, %v2099, %v2100
    %v2102 = vrot.slane %v1941, 5
    %v2103 = vrot.slane %v2102, 4
    %v2104 = vrot.slane %v1080, 5
    %v2105 = vsel %vm2066, %v2103, %v2104
    %v2106 = vrot.slane %v2104, 4
    %v2107 = vrot.slane %v1138, 5
    %v2108 = vsel %vm2066, %v2106, %v2107
    %v2109 = vrot.slane %v1942, 5
    %v2110 = vrot.slane %v2109, 4
    %v2111 = vrot.slane %v1082, 5
    %v2112 = vsel %vm2066, %v2110, %v2111
    %v2113 = vrot.slane %v2111, 4
    %v2114 = vrot.slane %v1139, 5
    %v2115 = vsel %vm2066, %v2113, %v2114
    %v2116 = vrot.slane %v1943, 5
    %v2117 = vrot.slane %v2116, 4
    %v2118 = vrot.slane %v1084, 5
    %v2119 = vsel %vm2066, %v2117, %v2118
    %v2120 = vrot.slane %v2118, 4
    %v2121 = vrot.slane %v1140, 5
    %v2122 = vsel %vm2066, %v2120, %v2121
    %v2123 = vrot.slane %v1944, 5
    %v2124 = vrot.slane %v2123, 4
    %v2125 = vrot.slane %v1086, 5
    %v2126 = vsel %vm2066, %v2124, %v2125
    %v2127 = vrot.slane %v2125, 4
    %v2128 = vrot.slane %v1141, 5
    %v2129 = vsel %vm2066, %v2127, %v2128
    %v2130 = vrot.slane %v1945, 5
    %v2131 = vrot.slane %v2130, 4
    %v2132 = vrot.slane %v1088, 5
    %v2133 = vsel %vm2066, %v2131, %v2132
    %v2134 = vrot.slane %v2132, 4
    %v2135 = vrot.slane %v1142, 5
    %v2136 = vsel %vm2066, %v2134, %v2135
    %v2137 = vrot.slane %v1946, 5
    %v2138 = vrot.slane %v2137, 4
    %v2139 = vrot.slane %v1090, 5
    %v2140 = vsel %vm2066, %v2138, %v2139
    %v2141 = vrot.slane %v2139, 4
    %v2142 = vrot.slane %v1143, 5
    %v2143 = vsel %vm2066, %v2141, %v2142
    %v2144 = vrot.slane %v1947, 5
    %v2145 = vrot.slane %v2144, 4
    %v2146 = vrot.slane %v1092, 5
    %v2147 = vsel %vm2066, %v2145, %v2146
    %v2148 = vrot.slane %v2146, 4
    %v2149 = vrot.slane %v1144, 5
    %v2150 = vsel %vm2066, %v2148, %v2149
    %v2151 = vrot.slane %v1948, 5
    %v2152 = vrot.slane %v2151, 4
    %v2153 = vrot.slane %v1094, 5
    %v2154 = vsel %vm2066, %v2152, %v2153
    %v2155 = vrot.slane %v2153, 4
    %v2156 = vrot.slane %v1145, 5
    %v2157 = vsel %vm2066, %v2155, %v2156
    %v2158 = vrot.slane %v1949, 5
    %v2159 = vrot.slane %v2158, 4
    %v2160 = vrot.slane %v1096, 5
    %v2161 = vsel %vm2066, %v2159, %v2160
    %v2162 = vrot.slane %v2160, 4
    %v2163 = vrot.slane %v1146, 5
    %v2164 = vsel %vm2066, %v2162, %v2163
    %v2165 = vrot.slane %v1950, 5
    %v2166 = vrot.slane %v2165, 4
    %v2167 = vrot.slane %v1098, 5
    %v2168 = vsel %vm2066, %v2166, %v2167
    %v2169 = vrot.slane %v2167, 4
    %v2170 = vrot.slane %v1147, 5
    %v2171 = vsel %vm2066, %v2169, %v2170
    %v2172 = vrot.slane %v1951, 5
    %v2173 = vrot.slane %v2172, 4
    %v2174 = vrot.slane %v1100, 5
    %v2175 = vsel %vm2066, %v2173, %v2174
    %v2176 = vrot.slane %v2174, 4
    %v2177 = vrot.slane %v1148, 5
    %v2178 = vsel %vm2066, %v2176, %v2177
    %v2179 = vrot.slane %v1952, 5
    %v2180 = vrot.slane %v2179, 4
    %v2181 = vrot.slane %v1102, 5
    %v2182 = vsel %vm2066, %v2180, %v2181
    %v2183 = vrot.slane %v2181, 4
    %v2184 = vrot.slane %v1149, 5
    %v2185 = vsel %vm2066, %v2183, %v2184
    %v2186 = vrot.slane %v1953, 5
    %v2187 = vrot.slane %v2186, 4
    %v2188 = vrot.slane %v1104, 5
    %v2189 = vsel %vm2066, %v2187, %v2188
    %v2190 = vrot.slane %v2188, 4
    %v2191 = vrot.slane %v1150, 5
    %v2192 = vsel %vm2066, %v2190, %v2191
    %v2193 = vrot.slane %v1954, 5
    %v2194 = vrot.slane %v2193, 4
    %v2195 = vrot.slane %v1106, 5
    %v2196 = vsel %vm2066, %v2194, %v2195
    %v2197 = vrot.slane %v2195, 4
    %v2198 = vrot.slane %v1151, 5
    %v2199 = vsel %vm2066, %v2197, %v2198
    %v2200 = vrot.slane %v1955, 5
    %v2201 = vrot.slane %v2200, 4
    %v2202 = vrot.slane %v1108, 5
    %v2203 = vsel %vm2066, %v2201, %v2202
    %v2204 = vrot.slane %v2202, 4
    %v2205 = vrot.slane %v1152, 5
    %v2206 = vsel %vm2066, %v2204, %v2205
    %v2207 = vrot.slane %v1956, 5
    %v2208 = vrot.slane %v2207, 4
    %v2209 = vrot.slane %v1110, 5
    %v2210 = vsel %vm2066, %v2208, %v2209
    %v2211 = vrot.slane %v2209, 4
    %v2212 = vrot.slane %v1153, 5
    %v2213 = vsel %vm2066, %v2211, %v2212
    %v2214 = vrot.slane %v1957, 5
    %v2215 = vrot.slane %v2214, 4
    %v2216 = vrot.slane %v1112, 5
    %v2217 = vsel %vm2066, %v2215, %v2216
    %v2218 = vrot.slane %v2216, 4
    %v2219 = vrot.slane %v1154, 5
    %v2220 = vsel %vm2066, %v2218, %v2219
    %v2221 = vrot.slane %v1958, 5
    %v2222 = vrot.slane %v2221, 4
    %v2223 = vrot.slane %v1114, 5
    %v2224 = vsel %vm2066, %v2222, %v2223
    %v2225 = vrot.slane %v2223, 4
    %v2226 = vrot.slane %v1155, 5
    %v2227 = vsel %vm2066, %v2225, %v2226
    %v2228 = vrot.slane %v1959, 5
    %v2229 = vrot.slane %v2228, 4
    %v2230 = vrot.slane %v1116, 5
    %v2231 = vsel %vm2066, %v2229, %v2230
    %v2232 = vrot.slane %v2230, 4
    %v2233 = vrot.slane %v1156, 5
    %v2234 = vsel %vm2066, %v2232, %v2233
    %v2235 = vrot.slane %v1960, 5
    %v2236 = vrot.slane %v2235, 4
    %v2237 = vrot.slane %v1118, 5
    %v2238 = vsel %vm2066, %v2236, %v2237
    %v2239 = vrot.slane %v2237, 4
    %v2240 = vrot.slane %v1157, 5
    %v2241 = vsel %vm2066, %v2239, %v2240
    %v2242 = vrot.slane %v1961, 5
    %v2243 = vrot.slane %v2242, 4
    %v2244 = vrot.slane %v1120, 5
    %v2245 = vsel %vm2066, %v2243, %v2244
    %v2246 = vrot.slane %v2244, 4
    %v2247 = vrot.slane %v1158, 5
    %v2248 = vsel %vm2066, %v2246, %v2247
    %v2249 = vrot.slane %v1962, 5
    %v2250 = vrot.slane %v2249, 4
    %v2251 = vrot.slane %v1122, 5
    %v2252 = vsel %vm2066, %v2250, %v2251
    %v2253 = vrot.slane %v2251, 4
    %v2254 = vrot.slane %v1159, 5
    %v2255 = vsel %vm2066, %v2253, %v2254
    %v2256 = vrot.slane %v1963, 5
    %v2257 = vrot.slane %v2256, 4
    %v2258 = vrot.slane %v1124, 5
    %v2259 = vsel %vm2066, %v2257, %v2258
    %v2260 = vrot.slane %v2258, 4
    %v2261 = vrot.slane %v1160, 5
    %v2262 = vsel %vm2066, %v2260, %v2261
    %v2263 = vrot.slane %v1964, 5
    %v2264 = vrot.slane %v2263, 4
    %v2265 = vrot.slane %v1126, 5
    %v2266 = vsel %vm2066, %v2264, %v2265
    %v2267 = vrot.slane %v2265, 4
    %v2268 = vrot.slane %v1161, 5
    %v2269 = vsel %vm2066, %v2267, %v2268
    %v2270 = vrot.slane %v1965, 5
    %v2271 = vrot.slane %v2270, 4
    %v2272 = vrot.slane %v1128, 5
    %v2273 = vsel %vm2066, %v2271, %v2272
    %v2274 = vrot.slane %v2272, 4
    %v2275 = vrot.slane %v1162, 5
    %v2276 = vsel %vm2066, %v2274, %v2275
    %v2277 = vrot.slane %v1966, 5
    %v2278 = vrot.slane %v2277, 4
    %v2279 = vrot.slane %v1130, 5
    %v2280 = vsel %vm2066, %v2278, %v2279
    %v2281 = vrot.slane %v2279, 4
    %v2282 = vrot.slane %v1163, 5
    %v2283 = vsel %vm2066, %v2281, %v2282
    %v2284 = vrot.slane %v1967, 5
    %v2285 = vrot.slane %v2284, 4
    %v2286 = vrot.slane %v1132, 5
    %v2287 = vsel %vm2066, %v2285, %v2286
    %v2288 = vrot.slane %v2286, 4
    %v2289 = vrot.slane %v1164, 5
    %v2290 = vsel %vm2066, %v2288, %v2289
    %v2291 = vld [vmem:[%s839] sm:$0xf]
    %v2292 = vld [vmem:[%s839 + $0x4] sm:$0xf]
    %v2293 = vld [vmem:[%s839 + $0xc] sm:$0xf]
    %v2294 = vld [vmem:[%s839 + $0x10] sm:$0xf]
    %v2295 = vld [vmem:[%s839 + $0x18] sm:$0xf]
    %v2296 = vld [vmem:[%s839 + $0x1c] sm:$0xf]
    %v2297 = vld [vmem:[%s839 + $0x24] sm:$0xf]
    %v2298 = vld [vmem:[%s839 + $0x28] sm:$0xf]
    %v2299 = vld [vmem:[%s839 + $0x30] sm:$0xf]
    %v2300 = vld [vmem:[%s839 + $0x34] sm:$0xf]
    %v2301 = vld [vmem:[%s839 + $0x3c] sm:$0xf]
    %v2302 = vld [vmem:[%s839 + $0x40] sm:$0xf]
    %v2303 = vld [vmem:[%s839 + $0x48] sm:$0xf]
    %v2304 = vld [vmem:[%s839 + $0x4c] sm:$0xf]
    %v2305 = vld [vmem:[%s839 + $0x54] sm:$0xf]
    %v2306 = vld [vmem:[%s839 + $0x58] sm:$0xf]
    %v2307 = vld [vmem:[%s839 + $0x60] sm:$0xf]
    %v2308 = vld [vmem:[%s839 + $0x64] sm:$0xf]
    %v2309 = vld [vmem:[%s839 + $0x6c] sm:$0xf]
    %v2310 = vld [vmem:[%s839 + $0x70] sm:$0xf]
    %v2311 = vld [vmem:[%s839 + $0x78] sm:$0xf]
    %v2312 = vld [vmem:[%s839 + $0x7c] sm:$0xf]
    %v2313 = vld [vmem:[%s839 + $0x84] sm:$0xf]
    %v2314 = vld [vmem:[%s839 + $0x88] sm:$0xf]
    %v2315 = vld [vmem:[%s839 + $0x90] sm:$0xf]
    %v2316 = vld [vmem:[%s839 + $0x94] sm:$0xf]
    %v2317 = vld [vmem:[%s839 + $0x9c] sm:$0xf]
    %v2318 = vld [vmem:[%s839 + $0xa0] sm:$0xf]
    %v2319 = vld [vmem:[%s839 + $0xa8] sm:$0xf]
    %v2320 = vld [vmem:[%s839 + $0xac] sm:$0xf]
    %v2321 = vld [vmem:[%s839 + $0xb4] sm:$0xf]
    %v2322 = vld [vmem:[%s839 + $0xb8] sm:$0xf]
    %v2323 = vld [vmem:[%s839 + $0xd8] sm:$0xf]
    %v2324 = vld [vmem:[%s839 + $0xdc] sm:$0xf]
    %v2325 = vld [vmem:[%s839 + $0xe4] sm:$0xf]
    %v2326 = vld [vmem:[%s839 + $0xe8] sm:$0xf]
    %v2327 = vld [vmem:[%s839 + $0xf0] sm:$0xf]
    %v2328 = vld [vmem:[%s839 + $0xf4] sm:$0xf]
    %v2329 = vld [vmem:[%s839 + $0xfc] sm:$0xf]
    %v2330 = vld [vmem:[%s839 + $0x100] sm:$0xf]
    %v2331 = vld [vmem:[%s839 + $0x108] sm:$0xf]
    %v2332 = vld [vmem:[%s839 + $0x10c] sm:$0xf]
    %v2333 = vld [vmem:[%s839 + $0x114] sm:$0xf]
    %v2334 = vld [vmem:[%s839 + $0x118] sm:$0xf]
    %v2335 = vld [vmem:[%s839 + $0x120] sm:$0xf]
    %v2336 = vld [vmem:[%s839 + $0x124] sm:$0xf]
    %v2337 = vld [vmem:[%s839 + $0x12c] sm:$0xf]
    %v2338 = vld [vmem:[%s839 + $0x130] sm:$0xf]
    %v2339 = vld [vmem:[%s839 + $0x138] sm:$0xf]
    %v2340 = vld [vmem:[%s839 + $0x13c] sm:$0xf]
    %v2341 = vld [vmem:[%s839 + $0x144] sm:$0xf]
    %v2342 = vld [vmem:[%s839 + $0x148] sm:$0xf]
    %v2343 = vld [vmem:[%s839 + $0x150] sm:$0xf]
    %v2344 = vld [vmem:[%s839 + $0x154] sm:$0xf]
    %v2345 = vld [vmem:[%s839 + $0x15c] sm:$0xf]
    %v2346 = vld [vmem:[%s839 + $0x160] sm:$0xf]
    %v2347 = vld [vmem:[%s839 + $0x168] sm:$0xf]
    %v2348 = vld [vmem:[%s839 + $0x16c] sm:$0xf]
    %v2349 = vld [vmem:[%s839 + $0x174] sm:$0xf]
    %v2350 = vld [vmem:[%s839 + $0x178] sm:$0xf]
    %v2351 = vld [vmem:[%s839 + $0x180] sm:$0xf]
    %v2352 = vld [vmem:[%s839 + $0x184] sm:$0xf]
    %v2353 = vld [vmem:[%s839 + $0x18c] sm:$0xf]
    %v2354 = vld [vmem:[%s839 + $0x190] sm:$0xf]
    %v2355 = vld [vmem:[%s839 + $0x8] sm:$0x1]
    %v2356 = vld [vmem:[%s839 + $0x14] sm:$0x1]
    %v2357 = vld [vmem:[%s839 + $0x20] sm:$0x1]
    %v2358 = vld [vmem:[%s839 + $0x2c] sm:$0x1]
    %v2359 = vld [vmem:[%s839 + $0x38] sm:$0x1]
    %v2360 = vld [vmem:[%s839 + $0x44] sm:$0x1]
    %v2361 = vld [vmem:[%s839 + $0x50] sm:$0x1]
    %v2362 = vld [vmem:[%s839 + $0x5c] sm:$0x1]
    %v2363 = vld [vmem:[%s839 + $0x68] sm:$0x1]
    %v2364 = vld [vmem:[%s839 + $0x74] sm:$0x1]
    %v2365 = vld [vmem:[%s839 + $0x80] sm:$0x1]
    %v2366 = vld [vmem:[%s839 + $0x8c] sm:$0x1]
    %v2367 = vld [vmem:[%s839 + $0x98] sm:$0x1]
    %v2368 = vld [vmem:[%s839 + $0xa4] sm:$0x1]
    %v2369 = vld [vmem:[%s839 + $0xb0] sm:$0x1]
    %v2370 = vld [vmem:[%s839 + $0xbc] sm:$0x1]
    %v2371 = vld [vmem:[%s839 + $0xe0] sm:$0x1]
    %v2372 = vld [vmem:[%s839 + $0xec] sm:$0x1]
    %v2373 = vld [vmem:[%s839 + $0xf8] sm:$0x1]
    %v2374 = vld [vmem:[%s839 + $0x104] sm:$0x1]
    %v2375 = vld [vmem:[%s839 + $0x110] sm:$0x1]
    %v2376 = vld [vmem:[%s839 + $0x11c] sm:$0x1]
    %v2377 = vld [vmem:[%s839 + $0x128] sm:$0x1]
    %v2378 = vld [vmem:[%s839 + $0x134] sm:$0x1]
    %v2379 = vld [vmem:[%s839 + $0x140] sm:$0x1]
    %v2380 = vld [vmem:[%s839 + $0x14c] sm:$0x1]
    %v2381 = vld [vmem:[%s839 + $0x158] sm:$0x1]
    %v2382 = vld [vmem:[%s839 + $0x164] sm:$0x1]
    %v2383 = vld [vmem:[%s839 + $0x170] sm:$0x1]
    %v2384 = vld [vmem:[%s839 + $0x17c] sm:$0x1]
    %v2385 = vld [vmem:[%s839 + $0x188] sm:$0x1]
    %v2386 = vld [vmem:[%s839 + $0x194] sm:$0x1]
    %v2388 = vshrl.u32 %v2291, 16
    %v2390 = vrot.slane %v2388, 4
    %v2391 = vshll.u32 %v2291, 16
    %v2393 = vrot.slane %v2391, 5
    %v2394 = vor.u32 %v2390, %v2393
    %v2395 = vrot.slane %v2394, 4
    %v2397 = vshll.u32 %v2292, 16
    %v2399 = vrot.slane %v2397, 5
    %v2400 = vsel %vm1167, %v2395, %v2399
    %v2401 = vshrl.u32 %v2292, 16
    %v2403 = vrot.slane %v2401, 4
    %v2404 = vor.u32 %v2403, %v2399
    %v2405 = vrot.slane %v2404, 4
    %v2407 = vshll.u32 %v2355, 16
    %v2409 = vrot.slane %v2407, 5
    %v2410 = vsel %vm1167, %v2405, %v2409
    %v2412 = vshrl.u32 %v2293, 16
    %v2414 = vrot.slane %v2412, 4
    %v2415 = vshll.u32 %v2293, 16
    %v2417 = vrot.slane %v2415, 5
    %v2418 = vor.u32 %v2414, %v2417
    %v2419 = vrot.slane %v2418, 4
    %v2421 = vshll.u32 %v2294, 16
    %v2423 = vrot.slane %v2421, 5
    %v2424 = vsel %vm1167, %v2419, %v2423
    %v2425 = vshrl.u32 %v2294, 16
    %v2427 = vrot.slane %v2425, 4
    %v2428 = vor.u32 %v2427, %v2423
    %v2429 = vrot.slane %v2428, 4
    %v2431 = vshll.u32 %v2356, 16
    %v2433 = vrot.slane %v2431, 5
    %v2434 = vsel %vm1167, %v2429, %v2433
    %v2436 = vshrl.u32 %v2295, 16
    %v2438 = vrot.slane %v2436, 4
    %v2439 = vshll.u32 %v2295, 16
    %v2441 = vrot.slane %v2439, 5
    %v2442 = vor.u32 %v2438, %v2441
    %v2443 = vrot.slane %v2442, 4
    %v2445 = vshll.u32 %v2296, 16
    %v2447 = vrot.slane %v2445, 5
    %v2448 = vsel %vm1167, %v2443, %v2447
    %v2449 = vshrl.u32 %v2296, 16
    %v2451 = vrot.slane %v2449, 4
    %v2452 = vor.u32 %v2451, %v2447
    %v2453 = vrot.slane %v2452, 4
    %v2455 = vshll.u32 %v2357, 16
    %v2457 = vrot.slane %v2455, 5
    %v2458 = vsel %vm1167, %v2453, %v2457
    %v2460 = vshrl.u32 %v2297, 16
    %v2462 = vrot.slane %v2460, 4
    %v2463 = vshll.u32 %v2297, 16
    %v2465 = vrot.slane %v2463, 5
    %v2466 = vor.u32 %v2462, %v2465
    %v2467 = vrot.slane %v2466, 4
    %v2469 = vshll.u32 %v2298, 16
    %v2471 = vrot.slane %v2469, 5
    %v2472 = vsel %vm1167, %v2467, %v2471
    %v2473 = vshrl.u32 %v2298, 16
    %v2475 = vrot.slane %v2473, 4
    %v2476 = vor.u32 %v2475, %v2471
    %v2477 = vrot.slane %v2476, 4
    %v2479 = vshll.u32 %v2358, 16
    %v2481 = vrot.slane %v2479, 5
    %v2482 = vsel %vm1167, %v2477, %v2481
    %v2484 = vshrl.u32 %v2299, 16
    %v2486 = vrot.slane %v2484, 4
    %v2487 = vshll.u32 %v2299, 16
    %v2489 = vrot.slane %v2487, 5
    %v2490 = vor.u32 %v2486, %v2489
    %v2491 = vrot.slane %v2490, 4
    %v2493 = vshll.u32 %v2300, 16
    %v2495 = vrot.slane %v2493, 5
    %v2496 = vsel %vm1167, %v2491, %v2495
    %v2497 = vshrl.u32 %v2300, 16
    %v2499 = vrot.slane %v2497, 4
    %v2500 = vor.u32 %v2499, %v2495
    %v2501 = vrot.slane %v2500, 4
    %v2503 = vshll.u32 %v2359, 16
    %v2505 = vrot.slane %v2503, 5
    %v2506 = vsel %vm1167, %v2501, %v2505
    %v2508 = vshrl.u32 %v2301, 16
    %v2510 = vrot.slane %v2508, 4
    %v2511 = vshll.u32 %v2301, 16
    %v2513 = vrot.slane %v2511, 5
    %v2514 = vor.u32 %v2510, %v2513
    %v2515 = vrot.slane %v2514, 4
    %v2517 = vshll.u32 %v2302, 16
    %v2519 = vrot.slane %v2517, 5
    %v2520 = vsel %vm1167, %v2515, %v2519
    %v2521 = vshrl.u32 %v2302, 16
    %v2523 = vrot.slane %v2521, 4
    %v2524 = vor.u32 %v2523, %v2519
    %v2525 = vrot.slane %v2524, 4
    %v2527 = vshll.u32 %v2360, 16
    %v2529 = vrot.slane %v2527, 5
    %v2530 = vsel %vm1167, %v2525, %v2529
    %v2532 = vshrl.u32 %v2303, 16
    %v2534 = vrot.slane %v2532, 4
    %v2535 = vshll.u32 %v2303, 16
    %v2537 = vrot.slane %v2535, 5
    %v2538 = vor.u32 %v2534, %v2537
    %v2539 = vrot.slane %v2538, 4
    %v2541 = vshll.u32 %v2304, 16
    %v2543 = vrot.slane %v2541, 5
    %v2544 = vsel %vm1167, %v2539, %v2543
    %v2545 = vshrl.u32 %v2304, 16
    %v2547 = vrot.slane %v2545, 4
    %v2548 = vor.u32 %v2547, %v2543
    %v2549 = vrot.slane %v2548, 4
    %v2551 = vshll.u32 %v2361, 16
    %v2553 = vrot.slane %v2551, 5
    %v2554 = vsel %vm1167, %v2549, %v2553
    %v2556 = vshrl.u32 %v2305, 16
    %v2558 = vrot.slane %v2556, 4
    %v2559 = vshll.u32 %v2305, 16
    %v2561 = vrot.slane %v2559, 5
    %v2562 = vor.u32 %v2558, %v2561
    %v2563 = vrot.slane %v2562, 4
    %v2565 = vshll.u32 %v2306, 16
    %v2567 = vrot.slane %v2565, 5
    %v2568 = vsel %vm1167, %v2563, %v2567
    %v2569 = vshrl.u32 %v2306, 16
    %v2571 = vrot.slane %v2569, 4
    %v2572 = vor.u32 %v2571, %v2567
    %v2573 = vrot.slane %v2572, 4
    %v2575 = vshll.u32 %v2362, 16
    %v2577 = vrot.slane %v2575, 5
    %v2578 = vsel %vm1167, %v2573, %v2577
    %v2580 = vshrl.u32 %v2307, 16
    %v2582 = vrot.slane %v2580, 4
    %v2583 = vshll.u32 %v2307, 16
    %v2585 = vrot.slane %v2583, 5
    %v2586 = vor.u32 %v2582, %v2585
    %v2587 = vrot.slane %v2586, 4
    %v2589 = vshll.u32 %v2308, 16
    %v2591 = vrot.slane %v2589, 5
    %v2592 = vsel %vm1167, %v2587, %v2591
    %v2593 = vshrl.u32 %v2308, 16
    %v2595 = vrot.slane %v2593, 4
    %v2596 = vor.u32 %v2595, %v2591
    %v2597 = vrot.slane %v2596, 4
    %v2599 = vshll.u32 %v2363, 16
    %v2601 = vrot.slane %v2599, 5
    %v2602 = vsel %vm1167, %v2597, %v2601
    %v2604 = vshrl.u32 %v2309, 16
    %v2606 = vrot.slane %v2604, 4
    %v2607 = vshll.u32 %v2309, 16
    %v2609 = vrot.slane %v2607, 5
    %v2610 = vor.u32 %v2606, %v2609
    %v2611 = vrot.slane %v2610, 4
    %v2613 = vshll.u32 %v2310, 16
    %v2615 = vrot.slane %v2613, 5
    %v2616 = vsel %vm1167, %v2611, %v2615
    %v2617 = vshrl.u32 %v2310, 16
    %v2619 = vrot.slane %v2617, 4
    %v2620 = vor.u32 %v2619, %v2615
    %v2621 = vrot.slane %v2620, 4
    %v2623 = vshll.u32 %v2364, 16
    %v2625 = vrot.slane %v2623, 5
    %v2626 = vsel %vm1167, %v2621, %v2625
    %v2628 = vshrl.u32 %v2311, 16
    %v2630 = vrot.slane %v2628, 4
    %v2631 = vshll.u32 %v2311, 16
    %v2633 = vrot.slane %v2631, 5
    %v2634 = vor.u32 %v2630, %v2633
    %v2635 = vrot.slane %v2634, 4
    %v2637 = vshll.u32 %v2312, 16
    %v2639 = vrot.slane %v2637, 5
    %v2640 = vsel %vm1167, %v2635, %v2639
    %v2641 = vshrl.u32 %v2312, 16
    %v2643 = vrot.slane %v2641, 4
    %v2644 = vor.u32 %v2643, %v2639
    %v2645 = vrot.slane %v2644, 4
    %v2647 = vshll.u32 %v2365, 16
    %v2649 = vrot.slane %v2647, 5
    %v2650 = vsel %vm1167, %v2645, %v2649
    %v2652 = vshrl.u32 %v2313, 16
    %v2654 = vrot.slane %v2652, 4
    %v2655 = vshll.u32 %v2313, 16
    %v2657 = vrot.slane %v2655, 5
    %v2658 = vor.u32 %v2654, %v2657
    %v2659 = vrot.slane %v2658, 4
    %v2661 = vshll.u32 %v2314, 16
    %v2663 = vrot.slane %v2661, 5
    %v2664 = vsel %vm1167, %v2659, %v2663
    %v2665 = vshrl.u32 %v2314, 16
    %v2667 = vrot.slane %v2665, 4
    %v2668 = vor.u32 %v2667, %v2663
    %v2669 = vrot.slane %v2668, 4
    %v2671 = vshll.u32 %v2366, 16
    %v2673 = vrot.slane %v2671, 5
    %v2674 = vsel %vm1167, %v2669, %v2673
    %v2676 = vshrl.u32 %v2315, 16
    %v2678 = vrot.slane %v2676, 4
    %v2679 = vshll.u32 %v2315, 16
    %v2681 = vrot.slane %v2679, 5
    %v2682 = vor.u32 %v2678, %v2681
    %v2683 = vrot.slane %v2682, 4
    %v2685 = vshll.u32 %v2316, 16
    %v2687 = vrot.slane %v2685, 5
    %v2688 = vsel %vm1167, %v2683, %v2687
    %v2689 = vshrl.u32 %v2316, 16
    %v2691 = vrot.slane %v2689, 4
    %v2692 = vor.u32 %v2691, %v2687
    %v2693 = vrot.slane %v2692, 4
    %v2695 = vshll.u32 %v2367, 16
    %v2697 = vrot.slane %v2695, 5
    %v2698 = vsel %vm1167, %v2693, %v2697
    %v2700 = vshrl.u32 %v2317, 16
    %v2702 = vrot.slane %v2700, 4
    %v2703 = vshll.u32 %v2317, 16
    %v2705 = vrot.slane %v2703, 5
    %v2706 = vor.u32 %v2702, %v2705
    %v2707 = vrot.slane %v2706, 4
    %v2709 = vshll.u32 %v2318, 16
    %v2711 = vrot.slane %v2709, 5
    %v2712 = vsel %vm1167, %v2707, %v2711
    %v2713 = vshrl.u32 %v2318, 16
    %v2715 = vrot.slane %v2713, 4
    %v2716 = vor.u32 %v2715, %v2711
    %v2717 = vrot.slane %v2716, 4
    %v2719 = vshll.u32 %v2368, 16
    %v2721 = vrot.slane %v2719, 5
    %v2722 = vsel %vm1167, %v2717, %v2721
    %v2724 = vshrl.u32 %v2319, 16
    %v2726 = vrot.slane %v2724, 4
    %v2727 = vshll.u32 %v2319, 16
    %v2729 = vrot.slane %v2727, 5
    %v2730 = vor.u32 %v2726, %v2729
    %v2731 = vrot.slane %v2730, 4
    %v2733 = vshll.u32 %v2320, 16
    %v2735 = vrot.slane %v2733, 5
    %v2736 = vsel %vm1167, %v2731, %v2735
    %v2737 = vshrl.u32 %v2320, 16
    %v2739 = vrot.slane %v2737, 4
    %v2740 = vor.u32 %v2739, %v2735
    %v2741 = vrot.slane %v2740, 4
    %v2743 = vshll.u32 %v2369, 16
    %v2745 = vrot.slane %v2743, 5
    %v2746 = vsel %vm1167, %v2741, %v2745
    %v2748 = vshrl.u32 %v2321, 16
    %v2750 = vrot.slane %v2748, 4
    %v2751 = vshll.u32 %v2321, 16
    %v2753 = vrot.slane %v2751, 5
    %v2754 = vor.u32 %v2750, %v2753
    %v2755 = vrot.slane %v2754, 4
    %v2757 = vshll.u32 %v2322, 16
    %v2759 = vrot.slane %v2757, 5
    %v2760 = vsel %vm1167, %v2755, %v2759
    %v2761 = vshrl.u32 %v2322, 16
    %v2763 = vrot.slane %v2761, 4
    %v2764 = vor.u32 %v2763, %v2759
    %v2765 = vrot.slane %v2764, 4
    %v2767 = vshll.u32 %v2370, 16
    %v2769 = vrot.slane %v2767, 5
    %v2770 = vsel %vm1167, %v2765, %v2769
    %v2772 = vshrl.u32 %v2323, 16
    %v2774 = vrot.slane %v2772, 4
    %v2775 = vshll.u32 %v2323, 16
    %v2777 = vrot.slane %v2775, 5
    %v2778 = vor.u32 %v2774, %v2777
    %v2779 = vrot.slane %v2778, 4
    %v2781 = vshll.u32 %v2324, 16
    %v2783 = vrot.slane %v2781, 5
    %v2784 = vsel %vm1167, %v2779, %v2783
    %v2785 = vshrl.u32 %v2324, 16
    %v2787 = vrot.slane %v2785, 4
    %v2788 = vor.u32 %v2787, %v2783
    %v2789 = vrot.slane %v2788, 4
    %v2791 = vshll.u32 %v2371, 16
    %v2793 = vrot.slane %v2791, 5
    %v2794 = vsel %vm1167, %v2789, %v2793
    %v2796 = vshrl.u32 %v2325, 16
    %v2798 = vrot.slane %v2796, 4
    %v2799 = vshll.u32 %v2325, 16
    %v2801 = vrot.slane %v2799, 5
    %v2802 = vor.u32 %v2798, %v2801
    %v2803 = vrot.slane %v2802, 4
    %v2805 = vshll.u32 %v2326, 16
    %v2807 = vrot.slane %v2805, 5
    %v2808 = vsel %vm1167, %v2803, %v2807
    %v2809 = vshrl.u32 %v2326, 16
    %v2811 = vrot.slane %v2809, 4
    %v2812 = vor.u32 %v2811, %v2807
    %v2813 = vrot.slane %v2812, 4
    %v2815 = vshll.u32 %v2372, 16
    %v2817 = vrot.slane %v2815, 5
    %v2818 = vsel %vm1167, %v2813, %v2817
    %v2820 = vshrl.u32 %v2327, 16
    %v2822 = vrot.slane %v2820, 4
    %v2823 = vshll.u32 %v2327, 16
    %v2825 = vrot.slane %v2823, 5
    %v2826 = vor.u32 %v2822, %v2825
    %v2827 = vrot.slane %v2826, 4
    %v2829 = vshll.u32 %v2328, 16
    %v2831 = vrot.slane %v2829, 5
    %v2832 = vsel %vm1167, %v2827, %v2831
    %v2833 = vshrl.u32 %v2328, 16
    %v2835 = vrot.slane %v2833, 4
    %v2836 = vor.u32 %v2835, %v2831
    %v2837 = vrot.slane %v2836, 4
    %v2839 = vshll.u32 %v2373, 16
    %v2841 = vrot.slane %v2839, 5
    %v2842 = vsel %vm1167, %v2837, %v2841
    %v2844 = vshrl.u32 %v2329, 16
    %v2846 = vrot.slane %v2844, 4
    %v2847 = vshll.u32 %v2329, 16
    %v2849 = vrot.slane %v2847, 5
    %v2850 = vor.u32 %v2846, %v2849
    %v2851 = vrot.slane %v2850, 4
    %v2853 = vshll.u32 %v2330, 16
    %v2855 = vrot.slane %v2853, 5
    %v2856 = vsel %vm1167, %v2851, %v2855
    %v2857 = vshrl.u32 %v2330, 16
    %v2859 = vrot.slane %v2857, 4
    %v2860 = vor.u32 %v2859, %v2855
    %v2861 = vrot.slane %v2860, 4
    %v2863 = vshll.u32 %v2374, 16
    %v2865 = vrot.slane %v2863, 5
    %v2866 = vsel %vm1167, %v2861, %v2865
    %v2868 = vshrl.u32 %v2331, 16
    %v2870 = vrot.slane %v2868, 4
    %v2871 = vshll.u32 %v2331, 16
    %v2873 = vrot.slane %v2871, 5
    %v2874 = vor.u32 %v2870, %v2873
    %v2875 = vrot.slane %v2874, 4
    %v2877 = vshll.u32 %v2332, 16
    %v2879 = vrot.slane %v2877, 5
    %v2880 = vsel %vm1167, %v2875, %v2879
    %v2881 = vshrl.u32 %v2332, 16
    %v2883 = vrot.slane %v2881, 4
    %v2884 = vor.u32 %v2883, %v2879
    %v2885 = vrot.slane %v2884, 4
    %v2887 = vshll.u32 %v2375, 16
    %v2889 = vrot.slane %v2887, 5
    %v2890 = vsel %vm1167, %v2885, %v2889
    %v2892 = vshrl.u32 %v2333, 16
    %v2894 = vrot.slane %v2892, 4
    %v2895 = vshll.u32 %v2333, 16
    %v2897 = vrot.slane %v2895, 5
    %v2898 = vor.u32 %v2894, %v2897
    %v2899 = vrot.slane %v2898, 4
    %v2901 = vshll.u32 %v2334, 16
    %v2903 = vrot.slane %v2901, 5
    %v2904 = vsel %vm1167, %v2899, %v2903
    %v2905 = vshrl.u32 %v2334, 16
    %v2907 = vrot.slane %v2905, 4
    %v2908 = vor.u32 %v2907, %v2903
    %v2909 = vrot.slane %v2908, 4
    %v2911 = vshll.u32 %v2376, 16
    %v2913 = vrot.slane %v2911, 5
    %v2914 = vsel %vm1167, %v2909, %v2913
    %v2916 = vshrl.u32 %v2335, 16
    %v2918 = vrot.slane %v2916, 4
    %v2919 = vshll.u32 %v2335, 16
    %v2921 = vrot.slane %v2919, 5
    %v2922 = vor.u32 %v2918, %v2921
    %v2923 = vrot.slane %v2922, 4
    %v2925 = vshll.u32 %v2336, 16
    %v2927 = vrot.slane %v2925, 5
    %v2928 = vsel %vm1167, %v2923, %v2927
    %v2929 = vshrl.u32 %v2336, 16
    %v2931 = vrot.slane %v2929, 4
    %v2932 = vor.u32 %v2931, %v2927
    %v2933 = vrot.slane %v2932, 4
    %v2935 = vshll.u32 %v2377, 16
    %v2937 = vrot.slane %v2935, 5
    %v2938 = vsel %vm1167, %v2933, %v2937
    %v2940 = vshrl.u32 %v2337, 16
    %v2942 = vrot.slane %v2940, 4
    %v2943 = vshll.u32 %v2337, 16
    %v2945 = vrot.slane %v2943, 5
    %v2946 = vor.u32 %v2942, %v2945
    %v2947 = vrot.slane %v2946, 4
    %v2949 = vshll.u32 %v2338, 16
    %v2951 = vrot.slane %v2949, 5
    %v2952 = vsel %vm1167, %v2947, %v2951
    %v2953 = vshrl.u32 %v2338, 16
    %v2955 = vrot.slane %v2953, 4
    %v2956 = vor.u32 %v2955, %v2951
    %v2957 = vrot.slane %v2956, 4
    %v2959 = vshll.u32 %v2378, 16
    %v2961 = vrot.slane %v2959, 5
    %v2962 = vsel %vm1167, %v2957, %v2961
    %v2964 = vshrl.u32 %v2339, 16
    %v2966 = vrot.slane %v2964, 4
    %v2967 = vshll.u32 %v2339, 16
    %v2969 = vrot.slane %v2967, 5
    %v2970 = vor.u32 %v2966, %v2969
    %v2971 = vrot.slane %v2970, 4
    %v2973 = vshll.u32 %v2340, 16
    %v2975 = vrot.slane %v2973, 5
    %v2976 = vsel %vm1167, %v2971, %v2975
    %v2977 = vshrl.u32 %v2340, 16
    %v2979 = vrot.slane %v2977, 4
    %v2980 = vor.u32 %v2979, %v2975
    %v2981 = vrot.slane %v2980, 4
    %v2983 = vshll.u32 %v2379, 16
    %v2985 = vrot.slane %v2983, 5
    %v2986 = vsel %vm1167, %v2981, %v2985
    %v2988 = vshrl.u32 %v2341, 16
    %v2990 = vrot.slane %v2988, 4
    %v2991 = vshll.u32 %v2341, 16
    %v2993 = vrot.slane %v2991, 5
    %v2994 = vor.u32 %v2990, %v2993
    %v2995 = vrot.slane %v2994, 4
    %v2997 = vshll.u32 %v2342, 16
    %v2999 = vrot.slane %v2997, 5
    %v3000 = vsel %vm1167, %v2995, %v2999
    %v3001 = vshrl.u32 %v2342, 16
    %v3003 = vrot.slane %v3001, 4
    %v3004 = vor.u32 %v3003, %v2999
    %v3005 = vrot.slane %v3004, 4
    %v3007 = vshll.u32 %v2380, 16
    %v3009 = vrot.slane %v3007, 5
    %v3010 = vsel %vm1167, %v3005, %v3009
    %v3012 = vshrl.u32 %v2343, 16
    %v3014 = vrot.slane %v3012, 4
    %v3015 = vshll.u32 %v2343, 16
    %v3017 = vrot.slane %v3015, 5
    %v3018 = vor.u32 %v3014, %v3017
    %v3019 = vrot.slane %v3018, 4
    %v3021 = vshll.u32 %v2344, 16
    %v3023 = vrot.slane %v3021, 5
    %v3024 = vsel %vm1167, %v3019, %v3023
    %v3025 = vshrl.u32 %v2344, 16
    %v3027 = vrot.slane %v3025, 4
    %v3028 = vor.u32 %v3027, %v3023
    %v3029 = vrot.slane %v3028, 4
    %v3031 = vshll.u32 %v2381, 16
    %v3033 = vrot.slane %v3031, 5
    %v3034 = vsel %vm1167, %v3029, %v3033
    %v3036 = vshrl.u32 %v2345, 16
    %v3038 = vrot.slane %v3036, 4
    %v3039 = vshll.u32 %v2345, 16
    %v3041 = vrot.slane %v3039, 5
    %v3042 = vor.u32 %v3038, %v3041
    %v3043 = vrot.slane %v3042, 4
    %v3045 = vshll.u32 %v2346, 16
    %v3047 = vrot.slane %v3045, 5
    %v3048 = vsel %vm1167, %v3043, %v3047
    %v3049 = vshrl.u32 %v2346, 16
    %v3051 = vrot.slane %v3049, 4
    %v3052 = vor.u32 %v3051, %v3047
    %v3053 = vrot.slane %v3052, 4
    %v3055 = vshll.u32 %v2382, 16
    %v3057 = vrot.slane %v3055, 5
    %v3058 = vsel %vm1167, %v3053, %v3057
    %v3060 = vshrl.u32 %v2347, 16
    %v3062 = vrot.slane %v3060, 4
    %v3063 = vshll.u32 %v2347, 16
    %v3065 = vrot.slane %v3063, 5
    %v3066 = vor.u32 %v3062, %v3065
    %v3067 = vrot.slane %v3066, 4
    %v3069 = vshll.u32 %v2348, 16
    %v3071 = vrot.slane %v3069, 5
    %v3072 = vsel %vm1167, %v3067, %v3071
    %v3073 = vshrl.u32 %v2348, 16
    %v3075 = vrot.slane %v3073, 4
    %v3076 = vor.u32 %v3075, %v3071
    %v3077 = vrot.slane %v3076, 4
    %v3079 = vshll.u32 %v2383, 16
    %v3081 = vrot.slane %v3079, 5
    %v3082 = vsel %vm1167, %v3077, %v3081
    %v3084 = vshrl.u32 %v2349, 16
    %v3086 = vrot.slane %v3084, 4
    %v3087 = vshll.u32 %v2349, 16
    %v3089 = vrot.slane %v3087, 5
    %v3090 = vor.u32 %v3086, %v3089
    %v3091 = vrot.slane %v3090, 4
    %v3093 = vshll.u32 %v2350, 16
    %v3095 = vrot.slane %v3093, 5
    %v3096 = vsel %vm1167, %v3091, %v3095
    %v3097 = vshrl.u32 %v2350, 16
    %v3099 = vrot.slane %v3097, 4
    %v3100 = vor.u32 %v3099, %v3095
    %v3101 = vrot.slane %v3100, 4
    %v3103 = vshll.u32 %v2384, 16
    %v3105 = vrot.slane %v3103, 5
    %v3106 = vsel %vm1167, %v3101, %v3105
    %v3108 = vshrl.u32 %v2351, 16
    %v3110 = vrot.slane %v3108, 4
    %v3111 = vshll.u32 %v2351, 16
    %v3113 = vrot.slane %v3111, 5
    %v3114 = vor.u32 %v3110, %v3113
    %v3115 = vrot.slane %v3114, 4
    %v3117 = vshll.u32 %v2352, 16
    %v3119 = vrot.slane %v3117, 5
    %v3120 = vsel %vm1167, %v3115, %v3119
    %v3121 = vshrl.u32 %v2352, 16
    %v3123 = vrot.slane %v3121, 4
    %v3124 = vor.u32 %v3123, %v3119
    %v3125 = vrot.slane %v3124, 4
    %v3127 = vshll.u32 %v2385, 16
    %v3129 = vrot.slane %v3127, 5
    %v3130 = vsel %vm1167, %v3125, %v3129
    %v3132 = vshrl.u32 %v2353, 16
    %v3134 = vrot.slane %v3132, 4
    %v3135 = vshll.u32 %v2353, 16
    %v3137 = vrot.slane %v3135, 5
    %v3138 = vor.u32 %v3134, %v3137
    %v3139 = vrot.slane %v3138, 4
    %v3141 = vshll.u32 %v2354, 16
    %v3143 = vrot.slane %v3141, 5
    %v3144 = vsel %vm1167, %v3139, %v3143
    %v3145 = vshrl.u32 %v2354, 16
    %v3147 = vrot.slane %v3145, 4
    %v3148 = vor.u32 %v3147, %v3143
    %v3149 = vrot.slane %v3148, 4
    %v3151 = vshll.u32 %v2386, 16
    %v3153 = vrot.slane %v3151, 5
    %v3154 = vsel %vm1167, %v3149, %v3153
    %v3155 = vld [vmem:[%s839] sm:$0xe]
    %v3156 = vld [vmem:[%s839 + $0xc] sm:$0xe]
    %v3157 = vld [vmem:[%s839 + $0x18] sm:$0xe]
    %v3158 = vld [vmem:[%s839 + $0x24] sm:$0xe]
    %v3159 = vld [vmem:[%s839 + $0x30] sm:$0xe]
    %v3160 = vld [vmem:[%s839 + $0x3c] sm:$0xe]
    %v3161 = vld [vmem:[%s839 + $0x48] sm:$0xe]
    %v3162 = vld [vmem:[%s839 + $0x54] sm:$0xe]
    %v3163 = vld [vmem:[%s839 + $0x60] sm:$0xe]
    %v3164 = vld [vmem:[%s839 + $0x6c] sm:$0xe]
    %v3165 = vld [vmem:[%s839 + $0x78] sm:$0xe]
    %v3166 = vld [vmem:[%s839 + $0x84] sm:$0xe]
    %v3167 = vld [vmem:[%s839 + $0x90] sm:$0xe]
    %v3168 = vld [vmem:[%s839 + $0x9c] sm:$0xe]
    %v3169 = vld [vmem:[%s839 + $0xa8] sm:$0xe]
    %v3170 = vld [vmem:[%s839 + $0xb4] sm:$0xe]
    %v3171 = vld [vmem:[%s839 + $0xd8] sm:$0xe]
    %v3172 = vld [vmem:[%s839 + $0xe4] sm:$0xe]
    %v3173 = vld [vmem:[%s839 + $0xf0] sm:$0xe]
    %v3174 = vld [vmem:[%s839 + $0xfc] sm:$0xe]
    %v3175 = vld [vmem:[%s839 + $0x108] sm:$0xe]
    %v3176 = vld [vmem:[%s839 + $0x114] sm:$0xe]
    %v3177 = vld [vmem:[%s839 + $0x120] sm:$0xe]
    %v3178 = vld [vmem:[%s839 + $0x12c] sm:$0xe]
    %v3179 = vld [vmem:[%s839 + $0x138] sm:$0xe]
    %v3180 = vld [vmem:[%s839 + $0x144] sm:$0xe]
    %v3181 = vld [vmem:[%s839 + $0x150] sm:$0xe]
    %v3182 = vld [vmem:[%s839 + $0x15c] sm:$0xe]
    %v3183 = vld [vmem:[%s839 + $0x168] sm:$0xe]
    %v3184 = vld [vmem:[%s839 + $0x174] sm:$0xe]
    %v3185 = vld [vmem:[%s839 + $0x180] sm:$0xe]
    %v3186 = vld [vmem:[%s839 + $0x18c] sm:$0xe]
    %v3283 = vrot.slane %v3155, 5
    %v3284 = vrot.slane %v3283, 4
    %v3285 = vrot.slane %v2292, 5
    %v3286 = vsel %vm2066, %v3284, %v3285
    %v3287 = vrot.slane %v3285, 4
    %v3288 = vrot.slane %v2355, 5
    %v3289 = vsel %vm2066, %v3287, %v3288
    %v3290 = vrot.slane %v3156, 5
    %v3291 = vrot.slane %v3290, 4
    %v3292 = vrot.slane %v2294, 5
    %v3293 = vsel %vm2066, %v3291, %v3292
    %v3294 = vrot.slane %v3292, 4
    %v3295 = vrot.slane %v2356, 5
    %v3296 = vsel %vm2066, %v3294, %v3295
    %v3297 = vrot.slane %v3157, 5
    %v3298 = vrot.slane %v3297, 4
    %v3299 = vrot.slane %v2296, 5
    %v3300 = vsel %vm2066, %v3298, %v3299
    %v3301 = vrot.slane %v3299, 4
    %v3302 = vrot.slane %v2357, 5
    %v3303 = vsel %vm2066, %v3301, %v3302
    %v3304 = vrot.slane %v3158, 5
    %v3305 = vrot.slane %v3304, 4
    %v3306 = vrot.slane %v2298, 5
    %v3307 = vsel %vm2066, %v3305, %v3306
    %v3308 = vrot.slane %v3306, 4
    %v3309 = vrot.slane %v2358, 5
    %v3310 = vsel %vm2066, %v3308, %v3309
    %v3311 = vrot.slane %v3159, 5
    %v3312 = vrot.slane %v3311, 4
    %v3313 = vrot.slane %v2300, 5
    %v3314 = vsel %vm2066, %v3312, %v3313
    %v3315 = vrot.slane %v3313, 4
    %v3316 = vrot.slane %v2359, 5
    %v3317 = vsel %vm2066, %v3315, %v3316
    %v3318 = vrot.slane %v3160, 5
    %v3319 = vrot.slane %v3318, 4
    %v3320 = vrot.slane %v2302, 5
    %v3321 = vsel %vm2066, %v3319, %v3320
    %v3322 = vrot.slane %v3320, 4
    %v3323 = vrot.slane %v2360, 5
    %v3324 = vsel %vm2066, %v3322, %v3323
    %v3325 = vrot.slane %v3161, 5
    %v3326 = vrot.slane %v3325, 4
    %v3327 = vrot.slane %v2304, 5
    %v3328 = vsel %vm2066, %v3326, %v3327
    %v3329 = vrot.slane %v3327, 4
    %v3330 = vrot.slane %v2361, 5
    %v3331 = vsel %vm2066, %v3329, %v3330
    %v3332 = vrot.slane %v3162, 5
    %v3333 = vrot.slane %v3332, 4
    %v3334 = vrot.slane %v2306, 5
    %v3335 = vsel %vm2066, %v3333, %v3334
    %v3336 = vrot.slane %v3334, 4
    %v3337 = vrot.slane %v2362, 5
    %v3338 = vsel %vm2066, %v3336, %v3337
    %v3339 = vrot.slane %v3163, 5
    %v3340 = vrot.slane %v3339, 4
    %v3341 = vrot.slane %v2308, 5
    %v3342 = vsel %vm2066, %v3340, %v3341
    %v3343 = vrot.slane %v3341, 4
    %v3344 = vrot.slane %v2363, 5
    %v3345 = vsel %vm2066, %v3343, %v3344
    %v3346 = vrot.slane %v3164, 5
    %v3347 = vrot.slane %v3346, 4
    %v3348 = vrot.slane %v2310, 5
    %v3349 = vsel %vm2066, %v3347, %v3348
    %v3350 = vrot.slane %v3348, 4
    %v3351 = vrot.slane %v2364, 5
    %v3352 = vsel %vm2066, %v3350, %v3351
    %v3353 = vrot.slane %v3165, 5
    %v3354 = vrot.slane %v3353, 4
    %v3355 = vrot.slane %v2312, 5
    %v3356 = vsel %vm2066, %v3354, %v3355
    %v3357 = vrot.slane %v3355, 4
    %v3358 = vrot.slane %v2365, 5
    %v3359 = vsel %vm2066, %v3357, %v3358
    %v3360 = vrot.slane %v3166, 5
    %v3361 = vrot.slane %v3360, 4
    %v3362 = vrot.slane %v2314, 5
    %v3363 = vsel %vm2066, %v3361, %v3362
    %v3364 = vrot.slane %v3362, 4
    %v3365 = vrot.slane %v2366, 5
    %v3366 = vsel %vm2066, %v3364, %v3365
    %v3367 = vrot.slane %v3167, 5
    %v3368 = vrot.slane %v3367, 4
    %v3369 = vrot.slane %v2316, 5
    %v3370 = vsel %vm2066, %v3368, %v3369
    %v3371 = vrot.slane %v3369, 4
    %v3372 = vrot.slane %v2367, 5
    %v3373 = vsel %vm2066, %v3371, %v3372
    %v3374 = vrot.slane %v3168, 5
    %v3375 = vrot.slane %v3374, 4
    %v3376 = vrot.slane %v2318, 5
    %v3377 = vsel %vm2066, %v3375, %v3376
    %v3378 = vrot.slane %v3376, 4
    %v3379 = vrot.slane %v2368, 5
    %v3380 = vsel %vm2066, %v3378, %v3379
    %v3381 = vrot.slane %v3169, 5
    %v3382 = vrot.slane %v3381, 4
    %v3383 = vrot.slane %v2320, 5
    %v3384 = vsel %vm2066, %v3382, %v3383
    %v3385 = vrot.slane %v3383, 4
    %v3386 = vrot.slane %v2369, 5
    %v3387 = vsel %vm2066, %v3385, %v3386
    %v3388 = vrot.slane %v3170, 5
    %v3389 = vrot.slane %v3388, 4
    %v3390 = vrot.slane %v2322, 5
    %v3391 = vsel %vm2066, %v3389, %v3390
    %v3392 = vrot.slane %v3390, 4
    %v3393 = vrot.slane %v2370, 5
    %v3394 = vsel %vm2066, %v3392, %v3393
    %v3395 = vrot.slane %v3171, 5
    %v3396 = vrot.slane %v3395, 4
    %v3397 = vrot.slane %v2324, 5
    %v3398 = vsel %vm2066, %v3396, %v3397
    %v3399 = vrot.slane %v3397, 4
    %v3400 = vrot.slane %v2371, 5
    %v3401 = vsel %vm2066, %v3399, %v3400
    %v3402 = vrot.slane %v3172, 5
    %v3403 = vrot.slane %v3402, 4
    %v3404 = vrot.slane %v2326, 5
    %v3405 = vsel %vm2066, %v3403, %v3404
    %v3406 = vrot.slane %v3404, 4
    %v3407 = vrot.slane %v2372, 5
    %v3408 = vsel %vm2066, %v3406, %v3407
    %v3409 = vrot.slane %v3173, 5
    %v3410 = vrot.slane %v3409, 4
    %v3411 = vrot.slane %v2328, 5
    %v3412 = vsel %vm2066, %v3410, %v3411
    %v3413 = vrot.slane %v3411, 4
    %v3414 = vrot.slane %v2373, 5
    %v3415 = vsel %vm2066, %v3413, %v3414
    %v3416 = vrot.slane %v3174, 5
    %v3417 = vrot.slane %v3416, 4
    %v3418 = vrot.slane %v2330, 5
    %v3419 = vsel %vm2066, %v3417, %v3418
    %v3420 = vrot.slane %v3418, 4
    %v3421 = vrot.slane %v2374, 5
    %v3422 = vsel %vm2066, %v3420, %v3421
    %v3423 = vrot.slane %v3175, 5
    %v3424 = vrot.slane %v3423, 4
    %v3425 = vrot.slane %v2332, 5
    %v3426 = vsel %vm2066, %v3424, %v3425
    %v3427 = vrot.slane %v3425, 4
    %v3428 = vrot.slane %v2375, 5
    %v3429 = vsel %vm2066, %v3427, %v3428
    %v3430 = vrot.slane %v3176, 5
    %v3431 = vrot.slane %v3430, 4
    %v3432 = vrot.slane %v2334, 5
    %v3433 = vsel %vm2066, %v3431, %v3432
    %v3434 = vrot.slane %v3432, 4
    %v3435 = vrot.slane %v2376, 5
    %v3436 = vsel %vm2066, %v3434, %v3435
    %v3437 = vrot.slane %v3177, 5
    %v3438 = vrot.slane %v3437, 4
    %v3439 = vrot.slane %v2336, 5
    %v3440 = vsel %vm2066, %v3438, %v3439
    %v3441 = vrot.slane %v3439, 4
    %v3442 = vrot.slane %v2377, 5
    %v3443 = vsel %vm2066, %v3441, %v3442
    %v3444 = vrot.slane %v3178, 5
    %v3445 = vrot.slane %v3444, 4
    %v3446 = vrot.slane %v2338, 5
    %v3447 = vsel %vm2066, %v3445, %v3446
    %v3448 = vrot.slane %v3446, 4
    %v3449 = vrot.slane %v2378, 5
    %v3450 = vsel %vm2066, %v3448, %v3449
    %v3451 = vrot.slane %v3179, 5
    %v3452 = vrot.slane %v3451, 4
    %v3453 = vrot.slane %v2340, 5
    %v3454 = vsel %vm2066, %v3452, %v3453
    %v3455 = vrot.slane %v3453, 4
    %v3456 = vrot.slane %v2379, 5
    %v3457 = vsel %vm2066, %v3455, %v3456
    %v3458 = vrot.slane %v3180, 5
    %v3459 = vrot.slane %v3458, 4
    %v3460 = vrot.slane %v2342, 5
    %v3461 = vsel %vm2066, %v3459, %v3460
    %v3462 = vrot.slane %v3460, 4
    %v3463 = vrot.slane %v2380, 5
    %v3464 = vsel %vm2066, %v3462, %v3463
    %v3465 = vrot.slane %v3181, 5
    %v3466 = vrot.slane %v3465, 4
    %v3467 = vrot.slane %v2344, 5
    %v3468 = vsel %vm2066, %v3466, %v3467
    %v3469 = vrot.slane %v3467, 4
    %v3470 = vrot.slane %v2381, 5
    %v3471 = vsel %vm2066, %v3469, %v3470
    %v3472 = vrot.slane %v3182, 5
    %v3473 = vrot.slane %v3472, 4
    %v3474 = vrot.slane %v2346, 5
    %v3475 = vsel %vm2066, %v3473, %v3474
    %v3476 = vrot.slane %v3474, 4
    %v3477 = vrot.slane %v2382, 5
    %v3478 = vsel %vm2066, %v3476, %v3477
    %v3479 = vrot.slane %v3183, 5
    %v3480 = vrot.slane %v3479, 4
    %v3481 = vrot.slane %v2348, 5
    %v3482 = vsel %vm2066, %v3480, %v3481
    %v3483 = vrot.slane %v3481, 4
    %v3484 = vrot.slane %v2383, 5
    %v3485 = vsel %vm2066, %v3483, %v3484
    %v3486 = vrot.slane %v3184, 5
    %v3487 = vrot.slane %v3486, 4
    %v3488 = vrot.slane %v2350, 5
    %v3489 = vsel %vm2066, %v3487, %v3488
    %v3490 = vrot.slane %v3488, 4
    %v3491 = vrot.slane %v2384, 5
    %v3492 = vsel %vm2066, %v3490, %v3491
    %v3493 = vrot.slane %v3185, 5
    %v3494 = vrot.slane %v3493, 4
    %v3495 = vrot.slane %v2352, 5
    %v3496 = vsel %vm2066, %v3494, %v3495
    %v3497 = vrot.slane %v3495, 4
    %v3498 = vrot.slane %v2385, 5
    %v3499 = vsel %vm2066, %v3497, %v3498
    %v3500 = vrot.slane %v3186, 5
    %v3501 = vrot.slane %v3500, 4
    %v3502 = vrot.slane %v2354, 5
    %v3503 = vsel %vm2066, %v3501, %v3502
    %v3504 = vrot.slane %v3502, 4
    %v3505 = vrot.slane %v2386, 5
    %v3506 = vsel %vm2066, %v3504, %v3505
    %s3507 = scalar_lea.vmem [#allocation2], 24
    %v3508 = vld [vmem:[%s3507] sm:$0xf]
    %v3509 = vld [vmem:[%s3507 + $0x4] sm:$0xf]
    %v3510 = vld [vmem:[%s3507 + $0xc] sm:$0xf]
    %v3511 = vld [vmem:[%s3507 + $0x10] sm:$0xf]
    %v3512 = vld [vmem:[%s3507 + $0x18] sm:$0xf]
    %v3513 = vld [vmem:[%s3507 + $0x1c] sm:$0xf]
    %v3514 = vld [vmem:[%s3507 + $0x24] sm:$0xf]
    %v3515 = vld [vmem:[%s3507 + $0x28] sm:$0xf]
    %v3516 = vld [vmem:[%s3507 + $0x30] sm:$0xf]
    %v3517 = vld [vmem:[%s3507 + $0x34] sm:$0xf]
    %v3518 = vld [vmem:[%s3507 + $0x3c] sm:$0xf]
    %v3519 = vld [vmem:[%s3507 + $0x40] sm:$0xf]
    %v3520 = vld [vmem:[%s3507 + $0x48] sm:$0xf]
    %v3521 = vld [vmem:[%s3507 + $0x4c] sm:$0xf]
    %v3522 = vld [vmem:[%s3507 + $0x54] sm:$0xf]
    %v3523 = vld [vmem:[%s3507 + $0x58] sm:$0xf]
    %v3524 = vld [vmem:[%s3507 + $0x60] sm:$0xf]
    %v3525 = vld [vmem:[%s3507 + $0x64] sm:$0xf]
    %v3526 = vld [vmem:[%s3507 + $0x6c] sm:$0xf]
    %v3527 = vld [vmem:[%s3507 + $0x70] sm:$0xf]
    %v3528 = vld [vmem:[%s3507 + $0x78] sm:$0xf]
    %v3529 = vld [vmem:[%s3507 + $0x7c] sm:$0xf]
    %v3530 = vld [vmem:[%s3507 + $0x84] sm:$0xf]
    %v3531 = vld [vmem:[%s3507 + $0x88] sm:$0xf]
    %v3532 = vld [vmem:[%s3507 + $0x90] sm:$0xf]
    %v3533 = vld [vmem:[%s3507 + $0x94] sm:$0xf]
    %v3534 = vld [vmem:[%s3507 + $0x9c] sm:$0xf]
    %v3535 = vld [vmem:[%s3507 + $0xa0] sm:$0xf]
    %v3536 = vld [vmem:[%s3507 + $0xa8] sm:$0xf]
    %v3537 = vld [vmem:[%s3507 + $0xac] sm:$0xf]
    %v3538 = vld [vmem:[%s3507 + $0xb4] sm:$0xf]
    %v3539 = vld [vmem:[%s3507 + $0xb8] sm:$0xf]
    %v3540 = vld [vmem:[%s3507 + $0xd8] sm:$0xf]
    %v3541 = vld [vmem:[%s3507 + $0xdc] sm:$0xf]
    %v3542 = vld [vmem:[%s3507 + $0xe4] sm:$0xf]
    %v3543 = vld [vmem:[%s3507 + $0xe8] sm:$0xf]
    %v3544 = vld [vmem:[%s3507 + $0xf0] sm:$0xf]
    %v3545 = vld [vmem:[%s3507 + $0xf4] sm:$0xf]
    %v3546 = vld [vmem:[%s3507 + $0xfc] sm:$0xf]
    %v3547 = vld [vmem:[%s3507 + $0x100] sm:$0xf]
    %v3548 = vld [vmem:[%s3507 + $0x108] sm:$0xf]
    %v3549 = vld [vmem:[%s3507 + $0x10c] sm:$0xf]
    %v3550 = vld [vmem:[%s3507 + $0x114] sm:$0xf]
    %v3551 = vld [vmem:[%s3507 + $0x118] sm:$0xf]
    %v3552 = vld [vmem:[%s3507 + $0x120] sm:$0xf]
    %v3553 = vld [vmem:[%s3507 + $0x124] sm:$0xf]
    %v3554 = vld [vmem:[%s3507 + $0x12c] sm:$0xf]
    %v3555 = vld [vmem:[%s3507 + $0x130] sm:$0xf]
    %v3556 = vld [vmem:[%s3507 + $0x138] sm:$0xf]
    %v3557 = vld [vmem:[%s3507 + $0x13c] sm:$0xf]
    %v3558 = vld [vmem:[%s3507 + $0x144] sm:$0xf]
    %v3559 = vld [vmem:[%s3507 + $0x148] sm:$0xf]
    %v3560 = vld [vmem:[%s3507 + $0x150] sm:$0xf]
    %v3561 = vld [vmem:[%s3507 + $0x154] sm:$0xf]
    %v3562 = vld [vmem:[%s3507 + $0x15c] sm:$0xf]
    %v3563 = vld [vmem:[%s3507 + $0x160] sm:$0xf]
    %v3564 = vld [vmem:[%s3507 + $0x168] sm:$0xf]
    %v3565 = vld [vmem:[%s3507 + $0x16c] sm:$0xf]
    %v3566 = vld [vmem:[%s3507 + $0x174] sm:$0xf]
    %v3567 = vld [vmem:[%s3507 + $0x178] sm:$0xf]
    %v3568 = vld [vmem:[%s3507 + $0x180] sm:$0xf]
    %v3569 = vld [vmem:[%s3507 + $0x184] sm:$0xf]
    %v3570 = vld [vmem:[%s3507 + $0x18c] sm:$0xf]
    %v3571 = vld [vmem:[%s3507 + $0x190] sm:$0xf]
    %v3572 = vld [vmem:[%s3507 + $0x8] sm:$0x1]
    %v3573 = vld [vmem:[%s3507 + $0x14] sm:$0x1]
    %v3574 = vld [vmem:[%s3507 + $0x20] sm:$0x1]
    %v3575 = vld [vmem:[%s3507 + $0x2c] sm:$0x1]
    %v3576 = vld [vmem:[%s3507 + $0x38] sm:$0x1]
    %v3577 = vld [vmem:[%s3507 + $0x44] sm:$0x1]
    %v3578 = vld [vmem:[%s3507 + $0x50] sm:$0x1]
    %v3579 = vld [vmem:[%s3507 + $0x5c] sm:$0x1]
    %v3580 = vld [vmem:[%s3507 + $0x68] sm:$0x1]
    %v3581 = vld [vmem:[%s3507 + $0x74] sm:$0x1]
    %v3582 = vld [vmem:[%s3507 + $0x80] sm:$0x1]
    %v3583 = vld [vmem:[%s3507 + $0x8c] sm:$0x1]
    %v3584 = vld [vmem:[%s3507 + $0x98] sm:$0x1]
    %v3585 = vld [vmem:[%s3507 + $0xa4] sm:$0x1]
    %v3586 = vld [vmem:[%s3507 + $0xb0] sm:$0x1]
    %v3587 = vld [vmem:[%s3507 + $0xbc] sm:$0x1]
    %v3588 = vld [vmem:[%s3507 + $0xe0] sm:$0x1]
    %v3589 = vld [vmem:[%s3507 + $0xec] sm:$0x1]
    %v3590 = vld [vmem:[%s3507 + $0xf8] sm:$0x1]
    %v3591 = vld [vmem:[%s3507 + $0x104] sm:$0x1]
    %v3592 = vld [vmem:[%s3507 + $0x110] sm:$0x1]
    %v3593 = vld [vmem:[%s3507 + $0x11c] sm:$0x1]
    %v3594 = vld [vmem:[%s3507 + $0x128] sm:$0x1]
    %v3595 = vld [vmem:[%s3507 + $0x134] sm:$0x1]
    %v3596 = vld [vmem:[%s3507 + $0x140] sm:$0x1]
    %v3597 = vld [vmem:[%s3507 + $0x14c] sm:$0x1]
    %v3598 = vld [vmem:[%s3507 + $0x158] sm:$0x1]
    %v3599 = vld [vmem:[%s3507 + $0x164] sm:$0x1]
    %v3600 = vld [vmem:[%s3507 + $0x170] sm:$0x1]
    %v3601 = vld [vmem:[%s3507 + $0x17c] sm:$0x1]
    %v3602 = vld [vmem:[%s3507 + $0x188] sm:$0x1]
    %v3603 = vld [vmem:[%s3507 + $0x194] sm:$0x1]
    %v3605 = vshrl.u32 %v3508, 16
    %v3607 = vrot.slane %v3605, 4
    %v3608 = vshll.u32 %v3508, 16
    %v3610 = vrot.slane %v3608, 5
    %v3611 = vor.u32 %v3607, %v3610
    %v3612 = vrot.slane %v3611, 4
    %v3614 = vshll.u32 %v3509, 16
    %v3616 = vrot.slane %v3614, 5
    %v3617 = vsel %vm1167, %v3612, %v3616
    %v3618 = vshrl.u32 %v3509, 16
    %v3620 = vrot.slane %v3618, 4
    %v3621 = vor.u32 %v3620, %v3616
    %v3622 = vrot.slane %v3621, 4
    %v3624 = vshll.u32 %v3572, 16
    %v3626 = vrot.slane %v3624, 5
    %v3627 = vsel %vm1167, %v3622, %v3626
    %v3629 = vshrl.u32 %v3510, 16
    %v3631 = vrot.slane %v3629, 4
    %v3632 = vshll.u32 %v3510, 16
    %v3634 = vrot.slane %v3632, 5
    %v3635 = vor.u32 %v3631, %v3634
    %v3636 = vrot.slane %v3635, 4
    %v3638 = vshll.u32 %v3511, 16
    %v3640 = vrot.slane %v3638, 5
    %v3641 = vsel %vm1167, %v3636, %v3640
    %v3642 = vshrl.u32 %v3511, 16
    %v3644 = vrot.slane %v3642, 4
    %v3645 = vor.u32 %v3644, %v3640
    %v3646 = vrot.slane %v3645, 4
    %v3648 = vshll.u32 %v3573, 16
    %v3650 = vrot.slane %v3648, 5
    %v3651 = vsel %vm1167, %v3646, %v3650
    %v3653 = vshrl.u32 %v3512, 16
    %v3655 = vrot.slane %v3653, 4
    %v3656 = vshll.u32 %v3512, 16
    %v3658 = vrot.slane %v3656, 5
    %v3659 = vor.u32 %v3655, %v3658
    %v3660 = vrot.slane %v3659, 4
    %v3662 = vshll.u32 %v3513, 16
    %v3664 = vrot.slane %v3662, 5
    %v3665 = vsel %vm1167, %v3660, %v3664
    %v3666 = vshrl.u32 %v3513, 16
    %v3668 = vrot.slane %v3666, 4
    %v3669 = vor.u32 %v3668, %v3664
    %v3670 = vrot.slane %v3669, 4
    %v3672 = vshll.u32 %v3574, 16
    %v3674 = vrot.slane %v3672, 5
    %v3675 = vsel %vm1167, %v3670, %v3674
    %v3677 = vshrl.u32 %v3514, 16
    %v3679 = vrot.slane %v3677, 4
    %v3680 = vshll.u32 %v3514, 16
    %v3682 = vrot.slane %v3680, 5
    %v3683 = vor.u32 %v3679, %v3682
    %v3684 = vrot.slane %v3683, 4
    %v3686 = vshll.u32 %v3515, 16
    %v3688 = vrot.slane %v3686, 5
    %v3689 = vsel %vm1167, %v3684, %v3688
    %v3690 = vshrl.u32 %v3515, 16
    %v3692 = vrot.slane %v3690, 4
    %v3693 = vor.u32 %v3692, %v3688
    %v3694 = vrot.slane %v3693, 4
    %v3696 = vshll.u32 %v3575, 16
    %v3698 = vrot.slane %v3696, 5
    %v3699 = vsel %vm1167, %v3694, %v3698
    %v3701 = vshrl.u32 %v3516, 16
    %v3703 = vrot.slane %v3701, 4
    %v3704 = vshll.u32 %v3516, 16
    %v3706 = vrot.slane %v3704, 5
    %v3707 = vor.u32 %v3703, %v3706
    %v3708 = vrot.slane %v3707, 4
    %v3710 = vshll.u32 %v3517, 16
    %v3712 = vrot.slane %v3710, 5
    %v3713 = vsel %vm1167, %v3708, %v3712
    %v3714 = vshrl.u32 %v3517, 16
    %v3716 = vrot.slane %v3714, 4
    %v3717 = vor.u32 %v3716, %v3712
    %v3718 = vrot.slane %v3717, 4
    %v3720 = vshll.u32 %v3576, 16
    %v3722 = vrot.slane %v3720, 5
    %v3723 = vsel %vm1167, %v3718, %v3722
    %v3725 = vshrl.u32 %v3518, 16
    %v3727 = vrot.slane %v3725, 4
    %v3728 = vshll.u32 %v3518, 16
    %v3730 = vrot.slane %v3728, 5
    %v3731 = vor.u32 %v3727, %v3730
    %v3732 = vrot.slane %v3731, 4
    %v3734 = vshll.u32 %v3519, 16
    %v3736 = vrot.slane %v3734, 5
    %v3737 = vsel %vm1167, %v3732, %v3736
    %v3738 = vshrl.u32 %v3519, 16
    %v3740 = vrot.slane %v3738, 4
    %v3741 = vor.u32 %v3740, %v3736
    %v3742 = vrot.slane %v3741, 4
    %v3744 = vshll.u32 %v3577, 16
    %v3746 = vrot.slane %v3744, 5
    %v3747 = vsel %vm1167, %v3742, %v3746
    %v3749 = vshrl.u32 %v3520, 16
    %v3751 = vrot.slane %v3749, 4
    %v3752 = vshll.u32 %v3520, 16
    %v3754 = vrot.slane %v3752, 5
    %v3755 = vor.u32 %v3751, %v3754
    %v3756 = vrot.slane %v3755, 4
    %v3758 = vshll.u32 %v3521, 16
    %v3760 = vrot.slane %v3758, 5
    %v3761 = vsel %vm1167, %v3756, %v3760
    %v3762 = vshrl.u32 %v3521, 16
    %v3764 = vrot.slane %v3762, 4
    %v3765 = vor.u32 %v3764, %v3760
    %v3766 = vrot.slane %v3765, 4
    %v3768 = vshll.u32 %v3578, 16
    %v3770 = vrot.slane %v3768, 5
    %v3771 = vsel %vm1167, %v3766, %v3770
    %v3773 = vshrl.u32 %v3522, 16
    %v3775 = vrot.slane %v3773, 4
    %v3776 = vshll.u32 %v3522, 16
    %v3778 = vrot.slane %v3776, 5
    %v3779 = vor.u32 %v3775, %v3778
    %v3780 = vrot.slane %v3779, 4
    %v3782 = vshll.u32 %v3523, 16
    %v3784 = vrot.slane %v3782, 5
    %v3785 = vsel %vm1167, %v3780, %v3784
    %v3786 = vshrl.u32 %v3523, 16
    %v3788 = vrot.slane %v3786, 4
    %v3789 = vor.u32 %v3788, %v3784
    %v3790 = vrot.slane %v3789, 4
    %v3792 = vshll.u32 %v3579, 16
    %v3794 = vrot.slane %v3792, 5
    %v3795 = vsel %vm1167, %v3790, %v3794
    %v3797 = vshrl.u32 %v3524, 16
    %v3799 = vrot.slane %v3797, 4
    %v3800 = vshll.u32 %v3524, 16
    %v3802 = vrot.slane %v3800, 5
    %v3803 = vor.u32 %v3799, %v3802
    %v3804 = vrot.slane %v3803, 4
    %v3806 = vshll.u32 %v3525, 16
    %v3808 = vrot.slane %v3806, 5
    %v3809 = vsel %vm1167, %v3804, %v3808
    %v3810 = vshrl.u32 %v3525, 16
    %v3812 = vrot.slane %v3810, 4
    %v3813 = vor.u32 %v3812, %v3808
    %v3814 = vrot.slane %v3813, 4
    %v3816 = vshll.u32 %v3580, 16
    %v3818 = vrot.slane %v3816, 5
    %v3819 = vsel %vm1167, %v3814, %v3818
    %v3821 = vshrl.u32 %v3526, 16
    %v3823 = vrot.slane %v3821, 4
    %v3824 = vshll.u32 %v3526, 16
    %v3826 = vrot.slane %v3824, 5
    %v3827 = vor.u32 %v3823, %v3826
    %v3828 = vrot.slane %v3827, 4
    %v3830 = vshll.u32 %v3527, 16
    %v3832 = vrot.slane %v3830, 5
    %v3833 = vsel %vm1167, %v3828, %v3832
    %v3834 = vshrl.u32 %v3527, 16
    %v3836 = vrot.slane %v3834, 4
    %v3837 = vor.u32 %v3836, %v3832
    %v3838 = vrot.slane %v3837, 4
    %v3840 = vshll.u32 %v3581, 16
    %v3842 = vrot.slane %v3840, 5
    %v3843 = vsel %vm1167, %v3838, %v3842
    %v3845 = vshrl.u32 %v3528, 16
    %v3847 = vrot.slane %v3845, 4
    %v3848 = vshll.u32 %v3528, 16
    %v3850 = vrot.slane %v3848, 5
    %v3851 = vor.u32 %v3847, %v3850
    %v3852 = vrot.slane %v3851, 4
    %v3854 = vshll.u32 %v3529, 16
    %v3856 = vrot.slane %v3854, 5
    %v3857 = vsel %vm1167, %v3852, %v3856
    %v3858 = vshrl.u32 %v3529, 16
    %v3860 = vrot.slane %v3858, 4
    %v3861 = vor.u32 %v3860, %v3856
    %v3862 = vrot.slane %v3861, 4
    %v3864 = vshll.u32 %v3582, 16
    %v3866 = vrot.slane %v3864, 5
    %v3867 = vsel %vm1167, %v3862, %v3866
    %v3869 = vshrl.u32 %v3530, 16
    %v3871 = vrot.slane %v3869, 4
    %v3872 = vshll.u32 %v3530, 16
    %v3874 = vrot.slane %v3872, 5
    %v3875 = vor.u32 %v3871, %v3874
    %v3876 = vrot.slane %v3875, 4
    %v3878 = vshll.u32 %v3531, 16
    %v3880 = vrot.slane %v3878, 5
    %v3881 = vsel %vm1167, %v3876, %v3880
    %v3882 = vshrl.u32 %v3531, 16
    %v3884 = vrot.slane %v3882, 4
    %v3885 = vor.u32 %v3884, %v3880
    %v3886 = vrot.slane %v3885, 4
    %v3888 = vshll.u32 %v3583, 16
    %v3890 = vrot.slane %v3888, 5
    %v3891 = vsel %vm1167, %v3886, %v3890
    %v3893 = vshrl.u32 %v3532, 16
    %v3895 = vrot.slane %v3893, 4
    %v3896 = vshll.u32 %v3532, 16
    %v3898 = vrot.slane %v3896, 5
    %v3899 = vor.u32 %v3895, %v3898
    %v3900 = vrot.slane %v3899, 4
    %v3902 = vshll.u32 %v3533, 16
    %v3904 = vrot.slane %v3902, 5
    %v3905 = vsel %vm1167, %v3900, %v3904
    %v3906 = vshrl.u32 %v3533, 16
    %v3908 = vrot.slane %v3906, 4
    %v3909 = vor.u32 %v3908, %v3904
    %v3910 = vrot.slane %v3909, 4
    %v3912 = vshll.u32 %v3584, 16
    %v3914 = vrot.slane %v3912, 5
    %v3915 = vsel %vm1167, %v3910, %v3914
    %v3917 = vshrl.u32 %v3534, 16
    %v3919 = vrot.slane %v3917, 4
    %v3920 = vshll.u32 %v3534, 16
    %v3922 = vrot.slane %v3920, 5
    %v3923 = vor.u32 %v3919, %v3922
    %v3924 = vrot.slane %v3923, 4
    %v3926 = vshll.u32 %v3535, 16
    %v3928 = vrot.slane %v3926, 5
    %v3929 = vsel %vm1167, %v3924, %v3928
    %v3930 = vshrl.u32 %v3535, 16
    %v3932 = vrot.slane %v3930, 4
    %v3933 = vor.u32 %v3932, %v3928
    %v3934 = vrot.slane %v3933, 4
    %v3936 = vshll.u32 %v3585, 16
    %v3938 = vrot.slane %v3936, 5
    %v3939 = vsel %vm1167, %v3934, %v3938
    %v3941 = vshrl.u32 %v3536, 16
    %v3943 = vrot.slane %v3941, 4
    %v3944 = vshll.u32 %v3536, 16
    %v3946 = vrot.slane %v3944, 5
    %v3947 = vor.u32 %v3943, %v3946
    %v3948 = vrot.slane %v3947, 4
    %v3950 = vshll.u32 %v3537, 16
    %v3952 = vrot.slane %v3950, 5
    %v3953 = vsel %vm1167, %v3948, %v3952
    %v3954 = vshrl.u32 %v3537, 16
    %v3956 = vrot.slane %v3954, 4
    %v3957 = vor.u32 %v3956, %v3952
    %v3958 = vrot.slane %v3957, 4
    %v3960 = vshll.u32 %v3586, 16
    %v3962 = vrot.slane %v3960, 5
    %v3963 = vsel %vm1167, %v3958, %v3962
    %v3965 = vshrl.u32 %v3538, 16
    %v3967 = vrot.slane %v3965, 4
    %v3968 = vshll.u32 %v3538, 16
    %v3970 = vrot.slane %v3968, 5
    %v3971 = vor.u32 %v3967, %v3970
    %v3972 = vrot.slane %v3971, 4
    %v3974 = vshll.u32 %v3539, 16
    %v3976 = vrot.slane %v3974, 5
    %v3977 = vsel %vm1167, %v3972, %v3976
    %v3978 = vshrl.u32 %v3539, 16
    %v3980 = vrot.slane %v3978, 4
    %v3981 = vor.u32 %v3980, %v3976
    %v3982 = vrot.slane %v3981, 4
    %v3984 = vshll.u32 %v3587, 16
    %v3986 = vrot.slane %v3984, 5
    %v3987 = vsel %vm1167, %v3982, %v3986
    %v3989 = vshrl.u32 %v3540, 16
    %v3991 = vrot.slane %v3989, 4
    %v3992 = vshll.u32 %v3540, 16
    %v3994 = vrot.slane %v3992, 5
    %v3995 = vor.u32 %v3991, %v3994
    %v3996 = vrot.slane %v3995, 4
    %v3998 = vshll.u32 %v3541, 16
    %v4000 = vrot.slane %v3998, 5
    %v4001 = vsel %vm1167, %v3996, %v4000
    %v4002 = vshrl.u32 %v3541, 16
    %v4004 = vrot.slane %v4002, 4
    %v4005 = vor.u32 %v4004, %v4000
    %v4006 = vrot.slane %v4005, 4
    %v4008 = vshll.u32 %v3588, 16
    %v4010 = vrot.slane %v4008, 5
    %v4011 = vsel %vm1167, %v4006, %v4010
    %v4013 = vshrl.u32 %v3542, 16
    %v4015 = vrot.slane %v4013, 4
    %v4016 = vshll.u32 %v3542, 16
    %v4018 = vrot.slane %v4016, 5
    %v4019 = vor.u32 %v4015, %v4018
    %v4020 = vrot.slane %v4019, 4
    %v4022 = vshll.u32 %v3543, 16
    %v4024 = vrot.slane %v4022, 5
    %v4025 = vsel %vm1167, %v4020, %v4024
    %v4026 = vshrl.u32 %v3543, 16
    %v4028 = vrot.slane %v4026, 4
    %v4029 = vor.u32 %v4028, %v4024
    %v4030 = vrot.slane %v4029, 4
    %v4032 = vshll.u32 %v3589, 16
    %v4034 = vrot.slane %v4032, 5
    %v4035 = vsel %vm1167, %v4030, %v4034
    %v4037 = vshrl.u32 %v3544, 16
    %v4039 = vrot.slane %v4037, 4
    %v4040 = vshll.u32 %v3544, 16
    %v4042 = vrot.slane %v4040, 5
    %v4043 = vor.u32 %v4039, %v4042
    %v4044 = vrot.slane %v4043, 4
    %v4046 = vshll.u32 %v3545, 16
    %v4048 = vrot.slane %v4046, 5
    %v4049 = vsel %vm1167, %v4044, %v4048
    %v4050 = vshrl.u32 %v3545, 16
    %v4052 = vrot.slane %v4050, 4
    %v4053 = vor.u32 %v4052, %v4048
    %v4054 = vrot.slane %v4053, 4
    %v4056 = vshll.u32 %v3590, 16
    %v4058 = vrot.slane %v4056, 5
    %v4059 = vsel %vm1167, %v4054, %v4058
    %v4061 = vshrl.u32 %v3546, 16
    %v4063 = vrot.slane %v4061, 4
    %v4064 = vshll.u32 %v3546, 16
    %v4066 = vrot.slane %v4064, 5
    %v4067 = vor.u32 %v4063, %v4066
    %v4068 = vrot.slane %v4067, 4
    %v4070 = vshll.u32 %v3547, 16
    %v4072 = vrot.slane %v4070, 5
    %v4073 = vsel %vm1167, %v4068, %v4072
    %v4074 = vshrl.u32 %v3547, 16
    %v4076 = vrot.slane %v4074, 4
    %v4077 = vor.u32 %v4076, %v4072
    %v4078 = vrot.slane %v4077, 4
    %v4080 = vshll.u32 %v3591, 16
    %v4082 = vrot.slane %v4080, 5
    %v4083 = vsel %vm1167, %v4078, %v4082
    %v4085 = vshrl.u32 %v3548, 16
    %v4087 = vrot.slane %v4085, 4
    %v4088 = vshll.u32 %v3548, 16
    %v4090 = vrot.slane %v4088, 5
    %v4091 = vor.u32 %v4087, %v4090
    %v4092 = vrot.slane %v4091, 4
    %v4094 = vshll.u32 %v3549, 16
    %v4096 = vrot.slane %v4094, 5
    %v4097 = vsel %vm1167, %v4092, %v4096
    %v4098 = vshrl.u32 %v3549, 16
    %v4100 = vrot.slane %v4098, 4
    %v4101 = vor.u32 %v4100, %v4096
    %v4102 = vrot.slane %v4101, 4
    %v4104 = vshll.u32 %v3592, 16
    %v4106 = vrot.slane %v4104, 5
    %v4107 = vsel %vm1167, %v4102, %v4106
    %v4109 = vshrl.u32 %v3550, 16
    %v4111 = vrot.slane %v4109, 4
    %v4112 = vshll.u32 %v3550, 16
    %v4114 = vrot.slane %v4112, 5
    %v4115 = vor.u32 %v4111, %v4114
    %v4116 = vrot.slane %v4115, 4
    %v4118 = vshll.u32 %v3551, 16
    %v4120 = vrot.slane %v4118, 5
    %v4121 = vsel %vm1167, %v4116, %v4120
    %v4122 = vshrl.u32 %v3551, 16
    %v4124 = vrot.slane %v4122, 4
    %v4125 = vor.u32 %v4124, %v4120
    %v4126 = vrot.slane %v4125, 4
    %v4128 = vshll.u32 %v3593, 16
    %v4130 = vrot.slane %v4128, 5
    %v4131 = vsel %vm1167, %v4126, %v4130
    %v4133 = vshrl.u32 %v3552, 16
    %v4135 = vrot.slane %v4133, 4
    %v4136 = vshll.u32 %v3552, 16
    %v4138 = vrot.slane %v4136, 5
    %v4139 = vor.u32 %v4135, %v4138
    %v4140 = vrot.slane %v4139, 4
    %v4142 = vshll.u32 %v3553, 16
    %v4144 = vrot.slane %v4142, 5
    %v4145 = vsel %vm1167, %v4140, %v4144
    %v4146 = vshrl.u32 %v3553, 16
    %v4148 = vrot.slane %v4146, 4
    %v4149 = vor.u32 %v4148, %v4144
    %v4150 = vrot.slane %v4149, 4
    %v4152 = vshll.u32 %v3594, 16
    %v4154 = vrot.slane %v4152, 5
    %v4155 = vsel %vm1167, %v4150, %v4154
    %v4157 = vshrl.u32 %v3554, 16
    %v4159 = vrot.slane %v4157, 4
    %v4160 = vshll.u32 %v3554, 16
    %v4162 = vrot.slane %v4160, 5
    %v4163 = vor.u32 %v4159, %v4162
    %v4164 = vrot.slane %v4163, 4
    %v4166 = vshll.u32 %v3555, 16
    %v4168 = vrot.slane %v4166, 5
    %v4169 = vsel %vm1167, %v4164, %v4168
    %v4170 = vshrl.u32 %v3555, 16
    %v4172 = vrot.slane %v4170, 4
    %v4173 = vor.u32 %v4172, %v4168
    %v4174 = vrot.slane %v4173, 4
    %v4176 = vshll.u32 %v3595, 16
    %v4178 = vrot.slane %v4176, 5
    %v4179 = vsel %vm1167, %v4174, %v4178
    %v4181 = vshrl.u32 %v3556, 16
    %v4183 = vrot.slane %v4181, 4
    %v4184 = vshll.u32 %v3556, 16
    %v4186 = vrot.slane %v4184, 5
    %v4187 = vor.u32 %v4183, %v4186
    %v4188 = vrot.slane %v4187, 4
    %v4190 = vshll.u32 %v3557, 16
    %v4192 = vrot.slane %v4190, 5
    %v4193 = vsel %vm1167, %v4188, %v4192
    %v4194 = vshrl.u32 %v3557, 16
    %v4196 = vrot.slane %v4194, 4
    %v4197 = vor.u32 %v4196, %v4192
    %v4198 = vrot.slane %v4197, 4
    %v4200 = vshll.u32 %v3596, 16
    %v4202 = vrot.slane %v4200, 5
    %v4203 = vsel %vm1167, %v4198, %v4202
    %v4205 = vshrl.u32 %v3558, 16
    %v4207 = vrot.slane %v4205, 4
    %v4208 = vshll.u32 %v3558, 16
    %v4210 = vrot.slane %v4208, 5
    %v4211 = vor.u32 %v4207, %v4210
    %v4212 = vrot.slane %v4211, 4
    %v4214 = vshll.u32 %v3559, 16
    %v4216 = vrot.slane %v4214, 5
    %v4217 = vsel %vm1167, %v4212, %v4216
    %v4218 = vshrl.u32 %v3559, 16
    %v4220 = vrot.slane %v4218, 4
    %v4221 = vor.u32 %v4220, %v4216
    %v4222 = vrot.slane %v4221, 4
    %v4224 = vshll.u32 %v3597, 16
    %v4226 = vrot.slane %v4224, 5
    %v4227 = vsel %vm1167, %v4222, %v4226
    %v4229 = vshrl.u32 %v3560, 16
    %v4231 = vrot.slane %v4229, 4
    %v4232 = vshll.u32 %v3560, 16
    %v4234 = vrot.slane %v4232, 5
    %v4235 = vor.u32 %v4231, %v4234
    %v4236 = vrot.slane %v4235, 4
    %v4238 = vshll.u32 %v3561, 16
    %v4240 = vrot.slane %v4238, 5
    %v4241 = vsel %vm1167, %v4236, %v4240
    %v4242 = vshrl.u32 %v3561, 16
    %v4244 = vrot.slane %v4242, 4
    %v4245 = vor.u32 %v4244, %v4240
    %v4246 = vrot.slane %v4245, 4
    %v4248 = vshll.u32 %v3598, 16
    %v4250 = vrot.slane %v4248, 5
    %v4251 = vsel %vm1167, %v4246, %v4250
    %v4253 = vshrl.u32 %v3562, 16
    %v4255 = vrot.slane %v4253, 4
    %v4256 = vshll.u32 %v3562, 16
    %v4258 = vrot.slane %v4256, 5
    %v4259 = vor.u32 %v4255, %v4258
    %v4260 = vrot.slane %v4259, 4
    %v4262 = vshll.u32 %v3563, 16
    %v4264 = vrot.slane %v4262, 5
    %v4265 = vsel %vm1167, %v4260, %v4264
    %v4266 = vshrl.u32 %v3563, 16
    %v4268 = vrot.slane %v4266, 4
    %v4269 = vor.u32 %v4268, %v4264
    %v4270 = vrot.slane %v4269, 4
    %v4272 = vshll.u32 %v3599, 16
    %v4274 = vrot.slane %v4272, 5
    %v4275 = vsel %vm1167, %v4270, %v4274
    %v4277 = vshrl.u32 %v3564, 16
    %v4279 = vrot.slane %v4277, 4
    %v4280 = vshll.u32 %v3564, 16
    %v4282 = vrot.slane %v4280, 5
    %v4283 = vor.u32 %v4279, %v4282
    %v4284 = vrot.slane %v4283, 4
    %v4286 = vshll.u32 %v3565, 16
    %v4288 = vrot.slane %v4286, 5
    %v4289 = vsel %vm1167, %v4284, %v4288
    %v4290 = vshrl.u32 %v3565, 16
    %v4292 = vrot.slane %v4290, 4
    %v4293 = vor.u32 %v4292, %v4288
    %v4294 = vrot.slane %v4293, 4
    %v4296 = vshll.u32 %v3600, 16
    %v4298 = vrot.slane %v4296, 5
    %v4299 = vsel %vm1167, %v4294, %v4298
    %v4301 = vshrl.u32 %v3566, 16
    %v4303 = vrot.slane %v4301, 4
    %v4304 = vshll.u32 %v3566, 16
    %v4306 = vrot.slane %v4304, 5
    %v4307 = vor.u32 %v4303, %v4306
    %v4308 = vrot.slane %v4307, 4
    %v4310 = vshll.u32 %v3567, 16
    %v4312 = vrot.slane %v4310, 5
    %v4313 = vsel %vm1167, %v4308, %v4312
    %v4314 = vshrl.u32 %v3567, 16
    %v4316 = vrot.slane %v4314, 4
    %v4317 = vor.u32 %v4316, %v4312
    %v4318 = vrot.slane %v4317, 4
    %v4320 = vshll.u32 %v3601, 16
    %v4322 = vrot.slane %v4320, 5
    %v4323 = vsel %vm1167, %v4318, %v4322
    %v4325 = vshrl.u32 %v3568, 16
    %v4327 = vrot.slane %v4325, 4
    %v4328 = vshll.u32 %v3568, 16
    %v4330 = vrot.slane %v4328, 5
    %v4331 = vor.u32 %v4327, %v4330
    %v4332 = vrot.slane %v4331, 4
    %v4334 = vshll.u32 %v3569, 16
    %v4336 = vrot.slane %v4334, 5
    %v4337 = vsel %vm1167, %v4332, %v4336
    %v4338 = vshrl.u32 %v3569, 16
    %v4340 = vrot.slane %v4338, 4
    %v4341 = vor.u32 %v4340, %v4336
    %v4342 = vrot.slane %v4341, 4
    %v4344 = vshll.u32 %v3602, 16
    %v4346 = vrot.slane %v4344, 5
    %v4347 = vsel %vm1167, %v4342, %v4346
    %v4349 = vshrl.u32 %v3570, 16
    %v4351 = vrot.slane %v4349, 4
    %v4352 = vshll.u32 %v3570, 16
    %v4354 = vrot.slane %v4352, 5
    %v4355 = vor.u32 %v4351, %v4354
    %v4356 = vrot.slane %v4355, 4
    %v4358 = vshll.u32 %v3571, 16
    %v4360 = vrot.slane %v4358, 5
    %v4361 = vsel %vm1167, %v4356, %v4360
    %v4362 = vshrl.u32 %v3571, 16
    %v4364 = vrot.slane %v4362, 4
    %v4365 = vor.u32 %v4364, %v4360
    %v4366 = vrot.slane %v4365, 4
    %v4368 = vshll.u32 %v3603, 16
    %v4370 = vrot.slane %v4368, 5
    %v4371 = vsel %vm1167, %v4366, %v4370
    %v4372 = vld [vmem:[%s3507] sm:$0xe]
    %v4373 = vld [vmem:[%s3507 + $0xc] sm:$0xe]
    %v4374 = vld [vmem:[%s3507 + $0x18] sm:$0xe]
    %v4375 = vld [vmem:[%s3507 + $0x24] sm:$0xe]
    %v4376 = vld [vmem:[%s3507 + $0x30] sm:$0xe]
    %v4377 = vld [vmem:[%s3507 + $0x3c] sm:$0xe]
    %v4378 = vld [vmem:[%s3507 + $0x48] sm:$0xe]
    %v4379 = vld [vmem:[%s3507 + $0x54] sm:$0xe]
    %v4380 = vld [vmem:[%s3507 + $0x60] sm:$0xe]
    %v4381 = vld [vmem:[%s3507 + $0x6c] sm:$0xe]
    %v4382 = vld [vmem:[%s3507 + $0x78] sm:$0xe]
    %v4383 = vld [vmem:[%s3507 + $0x84] sm:$0xe]
    %v4384 = vld [vmem:[%s3507 + $0x90] sm:$0xe]
    %v4385 = vld [vmem:[%s3507 + $0x9c] sm:$0xe]
    %v4386 = vld [vmem:[%s3507 + $0xa8] sm:$0xe]
    %v4387 = vld [vmem:[%s3507 + $0xb4] sm:$0xe]
    %v4388 = vld [vmem:[%s3507 + $0xd8] sm:$0xe]
    %v4389 = vld [vmem:[%s3507 + $0xe4] sm:$0xe]
    %v4390 = vld [vmem:[%s3507 + $0xf0] sm:$0xe]
    %v4391 = vld [vmem:[%s3507 + $0xfc] sm:$0xe]
    %v4392 = vld [vmem:[%s3507 + $0x108] sm:$0xe]
    %v4393 = vld [vmem:[%s3507 + $0x114] sm:$0xe]
    %v4394 = vld [vmem:[%s3507 + $0x120] sm:$0xe]
    %v4395 = vld [vmem:[%s3507 + $0x12c] sm:$0xe]
    %v4396 = vld [vmem:[%s3507 + $0x138] sm:$0xe]
    %v4397 = vld [vmem:[%s3507 + $0x144] sm:$0xe]
    %v4398 = vld [vmem:[%s3507 + $0x150] sm:$0xe]
    %v4399 = vld [vmem:[%s3507 + $0x15c] sm:$0xe]
    %v4400 = vld [vmem:[%s3507 + $0x168] sm:$0xe]
    %v4401 = vld [vmem:[%s3507 + $0x174] sm:$0xe]
    %v4402 = vld [vmem:[%s3507 + $0x180] sm:$0xe]
    %v4403 = vld [vmem:[%s3507 + $0x18c] sm:$0xe]
    %v4500 = vrot.slane %v4372, 5
    %v4501 = vrot.slane %v4500, 4
    %v4502 = vrot.slane %v3509, 5
    %v4503 = vsel %vm2066, %v4501, %v4502
    %v4504 = vrot.slane %v4502, 4
    %v4505 = vrot.slane %v3572, 5
    %v4506 = vsel %vm2066, %v4504, %v4505
    %v4507 = vrot.slane %v4373, 5
    %v4508 = vrot.slane %v4507, 4
    %v4509 = vrot.slane %v3511, 5
    %v4510 = vsel %vm2066, %v4508, %v4509
    %v4511 = vrot.slane %v4509, 4
    %v4512 = vrot.slane %v3573, 5
    %v4513 = vsel %vm2066, %v4511, %v4512
    %v4514 = vrot.slane %v4374, 5
    %v4515 = vrot.slane %v4514, 4
    %v4516 = vrot.slane %v3513, 5
    %v4517 = vsel %vm2066, %v4515, %v4516
    %v4518 = vrot.slane %v4516, 4
    %v4519 = vrot.slane %v3574, 5
    %v4520 = vsel %vm2066, %v4518, %v4519
    %v4521 = vrot.slane %v4375, 5
    %v4522 = vrot.slane %v4521, 4
    %v4523 = vrot.slane %v3515, 5
    %v4524 = vsel %vm2066, %v4522, %v4523
    %v4525 = vrot.slane %v4523, 4
    %v4526 = vrot.slane %v3575, 5
    %v4527 = vsel %vm2066, %v4525, %v4526
    %v4528 = vrot.slane %v4376, 5
    %v4529 = vrot.slane %v4528, 4
    %v4530 = vrot.slane %v3517, 5
    %v4531 = vsel %vm2066, %v4529, %v4530
    %v4532 = vrot.slane %v4530, 4
    %v4533 = vrot.slane %v3576, 5
    %v4534 = vsel %vm2066, %v4532, %v4533
    %v4535 = vrot.slane %v4377, 5
    %v4536 = vrot.slane %v4535, 4
    %v4537 = vrot.slane %v3519, 5
    %v4538 = vsel %vm2066, %v4536, %v4537
    %v4539 = vrot.slane %v4537, 4
    %v4540 = vrot.slane %v3577, 5
    %v4541 = vsel %vm2066, %v4539, %v4540
    %v4542 = vrot.slane %v4378, 5
    %v4543 = vrot.slane %v4542, 4
    %v4544 = vrot.slane %v3521, 5
    %v4545 = vsel %vm2066, %v4543, %v4544
    %v4546 = vrot.slane %v4544, 4
    %v4547 = vrot.slane %v3578, 5
    %v4548 = vsel %vm2066, %v4546, %v4547
    %v4549 = vrot.slane %v4379, 5
    %v4550 = vrot.slane %v4549, 4
    %v4551 = vrot.slane %v3523, 5
    %v4552 = vsel %vm2066, %v4550, %v4551
    %v4553 = vrot.slane %v4551, 4
    %v4554 = vrot.slane %v3579, 5
    %v4555 = vsel %vm2066, %v4553, %v4554
    %v4556 = vrot.slane %v4380, 5
    %v4557 = vrot.slane %v4556, 4
    %v4558 = vrot.slane %v3525, 5
    %v4559 = vsel %vm2066, %v4557, %v4558
    %v4560 = vrot.slane %v4558, 4
    %v4561 = vrot.slane %v3580, 5
    %v4562 = vsel %vm2066, %v4560, %v4561
    %v4563 = vrot.slane %v4381, 5
    %v4564 = vrot.slane %v4563, 4
    %v4565 = vrot.slane %v3527, 5
    %v4566 = vsel %vm2066, %v4564, %v4565
    %v4567 = vrot.slane %v4565, 4
    %v4568 = vrot.slane %v3581, 5
    %v4569 = vsel %vm2066, %v4567, %v4568
    %v4570 = vrot.slane %v4382, 5
    %v4571 = vrot.slane %v4570, 4
    %v4572 = vrot.slane %v3529, 5
    %v4573 = vsel %vm2066, %v4571, %v4572
    %v4574 = vrot.slane %v4572, 4
    %v4575 = vrot.slane %v3582, 5
    %v4576 = vsel %vm2066, %v4574, %v4575
    %v4577 = vrot.slane %v4383, 5
    %v4578 = vrot.slane %v4577, 4
    %v4579 = vrot.slane %v3531, 5
    %v4580 = vsel %vm2066, %v4578, %v4579
    %v4581 = vrot.slane %v4579, 4
    %v4582 = vrot.slane %v3583, 5
    %v4583 = vsel %vm2066, %v4581, %v4582
    %v4584 = vrot.slane %v4384, 5
    %v4585 = vrot.slane %v4584, 4
    %v4586 = vrot.slane %v3533, 5
    %v4587 = vsel %vm2066, %v4585, %v4586
    %v4588 = vrot.slane %v4586, 4
    %v4589 = vrot.slane %v3584, 5
    %v4590 = vsel %vm2066, %v4588, %v4589
    %v4591 = vrot.slane %v4385, 5
    %v4592 = vrot.slane %v4591, 4
    %v4593 = vrot.slane %v3535, 5
    %v4594 = vsel %vm2066, %v4592, %v4593
    %v4595 = vrot.slane %v4593, 4
    %v4596 = vrot.slane %v3585, 5
    %v4597 = vsel %vm2066, %v4595, %v4596
    %v4598 = vrot.slane %v4386, 5
    %v4599 = vrot.slane %v4598, 4
    %v4600 = vrot.slane %v3537, 5
    %v4601 = vsel %vm2066, %v4599, %v4600
    %v4602 = vrot.slane %v4600, 4
    %v4603 = vrot.slane %v3586, 5
    %v4604 = vsel %vm2066, %v4602, %v4603
    %v4605 = vrot.slane %v4387, 5
    %v4606 = vrot.slane %v4605, 4
    %v4607 = vrot.slane %v3539, 5
    %v4608 = vsel %vm2066, %v4606, %v4607
    %v4609 = vrot.slane %v4607, 4
    %v4610 = vrot.slane %v3587, 5
    %v4611 = vsel %vm2066, %v4609, %v4610
    %v4612 = vrot.slane %v4388, 5
    %v4613 = vrot.slane %v4612, 4
    %v4614 = vrot.slane %v3541, 5
    %v4615 = vsel %vm2066, %v4613, %v4614
    %v4616 = vrot.slane %v4614, 4
    %v4617 = vrot.slane %v3588, 5
    %v4618 = vsel %vm2066, %v4616, %v4617
    %v4619 = vrot.slane %v4389, 5
    %v4620 = vrot.slane %v4619, 4
    %v4621 = vrot.slane %v3543, 5
    %v4622 = vsel %vm2066, %v4620, %v4621
    %v4623 = vrot.slane %v4621, 4
    %v4624 = vrot.slane %v3589, 5
    %v4625 = vsel %vm2066, %v4623, %v4624
    %v4626 = vrot.slane %v4390, 5
    %v4627 = vrot.slane %v4626, 4
    %v4628 = vrot.slane %v3545, 5
    %v4629 = vsel %vm2066, %v4627, %v4628
    %v4630 = vrot.slane %v4628, 4
    %v4631 = vrot.slane %v3590, 5
    %v4632 = vsel %vm2066, %v4630, %v4631
    %v4633 = vrot.slane %v4391, 5
    %v4634 = vrot.slane %v4633, 4
    %v4635 = vrot.slane %v3547, 5
    %v4636 = vsel %vm2066, %v4634, %v4635
    %v4637 = vrot.slane %v4635, 4
    %v4638 = vrot.slane %v3591, 5
    %v4639 = vsel %vm2066, %v4637, %v4638
    %v4640 = vrot.slane %v4392, 5
    %v4641 = vrot.slane %v4640, 4
    %v4642 = vrot.slane %v3549, 5
    %v4643 = vsel %vm2066, %v4641, %v4642
    %v4644 = vrot.slane %v4642, 4
    %v4645 = vrot.slane %v3592, 5
    %v4646 = vsel %vm2066, %v4644, %v4645
    %v4647 = vrot.slane %v4393, 5
    %v4648 = vrot.slane %v4647, 4
    %v4649 = vrot.slane %v3551, 5
    %v4650 = vsel %vm2066, %v4648, %v4649
    %v4651 = vrot.slane %v4649, 4
    %v4652 = vrot.slane %v3593, 5
    %v4653 = vsel %vm2066, %v4651, %v4652
    %v4654 = vrot.slane %v4394, 5
    %v4655 = vrot.slane %v4654, 4
    %v4656 = vrot.slane %v3553, 5
    %v4657 = vsel %vm2066, %v4655, %v4656
    %v4658 = vrot.slane %v4656, 4
    %v4659 = vrot.slane %v3594, 5
    %v4660 = vsel %vm2066, %v4658, %v4659
    %v4661 = vrot.slane %v4395, 5
    %v4662 = vrot.slane %v4661, 4
    %v4663 = vrot.slane %v3555, 5
    %v4664 = vsel %vm2066, %v4662, %v4663
    %v4665 = vrot.slane %v4663, 4
    %v4666 = vrot.slane %v3595, 5
    %v4667 = vsel %vm2066, %v4665, %v4666
    %v4668 = vrot.slane %v4396, 5
    %v4669 = vrot.slane %v4668, 4
    %v4670 = vrot.slane %v3557, 5
    %v4671 = vsel %vm2066, %v4669, %v4670
    %v4672 = vrot.slane %v4670, 4
    %v4673 = vrot.slane %v3596, 5
    %v4674 = vsel %vm2066, %v4672, %v4673
    %v4675 = vrot.slane %v4397, 5
    %v4676 = vrot.slane %v4675, 4
    %v4677 = vrot.slane %v3559, 5
    %v4678 = vsel %vm2066, %v4676, %v4677
    %v4679 = vrot.slane %v4677, 4
    %v4680 = vrot.slane %v3597, 5
    %v4681 = vsel %vm2066, %v4679, %v4680
    %v4682 = vrot.slane %v4398, 5
    %v4683 = vrot.slane %v4682, 4
    %v4684 = vrot.slane %v3561, 5
    %v4685 = vsel %vm2066, %v4683, %v4684
    %v4686 = vrot.slane %v4684, 4
    %v4687 = vrot.slane %v3598, 5
    %v4688 = vsel %vm2066, %v4686, %v4687
    %v4689 = vrot.slane %v4399, 5
    %v4690 = vrot.slane %v4689, 4
    %v4691 = vrot.slane %v3563, 5
    %v4692 = vsel %vm2066, %v4690, %v4691
    %v4693 = vrot.slane %v4691, 4
    %v4694 = vrot.slane %v3599, 5
    %v4695 = vsel %vm2066, %v4693, %v4694
    %v4696 = vrot.slane %v4400, 5
    %v4697 = vrot.slane %v4696, 4
    %v4698 = vrot.slane %v3565, 5
    %v4699 = vsel %vm2066, %v4697, %v4698
    %v4700 = vrot.slane %v4698, 4
    %v4701 = vrot.slane %v3600, 5
    %v4702 = vsel %vm2066, %v4700, %v4701
    %v4703 = vrot.slane %v4401, 5
    %v4704 = vrot.slane %v4703, 4
    %v4705 = vrot.slane %v3567, 5
    %v4706 = vsel %vm2066, %v4704, %v4705
    %v4707 = vrot.slane %v4705, 4
    %v4708 = vrot.slane %v3601, 5
    %v4709 = vsel %vm2066, %v4707, %v4708
    %v4710 = vrot.slane %v4402, 5
    %v4711 = vrot.slane %v4710, 4
    %v4712 = vrot.slane %v3569, 5
    %v4713 = vsel %vm2066, %v4711, %v4712
    %v4714 = vrot.slane %v4712, 4
    %v4715 = vrot.slane %v3602, 5
    %v4716 = vsel %vm2066, %v4714, %v4715
    %v4717 = vrot.slane %v4403, 5
    %v4718 = vrot.slane %v4717, 4
    %v4719 = vrot.slane %v3571, 5
    %v4720 = vsel %vm2066, %v4718, %v4719
    %v4721 = vrot.slane %v4719, 4
    %v4722 = vrot.slane %v3603, 5
    %v4723 = vsel %vm2066, %v4721, %v4722
    %v4756 = vunpack.c.l.b16 %v1069
    %v4757 = vunpack.c.l.b16 %v1070
    %v4758 = vunpack.c.l.b16 %v1071
    %v4759 = vunpack.c.l.b16 %v1072
    %v4760 = vunpack.c.l.b16 %v1073
    %v4761 = vunpack.c.l.b16 %v1074
    %v4762 = vunpack.c.l.b16 %v1075
    %v4763 = vunpack.c.l.b16 %v1076
    %v4764 = vunpack.c.l.b16 %v1077
    %v4765 = vunpack.c.l.b16 %v1078
    %v4766 = vunpack.c.l.b16 %v1079
    %v4767 = vunpack.c.l.b16 %v1080
    %v4768 = vunpack.c.l.b16 %v1081
    %v4769 = vunpack.c.l.b16 %v1082
    %v4770 = vunpack.c.l.b16 %v1083
    %v4771 = vunpack.c.l.b16 %v1084
    %v4772 = vunpack.c.l.b16 %v1085
    %v4773 = vunpack.c.l.b16 %v1086
    %v4774 = vunpack.c.l.b16 %v1087
    %v4775 = vunpack.c.l.b16 %v1088
    %v4776 = vunpack.c.l.b16 %v1089
    %v4777 = vunpack.c.l.b16 %v1090
    %v4778 = vunpack.c.l.b16 %v1091
    %v4779 = vunpack.c.l.b16 %v1092
    %v4780 = vunpack.c.l.b16 %v1093
    %v4781 = vunpack.c.l.b16 %v1094
    %v4782 = vunpack.c.l.b16 %v1095
    %v4783 = vunpack.c.l.b16 %v1096
    %v4784 = vunpack.c.l.b16 %v1097
    %v4785 = vunpack.c.l.b16 %v1098
    %v4786 = vunpack.c.l.b16 %v1099
    %v4787 = vunpack.c.l.b16 %v1100
    %v4788 = vunpack.c.l.b16 %v1101
    %v4789 = vunpack.c.l.b16 %v1102
    %v4790 = vunpack.c.l.b16 %v1103
    %v4791 = vunpack.c.l.b16 %v1104
    %v4792 = vunpack.c.l.b16 %v1105
    %v4793 = vunpack.c.l.b16 %v1106
    %v4794 = vunpack.c.l.b16 %v1107
    %v4795 = vunpack.c.l.b16 %v1108
    %v4796 = vunpack.c.l.b16 %v1109
    %v4797 = vunpack.c.l.b16 %v1110
    %v4798 = vunpack.c.l.b16 %v1111
    %v4799 = vunpack.c.l.b16 %v1112
    %v4800 = vunpack.c.l.b16 %v1113
    %v4801 = vunpack.c.l.b16 %v1114
    %v4802 = vunpack.c.l.b16 %v1115
    %v4803 = vunpack.c.l.b16 %v1116
    %v4804 = vunpack.c.l.b16 %v1117
    %v4805 = vunpack.c.l.b16 %v1118
    %v4806 = vunpack.c.l.b16 %v1119
    %v4807 = vunpack.c.l.b16 %v1120
    %v4808 = vunpack.c.l.b16 %v1121
    %v4809 = vunpack.c.l.b16 %v1122
    %v4810 = vunpack.c.l.b16 %v1123
    %v4811 = vunpack.c.l.b16 %v1124
    %v4812 = vunpack.c.l.b16 %v1125
    %v4813 = vunpack.c.l.b16 %v1126
    %v4814 = vunpack.c.l.b16 %v1127
    %v4815 = vunpack.c.l.b16 %v1128
    %v4816 = vunpack.c.l.b16 %v1129
    %v4817 = vunpack.c.l.b16 %v1130
    %v4818 = vunpack.c.l.b16 %v1131
    %v4819 = vunpack.c.l.b16 %v1132
    %v4820 = vpack.c.b16 %v4757, %v4756
    %v4821 = vpack.c.b16 %v4759, %v4758
    %v4822 = vpack.c.b16 %v4761, %v4760
    %v4823 = vpack.c.b16 %v4763, %v4762
    %v4824 = vpack.c.b16 %v4765, %v4764
    %v4825 = vpack.c.b16 %v4767, %v4766
    %v4826 = vpack.c.b16 %v4769, %v4768
    %v4827 = vpack.c.b16 %v4771, %v4770
    %v4828 = vpack.c.b16 %v4773, %v4772
    %v4829 = vpack.c.b16 %v4775, %v4774
    %v4830 = vpack.c.b16 %v4777, %v4776
    %v4831 = vpack.c.b16 %v4779, %v4778
    %v4832 = vpack.c.b16 %v4781, %v4780
    %v4833 = vpack.c.b16 %v4783, %v4782
    %v4834 = vpack.c.b16 %v4785, %v4784
    %v4835 = vpack.c.b16 %v4787, %v4786
    %v4836 = vpack.c.b16 %v4789, %v4788
    %v4837 = vpack.c.b16 %v4791, %v4790
    %v4838 = vpack.c.b16 %v4793, %v4792
    %v4839 = vpack.c.b16 %v4795, %v4794
    %v4840 = vpack.c.b16 %v4797, %v4796
    %v4841 = vpack.c.b16 %v4799, %v4798
    %v4842 = vpack.c.b16 %v4801, %v4800
    %v4843 = vpack.c.b16 %v4803, %v4802
    %v4844 = vpack.c.b16 %v4805, %v4804
    %v4845 = vpack.c.b16 %v4807, %v4806
    %v4846 = vpack.c.b16 %v4809, %v4808
    %v4847 = vpack.c.b16 %v4811, %v4810
    %v4848 = vpack.c.b16 %v4813, %v4812
    %v4849 = vpack.c.b16 %v4815, %v4814
    %v4850 = vpack.c.b16 %v4817, %v4816
    %v4851 = vpack.c.b16 %v4819, %v4818
    %v4852 = vunpack.c.l.b16 %v1181
    %v4853 = vunpack.c.l.b16 %v1191
    %v4854 = vunpack.c.l.b16 %v1205
    %v4855 = vunpack.c.l.b16 %v1215
    %v4856 = vunpack.c.l.b16 %v1229
    %v4857 = vunpack.c.l.b16 %v1239
    %v4858 = vunpack.c.l.b16 %v1253
    %v4859 = vunpack.c.l.b16 %v1263
    %v4860 = vunpack.c.l.b16 %v1277
    %v4861 = vunpack.c.l.b16 %v1287
    %v4862 = vunpack.c.l.b16 %v1301
    %v4863 = vunpack.c.l.b16 %v1311
    %v4864 = vunpack.c.l.b16 %v1325
    %v4865 = vunpack.c.l.b16 %v1335
    %v4866 = vunpack.c.l.b16 %v1349
    %v4867 = vunpack.c.l.b16 %v1359
    %v4868 = vunpack.c.l.b16 %v1373
    %v4869 = vunpack.c.l.b16 %v1383
    %v4870 = vunpack.c.l.b16 %v1397
    %v4871 = vunpack.c.l.b16 %v1407
    %v4872 = vunpack.c.l.b16 %v1421
    %v4873 = vunpack.c.l.b16 %v1431
    %v4874 = vunpack.c.l.b16 %v1445
    %v4875 = vunpack.c.l.b16 %v1455
    %v4876 = vunpack.c.l.b16 %v1469
    %v4877 = vunpack.c.l.b16 %v1479
    %v4878 = vunpack.c.l.b16 %v1493
    %v4879 = vunpack.c.l.b16 %v1503
    %v4880 = vunpack.c.l.b16 %v1517
    %v4881 = vunpack.c.l.b16 %v1527
    %v4882 = vunpack.c.l.b16 %v1541
    %v4883 = vunpack.c.l.b16 %v1551
    %v4884 = vunpack.c.l.b16 %v1565
    %v4885 = vunpack.c.l.b16 %v1575
    %v4886 = vunpack.c.l.b16 %v1589
    %v4887 = vunpack.c.l.b16 %v1599
    %v4888 = vunpack.c.l.b16 %v1613
    %v4889 = vunpack.c.l.b16 %v1623
    %v4890 = vunpack.c.l.b16 %v1637
    %v4891 = vunpack.c.l.b16 %v1647
    %v4892 = vunpack.c.l.b16 %v1661
    %v4893 = vunpack.c.l.b16 %v1671
    %v4894 = vunpack.c.l.b16 %v1685
    %v4895 = vunpack.c.l.b16 %v1695
    %v4896 = vunpack.c.l.b16 %v1709
    %v4897 = vunpack.c.l.b16 %v1719
    %v4898 = vunpack.c.l.b16 %v1733
    %v4899 = vunpack.c.l.b16 %v1743
    %v4900 = vunpack.c.l.b16 %v1757
    %v4901 = vunpack.c.l.b16 %v1767
    %v4902 = vunpack.c.l.b16 %v1781
    %v4903 = vunpack.c.l.b16 %v1791
    %v4904 = vunpack.c.l.b16 %v1805
    %v4905 = vunpack.c.l.b16 %v1815
    %v4906 = vunpack.c.l.b16 %v1829
    %v4907 = vunpack.c.l.b16 %v1839
    %v4908 = vunpack.c.l.b16 %v1853
    %v4909 = vunpack.c.l.b16 %v1863
    %v4910 = vunpack.c.l.b16 %v1877
    %v4911 = vunpack.c.l.b16 %v1887
    %v4912 = vunpack.c.l.b16 %v1901
    %v4913 = vunpack.c.l.b16 %v1911
    %v4914 = vunpack.c.l.b16 %v1925
    %v4915 = vunpack.c.l.b16 %v1935
    %v4916 = vpack.c.b16 %v4853, %v4852
    %v4917 = vpack.c.b16 %v4855, %v4854
    %v4918 = vpack.c.b16 %v4857, %v4856
    %v4919 = vpack.c.b16 %v4859, %v4858
    %v4920 = vpack.c.b16 %v4861, %v4860
    %v4921 = vpack.c.b16 %v4863, %v4862
    %v4922 = vpack.c.b16 %v4865, %v4864
    %v4923 = vpack.c.b16 %v4867, %v4866
    %v4924 = vpack.c.b16 %v4869, %v4868
    %v4925 = vpack.c.b16 %v4871, %v4870
    %v4926 = vpack.c.b16 %v4873, %v4872
    %v4927 = vpack.c.b16 %v4875, %v4874
    %v4928 = vpack.c.b16 %v4877, %v4876
    %v4929 = vpack.c.b16 %v4879, %v4878
    %v4930 = vpack.c.b16 %v4881, %v4880
    %v4931 = vpack.c.b16 %v4883, %v4882
    %v4932 = vpack.c.b16 %v4885, %v4884
    %v4933 = vpack.c.b16 %v4887, %v4886
    %v4934 = vpack.c.b16 %v4889, %v4888
    %v4935 = vpack.c.b16 %v4891, %v4890
    %v4936 = vpack.c.b16 %v4893, %v4892
    %v4937 = vpack.c.b16 %v4895, %v4894
    %v4938 = vpack.c.b16 %v4897, %v4896
    %v4939 = vpack.c.b16 %v4899, %v4898
    %v4940 = vpack.c.b16 %v4901, %v4900
    %v4941 = vpack.c.b16 %v4903, %v4902
    %v4942 = vpack.c.b16 %v4905, %v4904
    %v4943 = vpack.c.b16 %v4907, %v4906
    %v4944 = vpack.c.b16 %v4909, %v4908
    %v4945 = vpack.c.b16 %v4911, %v4910
    %v4946 = vpack.c.b16 %v4913, %v4912
    %v4947 = vpack.c.b16 %v4915, %v4914
    %4948 = vrot.lane.b32.xlu0 %v4916, 36
    %v4949 = vpop.permute.xlu0 %4948
    %4950 = vrot.lane.b32.xlu0 %v4917, 36
    %v4951 = vpop.permute.xlu0 %4950
    %4952 = vrot.lane.b32.xlu0 %v4918, 36
    %v4953 = vpop.permute.xlu0 %4952
    %4954 = vrot.lane.b32.xlu0 %v4919, 36
    %v4955 = vpop.permute.xlu0 %4954
    %4956 = vrot.lane.b32.xlu0 %v4920, 36
    %v4957 = vpop.permute.xlu0 %4956
    %4958 = vrot.lane.b32.xlu0 %v4921, 36
    %v4959 = vpop.permute.xlu0 %4958
    %4960 = vrot.lane.b32.xlu0 %v4922, 36
    %v4961 = vpop.permute.xlu0 %4960
    %4962 = vrot.lane.b32.xlu0 %v4923, 36
    %v4963 = vpop.permute.xlu0 %4962
    %4964 = vrot.lane.b32.xlu0 %v4924, 36
    %v4965 = vpop.permute.xlu0 %4964
    %4966 = vrot.lane.b32.xlu0 %v4925, 36
    %v4967 = vpop.permute.xlu0 %4966
    %4968 = vrot.lane.b32.xlu0 %v4926, 36
    %v4969 = vpop.permute.xlu0 %4968
    %4970 = vrot.lane.b32.xlu0 %v4927, 36
    %v4971 = vpop.permute.xlu0 %4970
    %4972 = vrot.lane.b32.xlu0 %v4928, 36
    %v4973 = vpop.permute.xlu0 %4972
    %4974 = vrot.lane.b32.xlu0 %v4929, 36
    %v4975 = vpop.permute.xlu0 %4974
    %4976 = vrot.lane.b32.xlu0 %v4930, 36
    %v4977 = vpop.permute.xlu0 %4976
    %4978 = vrot.lane.b32.xlu0 %v4931, 36
    %v4979 = vpop.permute.xlu0 %4978
    %4980 = vrot.lane.b32.xlu0 %v4932, 36
    %v4981 = vpop.permute.xlu0 %4980
    %4982 = vrot.lane.b32.xlu0 %v4933, 36
    %v4983 = vpop.permute.xlu0 %4982
    %4984 = vrot.lane.b32.xlu0 %v4934, 36
    %v4985 = vpop.permute.xlu0 %4984
    %4986 = vrot.lane.b32.xlu0 %v4935, 36
    %v4987 = vpop.permute.xlu0 %4986
    %4988 = vrot.lane.b32.xlu0 %v4936, 36
    %v4989 = vpop.permute.xlu0 %4988
    %4990 = vrot.lane.b32.xlu0 %v4937, 36
    %v4991 = vpop.permute.xlu0 %4990
    %4992 = vrot.lane.b32.xlu0 %v4938, 36
    %v4993 = vpop.permute.xlu0 %4992
    %4994 = vrot.lane.b32.xlu0 %v4939, 36
    %v4995 = vpop.permute.xlu0 %4994
    %4996 = vrot.lane.b32.xlu0 %v4940, 36
    %v4997 = vpop.permute.xlu0 %4996
    %4998 = vrot.lane.b32.xlu0 %v4941, 36
    %v4999 = vpop.permute.xlu0 %4998
    %5000 = vrot.lane.b32.xlu0 %v4942, 36
    %v5001 = vpop.permute.xlu0 %5000
    %5002 = vrot.lane.b32.xlu0 %v4943, 36
    %v5003 = vpop.permute.xlu0 %5002
    %5004 = vrot.lane.b32.xlu0 %v4944, 36
    %v5005 = vpop.permute.xlu0 %5004
    %5006 = vrot.lane.b32.xlu0 %v4945, 36
    %v5007 = vpop.permute.xlu0 %5006
    %5008 = vrot.lane.b32.xlu0 %v4946, 36
    %v5009 = vpop.permute.xlu0 %5008
    %5010 = vrot.lane.b32.xlu0 %v4947, 36
    %v5011 = vpop.permute.xlu0 %5010
    %v5012 = vunpack.c.l.b16 %v2070
    %v5013 = vunpack.c.l.b16 %v2073
    %v5014 = vunpack.c.l.b16 %v2077
    %v5015 = vunpack.c.l.b16 %v2080
    %v5016 = vunpack.c.l.b16 %v2084
    %v5017 = vunpack.c.l.b16 %v2087
    %v5018 = vunpack.c.l.b16 %v2091
    %v5019 = vunpack.c.l.b16 %v2094
    %v5020 = vunpack.c.l.b16 %v2098
    %v5021 = vunpack.c.l.b16 %v2101
    %v5022 = vunpack.c.l.b16 %v2105
    %v5023 = vunpack.c.l.b16 %v2108
    %v5024 = vunpack.c.l.b16 %v2112
    %v5025 = vunpack.c.l.b16 %v2115
    %v5026 = vunpack.c.l.b16 %v2119
    %v5027 = vunpack.c.l.b16 %v2122
    %v5028 = vunpack.c.l.b16 %v2126
    %v5029 = vunpack.c.l.b16 %v2129
    %v5030 = vunpack.c.l.b16 %v2133
    %v5031 = vunpack.c.l.b16 %v2136
    %v5032 = vunpack.c.l.b16 %v2140
    %v5033 = vunpack.c.l.b16 %v2143
    %v5034 = vunpack.c.l.b16 %v2147
    %v5035 = vunpack.c.l.b16 %v2150
    %v5036 = vunpack.c.l.b16 %v2154
    %v5037 = vunpack.c.l.b16 %v2157
    %v5038 = vunpack.c.l.b16 %v2161
    %v5039 = vunpack.c.l.b16 %v2164
    %v5040 = vunpack.c.l.b16 %v2168
    %v5041 = vunpack.c.l.b16 %v2171
    %v5042 = vunpack.c.l.b16 %v2175
    %v5043 = vunpack.c.l.b16 %v2178
    %v5044 = vunpack.c.l.b16 %v2182
    %v5045 = vunpack.c.l.b16 %v2185
    %v5046 = vunpack.c.l.b16 %v2189
    %v5047 = vunpack.c.l.b16 %v2192
    %v5048 = vunpack.c.l.b16 %v2196
    %v5049 = vunpack.c.l.b16 %v2199
    %v5050 = vunpack.c.l.b16 %v2203
    %v5051 = vunpack.c.l.b16 %v2206
    %v5052 = vunpack.c.l.b16 %v2210
    %v5053 = vunpack.c.l.b16 %v2213
    %v5054 = vunpack.c.l.b16 %v2217
    %v5055 = vunpack.c.l.b16 %v2220
    %v5056 = vunpack.c.l.b16 %v2224
    %v5057 = vunpack.c.l.b16 %v2227
    %v5058 = vunpack.c.l.b16 %v2231
    %v5059 = vunpack.c.l.b16 %v2234
    %v5060 = vunpack.c.l.b16 %v2238
    %v5061 = vunpack.c.l.b16 %v2241
    %v5062 = vunpack.c.l.b16 %v2245
    %v5063 = vunpack.c.l.b16 %v2248
    %v5064 = vunpack.c.l.b16 %v2252
    %v5065 = vunpack.c.l.b16 %v2255
    %v5066 = vunpack.c.l.b16 %v2259
    %v5067 = vunpack.c.l.b16 %v2262
    %v5068 = vunpack.c.l.b16 %v2266
    %v5069 = vunpack.c.l.b16 %v2269
    %v5070 = vunpack.c.l.b16 %v2273
    %v5071 = vunpack.c.l.b16 %v2276
    %v5072 = vunpack.c.l.b16 %v2280
    %v5073 = vunpack.c.l.b16 %v2283
    %v5074 = vunpack.c.l.b16 %v2287
    %v5075 = vunpack.c.l.b16 %v2290
    %v5076 = vpack.c.b16 %v5013, %v5012
    %v5077 = vpack.c.b16 %v5015, %v5014
    %v5078 = vpack.c.b16 %v5017, %v5016
    %v5079 = vpack.c.b16 %v5019, %v5018
    %v5080 = vpack.c.b16 %v5021, %v5020
    %v5081 = vpack.c.b16 %v5023, %v5022
    %v5082 = vpack.c.b16 %v5025, %v5024
    %v5083 = vpack.c.b16 %v5027, %v5026
    %v5084 = vpack.c.b16 %v5029, %v5028
    %v5085 = vpack.c.b16 %v5031, %v5030
    %v5086 = vpack.c.b16 %v5033, %v5032
    %v5087 = vpack.c.b16 %v5035, %v5034
    %v5088 = vpack.c.b16 %v5037, %v5036
    %v5089 = vpack.c.b16 %v5039, %v5038
    %v5090 = vpack.c.b16 %v5041, %v5040
    %v5091 = vpack.c.b16 %v5043, %v5042
    %v5092 = vpack.c.b16 %v5045, %v5044
    %v5093 = vpack.c.b16 %v5047, %v5046
    %v5094 = vpack.c.b16 %v5049, %v5048
    %v5095 = vpack.c.b16 %v5051, %v5050
    %v5096 = vpack.c.b16 %v5053, %v5052
    %v5097 = vpack.c.b16 %v5055, %v5054
    %v5098 = vpack.c.b16 %v5057, %v5056
    %v5099 = vpack.c.b16 %v5059, %v5058
    %v5100 = vpack.c.b16 %v5061, %v5060
    %v5101 = vpack.c.b16 %v5063, %v5062
    %v5102 = vpack.c.b16 %v5065, %v5064
    %v5103 = vpack.c.b16 %v5067, %v5066
    %v5104 = vpack.c.b16 %v5069, %v5068
    %v5105 = vpack.c.b16 %v5071, %v5070
    %v5106 = vpack.c.b16 %v5073, %v5072
    %v5107 = vpack.c.b16 %v5075, %v5074
    %5108 = vrot.lane.b32.xlu0 %v5076, 72
    %v5109 = vpop.permute.xlu0 %5108
    %5110 = vrot.lane.b32.xlu0 %v5077, 72
    %v5111 = vpop.permute.xlu0 %5110
    %5112 = vrot.lane.b32.xlu0 %v5078, 72
    %v5113 = vpop.permute.xlu0 %5112
    %5114 = vrot.lane.b32.xlu0 %v5079, 72
    %v5115 = vpop.permute.xlu0 %5114
    %5116 = vrot.lane.b32.xlu0 %v5080, 72
    %v5117 = vpop.permute.xlu0 %5116
    %5118 = vrot.lane.b32.xlu0 %v5081, 72
    %v5119 = vpop.permute.xlu0 %5118
    %5120 = vrot.lane.b32.xlu0 %v5082, 72
    %v5121 = vpop.permute.xlu0 %5120
    %5122 = vrot.lane.b32.xlu0 %v5083, 72
    %v5123 = vpop.permute.xlu0 %5122
    %5124 = vrot.lane.b32.xlu0 %v5084, 72
    %v5125 = vpop.permute.xlu0 %5124
    %5126 = vrot.lane.b32.xlu0 %v5085, 72
    %v5127 = vpop.permute.xlu0 %5126
    %5128 = vrot.lane.b32.xlu0 %v5086, 72
    %v5129 = vpop.permute.xlu0 %5128
    %5130 = vrot.lane.b32.xlu0 %v5087, 72
    %v5131 = vpop.permute.xlu0 %5130
    %5132 = vrot.lane.b32.xlu0 %v5088, 72
    %v5133 = vpop.permute.xlu0 %5132
    %5134 = vrot.lane.b32.xlu0 %v5089, 72
    %v5135 = vpop.permute.xlu0 %5134
    %5136 = vrot.lane.b32.xlu0 %v5090, 72
    %v5137 = vpop.permute.xlu0 %5136
    %5138 = vrot.lane.b32.xlu0 %v5091, 72
    %v5139 = vpop.permute.xlu0 %5138
    %5140 = vrot.lane.b32.xlu0 %v5092, 72
    %v5141 = vpop.permute.xlu0 %5140
    %5142 = vrot.lane.b32.xlu0 %v5093, 72
    %v5143 = vpop.permute.xlu0 %5142
    %5144 = vrot.lane.b32.xlu0 %v5094, 72
    %v5145 = vpop.permute.xlu0 %5144
    %5146 = vrot.lane.b32.xlu0 %v5095, 72
    %v5147 = vpop.permute.xlu0 %5146
    %5148 = vrot.lane.b32.xlu0 %v5096, 72
    %v5149 = vpop.permute.xlu0 %5148
    %5150 = vrot.lane.b32.xlu0 %v5097, 72
    %v5151 = vpop.permute.xlu0 %5150
    %5152 = vrot.lane.b32.xlu0 %v5098, 72
    %v5153 = vpop.permute.xlu0 %5152
    %5154 = vrot.lane.b32.xlu0 %v5099, 72
    %v5155 = vpop.permute.xlu0 %5154
    %5156 = vrot.lane.b32.xlu0 %v5100, 72
    %v5157 = vpop.permute.xlu0 %5156
    %5158 = vrot.lane.b32.xlu0 %v5101, 72
    %v5159 = vpop.permute.xlu0 %5158
    %5160 = vrot.lane.b32.xlu0 %v5102, 72
    %v5161 = vpop.permute.xlu0 %5160
    %5162 = vrot.lane.b32.xlu0 %v5103, 72
    %v5163 = vpop.permute.xlu0 %5162
    %5164 = vrot.lane.b32.xlu0 %v5104, 72
    %v5165 = vpop.permute.xlu0 %5164
    %5166 = vrot.lane.b32.xlu0 %v5105, 72
    %v5167 = vpop.permute.xlu0 %5166
    %5168 = vrot.lane.b32.xlu0 %v5106, 72
    %v5169 = vpop.permute.xlu0 %5168
    %5170 = vrot.lane.b32.xlu0 %v5107, 72
    %v5171 = vpop.permute.xlu0 %5170
    %v5204 = vunpack.c.l.b16 %v2291
    %v5205 = vunpack.c.l.b16 %v2292
    %v5206 = vunpack.c.l.b16 %v2293
    %v5207 = vunpack.c.l.b16 %v2294
    %v5208 = vunpack.c.l.b16 %v2295
    %v5209 = vunpack.c.l.b16 %v2296
    %v5210 = vunpack.c.l.b16 %v2297
    %v5211 = vunpack.c.l.b16 %v2298
    %v5212 = vunpack.c.l.b16 %v2299
    %v5213 = vunpack.c.l.b16 %v2300
    %v5214 = vunpack.c.l.b16 %v2301
    %v5215 = vunpack.c.l.b16 %v2302
    %v5216 = vunpack.c.l.b16 %v2303
    %v5217 = vunpack.c.l.b16 %v2304
    %v5218 = vunpack.c.l.b16 %v2305
    %v5219 = vunpack.c.l.b16 %v2306
    %v5220 = vunpack.c.l.b16 %v2307
    %v5221 = vunpack.c.l.b16 %v2308
    %v5222 = vunpack.c.l.b16 %v2309
    %v5223 = vunpack.c.l.b16 %v2310
    %v5224 = vunpack.c.l.b16 %v2311
    %v5225 = vunpack.c.l.b16 %v2312
    %v5226 = vunpack.c.l.b16 %v2313
    %v5227 = vunpack.c.l.b16 %v2314
    %v5228 = vunpack.c.l.b16 %v2315
    %v5229 = vunpack.c.l.b16 %v2316
    %v5230 = vunpack.c.l.b16 %v2317
    %v5231 = vunpack.c.l.b16 %v2318
    %v5232 = vunpack.c.l.b16 %v2319
    %v5233 = vunpack.c.l.b16 %v2320
    %v5234 = vunpack.c.l.b16 %v2321
    %v5235 = vunpack.c.l.b16 %v2322
    %v5236 = vunpack.c.l.b16 %v2323
    %v5237 = vunpack.c.l.b16 %v2324
    %v5238 = vunpack.c.l.b16 %v2325
    %v5239 = vunpack.c.l.b16 %v2326
    %v5240 = vunpack.c.l.b16 %v2327
    %v5241 = vunpack.c.l.b16 %v2328
    %v5242 = vunpack.c.l.b16 %v2329
    %v5243 = vunpack.c.l.b16 %v2330
    %v5244 = vunpack.c.l.b16 %v2331
    %v5245 = vunpack.c.l.b16 %v2332
    %v5246 = vunpack.c.l.b16 %v2333
    %v5247 = vunpack.c.l.b16 %v2334
    %v5248 = vunpack.c.l.b16 %v2335
    %v5249 = vunpack.c.l.b16 %v2336
    %v5250 = vunpack.c.l.b16 %v2337
    %v5251 = vunpack.c.l.b16 %v2338
    %v5252 = vunpack.c.l.b16 %v2339
    %v5253 = vunpack.c.l.b16 %v2340
    %v5254 = vunpack.c.l.b16 %v2341
    %v5255 = vunpack.c.l.b16 %v2342
    %v5256 = vunpack.c.l.b16 %v2343
    %v5257 = vunpack.c.l.b16 %v2344
    %v5258 = vunpack.c.l.b16 %v2345
    %v5259 = vunpack.c.l.b16 %v2346
    %v5260 = vunpack.c.l.b16 %v2347
    %v5261 = vunpack.c.l.b16 %v2348
    %v5262 = vunpack.c.l.b16 %v2349
    %v5263 = vunpack.c.l.b16 %v2350
    %v5264 = vunpack.c.l.b16 %v2351
    %v5265 = vunpack.c.l.b16 %v2352
    %v5266 = vunpack.c.l.b16 %v2353
    %v5267 = vunpack.c.l.b16 %v2354
    %v5268 = vpack.c.b16 %v5205, %v5204
    %v5269 = vpack.c.b16 %v5207, %v5206
    %v5270 = vpack.c.b16 %v5209, %v5208
    %v5271 = vpack.c.b16 %v5211, %v5210
    %v5272 = vpack.c.b16 %v5213, %v5212
    %v5273 = vpack.c.b16 %v5215, %v5214
    %v5274 = vpack.c.b16 %v5217, %v5216
    %v5275 = vpack.c.b16 %v5219, %v5218
    %v5276 = vpack.c.b16 %v5221, %v5220
    %v5277 = vpack.c.b16 %v5223, %v5222
    %v5278 = vpack.c.b16 %v5225, %v5224
    %v5279 = vpack.c.b16 %v5227, %v5226
    %v5280 = vpack.c.b16 %v5229, %v5228
    %v5281 = vpack.c.b16 %v5231, %v5230
    %v5282 = vpack.c.b16 %v5233, %v5232
    %v5283 = vpack.c.b16 %v5235, %v5234
    %v5284 = vpack.c.b16 %v5237, %v5236
    %v5285 = vpack.c.b16 %v5239, %v5238
    %v5286 = vpack.c.b16 %v5241, %v5240
    %v5287 = vpack.c.b16 %v5243, %v5242
    %v5288 = vpack.c.b16 %v5245, %v5244
    %v5289 = vpack.c.b16 %v5247, %v5246
    %v5290 = vpack.c.b16 %v5249, %v5248
    %v5291 = vpack.c.b16 %v5251, %v5250
    %v5292 = vpack.c.b16 %v5253, %v5252
    %v5293 = vpack.c.b16 %v5255, %v5254
    %v5294 = vpack.c.b16 %v5257, %v5256
    %v5295 = vpack.c.b16 %v5259, %v5258
    %v5296 = vpack.c.b16 %v5261, %v5260
    %v5297 = vpack.c.b16 %v5263, %v5262
    %v5298 = vpack.c.b16 %v5265, %v5264
    %v5299 = vpack.c.b16 %v5267, %v5266
    %5300 = vrot.lane.b32.xlu0 %v5268, 108
    %v5301 = vpop.permute.xlu0 %5300
    %5302 = vrot.lane.b32.xlu0 %v5269, 108
    %v5303 = vpop.permute.xlu0 %5302
    %5304 = vrot.lane.b32.xlu0 %v5270, 108
    %v5305 = vpop.permute.xlu0 %5304
    %5306 = vrot.lane.b32.xlu0 %v5271, 108
    %v5307 = vpop.permute.xlu0 %5306
    %5308 = vrot.lane.b32.xlu0 %v5272, 108
    %v5309 = vpop.permute.xlu0 %5308
    %5310 = vrot.lane.b32.xlu0 %v5273, 108
    %v5311 = vpop.permute.xlu0 %5310
    %5312 = vrot.lane.b32.xlu0 %v5274, 108
    %v5313 = vpop.permute.xlu0 %5312
    %5314 = vrot.lane.b32.xlu0 %v5275, 108
    %v5315 = vpop.permute.xlu0 %5314
    %5316 = vrot.lane.b32.xlu0 %v5276, 108
    %v5317 = vpop.permute.xlu0 %5316
    %5318 = vrot.lane.b32.xlu0 %v5277, 108
    %v5319 = vpop.permute.xlu0 %5318
    %5320 = vrot.lane.b32.xlu0 %v5278, 108
    %v5321 = vpop.permute.xlu0 %5320
    %5322 = vrot.lane.b32.xlu0 %v5279, 108
    %v5323 = vpop.permute.xlu0 %5322
    %5324 = vrot.lane.b32.xlu0 %v5280, 108
    %v5325 = vpop.permute.xlu0 %5324
    %5326 = vrot.lane.b32.xlu0 %v5281, 108
    %v5327 = vpop.permute.xlu0 %5326
    %5328 = vrot.lane.b32.xlu0 %v5282, 108
    %v5329 = vpop.permute.xlu0 %5328
    %5330 = vrot.lane.b32.xlu0 %v5283, 108
    %v5331 = vpop.permute.xlu0 %5330
    %5332 = vrot.lane.b32.xlu0 %v5284, 108
    %v5333 = vpop.permute.xlu0 %5332
    %5334 = vrot.lane.b32.xlu0 %v5285, 108
    %v5335 = vpop.permute.xlu0 %5334
    %5336 = vrot.lane.b32.xlu0 %v5286, 108
    %v5337 = vpop.permute.xlu0 %5336
    %5338 = vrot.lane.b32.xlu0 %v5287, 108
    %v5339 = vpop.permute.xlu0 %5338
    %5340 = vrot.lane.b32.xlu0 %v5288, 108
    %v5341 = vpop.permute.xlu0 %5340
    %5342 = vrot.lane.b32.xlu0 %v5289, 108
    %v5343 = vpop.permute.xlu0 %5342
    %5344 = vrot.lane.b32.xlu0 %v5290, 108
    %v5345 = vpop.permute.xlu0 %5344
    %5346 = vrot.lane.b32.xlu0 %v5291, 108
    %v5347 = vpop.permute.xlu0 %5346
    %5348 = vrot.lane.b32.xlu0 %v5292, 108
    %v5349 = vpop.permute.xlu0 %5348
    %5350 = vrot.lane.b32.xlu0 %v5293, 108
    %v5351 = vpop.permute.xlu0 %5350
    %5352 = vrot.lane.b32.xlu0 %v5294, 108
    %v5353 = vpop.permute.xlu0 %5352
    %5354 = vrot.lane.b32.xlu0 %v5295, 108
    %v5355 = vpop.permute.xlu0 %5354
    %5356 = vrot.lane.b32.xlu0 %v5296, 108
    %v5357 = vpop.permute.xlu0 %5356
    %5358 = vrot.lane.b32.xlu0 %v5297, 108
    %v5359 = vpop.permute.xlu0 %5358
    %5360 = vrot.lane.b32.xlu0 %v5298, 108
    %v5361 = vpop.permute.xlu0 %5360
    %5362 = vrot.lane.b32.xlu0 %v5299, 108
    %v5363 = vpop.permute.xlu0 %5362
    %v5364 = vunpack.c.l.b16 %v2400
    %v5365 = vunpack.c.l.b16 %v2410
    %v5366 = vunpack.c.l.b16 %v2424
    %v5367 = vunpack.c.l.b16 %v2434
    %v5368 = vunpack.c.l.b16 %v2448
    %v5369 = vunpack.c.l.b16 %v2458
    %v5370 = vunpack.c.l.b16 %v2472
    %v5371 = vunpack.c.l.b16 %v2482
    %v5372 = vunpack.c.l.b16 %v2496
    %v5373 = vunpack.c.l.b16 %v2506
    %v5374 = vunpack.c.l.b16 %v2520
    %v5375 = vunpack.c.l.b16 %v2530
    %v5376 = vunpack.c.l.b16 %v2544
    %v5377 = vunpack.c.l.b16 %v2554
    %v5378 = vunpack.c.l.b16 %v2568
    %v5379 = vunpack.c.l.b16 %v2578
    %v5380 = vunpack.c.l.b16 %v2592
    %v5381 = vunpack.c.l.b16 %v2602
    %v5382 = vunpack.c.l.b16 %v2616
    %v5383 = vunpack.c.l.b16 %v2626
    %v5384 = vunpack.c.l.b16 %v2640
    %v5385 = vunpack.c.l.b16 %v2650
    %v5386 = vunpack.c.l.b16 %v2664
    %v5387 = vunpack.c.l.b16 %v2674
    %v5388 = vunpack.c.l.b16 %v2688
    %v5389 = vunpack.c.l.b16 %v2698
    %v5390 = vunpack.c.l.b16 %v2712
    %v5391 = vunpack.c.l.b16 %v2722
    %v5392 = vunpack.c.l.b16 %v2736
    %v5393 = vunpack.c.l.b16 %v2746
    %v5394 = vunpack.c.l.b16 %v2760
    %v5395 = vunpack.c.l.b16 %v2770
    %v5396 = vunpack.c.l.b16 %v2784
    %v5397 = vunpack.c.l.b16 %v2794
    %v5398 = vunpack.c.l.b16 %v2808
    %v5399 = vunpack.c.l.b16 %v2818
    %v5400 = vunpack.c.l.b16 %v2832
    %v5401 = vunpack.c.l.b16 %v2842
    %v5402 = vunpack.c.l.b16 %v2856
    %v5403 = vunpack.c.l.b16 %v2866
    %v5404 = vunpack.c.l.b16 %v2880
    %v5405 = vunpack.c.l.b16 %v2890
    %v5406 = vunpack.c.l.b16 %v2904
    %v5407 = vunpack.c.l.b16 %v2914
    %v5408 = vunpack.c.l.b16 %v2928
    %v5409 = vunpack.c.l.b16 %v2938
    %v5410 = vunpack.c.l.b16 %v2952
    %v5411 = vunpack.c.l.b16 %v2962
    %v5412 = vunpack.c.l.b16 %v2976
    %v5413 = vunpack.c.l.b16 %v2986
    %v5414 = vunpack.c.l.b16 %v3000
    %v5415 = vunpack.c.l.b16 %v3010
    %v5416 = vunpack.c.l.b16 %v3024
    %v5417 = vunpack.c.l.b16 %v3034
    %v5418 = vunpack.c.l.b16 %v3048
    %v5419 = vunpack.c.l.b16 %v3058
    %v5420 = vunpack.c.l.b16 %v3072
    %v5421 = vunpack.c.l.b16 %v3082
    %v5422 = vunpack.c.l.b16 %v3096
    %v5423 = vunpack.c.l.b16 %v3106
    %v5424 = vunpack.c.l.b16 %v3120
    %v5425 = vunpack.c.l.b16 %v3130
    %v5426 = vunpack.c.l.b16 %v3144
    %v5427 = vunpack.c.l.b16 %v3154
    %v5428 = vpack.c.b16 %v5365, %v5364
    %v5429 = vpack.c.b16 %v5367, %v5366
    %v5430 = vpack.c.b16 %v5369, %v5368
    %v5431 = vpack.c.b16 %v5371, %v5370
    %v5432 = vpack.c.b16 %v5373, %v5372
    %v5433 = vpack.c.b16 %v5375, %v5374
    %v5434 = vpack.c.b16 %v5377, %v5376
    %v5435 = vpack.c.b16 %v5379, %v5378
    %v5436 = vpack.c.b16 %v5381, %v5380
    %v5437 = vpack.c.b16 %v5383, %v5382
    %v5438 = vpack.c.b16 %v5385, %v5384
    %v5439 = vpack.c.b16 %v5387, %v5386
    %v5440 = vpack.c.b16 %v5389, %v5388
    %v5441 = vpack.c.b16 %v5391, %v5390
    %v5442 = vpack.c.b16 %v5393, %v5392
    %v5443 = vpack.c.b16 %v5395, %v5394
    %v5444 = vpack.c.b16 %v5397, %v5396
    %v5445 = vpack.c.b16 %v5399, %v5398
    %v5446 = vpack.c.b16 %v5401, %v5400
    %v5447 = vpack.c.b16 %v5403, %v5402
    %v5448 = vpack.c.b16 %v5405, %v5404
    %v5449 = vpack.c.b16 %v5407, %v5406
    %v5450 = vpack.c.b16 %v5409, %v5408
    %v5451 = vpack.c.b16 %v5411, %v5410
    %v5452 = vpack.c.b16 %v5413, %v5412
    %v5453 = vpack.c.b16 %v5415, %v5414
    %v5454 = vpack.c.b16 %v5417, %v5416
    %v5455 = vpack.c.b16 %v5419, %v5418
    %v5456 = vpack.c.b16 %v5421, %v5420
    %v5457 = vpack.c.b16 %v5423, %v5422
    %v5458 = vpack.c.b16 %v5425, %v5424
    %v5459 = vpack.c.b16 %v5427, %v5426
    %5460 = vrot.lane.b32.xlu0 %v5428, 16
    %v5461 = vpop.permute.xlu0 %5460
    %5462 = vrot.lane.b32.xlu0 %v5429, 16
    %v5463 = vpop.permute.xlu0 %5462
    %5464 = vrot.lane.b32.xlu0 %v5430, 16
    %v5465 = vpop.permute.xlu0 %5464
    %5466 = vrot.lane.b32.xlu0 %v5431, 16
    %v5467 = vpop.permute.xlu0 %5466
    %5468 = vrot.lane.b32.xlu0 %v5432, 16
    %v5469 = vpop.permute.xlu0 %5468
    %5470 = vrot.lane.b32.xlu0 %v5433, 16
    %v5471 = vpop.permute.xlu0 %5470
    %5472 = vrot.lane.b32.xlu0 %v5434, 16
    %v5473 = vpop.permute.xlu0 %5472
    %5474 = vrot.lane.b32.xlu0 %v5435, 16
    %v5475 = vpop.permute.xlu0 %5474
    %5476 = vrot.lane.b32.xlu0 %v5436, 16
    %v5477 = vpop.permute.xlu0 %5476
    %5478 = vrot.lane.b32.xlu0 %v5437, 16
    %v5479 = vpop.permute.xlu0 %5478
    %5480 = vrot.lane.b32.xlu0 %v5438, 16
    %v5481 = vpop.permute.xlu0 %5480
    %5482 = vrot.lane.b32.xlu0 %v5439, 16
    %v5483 = vpop.permute.xlu0 %5482
    %5484 = vrot.lane.b32.xlu0 %v5440, 16
    %v5485 = vpop.permute.xlu0 %5484
    %5486 = vrot.lane.b32.xlu0 %v5441, 16
    %v5487 = vpop.permute.xlu0 %5486
    %5488 = vrot.lane.b32.xlu0 %v5442, 16
    %v5489 = vpop.permute.xlu0 %5488
    %5490 = vrot.lane.b32.xlu0 %v5443, 16
    %v5491 = vpop.permute.xlu0 %5490
    %5492 = vrot.lane.b32.xlu0 %v5444, 16
    %v5493 = vpop.permute.xlu0 %5492
    %5494 = vrot.lane.b32.xlu0 %v5445, 16
    %v5495 = vpop.permute.xlu0 %5494
    %5496 = vrot.lane.b32.xlu0 %v5446, 16
    %v5497 = vpop.permute.xlu0 %5496
    %5498 = vrot.lane.b32.xlu0 %v5447, 16
    %v5499 = vpop.permute.xlu0 %5498
    %5500 = vrot.lane.b32.xlu0 %v5448, 16
    %v5501 = vpop.permute.xlu0 %5500
    %5502 = vrot.lane.b32.xlu0 %v5449, 16
    %v5503 = vpop.permute.xlu0 %5502
    %5504 = vrot.lane.b32.xlu0 %v5450, 16
    %v5505 = vpop.permute.xlu0 %5504
    %5506 = vrot.lane.b32.xlu0 %v5451, 16
    %v5507 = vpop.permute.xlu0 %5506
    %5508 = vrot.lane.b32.xlu0 %v5452, 16
    %v5509 = vpop.permute.xlu0 %5508
    %5510 = vrot.lane.b32.xlu0 %v5453, 16
    %v5511 = vpop.permute.xlu0 %5510
    %5512 = vrot.lane.b32.xlu0 %v5454, 16
    %v5513 = vpop.permute.xlu0 %5512
    %5514 = vrot.lane.b32.xlu0 %v5455, 16
    %v5515 = vpop.permute.xlu0 %5514
    %5516 = vrot.lane.b32.xlu0 %v5456, 16
    %v5517 = vpop.permute.xlu0 %5516
    %5518 = vrot.lane.b32.xlu0 %v5457, 16
    %v5519 = vpop.permute.xlu0 %5518
    %5520 = vrot.lane.b32.xlu0 %v5458, 16
    %v5521 = vpop.permute.xlu0 %5520
    %5522 = vrot.lane.b32.xlu0 %v5459, 16
    %v5523 = vpop.permute.xlu0 %5522
    %v5524 = vunpack.c.l.b16 %v3286
    %v5525 = vunpack.c.l.b16 %v3289
    %v5526 = vunpack.c.l.b16 %v3293
    %v5527 = vunpack.c.l.b16 %v3296
    %v5528 = vunpack.c.l.b16 %v3300
    %v5529 = vunpack.c.l.b16 %v3303
    %v5530 = vunpack.c.l.b16 %v3307
    %v5531 = vunpack.c.l.b16 %v3310
    %v5532 = vunpack.c.l.b16 %v3314
    %v5533 = vunpack.c.l.b16 %v3317
    %v5534 = vunpack.c.l.b16 %v3321
    %v5535 = vunpack.c.l.b16 %v3324
    %v5536 = vunpack.c.l.b16 %v3328
    %v5537 = vunpack.c.l.b16 %v3331
    %v5538 = vunpack.c.l.b16 %v3335
    %v5539 = vunpack.c.l.b16 %v3338
    %v5540 = vunpack.c.l.b16 %v3342
    %v5541 = vunpack.c.l.b16 %v3345
    %v5542 = vunpack.c.l.b16 %v3349
    %v5543 = vunpack.c.l.b16 %v3352
    %v5544 = vunpack.c.l.b16 %v3356
    %v5545 = vunpack.c.l.b16 %v3359
    %v5546 = vunpack.c.l.b16 %v3363
    %v5547 = vunpack.c.l.b16 %v3366
    %v5548 = vunpack.c.l.b16 %v3370
    %v5549 = vunpack.c.l.b16 %v3373
    %v5550 = vunpack.c.l.b16 %v3377
    %v5551 = vunpack.c.l.b16 %v3380
    %v5552 = vunpack.c.l.b16 %v3384
    %v5553 = vunpack.c.l.b16 %v3387
    %v5554 = vunpack.c.l.b16 %v3391
    %v5555 = vunpack.c.l.b16 %v3394
    %v5556 = vunpack.c.l.b16 %v3398
    %v5557 = vunpack.c.l.b16 %v3401
    %v5558 = vunpack.c.l.b16 %v3405
    %v5559 = vunpack.c.l.b16 %v3408
    %v5560 = vunpack.c.l.b16 %v3412
    %v5561 = vunpack.c.l.b16 %v3415
    %v5562 = vunpack.c.l.b16 %v3419
    %v5563 = vunpack.c.l.b16 %v3422
    %v5564 = vunpack.c.l.b16 %v3426
    %v5565 = vunpack.c.l.b16 %v3429
    %v5566 = vunpack.c.l.b16 %v3433
    %v5567 = vunpack.c.l.b16 %v3436
    %v5568 = vunpack.c.l.b16 %v3440
    %v5569 = vunpack.c.l.b16 %v3443
    %v5570 = vunpack.c.l.b16 %v3447
    %v5571 = vunpack.c.l.b16 %v3450
    %v5572 = vunpack.c.l.b16 %v3454
    %v5573 = vunpack.c.l.b16 %v3457
    %v5574 = vunpack.c.l.b16 %v3461
    %v5575 = vunpack.c.l.b16 %v3464
    %v5576 = vunpack.c.l.b16 %v3468
    %v5577 = vunpack.c.l.b16 %v3471
    %v5578 = vunpack.c.l.b16 %v3475
    %v5579 = vunpack.c.l.b16 %v3478
    %v5580 = vunpack.c.l.b16 %v3482
    %v5581 = vunpack.c.l.b16 %v3485
    %v5582 = vunpack.c.l.b16 %v3489
    %v5583 = vunpack.c.l.b16 %v3492
    %v5584 = vunpack.c.l.b16 %v3496
    %v5585 = vunpack.c.l.b16 %v3499
    %v5586 = vunpack.c.l.b16 %v3503
    %v5587 = vunpack.c.l.b16 %v3506
    %v5588 = vpack.c.b16 %v5525, %v5524
    %v5589 = vpack.c.b16 %v5527, %v5526
    %v5590 = vpack.c.b16 %v5529, %v5528
    %v5591 = vpack.c.b16 %v5531, %v5530
    %v5592 = vpack.c.b16 %v5533, %v5532
    %v5593 = vpack.c.b16 %v5535, %v5534
    %v5594 = vpack.c.b16 %v5537, %v5536
    %v5595 = vpack.c.b16 %v5539, %v5538
    %v5596 = vpack.c.b16 %v5541, %v5540
    %v5597 = vpack.c.b16 %v5543, %v5542
    %v5598 = vpack.c.b16 %v5545, %v5544
    %v5599 = vpack.c.b16 %v5547, %v5546
    %v5600 = vpack.c.b16 %v5549, %v5548
    %v5601 = vpack.c.b16 %v5551, %v5550
    %v5602 = vpack.c.b16 %v5553, %v5552
    %v5603 = vpack.c.b16 %v5555, %v5554
    %v5604 = vpack.c.b16 %v5557, %v5556
    %v5605 = vpack.c.b16 %v5559, %v5558
    %v5606 = vpack.c.b16 %v5561, %v5560
    %v5607 = vpack.c.b16 %v5563, %v5562
    %v5608 = vpack.c.b16 %v5565, %v5564
    %v5609 = vpack.c.b16 %v5567, %v5566
    %v5610 = vpack.c.b16 %v5569, %v5568
    %v5611 = vpack.c.b16 %v5571, %v5570
    %v5612 = vpack.c.b16 %v5573, %v5572
    %v5613 = vpack.c.b16 %v5575, %v5574
    %v5614 = vpack.c.b16 %v5577, %v5576
    %v5615 = vpack.c.b16 %v5579, %v5578
    %v5616 = vpack.c.b16 %v5581, %v5580
    %v5617 = vpack.c.b16 %v5583, %v5582
    %v5618 = vpack.c.b16 %v5585, %v5584
    %v5619 = vpack.c.b16 %v5587, %v5586
    %5620 = vrot.lane.b32.xlu0 %v5588, 52
    %v5621 = vpop.permute.xlu0 %5620
    %5622 = vrot.lane.b32.xlu0 %v5589, 52
    %v5623 = vpop.permute.xlu0 %5622
    %5624 = vrot.lane.b32.xlu0 %v5590, 52
    %v5625 = vpop.permute.xlu0 %5624
    %5626 = vrot.lane.b32.xlu0 %v5591, 52
    %v5627 = vpop.permute.xlu0 %5626
    %5628 = vrot.lane.b32.xlu0 %v5592, 52
    %v5629 = vpop.permute.xlu0 %5628
    %5630 = vrot.lane.b32.xlu0 %v5593, 52
    %v5631 = vpop.permute.xlu0 %5630
    %5632 = vrot.lane.b32.xlu0 %v5594, 52
    %v5633 = vpop.permute.xlu0 %5632
    %5634 = vrot.lane.b32.xlu0 %v5595, 52
    %v5635 = vpop.permute.xlu0 %5634
    %5636 = vrot.lane.b32.xlu0 %v5596, 52
    %v5637 = vpop.permute.xlu0 %5636
    %5638 = vrot.lane.b32.xlu0 %v5597, 52
    %v5639 = vpop.permute.xlu0 %5638
    %5640 = vrot.lane.b32.xlu0 %v5598, 52
    %v5641 = vpop.permute.xlu0 %5640
    %5642 = vrot.lane.b32.xlu0 %v5599, 52
    %v5643 = vpop.permute.xlu0 %5642
    %5644 = vrot.lane.b32.xlu0 %v5600, 52
    %v5645 = vpop.permute.xlu0 %5644
    %5646 = vrot.lane.b32.xlu0 %v5601, 52
    %v5647 = vpop.permute.xlu0 %5646
    %5648 = vrot.lane.b32.xlu0 %v5602, 52
    %v5649 = vpop.permute.xlu0 %5648
    %5650 = vrot.lane.b32.xlu0 %v5603, 52
    %v5651 = vpop.permute.xlu0 %5650
    %5652 = vrot.lane.b32.xlu0 %v5604, 52
    %v5653 = vpop.permute.xlu0 %5652
    %5654 = vrot.lane.b32.xlu0 %v5605, 52
    %v5655 = vpop.permute.xlu0 %5654
    %5656 = vrot.lane.b32.xlu0 %v5606, 52
    %v5657 = vpop.permute.xlu0 %5656
    %5658 = vrot.lane.b32.xlu0 %v5607, 52
    %v5659 = vpop.permute.xlu0 %5658
    %5660 = vrot.lane.b32.xlu0 %v5608, 52
    %v5661 = vpop.permute.xlu0 %5660
    %5662 = vrot.lane.b32.xlu0 %v5609, 52
    %v5663 = vpop.permute.xlu0 %5662
    %5664 = vrot.lane.b32.xlu0 %v5610, 52
    %v5665 = vpop.permute.xlu0 %5664
    %5666 = vrot.lane.b32.xlu0 %v5611, 52
    %v5667 = vpop.permute.xlu0 %5666
    %5668 = vrot.lane.b32.xlu0 %v5612, 52
    %v5669 = vpop.permute.xlu0 %5668
    %5670 = vrot.lane.b32.xlu0 %v5613, 52
    %v5671 = vpop.permute.xlu0 %5670
    %5672 = vrot.lane.b32.xlu0 %v5614, 52
    %v5673 = vpop.permute.xlu0 %5672
    %5674 = vrot.lane.b32.xlu0 %v5615, 52
    %v5675 = vpop.permute.xlu0 %5674
    %5676 = vrot.lane.b32.xlu0 %v5616, 52
    %v5677 = vpop.permute.xlu0 %5676
    %5678 = vrot.lane.b32.xlu0 %v5617, 52
    %v5679 = vpop.permute.xlu0 %5678
    %5680 = vrot.lane.b32.xlu0 %v5618, 52
    %v5681 = vpop.permute.xlu0 %5680
    %5682 = vrot.lane.b32.xlu0 %v5619, 52
    %v5683 = vpop.permute.xlu0 %5682
    %v5716 = vunpack.c.l.b16 %v3508
    %v5717 = vunpack.c.l.b16 %v3509
    %v5718 = vunpack.c.l.b16 %v3510
    %v5719 = vunpack.c.l.b16 %v3511
    %v5720 = vunpack.c.l.b16 %v3512
    %v5721 = vunpack.c.l.b16 %v3513
    %v5722 = vunpack.c.l.b16 %v3514
    %v5723 = vunpack.c.l.b16 %v3515
    %v5724 = vunpack.c.l.b16 %v3516
    %v5725 = vunpack.c.l.b16 %v3517
    %v5726 = vunpack.c.l.b16 %v3518
    %v5727 = vunpack.c.l.b16 %v3519
    %v5728 = vunpack.c.l.b16 %v3520
    %v5729 = vunpack.c.l.b16 %v3521
    %v5730 = vunpack.c.l.b16 %v3522
    %v5731 = vunpack.c.l.b16 %v3523
    %v5732 = vunpack.c.l.b16 %v3524
    %v5733 = vunpack.c.l.b16 %v3525
    %v5734 = vunpack.c.l.b16 %v3526
    %v5735 = vunpack.c.l.b16 %v3527
    %v5736 = vunpack.c.l.b16 %v3528
    %v5737 = vunpack.c.l.b16 %v3529
    %v5738 = vunpack.c.l.b16 %v3530
    %v5739 = vunpack.c.l.b16 %v3531
    %v5740 = vunpack.c.l.b16 %v3532
    %v5741 = vunpack.c.l.b16 %v3533
    %v5742 = vunpack.c.l.b16 %v3534
    %v5743 = vunpack.c.l.b16 %v3535
    %v5744 = vunpack.c.l.b16 %v3536
    %v5745 = vunpack.c.l.b16 %v3537
    %v5746 = vunpack.c.l.b16 %v3538
    %v5747 = vunpack.c.l.b16 %v3539
    %v5748 = vunpack.c.l.b16 %v3540
    %v5749 = vunpack.c.l.b16 %v3541
    %v5750 = vunpack.c.l.b16 %v3542
    %v5751 = vunpack.c.l.b16 %v3543
    %v5752 = vunpack.c.l.b16 %v3544
    %v5753 = vunpack.c.l.b16 %v3545
    %v5754 = vunpack.c.l.b16 %v3546
    %v5755 = vunpack.c.l.b16 %v3547
    %v5756 = vunpack.c.l.b16 %v3548
    %v5757 = vunpack.c.l.b16 %v3549
    %v5758 = vunpack.c.l.b16 %v3550
    %v5759 = vunpack.c.l.b16 %v3551
    %v5760 = vunpack.c.l.b16 %v3552
    %v5761 = vunpack.c.l.b16 %v3553
    %v5762 = vunpack.c.l.b16 %v3554
    %v5763 = vunpack.c.l.b16 %v3555
    %v5764 = vunpack.c.l.b16 %v3556
    %v5765 = vunpack.c.l.b16 %v3557
    %v5766 = vunpack.c.l.b16 %v3558
    %v5767 = vunpack.c.l.b16 %v3559
    %v5768 = vunpack.c.l.b16 %v3560
    %v5769 = vunpack.c.l.b16 %v3561
    %v5770 = vunpack.c.l.b16 %v3562
    %v5771 = vunpack.c.l.b16 %v3563
    %v5772 = vunpack.c.l.b16 %v3564
    %v5773 = vunpack.c.l.b16 %v3565
    %v5774 = vunpack.c.l.b16 %v3566
    %v5775 = vunpack.c.l.b16 %v3567
    %v5776 = vunpack.c.l.b16 %v3568
    %v5777 = vunpack.c.l.b16 %v3569
    %v5778 = vunpack.c.l.b16 %v3570
    %v5779 = vunpack.c.l.b16 %v3571
    %v5780 = vpack.c.b16 %v5717, %v5716
    %v5781 = vpack.c.b16 %v5719, %v5718
    %v5782 = vpack.c.b16 %v5721, %v5720
    %v5783 = vpack.c.b16 %v5723, %v5722
    %v5784 = vpack.c.b16 %v5725, %v5724
    %v5785 = vpack.c.b16 %v5727, %v5726
    %v5786 = vpack.c.b16 %v5729, %v5728
    %v5787 = vpack.c.b16 %v5731, %v5730
    %v5788 = vpack.c.b16 %v5733, %v5732
    %v5789 = vpack.c.b16 %v5735, %v5734
    %v5790 = vpack.c.b16 %v5737, %v5736
    %v5791 = vpack.c.b16 %v5739, %v5738
    %v5792 = vpack.c.b16 %v5741, %v5740
    %v5793 = vpack.c.b16 %v5743, %v5742
    %v5794 = vpack.c.b16 %v5745, %v5744
    %v5795 = vpack.c.b16 %v5747, %v5746
    %v5796 = vpack.c.b16 %v5749, %v5748
    %v5797 = vpack.c.b16 %v5751, %v5750
    %v5798 = vpack.c.b16 %v5753, %v5752
    %v5799 = vpack.c.b16 %v5755, %v5754
    %v5800 = vpack.c.b16 %v5757, %v5756
    %v5801 = vpack.c.b16 %v5759, %v5758
    %v5802 = vpack.c.b16 %v5761, %v5760
    %v5803 = vpack.c.b16 %v5763, %v5762
    %v5804 = vpack.c.b16 %v5765, %v5764
    %v5805 = vpack.c.b16 %v5767, %v5766
    %v5806 = vpack.c.b16 %v5769, %v5768
    %v5807 = vpack.c.b16 %v5771, %v5770
    %v5808 = vpack.c.b16 %v5773, %v5772
    %v5809 = vpack.c.b16 %v5775, %v5774
    %v5810 = vpack.c.b16 %v5777, %v5776
    %v5811 = vpack.c.b16 %v5779, %v5778
    %5812 = vrot.lane.b32.xlu0 %v5780, 88
    %v5813 = vpop.permute.xlu0 %5812
    %5814 = vrot.lane.b32.xlu0 %v5781, 88
    %v5815 = vpop.permute.xlu0 %5814
    %5816 = vrot.lane.b32.xlu0 %v5782, 88
    %v5817 = vpop.permute.xlu0 %5816
    %5818 = vrot.lane.b32.xlu0 %v5783, 88
    %v5819 = vpop.permute.xlu0 %5818
    %5820 = vrot.lane.b32.xlu0 %v5784, 88
    %v5821 = vpop.permute.xlu0 %5820
    %5822 = vrot.lane.b32.xlu0 %v5785, 88
    %v5823 = vpop.permute.xlu0 %5822
    %5824 = vrot.lane.b32.xlu0 %v5786, 88
    %v5825 = vpop.permute.xlu0 %5824
    %5826 = vrot.lane.b32.xlu0 %v5787, 88
    %v5827 = vpop.permute.xlu0 %5826
    %5828 = vrot.lane.b32.xlu0 %v5788, 88
    %v5829 = vpop.permute.xlu0 %5828
    %5830 = vrot.lane.b32.xlu0 %v5789, 88
    %v5831 = vpop.permute.xlu0 %5830
    %5832 = vrot.lane.b32.xlu0 %v5790, 88
    %v5833 = vpop.permute.xlu0 %5832
    %5834 = vrot.lane.b32.xlu0 %v5791, 88
    %v5835 = vpop.permute.xlu0 %5834
    %5836 = vrot.lane.b32.xlu0 %v5792, 88
    %v5837 = vpop.permute.xlu0 %5836
    %5838 = vrot.lane.b32.xlu0 %v5793, 88
    %v5839 = vpop.permute.xlu0 %5838
    %5840 = vrot.lane.b32.xlu0 %v5794, 88
    %v5841 = vpop.permute.xlu0 %5840
    %5842 = vrot.lane.b32.xlu0 %v5795, 88
    %v5843 = vpop.permute.xlu0 %5842
    %5844 = vrot.lane.b32.xlu0 %v5796, 88
    %v5845 = vpop.permute.xlu0 %5844
    %5846 = vrot.lane.b32.xlu0 %v5797, 88
    %v5847 = vpop.permute.xlu0 %5846
    %5848 = vrot.lane.b32.xlu0 %v5798, 88
    %v5849 = vpop.permute.xlu0 %5848
    %5850 = vrot.lane.b32.xlu0 %v5799, 88
    %v5851 = vpop.permute.xlu0 %5850
    %5852 = vrot.lane.b32.xlu0 %v5800, 88
    %v5853 = vpop.permute.xlu0 %5852
    %5854 = vrot.lane.b32.xlu0 %v5801, 88
    %v5855 = vpop.permute.xlu0 %5854
    %5856 = vrot.lane.b32.xlu0 %v5802, 88
    %v5857 = vpop.permute.xlu0 %5856
    %5858 = vrot.lane.b32.xlu0 %v5803, 88
    %v5859 = vpop.permute.xlu0 %5858
    %5860 = vrot.lane.b32.xlu0 %v5804, 88
    %v5861 = vpop.permute.xlu0 %5860
    %5862 = vrot.lane.b32.xlu0 %v5805, 88
    %v5863 = vpop.permute.xlu0 %5862
    %5864 = vrot.lane.b32.xlu0 %v5806, 88
    %v5865 = vpop.permute.xlu0 %5864
    %5866 = vrot.lane.b32.xlu0 %v5807, 88
    %v5867 = vpop.permute.xlu0 %5866
    %5868 = vrot.lane.b32.xlu0 %v5808, 88
    %v5869 = vpop.permute.xlu0 %5868
    %5870 = vrot.lane.b32.xlu0 %v5809, 88
    %v5871 = vpop.permute.xlu0 %5870
    %5872 = vrot.lane.b32.xlu0 %v5810, 88
    %v5873 = vpop.permute.xlu0 %5872
    %5874 = vrot.lane.b32.xlu0 %v5811, 88
    %v5875 = vpop.permute.xlu0 %5874
    %v5876 = vunpack.c.l.b16 %v3617
    %v5877 = vunpack.c.l.b16 %v3627
    %v5878 = vunpack.c.l.b16 %v3641
    %v5879 = vunpack.c.l.b16 %v3651
    %v5880 = vunpack.c.l.b16 %v3665
    %v5881 = vunpack.c.l.b16 %v3675
    %v5882 = vunpack.c.l.b16 %v3689
    %v5883 = vunpack.c.l.b16 %v3699
    %v5884 = vunpack.c.l.b16 %v3713
    %v5885 = vunpack.c.l.b16 %v3723
    %v5886 = vunpack.c.l.b16 %v3737
    %v5887 = vunpack.c.l.b16 %v3747
    %v5888 = vunpack.c.l.b16 %v3761
    %v5889 = vunpack.c.l.b16 %v3771
    %v5890 = vunpack.c.l.b16 %v3785
    %v5891 = vunpack.c.l.b16 %v3795
    %v5892 = vunpack.c.l.b16 %v3809
    %v5893 = vunpack.c.l.b16 %v3819
    %v5894 = vunpack.c.l.b16 %v3833
    %v5895 = vunpack.c.l.b16 %v3843
    %v5896 = vunpack.c.l.b16 %v3857
    %v5897 = vunpack.c.l.b16 %v3867
    %v5898 = vunpack.c.l.b16 %v3881
    %v5899 = vunpack.c.l.b16 %v3891
    %v5900 = vunpack.c.l.b16 %v3905
    %v5901 = vunpack.c.l.b16 %v3915
    %v5902 = vunpack.c.l.b16 %v3929
    %v5903 = vunpack.c.l.b16 %v3939
    %v5904 = vunpack.c.l.b16 %v3953
    %v5905 = vunpack.c.l.b16 %v3963
    %v5906 = vunpack.c.l.b16 %v3977
    %v5907 = vunpack.c.l.b16 %v3987
    %v5908 = vunpack.c.l.b16 %v4001
    %v5909 = vunpack.c.l.b16 %v4011
    %v5910 = vunpack.c.l.b16 %v4025
    %v5911 = vunpack.c.l.b16 %v4035
    %v5912 = vunpack.c.l.b16 %v4049
    %v5913 = vunpack.c.l.b16 %v4059
    %v5914 = vunpack.c.l.b16 %v4073
    %v5915 = vunpack.c.l.b16 %v4083
    %v5916 = vunpack.c.l.b16 %v4097
    %v5917 = vunpack.c.l.b16 %v4107
    %v5918 = vunpack.c.l.b16 %v4121
    %v5919 = vunpack.c.l.b16 %v4131
    %v5920 = vunpack.c.l.b16 %v4145
    %v5921 = vunpack.c.l.b16 %v4155
    %v5922 = vunpack.c.l.b16 %v4169
    %v5923 = vunpack.c.l.b16 %v4179
    %v5924 = vunpack.c.l.b16 %v4193
    %v5925 = vunpack.c.l.b16 %v4203
    %v5926 = vunpack.c.l.b16 %v4217
    %v5927 = vunpack.c.l.b16 %v4227
    %v5928 = vunpack.c.l.b16 %v4241
    %v5929 = vunpack.c.l.b16 %v4251
    %v5930 = vunpack.c.l.b16 %v4265
    %v5931 = vunpack.c.l.b16 %v4275
    %v5932 = vunpack.c.l.b16 %v4289
    %v5933 = vunpack.c.l.b16 %v4299
    %v5934 = vunpack.c.l.b16 %v4313
    %v5935 = vunpack.c.l.b16 %v4323
    %v5936 = vunpack.c.l.b16 %v4337
    %v5937 = vunpack.c.l.b16 %v4347
    %v5938 = vunpack.c.l.b16 %v4361
    %v5939 = vunpack.c.l.b16 %v4371
    %v5940 = vpack.c.b16 %v5877, %v5876
    %v5941 = vpack.c.b16 %v5879, %v5878
    %v5942 = vpack.c.b16 %v5881, %v5880
    %v5943 = vpack.c.b16 %v5883, %v5882
    %v5944 = vpack.c.b16 %v5885, %v5884
    %v5945 = vpack.c.b16 %v5887, %v5886
    %v5946 = vpack.c.b16 %v5889, %v5888
    %v5947 = vpack.c.b16 %v5891, %v5890
    %v5948 = vpack.c.b16 %v5893, %v5892
    %v5949 = vpack.c.b16 %v5895, %v5894
    %v5950 = vpack.c.b16 %v5897, %v5896
    %v5951 = vpack.c.b16 %v5899, %v5898
    %v5952 = vpack.c.b16 %v5901, %v5900
    %v5953 = vpack.c.b16 %v5903, %v5902
    %v5954 = vpack.c.b16 %v5905, %v5904
    %v5955 = vpack.c.b16 %v5907, %v5906
    %v5956 = vpack.c.b16 %v5909, %v5908
    %v5957 = vpack.c.b16 %v5911, %v5910
    %v5958 = vpack.c.b16 %v5913, %v5912
    %v5959 = vpack.c.b16 %v5915, %v5914
    %v5960 = vpack.c.b16 %v5917, %v5916
    %v5961 = vpack.c.b16 %v5919, %v5918
    %v5962 = vpack.c.b16 %v5921, %v5920
    %v5963 = vpack.c.b16 %v5923, %v5922
    %v5964 = vpack.c.b16 %v5925, %v5924
    %v5965 = vpack.c.b16 %v5927, %v5926
    %v5966 = vpack.c.b16 %v5929, %v5928
    %v5967 = vpack.c.b16 %v5931, %v5930
    %v5968 = vpack.c.b16 %v5933, %v5932
    %v5969 = vpack.c.b16 %v5935, %v5934
    %v5970 = vpack.c.b16 %v5937, %v5936
    %v5971 = vpack.c.b16 %v5939, %v5938
    %5972 = vrot.lane.b32.xlu0 %v5940, 124
    %v5973 = vpop.permute.xlu0 %5972
    %5974 = vrot.lane.b32.xlu0 %v5941, 124
    %v5975 = vpop.permute.xlu0 %5974
    %5976 = vrot.lane.b32.xlu0 %v5942, 124
    %v5977 = vpop.permute.xlu0 %5976
    %5978 = vrot.lane.b32.xlu0 %v5943, 124
    %v5979 = vpop.permute.xlu0 %5978
    %5980 = vrot.lane.b32.xlu0 %v5944, 124
    %v5981 = vpop.permute.xlu0 %5980
    %5982 = vrot.lane.b32.xlu0 %v5945, 124
    %v5983 = vpop.permute.xlu0 %5982
    %5984 = vrot.lane.b32.xlu0 %v5946, 124
    %v5985 = vpop.permute.xlu0 %5984
    %5986 = vrot.lane.b32.xlu0 %v5947, 124
    %v5987 = vpop.permute.xlu0 %5986
    %5988 = vrot.lane.b32.xlu0 %v5948, 124
    %v5989 = vpop.permute.xlu0 %5988
    %5990 = vrot.lane.b32.xlu0 %v5949, 124
    %v5991 = vpop.permute.xlu0 %5990
    %5992 = vrot.lane.b32.xlu0 %v5950, 124
    %v5993 = vpop.permute.xlu0 %5992
    %5994 = vrot.lane.b32.xlu0 %v5951, 124
    %v5995 = vpop.permute.xlu0 %5994
    %5996 = vrot.lane.b32.xlu0 %v5952, 124
    %v5997 = vpop.permute.xlu0 %5996
    %5998 = vrot.lane.b32.xlu0 %v5953, 124
    %v5999 = vpop.permute.xlu0 %5998
    %6000 = vrot.lane.b32.xlu0 %v5954, 124
    %v6001 = vpop.permute.xlu0 %6000
    %6002 = vrot.lane.b32.xlu0 %v5955, 124
    %v6003 = vpop.permute.xlu0 %6002
    %6004 = vrot.lane.b32.xlu0 %v5956, 124
    %v6005 = vpop.permute.xlu0 %6004
    %6006 = vrot.lane.b32.xlu0 %v5957, 124
    %v6007 = vpop.permute.xlu0 %6006
    %6008 = vrot.lane.b32.xlu0 %v5958, 124
    %v6009 = vpop.permute.xlu0 %6008
    %6010 = vrot.lane.b32.xlu0 %v5959, 124
    %v6011 = vpop.permute.xlu0 %6010
    %6012 = vrot.lane.b32.xlu0 %v5960, 124
    %v6013 = vpop.permute.xlu0 %6012
    %6014 = vrot.lane.b32.xlu0 %v5961, 124
    %v6015 = vpop.permute.xlu0 %6014
    %6016 = vrot.lane.b32.xlu0 %v5962, 124
    %v6017 = vpop.permute.xlu0 %6016
    %6018 = vrot.lane.b32.xlu0 %v5963, 124
    %v6019 = vpop.permute.xlu0 %6018
    %6020 = vrot.lane.b32.xlu0 %v5964, 124
    %v6021 = vpop.permute.xlu0 %6020
    %6022 = vrot.lane.b32.xlu0 %v5965, 124
    %v6023 = vpop.permute.xlu0 %6022
    %6024 = vrot.lane.b32.xlu0 %v5966, 124
    %v6025 = vpop.permute.xlu0 %6024
    %6026 = vrot.lane.b32.xlu0 %v5967, 124
    %v6027 = vpop.permute.xlu0 %6026
    %6028 = vrot.lane.b32.xlu0 %v5968, 124
    %v6029 = vpop.permute.xlu0 %6028
    %6030 = vrot.lane.b32.xlu0 %v5969, 124
    %v6031 = vpop.permute.xlu0 %6030
    %6032 = vrot.lane.b32.xlu0 %v5970, 124
    %v6033 = vpop.permute.xlu0 %6032
    %6034 = vrot.lane.b32.xlu0 %v5971, 124
    %v6035 = vpop.permute.xlu0 %6034
    %v6036 = vunpack.c.l.b16 %v4503
    %v6037 = vunpack.c.l.b16 %v4506
    %v6038 = vunpack.c.l.b16 %v4510
    %v6039 = vunpack.c.l.b16 %v4513
    %v6040 = vunpack.c.l.b16 %v4517
    %v6041 = vunpack.c.l.b16 %v4520
    %v6042 = vunpack.c.l.b16 %v4524
    %v6043 = vunpack.c.l.b16 %v4527
    %v6044 = vunpack.c.l.b16 %v4531
    %v6045 = vunpack.c.l.b16 %v4534
    %v6046 = vunpack.c.l.b16 %v4538
    %v6047 = vunpack.c.l.b16 %v4541
    %v6048 = vunpack.c.l.b16 %v4545
    %v6049 = vunpack.c.l.b16 %v4548
    %v6050 = vunpack.c.l.b16 %v4552
    %v6051 = vunpack.c.l.b16 %v4555
    %v6052 = vunpack.c.l.b16 %v4559
    %v6053 = vunpack.c.l.b16 %v4562
    %v6054 = vunpack.c.l.b16 %v4566
    %v6055 = vunpack.c.l.b16 %v4569
    %v6056 = vunpack.c.l.b16 %v4573
    %v6057 = vunpack.c.l.b16 %v4576
    %v6058 = vunpack.c.l.b16 %v4580
    %v6059 = vunpack.c.l.b16 %v4583
    %v6060 = vunpack.c.l.b16 %v4587
    %v6061 = vunpack.c.l.b16 %v4590
    %v6062 = vunpack.c.l.b16 %v4594
    %v6063 = vunpack.c.l.b16 %v4597
    %v6064 = vunpack.c.l.b16 %v4601
    %v6065 = vunpack.c.l.b16 %v4604
    %v6066 = vunpack.c.l.b16 %v4608
    %v6067 = vunpack.c.l.b16 %v4611
    %v6068 = vunpack.c.l.b16 %v4615
    %v6069 = vunpack.c.l.b16 %v4618
    %v6070 = vunpack.c.l.b16 %v4622
    %v6071 = vunpack.c.l.b16 %v4625
    %v6072 = vunpack.c.l.b16 %v4629
    %v6073 = vunpack.c.l.b16 %v4632
    %v6074 = vunpack.c.l.b16 %v4636
    %v6075 = vunpack.c.l.b16 %v4639
    %v6076 = vunpack.c.l.b16 %v4643
    %v6077 = vunpack.c.l.b16 %v4646
    %v6078 = vunpack.c.l.b16 %v4650
    %v6079 = vunpack.c.l.b16 %v4653
    %v6080 = vunpack.c.l.b16 %v4657
    %v6081 = vunpack.c.l.b16 %v4660
    %v6082 = vunpack.c.l.b16 %v4664
    %v6083 = vunpack.c.l.b16 %v4667
    %v6084 = vunpack.c.l.b16 %v4671
    %v6085 = vunpack.c.l.b16 %v4674
    %v6086 = vunpack.c.l.b16 %v4678
    %v6087 = vunpack.c.l.b16 %v4681
    %v6088 = vunpack.c.l.b16 %v4685
    %v6089 = vunpack.c.l.b16 %v4688
    %v6090 = vunpack.c.l.b16 %v4692
    %v6091 = vunpack.c.l.b16 %v4695
    %v6092 = vunpack.c.l.b16 %v4699
    %v6093 = vunpack.c.l.b16 %v4702
    %v6094 = vunpack.c.l.b16 %v4706
    %v6095 = vunpack.c.l.b16 %v4709
    %v6096 = vunpack.c.l.b16 %v4713
    %v6097 = vunpack.c.l.b16 %v4716
    %v6098 = vunpack.c.l.b16 %v4720
    %v6099 = vunpack.c.l.b16 %v4723
    %v6100 = vpack.c.b16 %v6037, %v6036
    %v6101 = vpack.c.b16 %v6039, %v6038
    %v6102 = vpack.c.b16 %v6041, %v6040
    %v6103 = vpack.c.b16 %v6043, %v6042
    %v6104 = vpack.c.b16 %v6045, %v6044
    %v6105 = vpack.c.b16 %v6047, %v6046
    %v6106 = vpack.c.b16 %v6049, %v6048
    %v6107 = vpack.c.b16 %v6051, %v6050
    %v6108 = vpack.c.b16 %v6053, %v6052
    %v6109 = vpack.c.b16 %v6055, %v6054
    %v6110 = vpack.c.b16 %v6057, %v6056
    %v6111 = vpack.c.b16 %v6059, %v6058
    %v6112 = vpack.c.b16 %v6061, %v6060
    %v6113 = vpack.c.b16 %v6063, %v6062
    %v6114 = vpack.c.b16 %v6065, %v6064
    %v6115 = vpack.c.b16 %v6067, %v6066
    %v6116 = vpack.c.b16 %v6069, %v6068
    %v6117 = vpack.c.b16 %v6071, %v6070
    %v6118 = vpack.c.b16 %v6073, %v6072
    %v6119 = vpack.c.b16 %v6075, %v6074
    %v6120 = vpack.c.b16 %v6077, %v6076
    %v6121 = vpack.c.b16 %v6079, %v6078
    %v6122 = vpack.c.b16 %v6081, %v6080
    %v6123 = vpack.c.b16 %v6083, %v6082
    %v6124 = vpack.c.b16 %v6085, %v6084
    %v6125 = vpack.c.b16 %v6087, %v6086
    %v6126 = vpack.c.b16 %v6089, %v6088
    %v6127 = vpack.c.b16 %v6091, %v6090
    %v6128 = vpack.c.b16 %v6093, %v6092
    %v6129 = vpack.c.b16 %v6095, %v6094
    %v6130 = vpack.c.b16 %v6097, %v6096
    %v6131 = vpack.c.b16 %v6099, %v6098
    %6132 = vrot.lane.b32.xlu0 %v6100, 32
    %v6133 = vpop.permute.xlu0 %6132
    %6134 = vrot.lane.b32.xlu0 %v6101, 32
    %v6135 = vpop.permute.xlu0 %6134
    %6136 = vrot.lane.b32.xlu0 %v6102, 32
    %v6137 = vpop.permute.xlu0 %6136
    %6138 = vrot.lane.b32.xlu0 %v6103, 32
    %v6139 = vpop.permute.xlu0 %6138
    %6140 = vrot.lane.b32.xlu0 %v6104, 32
    %v6141 = vpop.permute.xlu0 %6140
    %6142 = vrot.lane.b32.xlu0 %v6105, 32
    %v6143 = vpop.permute.xlu0 %6142
    %6144 = vrot.lane.b32.xlu0 %v6106, 32
    %v6145 = vpop.permute.xlu0 %6144
    %6146 = vrot.lane.b32.xlu0 %v6107, 32
    %v6147 = vpop.permute.xlu0 %6146
    %6148 = vrot.lane.b32.xlu0 %v6108, 32
    %v6149 = vpop.permute.xlu0 %6148
    %6150 = vrot.lane.b32.xlu0 %v6109, 32
    %v6151 = vpop.permute.xlu0 %6150
    %6152 = vrot.lane.b32.xlu0 %v6110, 32
    %v6153 = vpop.permute.xlu0 %6152
    %6154 = vrot.lane.b32.xlu0 %v6111, 32
    %v6155 = vpop.permute.xlu0 %6154
    %6156 = vrot.lane.b32.xlu0 %v6112, 32
    %v6157 = vpop.permute.xlu0 %6156
    %6158 = vrot.lane.b32.xlu0 %v6113, 32
    %v6159 = vpop.permute.xlu0 %6158
    %6160 = vrot.lane.b32.xlu0 %v6114, 32
    %v6161 = vpop.permute.xlu0 %6160
    %6162 = vrot.lane.b32.xlu0 %v6115, 32
    %v6163 = vpop.permute.xlu0 %6162
    %6164 = vrot.lane.b32.xlu0 %v6116, 32
    %v6165 = vpop.permute.xlu0 %6164
    %6166 = vrot.lane.b32.xlu0 %v6117, 32
    %v6167 = vpop.permute.xlu0 %6166
    %6168 = vrot.lane.b32.xlu0 %v6118, 32
    %v6169 = vpop.permute.xlu0 %6168
    %6170 = vrot.lane.b32.xlu0 %v6119, 32
    %v6171 = vpop.permute.xlu0 %6170
    %6172 = vrot.lane.b32.xlu0 %v6120, 32
    %v6173 = vpop.permute.xlu0 %6172
    %6174 = vrot.lane.b32.xlu0 %v6121, 32
    %v6175 = vpop.permute.xlu0 %6174
    %6176 = vrot.lane.b32.xlu0 %v6122, 32
    %v6177 = vpop.permute.xlu0 %6176
    %6178 = vrot.lane.b32.xlu0 %v6123, 32
    %v6179 = vpop.permute.xlu0 %6178
    %6180 = vrot.lane.b32.xlu0 %v6124, 32
    %v6181 = vpop.permute.xlu0 %6180
    %6182 = vrot.lane.b32.xlu0 %v6125, 32
    %v6183 = vpop.permute.xlu0 %6182
    %6184 = vrot.lane.b32.xlu0 %v6126, 32
    %v6185 = vpop.permute.xlu0 %6184
    %6186 = vrot.lane.b32.xlu0 %v6127, 32
    %v6187 = vpop.permute.xlu0 %6186
    %6188 = vrot.lane.b32.xlu0 %v6128, 32
    %v6189 = vpop.permute.xlu0 %6188
    %6190 = vrot.lane.b32.xlu0 %v6129, 32
    %v6191 = vpop.permute.xlu0 %6190
    %6192 = vrot.lane.b32.xlu0 %v6130, 32
    %v6193 = vpop.permute.xlu0 %6192
    %6194 = vrot.lane.b32.xlu0 %v6131, 32
    %v6195 = vpop.permute.xlu0 %6194
    %vm6196 = vcmask 293888
    %v6199 = vsel %vm6196, %v4820, %v4949
    %v6202 = vsel %vm6196, %v4821, %v4951
    %v6205 = vsel %vm6196, %v4822, %v4953
    %v6208 = vsel %vm6196, %v4823, %v4955
    %v6211 = vsel %vm6196, %v4824, %v4957
    %v6214 = vsel %vm6196, %v4825, %v4959
    %v6217 = vsel %vm6196, %v4826, %v4961
    %v6220 = vsel %vm6196, %v4827, %v4963
    %v6223 = vsel %vm6196, %v4828, %v4965
    %v6226 = vsel %vm6196, %v4829, %v4967
    %v6229 = vsel %vm6196, %v4830, %v4969
    %v6232 = vsel %vm6196, %v4831, %v4971
    %v6235 = vsel %vm6196, %v4832, %v4973
    %v6238 = vsel %vm6196, %v4833, %v4975
    %v6241 = vsel %vm6196, %v4834, %v4977
    %v6244 = vsel %vm6196, %v4835, %v4979
    %v6247 = vsel %vm6196, %v4836, %v4981
    %v6250 = vsel %vm6196, %v4837, %v4983
    %v6253 = vsel %vm6196, %v4838, %v4985
    %v6256 = vsel %vm6196, %v4839, %v4987
    %v6259 = vsel %vm6196, %v4840, %v4989
    %v6262 = vsel %vm6196, %v4841, %v4991
    %v6265 = vsel %vm6196, %v4842, %v4993
    %v6268 = vsel %vm6196, %v4843, %v4995
    %v6271 = vsel %vm6196, %v4844, %v4997
    %v6274 = vsel %vm6196, %v4845, %v4999
    %v6277 = vsel %vm6196, %v4846, %v5001
    %v6280 = vsel %vm6196, %v4847, %v5003
    %v6283 = vsel %vm6196, %v4848, %v5005
    %v6286 = vsel %vm6196, %v4849, %v5007
    %v6289 = vsel %vm6196, %v4850, %v5009
    %v6292 = vsel %vm6196, %v4851, %v5011
    %vm6293 = vcmask 588800
    %v6295 = vsel %vm6293, %v6199, %v5109
    %v6297 = vsel %vm6293, %v6202, %v5111
    %v6299 = vsel %vm6293, %v6205, %v5113
    %v6301 = vsel %vm6293, %v6208, %v5115
    %v6303 = vsel %vm6293, %v6211, %v5117
    %v6305 = vsel %vm6293, %v6214, %v5119
    %v6307 = vsel %vm6293, %v6217, %v5121
    %v6309 = vsel %vm6293, %v6220, %v5123
    %v6311 = vsel %vm6293, %v6223, %v5125
    %v6313 = vsel %vm6293, %v6226, %v5127
    %v6315 = vsel %vm6293, %v6229, %v5129
    %v6317 = vsel %vm6293, %v6232, %v5131
    %v6319 = vsel %vm6293, %v6235, %v5133
    %v6321 = vsel %vm6293, %v6238, %v5135
    %v6323 = vsel %vm6293, %v6241, %v5137
    %v6325 = vsel %vm6293, %v6244, %v5139
    %v6327 = vsel %vm6293, %v6247, %v5141
    %v6329 = vsel %vm6293, %v6250, %v5143
    %v6331 = vsel %vm6293, %v6253, %v5145
    %v6333 = vsel %vm6293, %v6256, %v5147
    %v6335 = vsel %vm6293, %v6259, %v5149
    %v6337 = vsel %vm6293, %v6262, %v5151
    %v6339 = vsel %vm6293, %v6265, %v5153
    %v6341 = vsel %vm6293, %v6268, %v5155
    %v6343 = vsel %vm6293, %v6271, %v5157
    %v6345 = vsel %vm6293, %v6274, %v5159
    %v6347 = vsel %vm6293, %v6277, %v5161
    %v6349 = vsel %vm6293, %v6280, %v5163
    %v6351 = vsel %vm6293, %v6283, %v5165
    %v6353 = vsel %vm6293, %v6286, %v5167
    %v6355 = vsel %vm6293, %v6289, %v5169
    %v6357 = vsel %vm6293, %v6292, %v5171
    %vm6358 = vcmask 883712
    %v6360 = vsel %vm6358, %v6295, %v5301
    %v6363 = vsel %vm6358, %v6297, %v5303
    %v6366 = vsel %vm6358, %v6299, %v5305
    %v6369 = vsel %vm6358, %v6301, %v5307
    %v6372 = vsel %vm6358, %v6303, %v5309
    %v6375 = vsel %vm6358, %v6305, %v5311
    %v6378 = vsel %vm6358, %v6307, %v5313
    %v6381 = vsel %vm6358, %v6309, %v5315
    %v6384 = vsel %vm6358, %v6311, %v5317
    %v6387 = vsel %vm6358, %v6313, %v5319
    %v6390 = vsel %vm6358, %v6315, %v5321
    %v6393 = vsel %vm6358, %v6317, %v5323
    %v6396 = vsel %vm6358, %v6319, %v5325
    %v6399 = vsel %vm6358, %v6321, %v5327
    %v6402 = vsel %vm6358, %v6323, %v5329
    %v6405 = vsel %vm6358, %v6325, %v5331
    %v6408 = vsel %vm6358, %v6327, %v5333
    %v6411 = vsel %vm6358, %v6329, %v5335
    %v6414 = vsel %vm6358, %v6331, %v5337
    %v6417 = vsel %vm6358, %v6333, %v5339
    %v6420 = vsel %vm6358, %v6335, %v5341
    %v6423 = vsel %vm6358, %v6337, %v5343
    %v6426 = vsel %vm6358, %v6339, %v5345
    %v6429 = vsel %vm6358, %v6341, %v5347
    %v6432 = vsel %vm6358, %v6343, %v5349
    %v6435 = vsel %vm6358, %v6345, %v5351
    %v6438 = vsel %vm6358, %v6347, %v5353
    %v6441 = vsel %vm6358, %v6349, %v5355
    %v6444 = vsel %vm6358, %v6351, %v5357
    %v6447 = vsel %vm6358, %v6353, %v5359
    %v6450 = vsel %vm6358, %v6355, %v5361
    %v6453 = vsel %vm6358, %v6357, %v5363
    %vm6455 = vcmask 130048
    %v6457 = vsel %vm6455, %v5301, %v5461
    %v6459 = vsel %vm6455, %v5303, %v5463
    %v6461 = vsel %vm6455, %v5305, %v5465
    %v6463 = vsel %vm6455, %v5307, %v5467
    %v6465 = vsel %vm6455, %v5309, %v5469
    %v6467 = vsel %vm6455, %v5311, %v5471
    %v6469 = vsel %vm6455, %v5313, %v5473
    %v6471 = vsel %vm6455, %v5315, %v5475
    %v6473 = vsel %vm6455, %v5317, %v5477
    %v6475 = vsel %vm6455, %v5319, %v5479
    %v6477 = vsel %vm6455, %v5321, %v5481
    %v6479 = vsel %vm6455, %v5323, %v5483
    %v6481 = vsel %vm6455, %v5325, %v5485
    %v6483 = vsel %vm6455, %v5327, %v5487
    %v6485 = vsel %vm6455, %v5329, %v5489
    %v6487 = vsel %vm6455, %v5331, %v5491
    %v6489 = vsel %vm6455, %v5333, %v5493
    %v6491 = vsel %vm6455, %v5335, %v5495
    %v6493 = vsel %vm6455, %v5337, %v5497
    %v6495 = vsel %vm6455, %v5339, %v5499
    %v6497 = vsel %vm6455, %v5341, %v5501
    %v6499 = vsel %vm6455, %v5343, %v5503
    %v6501 = vsel %vm6455, %v5345, %v5505
    %v6503 = vsel %vm6455, %v5347, %v5507
    %v6505 = vsel %vm6455, %v5349, %v5509
    %v6507 = vsel %vm6455, %v5351, %v5511
    %v6509 = vsel %vm6455, %v5353, %v5513
    %v6511 = vsel %vm6455, %v5355, %v5515
    %v6513 = vsel %vm6455, %v5357, %v5517
    %v6515 = vsel %vm6455, %v5359, %v5519
    %v6517 = vsel %vm6455, %v5361, %v5521
    %v6519 = vsel %vm6455, %v5363, %v5523
    %vm6520 = vcmask 424960
    %v6522 = vsel %vm6520, %v6457, %v5621
    %v6524 = vsel %vm6520, %v6459, %v5623
    %v6526 = vsel %vm6520, %v6461, %v5625
    %v6528 = vsel %vm6520, %v6463, %v5627
    %v6530 = vsel %vm6520, %v6465, %v5629
    %v6532 = vsel %vm6520, %v6467, %v5631
    %v6534 = vsel %vm6520, %v6469, %v5633
    %v6536 = vsel %vm6520, %v6471, %v5635
    %v6538 = vsel %vm6520, %v6473, %v5637
    %v6540 = vsel %vm6520, %v6475, %v5639
    %v6542 = vsel %vm6520, %v6477, %v5641
    %v6544 = vsel %vm6520, %v6479, %v5643
    %v6546 = vsel %vm6520, %v6481, %v5645
    %v6548 = vsel %vm6520, %v6483, %v5647
    %v6550 = vsel %vm6520, %v6485, %v5649
    %v6552 = vsel %vm6520, %v6487, %v5651
    %v6554 = vsel %vm6520, %v6489, %v5653
    %v6556 = vsel %vm6520, %v6491, %v5655
    %v6558 = vsel %vm6520, %v6493, %v5657
    %v6560 = vsel %vm6520, %v6495, %v5659
    %v6562 = vsel %vm6520, %v6497, %v5661
    %v6564 = vsel %vm6520, %v6499, %v5663
    %v6566 = vsel %vm6520, %v6501, %v5665
    %v6568 = vsel %vm6520, %v6503, %v5667
    %v6570 = vsel %vm6520, %v6505, %v5669
    %v6572 = vsel %vm6520, %v6507, %v5671
    %v6574 = vsel %vm6520, %v6509, %v5673
    %v6576 = vsel %vm6520, %v6511, %v5675
    %v6578 = vsel %vm6520, %v6513, %v5677
    %v6580 = vsel %vm6520, %v6515, %v5679
    %v6582 = vsel %vm6520, %v6517, %v5681
    %v6584 = vsel %vm6520, %v6519, %v5683
    %vm6585 = vcmask 719872
    %v6587 = vsel %vm6585, %v6522, %v5813
    %v6589 = vsel %vm6585, %v6524, %v5815
    %v6591 = vsel %vm6585, %v6526, %v5817
    %v6593 = vsel %vm6585, %v6528, %v5819
    %v6595 = vsel %vm6585, %v6530, %v5821
    %v6597 = vsel %vm6585, %v6532, %v5823
    %v6599 = vsel %vm6585, %v6534, %v5825
    %v6601 = vsel %vm6585, %v6536, %v5827
    %v6603 = vsel %vm6585, %v6538, %v5829
    %v6605 = vsel %vm6585, %v6540, %v5831
    %v6607 = vsel %vm6585, %v6542, %v5833
    %v6609 = vsel %vm6585, %v6544, %v5835
    %v6611 = vsel %vm6585, %v6546, %v5837
    %v6613 = vsel %vm6585, %v6548, %v5839
    %v6615 = vsel %vm6585, %v6550, %v5841
    %v6617 = vsel %vm6585, %v6552, %v5843
    %v6619 = vsel %vm6585, %v6554, %v5845
    %v6621 = vsel %vm6585, %v6556, %v5847
    %v6623 = vsel %vm6585, %v6558, %v5849
    %v6625 = vsel %vm6585, %v6560, %v5851
    %v6627 = vsel %vm6585, %v6562, %v5853
    %v6629 = vsel %vm6585, %v6564, %v5855
    %v6631 = vsel %vm6585, %v6566, %v5857
    %v6633 = vsel %vm6585, %v6568, %v5859
    %v6635 = vsel %vm6585, %v6570, %v5861
    %v6637 = vsel %vm6585, %v6572, %v5863
    %v6639 = vsel %vm6585, %v6574, %v5865
    %v6641 = vsel %vm6585, %v6576, %v5867
    %v6643 = vsel %vm6585, %v6578, %v5869
    %v6645 = vsel %vm6585, %v6580, %v5871
    %v6647 = vsel %vm6585, %v6582, %v5873
    %v6649 = vsel %vm6585, %v6584, %v5875
    %vm6650 = vcmask 1014784
    %v6652 = vsel %vm6650, %v6587, %v5973
    %v6655 = vsel %vm6650, %v6589, %v5975
    %v6658 = vsel %vm6650, %v6591, %v5977
    %v6661 = vsel %vm6650, %v6593, %v5979
    %v6664 = vsel %vm6650, %v6595, %v5981
    %v6667 = vsel %vm6650, %v6597, %v5983
    %v6670 = vsel %vm6650, %v6599, %v5985
    %v6673 = vsel %vm6650, %v6601, %v5987
    %v6676 = vsel %vm6650, %v6603, %v5989
    %v6679 = vsel %vm6650, %v6605, %v5991
    %v6682 = vsel %vm6650, %v6607, %v5993
    %v6685 = vsel %vm6650, %v6609, %v5995
    %v6688 = vsel %vm6650, %v6611, %v5997
    %v6691 = vsel %vm6650, %v6613, %v5999
    %v6694 = vsel %vm6650, %v6615, %v6001
    %v6697 = vsel %vm6650, %v6617, %v6003
    %v6700 = vsel %vm6650, %v6619, %v6005
    %v6703 = vsel %vm6650, %v6621, %v6007
    %v6706 = vsel %vm6650, %v6623, %v6009
    %v6709 = vsel %vm6650, %v6625, %v6011
    %v6712 = vsel %vm6650, %v6627, %v6013
    %v6715 = vsel %vm6650, %v6629, %v6015
    %v6718 = vsel %vm6650, %v6631, %v6017
    %v6721 = vsel %vm6650, %v6633, %v6019
    %v6724 = vsel %vm6650, %v6635, %v6021
    %v6727 = vsel %vm6650, %v6637, %v6023
    %v6730 = vsel %vm6650, %v6639, %v6025
    %v6733 = vsel %vm6650, %v6641, %v6027
    %v6736 = vsel %vm6650, %v6643, %v6029
    %v6739 = vsel %vm6650, %v6645, %v6031
    %v6742 = vsel %vm6650, %v6647, %v6033
    %v6745 = vsel %vm6650, %v6649, %v6035
    %vm6747 = vcmask 261120
    %v6749 = vsel %vm6747, %v5973, %v6133
    %v6751 = vsel %vm6747, %v5975, %v6135
    %v6753 = vsel %vm6747, %v5977, %v6137
    %v6755 = vsel %vm6747, %v5979, %v6139
    %v6757 = vsel %vm6747, %v5981, %v6141
    %v6759 = vsel %vm6747, %v5983, %v6143
    %v6761 = vsel %vm6747, %v5985, %v6145
    %v6763 = vsel %vm6747, %v5987, %v6147
    %v6765 = vsel %vm6747, %v5989, %v6149
    %v6767 = vsel %vm6747, %v5991, %v6151
    %v6769 = vsel %vm6747, %v5993, %v6153
    %v6771 = vsel %vm6747, %v5995, %v6155
    %v6773 = vsel %vm6747, %v5997, %v6157
    %v6775 = vsel %vm6747, %v5999, %v6159
    %v6777 = vsel %vm6747, %v6001, %v6161
    %v6779 = vsel %vm6747, %v6003, %v6163
    %v6781 = vsel %vm6747, %v6005, %v6165
    %v6783 = vsel %vm6747, %v6007, %v6167
    %v6785 = vsel %vm6747, %v6009, %v6169
    %v6787 = vsel %vm6747, %v6011, %v6171
    %v6789 = vsel %vm6747, %v6013, %v6173
    %v6791 = vsel %vm6747, %v6015, %v6175
    %v6793 = vsel %vm6747, %v6017, %v6177
    %v6795 = vsel %vm6747, %v6019, %v6179
    %v6797 = vsel %vm6747, %v6021, %v6181
    %v6799 = vsel %vm6747, %v6023, %v6183
    %v6801 = vsel %vm6747, %v6025, %v6185
    %v6803 = vsel %vm6747, %v6027, %v6187
    %v6805 = vsel %vm6747, %v6029, %v6189
    %v6807 = vsel %vm6747, %v6031, %v6191
    %v6809 = vsel %vm6747, %v6033, %v6193
    %v6811 = vsel %vm6747, %v6035, %v6195
    %v6812 = vld [vmem:[%s2] sm:$0xf]
    %v6813 = vld [vmem:[%s2 + $0x4] sm:$0xf]
    %v6814 = vld [vmem:[%s2 + $0x8] sm:$0xf]
    %v6815 = vld [vmem:[%s2 + $0xc] sm:$0xf]
    %v6816 = vld [vmem:[%s2 + $0x10] sm:$0xf]
    %v6817 = vld [vmem:[%s2 + $0x14] sm:$0xf]
    %v6818 = vld [vmem:[%s2 + $0x18] sm:$0xf]
    %v6819 = vld [vmem:[%s2 + $0x1c] sm:$0xf]
    %v6820 = vld [vmem:[%s2 + $0x20] sm:$0xf]
    %v6821 = vld [vmem:[%s2 + $0x24] sm:$0xf]
    %v6822 = vld [vmem:[%s2 + $0x28] sm:$0xf]
    %v6823 = vld [vmem:[%s2 + $0x2c] sm:$0xf]
    %v6824 = vld [vmem:[%s2 + $0x30] sm:$0xf]
    %v6825 = vld [vmem:[%s2 + $0x34] sm:$0xf]
    %v6826 = vld [vmem:[%s2 + $0x38] sm:$0xf]
    %v6827 = vld [vmem:[%s2 + $0x3c] sm:$0xf]
    %v6828 = vld [vmem:[%s2 + $0x40] sm:$0xf]
    %v6829 = vld [vmem:[%s2 + $0x44] sm:$0xf]
    %v6830 = vld [vmem:[%s2 + $0x48] sm:$0xf]
    %v6831 = vld [vmem:[%s2 + $0x4c] sm:$0xf]
    %v6832 = vld [vmem:[%s2 + $0x50] sm:$0xf]
    %v6833 = vld [vmem:[%s2 + $0x54] sm:$0xf]
    %v6834 = vld [vmem:[%s2 + $0x58] sm:$0xf]
    %v6835 = vld [vmem:[%s2 + $0x5c] sm:$0xf]
    %v6836 = vld [vmem:[%s2 + $0x60] sm:$0xf]
    %v6837 = vld [vmem:[%s2 + $0x64] sm:$0xf]
    %v6838 = vld [vmem:[%s2 + $0x68] sm:$0xf]
    %v6839 = vld [vmem:[%s2 + $0x6c] sm:$0xf]
    %v6840 = vld [vmem:[%s2 + $0x70] sm:$0xf]
    %v6841 = vld [vmem:[%s2 + $0x74] sm:$0xf]
    %v6842 = vld [vmem:[%s2 + $0x78] sm:$0xf]
    %v6843 = vld [vmem:[%s2 + $0x7c] sm:$0xf]
    %v6844 = vld [vmem:[%s2 + $0x80] sm:$0xf]
    %v6845 = vld [vmem:[%s2 + $0x84] sm:$0xf]
    %v6846 = vld [vmem:[%s2 + $0x88] sm:$0xf]
    %v6847 = vld [vmem:[%s2 + $0x8c] sm:$0xf]
    %v6848 = vld [vmem:[%s2 + $0x90] sm:$0xf]
    %v6849 = vld [vmem:[%s2 + $0x94] sm:$0xf]
    %v6850 = vld [vmem:[%s2 + $0x98] sm:$0xf]
    %v6851 = vld [vmem:[%s2 + $0x9c] sm:$0xf]
    %v6852 = vld [vmem:[%s2 + $0xa0] sm:$0x3]
    %v6853 = vld [vmem:[%s3] sm:$0x1]
    %v6855 = vlaneseq
    %v6856 = vshrl.u32 %v6855, 7
    %v6857 = vsub.s32 0, %v6856
    %v6858 = vrot.slane %v6853, %v6857
    %v6901 = vunpack.c.l.b16 %v6812
    %v6902 = vunpack.c.l.b16 %v6813
    %v6903 = vunpack.c.l.b16 %v6814
    %v6904 = vunpack.c.l.b16 %v6815
    %v6905 = vunpack.c.l.b16 %v6816
    %v6906 = vunpack.c.l.b16 %v6817
    %v6907 = vunpack.c.l.b16 %v6818
    %v6908 = vunpack.c.l.b16 %v6819
    %v6909 = vunpack.c.l.b16 %v6820
    %v6910 = vunpack.c.l.b16 %v6821
    %v6911 = vunpack.c.l.b16 %v6822
    %v6912 = vunpack.c.l.b16 %v6823
    %v6913 = vunpack.c.l.b16 %v6824
    %v6914 = vunpack.c.l.b16 %v6825
    %v6915 = vunpack.c.l.b16 %v6826
    %v6916 = vunpack.c.l.b16 %v6827
    %v6917 = vunpack.c.l.b16 %v6828
    %v6918 = vunpack.c.l.b16 %v6829
    %v6919 = vunpack.c.l.b16 %v6830
    %v6920 = vunpack.c.l.b16 %v6831
    %v6921 = vunpack.c.l.b16 %v6832
    %v6922 = vunpack.c.l.b16 %v6833
    %v6923 = vunpack.c.l.b16 %v6834
    %v6924 = vunpack.c.l.b16 %v6835
    %v6925 = vunpack.c.l.b16 %v6836
    %v6926 = vunpack.c.l.b16 %v6837
    %v6927 = vunpack.c.l.b16 %v6838
    %v6928 = vunpack.c.l.b16 %v6839
    %v6929 = vunpack.c.l.b16 %v6840
    %v6930 = vunpack.c.l.b16 %v6841
    %v6931 = vunpack.c.l.b16 %v6842
    %v6932 = vunpack.c.l.b16 %v6843
    %v6933 = vunpack.c.l.b16 %v6844
    %v6934 = vunpack.c.l.b16 %v6845
    %v6935 = vunpack.c.l.b16 %v6846
    %v6936 = vunpack.c.l.b16 %v6847
    %v6937 = vunpack.c.l.b16 %v6848
    %v6938 = vunpack.c.l.b16 %v6849
    %v6939 = vunpack.c.l.b16 %v6850
    %v6940 = vunpack.c.l.b16 %v6851
    %v6941 = vunpack.c.l.b16 %v6852
    %v6942 = vpack.c.b16 %v6902, %v6901
    %v6943 = vpack.c.b16 %v6904, %v6903
    %v6944 = vpack.c.b16 %v6906, %v6905
    %v6945 = vpack.c.b16 %v6908, %v6907
    %v6946 = vpack.c.b16 %v6910, %v6909
    %v6947 = vpack.c.b16 %v6912, %v6911
    %v6948 = vpack.c.b16 %v6914, %v6913
    %v6949 = vpack.c.b16 %v6916, %v6915
    %v6950 = vpack.c.b16 %v6918, %v6917
    %v6951 = vpack.c.b16 %v6920, %v6919
    %v6952 = vpack.c.b16 %v6922, %v6921
    %v6953 = vpack.c.b16 %v6924, %v6923
    %v6954 = vpack.c.b16 %v6926, %v6925
    %v6955 = vpack.c.b16 %v6928, %v6927
    %v6956 = vpack.c.b16 %v6930, %v6929
    %v6957 = vpack.c.b16 %v6932, %v6931
    %v6958 = vpack.c.b16 %v6934, %v6933
    %v6959 = vpack.c.b16 %v6936, %v6935
    %v6960 = vpack.c.b16 %v6938, %v6937
    %v6961 = vpack.c.b16 %v6940, %v6939
    %v6962 = vpack.c.b16 %v6941, %v6941
    %vm6983 = vcmask 556032
    %v6984 = vsel %vm6983, %v6749, 0
    %v6986 = vsel %vm6983, %v6751, 0
    %v6988 = vsel %vm6983, %v6753, 0
    %v6990 = vsel %vm6983, %v6755, 0
    %v6992 = vsel %vm6983, %v6757, 0
    %v6994 = vsel %vm6983, %v6759, 0
    %v6996 = vsel %vm6983, %v6761, 0
    %v6998 = vsel %vm6983, %v6763, 0
    %v7000 = vsel %vm6983, %v6765, 0
    %v7002 = vsel %vm6983, %v6767, 0
    %v7004 = vsel %vm6983, %v6769, 0
    %v7006 = vsel %vm6983, %v6771, 0
    %v7008 = vsel %vm6983, %v6773, 0
    %v7010 = vsel %vm6983, %v6775, 0
    %v7012 = vsel %vm6983, %v6777, 0
    %v7014 = vsel %vm6983, %v6779, 0
    %v7016 = vsel %vm6983, %v6781, 0
    %v7018 = vsel %vm6983, %v6783, 0
    %v7020 = vsel %vm6983, %v6785, 0
    %v7022 = vsel %vm6983, %v6787, 0
    %v7024 = vsel %vm6983, %v6789, 0
    %v7026 = vsel %vm6983, %v6791, 0
    %v7028 = vsel %vm6983, %v6793, 0
    %v7030 = vsel %vm6983, %v6795, 0
    %v7032 = vsel %vm6983, %v6797, 0
    %v7034 = vsel %vm6983, %v6799, 0
    %v7036 = vsel %vm6983, %v6801, 0
    %v7038 = vsel %vm6983, %v6803, 0
    %v7040 = vsel %vm6983, %v6805, 0
    %v7042 = vsel %vm6983, %v6807, 0
    %v7044 = vsel %vm6983, %v6809, 0
    %v7046 = vsel %vm6983, %v6811, 0
    %vm7048 = vcmask 1041408
    %v7050 = vsel %vm7048, %v6962, 0
    %7052 = vmatprep.subr.bf16.mxu0 0
    %7053 = vmatpush1.bf16.msra.mxu0 %v6942
    %7054 = vmatprep.subr.bf16.mxu0 0
    %7055 = vmatpush1.bf16.msra.mxu0 %v6943
    %7056 = vmatprep.subr.bf16.mxu0 0
    %7057 = vmatpush1.bf16.msra.mxu0 %v6944
    %7058 = vmatprep.subr.bf16.mxu0 0
    %7059 = vmatpush1.bf16.msra.mxu0 %v6945
    %7060 = vmatprep.subr.bf16.mxu0 0
    %7061 = vmatpush1.bf16.msra.mxu0 %v6946
    %7062 = vmatprep.subr.bf16.mxu0 0
    %7063 = vmatpush1.bf16.msra.mxu0 %v6947
    %7064 = vmatprep.subr.bf16.mxu0 0
    %7065 = vmatpush1.bf16.msra.mxu0 %v6948
    %7066 = vmatprep.subr.bf16.mxu0 0
    %7067 = vmatpush1.bf16.msra.mxu0 %v6949
    %7068 = vmatprep.subr.bf16.mxu0 0
    %7069 = vmatpush1.bf16.msra.mxu0 %v6950
    %7070 = vmatprep.subr.bf16.mxu0 0
    %7071 = vmatpush1.bf16.msra.mxu0 %v6951
    %7072 = vmatprep.subr.bf16.mxu0 0
    %7073 = vmatpush1.bf16.msra.mxu0 %v6952
    %7074 = vmatprep.subr.bf16.mxu0 0
    %7075 = vmatpush1.bf16.msra.mxu0 %v6953
    %7076 = vmatprep.subr.bf16.mxu0 0
    %7077 = vmatpush1.bf16.msra.mxu0 %v6954
    %7078 = vmatprep.subr.bf16.mxu0 0
    %7079 = vmatpush1.bf16.msra.mxu0 %v6955
    %7080 = vmatprep.subr.bf16.mxu0 0
    %7081 = vmatpush1.bf16.msra.mxu0 %v6956
    %7082 = vmatprep.subr.bf16.mxu0 0
    %7083 = vmatpush1.bf16.msra.mxu0 %v6957
    %7084 = vmatprep.mubr.bf16.mxu0 %v6652
    %7085 = vmatmul.mubr.bf16.gmra.mrb[0].mxu0 %v6360
    %v7086 = vpop.f32.mrb[0].mxu0
    %v7087 = vadd.f32 %v6858, %v7086
    %v7088 = vpop.f32.mrb[0].mxu0
    %v7089 = vpop.f32.mrb[0].mxu0
    %v7090 = vadd.f32 %v6858, %v7089
    %v7091 = vpop.f32.mrb[0].mxu0
    %7092 = vmatprep.mubr.bf16.mxu0 %v6655
    %7093 = vmatmul.mubr.bf16.gmra.mrb[0].mxu0 %v6363
    %v7094 = vpop.f32.mrb[0].mxu0
    %v7095 = vadd.f32 %v6858, %v7094
    %v7096 = vpop.f32.mrb[0].mxu0
    %v7097 = vpop.f32.mrb[0].mxu0
    %v7098 = vadd.f32 %v6858, %v7097
    %v7099 = vpop.f32.mrb[0].mxu0
    %7100 = vmatprep.mubr.bf16.mxu0 %v6658
    %7101 = vmatmul.mubr.bf16.gmra.mrb[0].mxu0 %v6366
    %v7102 = vpop.f32.mrb[0].mxu0
    %v7103 = vadd.f32 %v6858, %v7102
    %v7104 = vpop.f32.mrb[0].mxu0
    %v7105 = vpop.f32.mrb[0].mxu0
    %v7106 = vadd.f32 %v6858, %v7105
    %v7107 = vpop.f32.mrb[0].mxu0
    %7108 = vmatprep.mubr.bf16.mxu0 %v6661
    %7109 = vmatmul.mubr.bf16.gmra.mrb[0].mxu0 %v6369
    %v7110 = vpop.f32.mrb[0].mxu0
    %v7111 = vadd.f32 %v6858, %v7110
    %v7112 = vpop.f32.mrb[0].mxu0
    %v7113 = vpop.f32.mrb[0].mxu0
    %v7114 = vadd.f32 %v6858, %v7113
    %v7115 = vpop.f32.mrb[0].mxu0
    %7116 = vmatprep.mubr.bf16.mxu0 %v6664
    %7117 = vmatmul.mubr.bf16.gmra.mrb[0].mxu0 %v6372
    %v7118 = vpop.f32.mrb[0].mxu0
    %v7119 = vadd.f32 %v6858, %v7118
    %v7120 = vpop.f32.mrb[0].mxu0
    %v7121 = vpop.f32.mrb[0].mxu0
    %v7122 = vadd.f32 %v6858, %v7121
    %v7123 = vpop.f32.mrb[0].mxu0
    %7124 = vmatprep.mubr.bf16.mxu0 %v6667
    %7125 = vmatmul.mubr.bf16.gmra.mrb[0].mxu0 %v6375
    %v7126 = vpop.f32.mrb[0].mxu0
    %v7127 = vadd.f32 %v6858, %v7126
    %v7128 = vpop.f32.mrb[0].mxu0
    %v7129 = vpop.f32.mrb[0].mxu0
    %v7130 = vadd.f32 %v6858, %v7129
    %v7131 = vpop.f32.mrb[0].mxu0
    %7132 = vmatprep.mubr.bf16.mxu0 %v6670
    %7133 = vmatmul.mubr.bf16.gmra.mrb[0].mxu0 %v6378
    %v7134 = vpop.f32.mrb[0].mxu0
    %v7135 = vadd.f32 %v6858, %v7134
    %v7136 = vpop.f32.mrb[0].mxu0
    %v7137 = vpop.f32.mrb[0].mxu0
    %v7138 = vadd.f32 %v6858, %v7137
    %v7139 = vpop.f32.mrb[0].mxu0
    %7140 = vmatprep.mubr.bf16.mxu0 %v6673
    %7141 = vmatmul.mubr.bf16.gmra.mrb[0].mxu0 %v6381
    %v7142 = vpop.f32.mrb[0].mxu0
    %v7143 = vadd.f32 %v6858, %v7142
    %v7144 = vpop.f32.mrb[0].mxu0
    %v7145 = vpop.f32.mrb[0].mxu0
    %v7146 = vadd.f32 %v6858, %v7145
    %v7147 = vpop.f32.mrb[0].mxu0
    %7148 = vmatprep.mubr.bf16.mxu0 %v6676
    %7149 = vmatmul.mubr.bf16.gmra.mrb[0].mxu0 %v6384
    %v7150 = vpop.f32.mrb[0].mxu0
    %v7151 = vadd.f32 %v6858, %v7150
    %v7152 = vpop.f32.mrb[0].mxu0
    %v7153 = vpop.f32.mrb[0].mxu0
    %v7154 = vadd.f32 %v6858, %v7153
    %v7155 = vpop.f32.mrb[0].mxu0
    %7156 = vmatprep.mubr.bf16.mxu0 %v6679
    %7157 = vmatmul.mubr.bf16.gmra.mrb[0].mxu0 %v6387
    %v7158 = vpop.f32.mrb[0].mxu0
    %v7159 = vadd.f32 %v6858, %v7158
    %v7160 = vpop.f32.mrb[0].mxu0
    %v7161 = vpop.f32.mrb[0].mxu0
    %v7162 = vadd.f32 %v6858, %v7161
    %v7163 = vpop.f32.mrb[0].mxu0
    %7164 = vmatprep.mubr.bf16.mxu0 %v6682
    %7165 = vmatmul.mubr.bf16.gmra.mrb[0].mxu0 %v6390
    %v7166 = vpop.f32.mrb[0].mxu0
    %v7167 = vadd.f32 %v6858, %v7166
    %v7168 = vpop.f32.mrb[0].mxu0
    %v7169 = vpop.f32.mrb[0].mxu0
    %v7170 = vadd.f32 %v6858, %v7169
    %v7171 = vpop.f32.mrb[0].mxu0
    %7172 = vmatprep.mubr.bf16.mxu0 %v6685
    %7173 = vmatmul.mubr.bf16.gmra.mrb[0].mxu0 %v6393
    %v7174 = vpop.f32.mrb[0].mxu0
    %v7175 = vadd.f32 %v6858, %v7174
    %v7176 = vpop.f32.mrb[0].mxu0
    %v7177 = vpop.f32.mrb[0].mxu0
    %v7178 = vadd.f32 %v6858, %v7177
    %v7179 = vpop.f32.mrb[0].mxu0
    %7180 = vmatprep.mubr.bf16.mxu0 %v6688
    %7181 = vmatmul.mubr.bf16.gmra.mrb[0].mxu0 %v6396
    %v7182 = vpop.f32.mrb[0].mxu0
    %v7183 = vadd.f32 %v6858, %v7182
    %v7184 = vpop.f32.mrb[0].mxu0
    %v7185 = vpop.f32.mrb[0].mxu0
    %v7186 = vadd.f32 %v6858, %v7185
    %v7187 = vpop.f32.mrb[0].mxu0
    %7188 = vmatprep.mubr.bf16.mxu0 %v6691
    %7189 = vmatmul.mubr.bf16.gmra.mrb[0].mxu0 %v6399
    %v7190 = vpop.f32.mrb[0].mxu0
    %v7191 = vadd.f32 %v6858, %v7190
    %v7192 = vpop.f32.mrb[0].mxu0
    %v7193 = vpop.f32.mrb[0].mxu0
    %v7194 = vadd.f32 %v6858, %v7193
    %v7195 = vpop.f32.mrb[0].mxu0
    %7196 = vmatprep.mubr.bf16.mxu0 %v6694
    %7197 = vmatmul.mubr.bf16.gmra.mrb[0].mxu0 %v6402
    %v7198 = vpop.f32.mrb[0].mxu0
    %v7199 = vadd.f32 %v6858, %v7198
    %v7200 = vpop.f32.mrb[0].mxu0
    %v7201 = vpop.f32.mrb[0].mxu0
    %v7202 = vadd.f32 %v6858, %v7201
    %v7203 = vpop.f32.mrb[0].mxu0
    %7204 = vmatprep.mubr.bf16.mxu0 %v6697
    %7205 = vmatmul.mubr.bf16.gmra.mrb[0].mxu0 %v6405
    %v7206 = vpop.f32.mrb[0].mxu0
    %v7207 = vadd.f32 %v6858, %v7206
    %v7208 = vpop.f32.mrb[0].mxu0
    %v7209 = vpop.f32.mrb[0].mxu0
    %v7210 = vadd.f32 %v6858, %v7209
    %v7211 = vpop.f32.mrb[0].mxu0
    %7212 = vmatprep.mubr.bf16.mxu0 %v6700
    %7213 = vmatmul.mubr.bf16.gmra.mrb[0].mxu0 %v6408
    %v7214 = vpop.f32.mrb[0].mxu0
    %v7215 = vadd.f32 %v6858, %v7214
    %v7216 = vpop.f32.mrb[0].mxu0
    %v7217 = vpop.f32.mrb[0].mxu0
    %v7218 = vadd.f32 %v6858, %v7217
    %v7219 = vpop.f32.mrb[0].mxu0
    %7220 = vmatprep.mubr.bf16.mxu0 %v6703
    %7221 = vmatmul.mubr.bf16.gmra.mrb[0].mxu0 %v6411
    %v7222 = vpop.f32.mrb[0].mxu0
    %v7223 = vadd.f32 %v6858, %v7222
    %v7224 = vpop.f32.mrb[0].mxu0
    %v7225 = vpop.f32.mrb[0].mxu0
    %v7226 = vadd.f32 %v6858, %v7225
    %v7227 = vpop.f32.mrb[0].mxu0
    %7228 = vmatprep.mubr.bf16.mxu0 %v6706
    %7229 = vmatmul.mubr.bf16.gmra.mrb[0].mxu0 %v6414
    %v7230 = vpop.f32.mrb[0].mxu0
    %v7231 = vadd.f32 %v6858, %v7230
    %v7232 = vpop.f32.mrb[0].mxu0
    %v7233 = vpop.f32.mrb[0].mxu0
    %v7234 = vadd.f32 %v6858, %v7233
    %v7235 = vpop.f32.mrb[0].mxu0
    %7236 = vmatprep.mubr.bf16.mxu0 %v6709
    %7237 = vmatmul.mubr.bf16.gmra.mrb[0].mxu0 %v6417
    %v7238 = vpop.f32.mrb[0].mxu0
    %v7239 = vadd.f32 %v6858, %v7238
    %v7240 = vpop.f32.mrb[0].mxu0
    %v7241 = vpop.f32.mrb[0].mxu0
    %v7242 = vadd.f32 %v6858, %v7241
    %v7243 = vpop.f32.mrb[0].mxu0
    %7244 = vmatprep.mubr.bf16.mxu0 %v6712
    %7245 = vmatmul.mubr.bf16.gmra.mrb[0].mxu0 %v6420
    %v7246 = vpop.f32.mrb[0].mxu0
    %v7247 = vadd.f32 %v6858, %v7246
    %v7248 = vpop.f32.mrb[0].mxu0
    %v7249 = vpop.f32.mrb[0].mxu0
    %v7250 = vadd.f32 %v6858, %v7249
    %v7251 = vpop.f32.mrb[0].mxu0
    %7252 = vmatprep.mubr.bf16.mxu0 %v6715
    %7253 = vmatmul.mubr.bf16.gmra.mrb[0].mxu0 %v6423
    %v7254 = vpop.f32.mrb[0].mxu0
    %v7255 = vadd.f32 %v6858, %v7254
    %v7256 = vpop.f32.mrb[0].mxu0
    %v7257 = vpop.f32.mrb[0].mxu0
    %v7258 = vadd.f32 %v6858, %v7257
    %v7259 = vpop.f32.mrb[0].mxu0
    %7260 = vmatprep.mubr.bf16.mxu0 %v6718
    %7261 = vmatmul.mubr.bf16.gmra.mrb[0].mxu0 %v6426
    %v7262 = vpop.f32.mrb[0].mxu0
    %v7263 = vadd.f32 %v6858, %v7262
    %v7264 = vpop.f32.mrb[0].mxu0
    %v7265 = vpop.f32.mrb[0].mxu0
    %v7266 = vadd.f32 %v6858, %v7265
    %v7267 = vpop.f32.mrb[0].mxu0
    %7268 = vmatprep.mubr.bf16.mxu0 %v6721
    %7269 = vmatmul.mubr.bf16.gmra.mrb[0].mxu0 %v6429
    %v7270 = vpop.f32.mrb[0].mxu0
    %v7271 = vadd.f32 %v6858, %v7270
    %v7272 = vpop.f32.mrb[0].mxu0
    %v7273 = vpop.f32.mrb[0].mxu0
    %v7274 = vadd.f32 %v6858, %v7273
    %v7275 = vpop.f32.mrb[0].mxu0
    %7276 = vmatprep.mubr.bf16.mxu0 %v6724
    %7277 = vmatmul.mubr.bf16.gmra.mrb[0].mxu0 %v6432
    %v7278 = vpop.f32.mrb[0].mxu0
    %v7279 = vadd.f32 %v6858, %v7278
    %v7280 = vpop.f32.mrb[0].mxu0
    %v7281 = vpop.f32.mrb[0].mxu0
    %v7282 = vadd.f32 %v6858, %v7281
    %v7283 = vpop.f32.mrb[0].mxu0
    %7284 = vmatprep.mubr.bf16.mxu0 %v6727
    %7285 = vmatmul.mubr.bf16.gmra.mrb[0].mxu0 %v6435
    %v7286 = vpop.f32.mrb[0].mxu0
    %v7287 = vadd.f32 %v6858, %v7286
    %v7288 = vpop.f32.mrb[0].mxu0
    %v7289 = vpop.f32.mrb[0].mxu0
    %v7290 = vadd.f32 %v6858, %v7289
    %v7291 = vpop.f32.mrb[0].mxu0
    %7292 = vmatprep.mubr.bf16.mxu0 %v6730
    %7293 = vmatmul.mubr.bf16.gmra.mrb[0].mxu0 %v6438
    %v7294 = vpop.f32.mrb[0].mxu0
    %v7295 = vadd.f32 %v6858, %v7294
    %v7296 = vpop.f32.mrb[0].mxu0
    %v7297 = vpop.f32.mrb[0].mxu0
    %v7298 = vadd.f32 %v6858, %v7297
    %v7299 = vpop.f32.mrb[0].mxu0
    %7300 = vmatprep.mubr.bf16.mxu0 %v6733
    %7301 = vmatmul.mubr.bf16.gmra.mrb[0].mxu0 %v6441
    %v7302 = vpop.f32.mrb[0].mxu0
    %v7303 = vadd.f32 %v6858, %v7302
    %v7304 = vpop.f32.mrb[0].mxu0
    %v7305 = vpop.f32.mrb[0].mxu0
    %v7306 = vadd.f32 %v6858, %v7305
    %v7307 = vpop.f32.mrb[0].mxu0
    %7308 = vmatprep.mubr.bf16.mxu0 %v6736
    %7309 = vmatmul.mubr.bf16.gmra.mrb[0].mxu0 %v6444
    %v7310 = vpop.f32.mrb[0].mxu0
    %v7311 = vadd.f32 %v6858, %v7310
    %v7312 = vpop.f32.mrb[0].mxu0
    %v7313 = vpop.f32.mrb[0].mxu0
    %v7314 = vadd.f32 %v6858, %v7313
    %v7315 = vpop.f32.mrb[0].mxu0
    %7316 = vmatprep.mubr.bf16.mxu0 %v6739
    %7317 = vmatmul.mubr.bf16.gmra.mrb[0].mxu0 %v6447
    %v7318 = vpop.f32.mrb[0].mxu0
    %v7319 = vadd.f32 %v6858, %v7318
    %v7320 = vpop.f32.mrb[0].mxu0
    %v7321 = vpop.f32.mrb[0].mxu0
    %v7322 = vadd.f32 %v6858, %v7321
    %v7323 = vpop.f32.mrb[0].mxu0
    %7324 = vmatprep.mubr.bf16.mxu0 %v6742
    %7325 = vmatmul.mubr.bf16.gmra.mrb[0].mxu0 %v6450
    %v7326 = vpop.f32.mrb[0].mxu0
    %v7327 = vadd.f32 %v6858, %v7326
    %v7328 = vpop.f32.mrb[0].mxu0
    %v7329 = vpop.f32.mrb[0].mxu0
    %v7330 = vadd.f32 %v6858, %v7329
    %v7331 = vpop.f32.mrb[0].mxu0
    %7332 = vmatprep.mubr.bf16.mxu0 %v6745
    %7333 = vmatmul.mubr.bf16.gmra.mrb[0].mxu0 %v6453
    %v7334 = vpop.f32.mrb[0].mxu0
    %v7335 = vadd.f32 %v6858, %v7334
    %v7336 = vpop.f32.mrb[0].mxu0
    %v7337 = vpop.f32.mrb[0].mxu0
    %v7338 = vadd.f32 %v6858, %v7337
    %v7339 = vpop.f32.mrb[0].mxu0
    %7340 = vdwg.mxu0
    %7341 = vmatprep.subr.bf16.mxu0 0
    %7342 = vmatpush1.bf16.msra.mxu0 %v6958
    %7343 = vmatprep.subr.bf16.mxu0 0
    %7344 = vmatpush1.bf16.msra.mxu0 %v6959
    %7345 = vmatprep.subr.bf16.mxu0 0
    %7346 = vmatpush1.bf16.msra.mxu0 %v6960
    %7347 = vmatprep.subr.bf16.mxu0 0
    %7348 = vmatpush1.bf16.msra.mxu0 %v6961
    %7349 = vmatprep.subr.bf16.mxu0 0
    %7350 = vmatpush1.bf16.msra.mxu0 %v7050
    %7351 = vmatprep.subr.bf16.mxu0 0
    %7352 = vmatpush1.bf16.msra.mxu0 0
    %7353 = vmatprep.subr.bf16.mxu0 0
    %7354 = vmatpush1.bf16.msra.mxu0 0
    %7355 = vmatprep.subr.bf16.mxu0 0
    %7356 = vmatpush1.bf16.msra.mxu0 0
    %7357 = vmatprep.subr.bf16.mxu0 0
    %7358 = vmatpush1.bf16.msra.mxu0 0
    %7359 = vmatprep.subr.bf16.mxu0 0
    %7360 = vmatpush1.bf16.msra.mxu0 0
    %7361 = vmatprep.subr.bf16.mxu0 0
    %7362 = vmatpush1.bf16.msra.mxu0 0
    %7363 = vmatprep.subr.bf16.mxu0 0
    %7364 = vmatpush1.bf16.msra.mxu0 0
    %7365 = vmatprep.subr.bf16.mxu0 0
    %7366 = vmatpush1.bf16.msra.mxu0 0
    %7367 = vmatprep.subr.bf16.mxu0 0
    %7368 = vmatpush1.bf16.msra.mxu0 0
    %7369 = vmatprep.subr.bf16.mxu0 0
    %7370 = vmatpush1.bf16.msra.mxu0 0
    %7371 = vmatprep.subr.bf16.mxu0 0
    %7372 = vmatpush1.bf16.msra.mxu0 0
    %7373 = vmatprep.mubr.bf16.mxu0 0
    %7374 = vmatmul.mubr.bf16.gmra.mrb[0].mxu0 %v6984
    %v7375 = vpop.f32.mrb[0].mxu0
    %v7376 = vadd.f32 %v7087, %v7375
    %v7377 = vpop.f32.mrb[0].mxu0
    %v7378 = vpop.f32.mrb[0].mxu0
    %v7379 = vadd.f32 %v7090, %v7378
    %v7380 = vpop.f32.mrb[0].mxu0
    %7381 = vmatprep.mubr.bf16.mxu0 0
    %7382 = vmatmul.mubr.bf16.gmra.mrb[0].mxu0 %v6986
    %v7383 = vpop.f32.mrb[0].mxu0
    %v7384 = vadd.f32 %v7095, %v7383
    %v7385 = vpop.f32.mrb[0].mxu0
    %v7386 = vpop.f32.mrb[0].mxu0
    %v7387 = vadd.f32 %v7098, %v7386
    %v7388 = vpop.f32.mrb[0].mxu0
    %7389 = vmatprep.mubr.bf16.mxu0 0
    %7390 = vmatmul.mubr.bf16.gmra.mrb[0].mxu0 %v6988
    %v7391 = vpop.f32.mrb[0].mxu0
    %v7392 = vadd.f32 %v7103, %v7391
    %v7393 = vpop.f32.mrb[0].mxu0
    %v7394 = vpop.f32.mrb[0].mxu0
    %v7395 = vadd.f32 %v7106, %v7394
    %v7396 = vpop.f32.mrb[0].mxu0
    %7397 = vmatprep.mubr.bf16.mxu0 0
    %7398 = vmatmul.mubr.bf16.gmra.mrb[0].mxu0 %v6990
    %v7399 = vpop.f32.mrb[0].mxu0
    %v7400 = vadd.f32 %v7111, %v7399
    %v7401 = vpop.f32.mrb[0].mxu0
    %v7402 = vpop.f32.mrb[0].mxu0
    %v7403 = vadd.f32 %v7114, %v7402
    %v7404 = vpop.f32.mrb[0].mxu0
    %7405 = vmatprep.mubr.bf16.mxu0 0
    %7406 = vmatmul.mubr.bf16.gmra.mrb[0].mxu0 %v6992
    %v7407 = vpop.f32.mrb[0].mxu0
    %v7408 = vadd.f32 %v7119, %v7407
    %v7409 = vpop.f32.mrb[0].mxu0
    %v7410 = vpop.f32.mrb[0].mxu0
    %v7411 = vadd.f32 %v7122, %v7410
    %v7412 = vpop.f32.mrb[0].mxu0
    %7413 = vmatprep.mubr.bf16.mxu0 0
    %7414 = vmatmul.mubr.bf16.gmra.mrb[0].mxu0 %v6994
    %v7415 = vpop.f32.mrb[0].mxu0
    %v7416 = vadd.f32 %v7127, %v7415
    %v7417 = vpop.f32.mrb[0].mxu0
    %v7418 = vpop.f32.mrb[0].mxu0
    %v7419 = vadd.f32 %v7130, %v7418
    %v7420 = vpop.f32.mrb[0].mxu0
    %7421 = vmatprep.mubr.bf16.mxu0 0
    %7422 = vmatmul.mubr.bf16.gmra.mrb[0].mxu0 %v6996
    %v7423 = vpop.f32.mrb[0].mxu0
    %v7424 = vadd.f32 %v7135, %v7423
    %v7425 = vpop.f32.mrb[0].mxu0
    %v7426 = vpop.f32.mrb[0].mxu0
    %v7427 = vadd.f32 %v7138, %v7426
    %v7428 = vpop.f32.mrb[0].mxu0
    %7429 = vmatprep.mubr.bf16.mxu0 0
    %7430 = vmatmul.mubr.bf16.gmra.mrb[0].mxu0 %v6998
    %v7431 = vpop.f32.mrb[0].mxu0
    %v7432 = vadd.f32 %v7143, %v7431
    %v7433 = vpop.f32.mrb[0].mxu0
    %v7434 = vpop.f32.mrb[0].mxu0
    %v7435 = vadd.f32 %v7146, %v7434
    %v7436 = vpop.f32.mrb[0].mxu0
    %7437 = vmatprep.mubr.bf16.mxu0 0
    %7438 = vmatmul.mubr.bf16.gmra.mrb[0].mxu0 %v7000
    %v7439 = vpop.f32.mrb[0].mxu0
    %v7440 = vadd.f32 %v7151, %v7439
    %v7441 = vpop.f32.mrb[0].mxu0
    %v7442 = vpop.f32.mrb[0].mxu0
    %v7443 = vadd.f32 %v7154, %v7442
    %v7444 = vpop.f32.mrb[0].mxu0
    %7445 = vmatprep.mubr.bf16.mxu0 0
    %7446 = vmatmul.mubr.bf16.gmra.mrb[0].mxu0 %v7002
    %v7447 = vpop.f32.mrb[0].mxu0
    %v7448 = vadd.f32 %v7159, %v7447
    %v7449 = vpop.f32.mrb[0].mxu0
    %v7450 = vpop.f32.mrb[0].mxu0
    %v7451 = vadd.f32 %v7162, %v7450
    %v7452 = vpop.f32.mrb[0].mxu0
    %7453 = vmatprep.mubr.bf16.mxu0 0
    %7454 = vmatmul.mubr.bf16.gmra.mrb[0].mxu0 %v7004
    %v7455 = vpop.f32.mrb[0].mxu0
    %v7456 = vadd.f32 %v7167, %v7455
    %v7457 = vpop.f32.mrb[0].mxu0
    %v7458 = vpop.f32.mrb[0].mxu0
    %v7459 = vadd.f32 %v7170, %v7458
    %v7460 = vpop.f32.mrb[0].mxu0
    %7461 = vmatprep.mubr.bf16.mxu0 0
    %7462 = vmatmul.mubr.bf16.gmra.mrb[0].mxu0 %v7006
    %v7463 = vpop.f32.mrb[0].mxu0
    %v7464 = vadd.f32 %v7175, %v7463
    %v7465 = vpop.f32.mrb[0].mxu0
    %v7466 = vpop.f32.mrb[0].mxu0
    %v7467 = vadd.f32 %v7178, %v7466
    %v7468 = vpop.f32.mrb[0].mxu0
    %7469 = vmatprep.mubr.bf16.mxu0 0
    %7470 = vmatmul.mubr.bf16.gmra.mrb[0].mxu0 %v7008
    %v7471 = vpop.f32.mrb[0].mxu0
    %v7472 = vadd.f32 %v7183, %v7471
    %v7473 = vpop.f32.mrb[0].mxu0
    %v7474 = vpop.f32.mrb[0].mxu0
    %v7475 = vadd.f32 %v7186, %v7474
    %v7476 = vpop.f32.mrb[0].mxu0
    %7477 = vmatprep.mubr.bf16.mxu0 0
    %7478 = vmatmul.mubr.bf16.gmra.mrb[0].mxu0 %v7010
    %v7479 = vpop.f32.mrb[0].mxu0
    %v7480 = vadd.f32 %v7191, %v7479
    %v7481 = vpop.f32.mrb[0].mxu0
    %v7482 = vpop.f32.mrb[0].mxu0
    %v7483 = vadd.f32 %v7194, %v7482
    %v7484 = vpop.f32.mrb[0].mxu0
    %7485 = vmatprep.mubr.bf16.mxu0 0
    %7486 = vmatmul.mubr.bf16.gmra.mrb[0].mxu0 %v7012
    %v7487 = vpop.f32.mrb[0].mxu0
    %v7488 = vadd.f32 %v7199, %v7487
    %v7489 = vpop.f32.mrb[0].mxu0
    %v7490 = vpop.f32.mrb[0].mxu0
    %v7491 = vadd.f32 %v7202, %v7490
    %v7492 = vpop.f32.mrb[0].mxu0
    %7493 = vmatprep.mubr.bf16.mxu0 0
    %7494 = vmatmul.mubr.bf16.gmra.mrb[0].mxu0 %v7014
    %v7495 = vpop.f32.mrb[0].mxu0
    %v7496 = vadd.f32 %v7207, %v7495
    %v7497 = vpop.f32.mrb[0].mxu0
    %v7498 = vpop.f32.mrb[0].mxu0
    %v7499 = vadd.f32 %v7210, %v7498
    %v7500 = vpop.f32.mrb[0].mxu0
    %7501 = vmatprep.mubr.bf16.mxu0 0
    %7502 = vmatmul.mubr.bf16.gmra.mrb[0].mxu0 %v7016
    %v7503 = vpop.f32.mrb[0].mxu0
    %v7504 = vadd.f32 %v7215, %v7503
    %v7505 = vpop.f32.mrb[0].mxu0
    %v7506 = vpop.f32.mrb[0].mxu0
    %v7507 = vadd.f32 %v7218, %v7506
    %v7508 = vpop.f32.mrb[0].mxu0
    %7509 = vmatprep.mubr.bf16.mxu0 0
    %7510 = vmatmul.mubr.bf16.gmra.mrb[0].mxu0 %v7018
    %v7511 = vpop.f32.mrb[0].mxu0
    %v7512 = vadd.f32 %v7223, %v7511
    %v7513 = vpop.f32.mrb[0].mxu0
    %v7514 = vpop.f32.mrb[0].mxu0
    %v7515 = vadd.f32 %v7226, %v7514
    %v7516 = vpop.f32.mrb[0].mxu0
    %7517 = vmatprep.mubr.bf16.mxu0 0
    %7518 = vmatmul.mubr.bf16.gmra.mrb[0].mxu0 %v7020
    %v7519 = vpop.f32.mrb[0].mxu0
    %v7520 = vadd.f32 %v7231, %v7519
    %v7521 = vpop.f32.mrb[0].mxu0
    %v7522 = vpop.f32.mrb[0].mxu0
    %v7523 = vadd.f32 %v7234, %v7522
    %v7524 = vpop.f32.mrb[0].mxu0
    %7525 = vmatprep.mubr.bf16.mxu0 0
    %7526 = vmatmul.mubr.bf16.gmra.mrb[0].mxu0 %v7022
    %v7527 = vpop.f32.mrb[0].mxu0
    %v7528 = vadd.f32 %v7239, %v7527
    %v7529 = vpop.f32.mrb[0].mxu0
    %v7530 = vpop.f32.mrb[0].mxu0
    %v7531 = vadd.f32 %v7242, %v7530
    %v7532 = vpop.f32.mrb[0].mxu0
    %7533 = vmatprep.mubr.bf16.mxu0 0
    %7534 = vmatmul.mubr.bf16.gmra.mrb[0].mxu0 %v7024
    %v7535 = vpop.f32.mrb[0].mxu0
    %v7536 = vadd.f32 %v7247, %v7535
    %v7537 = vpop.f32.mrb[0].mxu0
    %v7538 = vpop.f32.mrb[0].mxu0
    %v7539 = vadd.f32 %v7250, %v7538
    %v7540 = vpop.f32.mrb[0].mxu0
    %7541 = vmatprep.mubr.bf16.mxu0 0
    %7542 = vmatmul.mubr.bf16.gmra.mrb[0].mxu0 %v7026
    %v7543 = vpop.f32.mrb[0].mxu0
    %v7544 = vadd.f32 %v7255, %v7543
    %v7545 = vpop.f32.mrb[0].mxu0
    %v7546 = vpop.f32.mrb[0].mxu0
    %v7547 = vadd.f32 %v7258, %v7546
    %v7548 = vpop.f32.mrb[0].mxu0
    %7549 = vmatprep.mubr.bf16.mxu0 0
    %7550 = vmatmul.mubr.bf16.gmra.mrb[0].mxu0 %v7028
    %v7551 = vpop.f32.mrb[0].mxu0
    %v7552 = vadd.f32 %v7263, %v7551
    %v7553 = vpop.f32.mrb[0].mxu0
    %v7554 = vpop.f32.mrb[0].mxu0
    %v7555 = vadd.f32 %v7266, %v7554
    %v7556 = vpop.f32.mrb[0].mxu0
    %7557 = vmatprep.mubr.bf16.mxu0 0
    %7558 = vmatmul.mubr.bf16.gmra.mrb[0].mxu0 %v7030
    %v7559 = vpop.f32.mrb[0].mxu0
    %v7560 = vadd.f32 %v7271, %v7559
    %v7561 = vpop.f32.mrb[0].mxu0
    %v7562 = vpop.f32.mrb[0].mxu0
    %v7563 = vadd.f32 %v7274, %v7562
    %v7564 = vpop.f32.mrb[0].mxu0
    %7565 = vmatprep.mubr.bf16.mxu0 0
    %7566 = vmatmul.mubr.bf16.gmra.mrb[0].mxu0 %v7032
    %v7567 = vpop.f32.mrb[0].mxu0
    %v7568 = vadd.f32 %v7279, %v7567
    %v7569 = vpop.f32.mrb[0].mxu0
    %v7570 = vpop.f32.mrb[0].mxu0
    %v7571 = vadd.f32 %v7282, %v7570
    %v7572 = vpop.f32.mrb[0].mxu0
    %7573 = vmatprep.mubr.bf16.mxu0 0
    %7574 = vmatmul.mubr.bf16.gmra.mrb[0].mxu0 %v7034
    %v7575 = vpop.f32.mrb[0].mxu0
    %v7576 = vadd.f32 %v7287, %v7575
    %v7577 = vpop.f32.mrb[0].mxu0
    %v7578 = vpop.f32.mrb[0].mxu0
    %v7579 = vadd.f32 %v7290, %v7578
    %v7580 = vpop.f32.mrb[0].mxu0
    %7581 = vmatprep.mubr.bf16.mxu0 0
    %7582 = vmatmul.mubr.bf16.gmra.mrb[0].mxu0 %v7036
    %v7583 = vpop.f32.mrb[0].mxu0
    %v7584 = vadd.f32 %v7295, %v7583
    %v7585 = vpop.f32.mrb[0].mxu0
    %v7586 = vpop.f32.mrb[0].mxu0
    %v7587 = vadd.f32 %v7298, %v7586
    %v7588 = vpop.f32.mrb[0].mxu0
    %7589 = vmatprep.mubr.bf16.mxu0 0
    %7590 = vmatmul.mubr.bf16.gmra.mrb[0].mxu0 %v7038
    %v7591 = vpop.f32.mrb[0].mxu0
    %v7592 = vadd.f32 %v7303, %v7591
    %v7593 = vpop.f32.mrb[0].mxu0
    %v7594 = vpop.f32.mrb[0].mxu0
    %v7595 = vadd.f32 %v7306, %v7594
    %v7596 = vpop.f32.mrb[0].mxu0
    %7597 = vmatprep.mubr.bf16.mxu0 0
    %7598 = vmatmul.mubr.bf16.gmra.mrb[0].mxu0 %v7040
    %v7599 = vpop.f32.mrb[0].mxu0
    %v7600 = vadd.f32 %v7311, %v7599
    %v7601 = vpop.f32.mrb[0].mxu0
    %v7602 = vpop.f32.mrb[0].mxu0
    %v7603 = vadd.f32 %v7314, %v7602
    %v7604 = vpop.f32.mrb[0].mxu0
    %7605 = vmatprep.mubr.bf16.mxu0 0
    %7606 = vmatmul.mubr.bf16.gmra.mrb[0].mxu0 %v7042
    %v7607 = vpop.f32.mrb[0].mxu0
    %v7608 = vadd.f32 %v7319, %v7607
    %v7609 = vpop.f32.mrb[0].mxu0
    %v7610 = vpop.f32.mrb[0].mxu0
    %v7611 = vadd.f32 %v7322, %v7610
    %v7612 = vpop.f32.mrb[0].mxu0
    %7613 = vmatprep.mubr.bf16.mxu0 0
    %7614 = vmatmul.mubr.bf16.gmra.mrb[0].mxu0 %v7044
    %v7615 = vpop.f32.mrb[0].mxu0
    %v7616 = vadd.f32 %v7327, %v7615
    %v7617 = vpop.f32.mrb[0].mxu0
    %v7618 = vpop.f32.mrb[0].mxu0
    %v7619 = vadd.f32 %v7330, %v7618
    %v7620 = vpop.f32.mrb[0].mxu0
    %7621 = vmatprep.mubr.bf16.mxu0 0
    %7622 = vmatmul.mubr.bf16.gmra.mrb[0].mxu0 %v7046
    %v7623 = vpop.f32.mrb[0].mxu0
    %v7624 = vadd.f32 %v7335, %v7623
    %v7625 = vpop.f32.mrb[0].mxu0
    %v7626 = vpop.f32.mrb[0].mxu0
    %v7627 = vadd.f32 %v7338, %v7626
    %v7628 = vpop.f32.mrb[0].mxu0
    %7629 = vdwg.mxu0
    %v7630 = vxor.u32 %v7376, 2147483648
    %v7631 = vxor.u32 %v7379, 2147483648
    %v7632 = vxor.u32 %v7384, 2147483648
    %v7633 = vxor.u32 %v7387, 2147483648
    %v7634 = vxor.u32 %v7392, 2147483648
    %v7635 = vxor.u32 %v7395, 2147483648
    %v7636 = vxor.u32 %v7400, 2147483648
    %v7637 = vxor.u32 %v7403, 2147483648
    %v7638 = vxor.u32 %v7408, 2147483648
    %v7639 = vxor.u32 %v7411, 2147483648
    %v7640 = vxor.u32 %v7416, 2147483648
    %v7641 = vxor.u32 %v7419, 2147483648
    %v7642 = vxor.u32 %v7424, 2147483648
    %v7643 = vxor.u32 %v7427, 2147483648
    %v7644 = vxor.u32 %v7432, 2147483648
    %v7645 = vxor.u32 %v7435, 2147483648
    %v7646 = vxor.u32 %v7440, 2147483648
    %v7647 = vxor.u32 %v7443, 2147483648
    %v7648 = vxor.u32 %v7448, 2147483648
    %v7649 = vxor.u32 %v7451, 2147483648
    %v7650 = vxor.u32 %v7456, 2147483648
    %v7651 = vxor.u32 %v7459, 2147483648
    %v7652 = vxor.u32 %v7464, 2147483648
    %v7653 = vxor.u32 %v7467, 2147483648
    %v7654 = vxor.u32 %v7472, 2147483648
    %v7655 = vxor.u32 %v7475, 2147483648
    %v7656 = vxor.u32 %v7480, 2147483648
    %v7657 = vxor.u32 %v7483, 2147483648
    %v7658 = vxor.u32 %v7488, 2147483648
    %v7659 = vxor.u32 %v7491, 2147483648
    %v7660 = vxor.u32 %v7496, 2147483648
    %v7661 = vxor.u32 %v7499, 2147483648
    %v7662 = vxor.u32 %v7504, 2147483648
    %v7663 = vxor.u32 %v7507, 2147483648
    %v7664 = vxor.u32 %v7512, 2147483648
    %v7665 = vxor.u32 %v7515, 2147483648
    %v7666 = vxor.u32 %v7520, 2147483648
    %v7667 = vxor.u32 %v7523, 2147483648
    %v7668 = vxor.u32 %v7528, 2147483648
    %v7669 = vxor.u32 %v7531, 2147483648
    %v7670 = vxor.u32 %v7536, 2147483648
    %v7671 = vxor.u32 %v7539, 2147483648
    %v7672 = vxor.u32 %v7544, 2147483648
    %v7673 = vxor.u32 %v7547, 2147483648
    %v7674 = vxor.u32 %v7552, 2147483648
    %v7675 = vxor.u32 %v7555, 2147483648
    %v7676 = vxor.u32 %v7560, 2147483648
    %v7677 = vxor.u32 %v7563, 2147483648
    %v7678 = vxor.u32 %v7568, 2147483648
    %v7679 = vxor.u32 %v7571, 2147483648
    %v7680 = vxor.u32 %v7576, 2147483648
    %v7681 = vxor.u32 %v7579, 2147483648
    %v7682 = vxor.u32 %v7584, 2147483648
    %v7683 = vxor.u32 %v7587, 2147483648
    %v7684 = vxor.u32 %v7592, 2147483648
    %v7685 = vxor.u32 %v7595, 2147483648
    %v7686 = vxor.u32 %v7600, 2147483648
    %v7687 = vxor.u32 %v7603, 2147483648
    %v7688 = vxor.u32 %v7608, 2147483648
    %v7689 = vxor.u32 %v7611, 2147483648
    %v7690 = vxor.u32 %v7616, 2147483648
    %v7691 = vxor.u32 %v7619, 2147483648
    %v7692 = vxor.u32 %v7624, 2147483648
    %v7693 = vxor.u32 %v7627, 2147483648
    %v7694 = vmul.f32 %v7630, 1.442695
    %v7695 = vpow.pop %v7694
    %v7696 = vmul.f32 %v7631, 1.442695
    %v7697 = vpow.pop %v7696
    %v7698 = vmul.f32 %v7632, 1.442695
    %v7699 = vpow.pop %v7698
    %v7700 = vmul.f32 %v7633, 1.442695
    %v7701 = vpow.pop %v7700
    %v7702 = vmul.f32 %v7634, 1.442695
    %v7703 = vpow.pop %v7702
    %v7704 = vmul.f32 %v7635, 1.442695
    %v7705 = vpow.pop %v7704
    %v7706 = vmul.f32 %v7636, 1.442695
    %v7707 = vpow.pop %v7706
    %v7708 = vmul.f32 %v7637, 1.442695
    %v7709 = vpow.pop %v7708
    %v7710 = vmul.f32 %v7638, 1.442695
    %v7711 = vpow.pop %v7710
    %v7712 = vmul.f32 %v7639, 1.442695
    %v7713 = vpow.pop %v7712
    %v7714 = vmul.f32 %v7640, 1.442695
    %v7715 = vpow.pop %v7714
    %v7716 = vmul.f32 %v7641, 1.442695
    %v7717 = vpow.pop %v7716
    %v7718 = vmul.f32 %v7642, 1.442695
    %v7719 = vpow.pop %v7718
    %v7720 = vmul.f32 %v7643, 1.442695
    %v7721 = vpow.pop %v7720
    %v7722 = vmul.f32 %v7644, 1.442695
    %v7723 = vpow.pop %v7722
    %v7724 = vmul.f32 %v7645, 1.442695
    %v7725 = vpow.pop %v7724
    %v7726 = vmul.f32 %v7646, 1.442695
    %v7727 = vpow.pop %v7726
    %v7728 = vmul.f32 %v7647, 1.442695
    %v7729 = vpow.pop %v7728
    %v7730 = vmul.f32 %v7648, 1.442695
    %v7731 = vpow.pop %v7730
    %v7732 = vmul.f32 %v7649, 1.442695
    %v7733 = vpow.pop %v7732
    %v7734 = vmul.f32 %v7650, 1.442695
    %v7735 = vpow.pop %v7734
    %v7736 = vmul.f32 %v7651, 1.442695
    %v7737 = vpow.pop %v7736
    %v7738 = vmul.f32 %v7652, 1.442695
    %v7739 = vpow.pop %v7738
    %v7740 = vmul.f32 %v7653, 1.442695
    %v7741 = vpow.pop %v7740
    %v7742 = vmul.f32 %v7654, 1.442695
    %v7743 = vpow.pop %v7742
    %v7744 = vmul.f32 %v7655, 1.442695
    %v7745 = vpow.pop %v7744
    %v7746 = vmul.f32 %v7656, 1.442695
    %v7747 = vpow.pop %v7746
    %v7748 = vmul.f32 %v7657, 1.442695
    %v7749 = vpow.pop %v7748
    %v7750 = vmul.f32 %v7658, 1.442695
    %v7751 = vpow.pop %v7750
    %v7752 = vmul.f32 %v7659, 1.442695
    %v7753 = vpow.pop %v7752
    %v7754 = vmul.f32 %v7660, 1.442695
    %v7755 = vpow.pop %v7754
    %v7756 = vmul.f32 %v7661, 1.442695
    %v7757 = vpow.pop %v7756
    %v7758 = vmul.f32 %v7662, 1.442695
    %v7759 = vpow.pop %v7758
    %v7760 = vmul.f32 %v7663, 1.442695
    %v7761 = vpow.pop %v7760
    %v7762 = vmul.f32 %v7664, 1.442695
    %v7763 = vpow.pop %v7762
    %v7764 = vmul.f32 %v7665, 1.442695
    %v7765 = vpow.pop %v7764
    %v7766 = vmul.f32 %v7666, 1.442695
    %v7767 = vpow.pop %v7766
    %v7768 = vmul.f32 %v7667, 1.442695
    %v7769 = vpow.pop %v7768
    %v7770 = vmul.f32 %v7668, 1.442695
    %v7771 = vpow.pop %v7770
    %v7772 = vmul.f32 %v7669, 1.442695
    %v7773 = vpow.pop %v7772
    %v7774 = vmul.f32 %v7670, 1.442695
    %v7775 = vpow.pop %v7774
    %v7776 = vmul.f32 %v7671, 1.442695
    %v7777 = vpow.pop %v7776
    %v7778 = vmul.f32 %v7672, 1.442695
    %v7779 = vpow.pop %v7778
    %v7780 = vmul.f32 %v7673, 1.442695
    %v7781 = vpow.pop %v7780
    %v7782 = vmul.f32 %v7674, 1.442695
    %v7783 = vpow.pop %v7782
    %v7784 = vmul.f32 %v7675, 1.442695
    %v7785 = vpow.pop %v7784
    %v7786 = vmul.f32 %v7676, 1.442695
    %v7787 = vpow.pop %v7786
    %v7788 = vmul.f32 %v7677, 1.442695
    %v7789 = vpow.pop %v7788
    %v7790 = vmul.f32 %v7678, 1.442695
    %v7791 = vpow.pop %v7790
    %v7792 = vmul.f32 %v7679, 1.442695
    %v7793 = vpow.pop %v7792
    %v7794 = vmul.f32 %v7680, 1.442695
    %v7795 = vpow.pop %v7794
    %v7796 = vmul.f32 %v7681, 1.442695
    %v7797 = vpow.pop %v7796
    %v7798 = vmul.f32 %v7682, 1.442695
    %v7799 = vpow.pop %v7798
    %v7800 = vmul.f32 %v7683, 1.442695
    %v7801 = vpow.pop %v7800
    %v7802 = vmul.f32 %v7684, 1.442695
    %v7803 = vpow.pop %v7802
    %v7804 = vmul.f32 %v7685, 1.442695
    %v7805 = vpow.pop %v7804
    %v7806 = vmul.f32 %v7686, 1.442695
    %v7807 = vpow.pop %v7806
    %v7808 = vmul.f32 %v7687, 1.442695
    %v7809 = vpow.pop %v7808
    %v7810 = vmul.f32 %v7688, 1.442695
    %v7811 = vpow.pop %v7810
    %v7812 = vmul.f32 %v7689, 1.442695
    %v7813 = vpow.pop %v7812
    %v7814 = vmul.f32 %v7690, 1.442695
    %v7815 = vpow.pop %v7814
    %v7816 = vmul.f32 %v7691, 1.442695
    %v7817 = vpow.pop %v7816
    %v7818 = vmul.f32 %v7692, 1.442695
    %v7819 = vpow.pop %v7818
    %v7820 = vmul.f32 %v7693, 1.442695
    %v7821 = vpow.pop %v7820
    %v7822 = vadd.f32 %v7695, 1.0
    %v7823 = vadd.f32 %v7697, 1.0
    %v7824 = vadd.f32 %v7699, 1.0
    %v7825 = vadd.f32 %v7701, 1.0
    %v7826 = vadd.f32 %v7703, 1.0
    %v7827 = vadd.f32 %v7705, 1.0
    %v7828 = vadd.f32 %v7707, 1.0
    %v7829 = vadd.f32 %v7709, 1.0
    %v7830 = vadd.f32 %v7711, 1.0
    %v7831 = vadd.f32 %v7713, 1.0
    %v7832 = vadd.f32 %v7715, 1.0
    %v7833 = vadd.f32 %v7717, 1.0
    %v7834 = vadd.f32 %v7719, 1.0
    %v7835 = vadd.f32 %v7721, 1.0
    %v7836 = vadd.f32 %v7723, 1.0
    %v7837 = vadd.f32 %v7725, 1.0
    %v7838 = vadd.f32 %v7727, 1.0
    %v7839 = vadd.f32 %v7729, 1.0
    %v7840 = vadd.f32 %v7731, 1.0
    %v7841 = vadd.f32 %v7733, 1.0
    %v7842 = vadd.f32 %v7735, 1.0
    %v7843 = vadd.f32 %v7737, 1.0
    %v7844 = vadd.f32 %v7739, 1.0
    %v7845 = vadd.f32 %v7741, 1.0
    %v7846 = vadd.f32 %v7743, 1.0
    %v7847 = vadd.f32 %v7745, 1.0
    %v7848 = vadd.f32 %v7747, 1.0
    %v7849 = vadd.f32 %v7749, 1.0
    %v7850 = vadd.f32 %v7751, 1.0
    %v7851 = vadd.f32 %v7753, 1.0
    %v7852 = vadd.f32 %v7755, 1.0
    %v7853 = vadd.f32 %v7757, 1.0
    %v7854 = vadd.f32 %v7759, 1.0
    %v7855 = vadd.f32 %v7761, 1.0
    %v7856 = vadd.f32 %v7763, 1.0
    %v7857 = vadd.f32 %v7765, 1.0
    %v7858 = vadd.f32 %v7767, 1.0
    %v7859 = vadd.f32 %v7769, 1.0
    %v7860 = vadd.f32 %v7771, 1.0
    %v7861 = vadd.f32 %v7773, 1.0
    %v7862 = vadd.f32 %v7775, 1.0
    %v7863 = vadd.f32 %v7777, 1.0
    %v7864 = vadd.f32 %v7779, 1.0
    %v7865 = vadd.f32 %v7781, 1.0
    %v7866 = vadd.f32 %v7783, 1.0
    %v7867 = vadd.f32 %v7785, 1.0
    %v7868 = vadd.f32 %v7787, 1.0
    %v7869 = vadd.f32 %v7789, 1.0
    %v7870 = vadd.f32 %v7791, 1.0
    %v7871 = vadd.f32 %v7793, 1.0
    %v7872 = vadd.f32 %v7795, 1.0
    %v7873 = vadd.f32 %v7797, 1.0
    %v7874 = vadd.f32 %v7799, 1.0
    %v7875 = vadd.f32 %v7801, 1.0
    %v7876 = vadd.f32 %v7803, 1.0
    %v7877 = vadd.f32 %v7805, 1.0
    %v7878 = vadd.f32 %v7807, 1.0
    %v7879 = vadd.f32 %v7809, 1.0
    %v7880 = vadd.f32 %v7811, 1.0
    %v7881 = vadd.f32 %v7813, 1.0
    %v7882 = vadd.f32 %v7815, 1.0
    %v7883 = vadd.f32 %v7817, 1.0
    %v7884 = vadd.f32 %v7819, 1.0
    %v7885 = vadd.f32 %v7821, 1.0
    %v7886 = vrcp.pop %v7822
    %v7887 = vmul.f32 1.0, %v7886
    %v7888 = vrcp.pop %v7823
    %v7889 = vmul.f32 1.0, %v7888
    %v7890 = vrcp.pop %v7824
    %v7891 = vmul.f32 1.0, %v7890
    %v7892 = vrcp.pop %v7825
    %v7893 = vmul.f32 1.0, %v7892
    %v7894 = vrcp.pop %v7826
    %v7895 = vmul.f32 1.0, %v7894
    %v7896 = vrcp.pop %v7827
    %v7897 = vmul.f32 1.0, %v7896
    %v7898 = vrcp.pop %v7828
    %v7899 = vmul.f32 1.0, %v7898
    %v7900 = vrcp.pop %v7829
    %v7901 = vmul.f32 1.0, %v7900
    %v7902 = vrcp.pop %v7830
    %v7903 = vmul.f32 1.0, %v7902
    %v7904 = vrcp.pop %v7831
    %v7905 = vmul.f32 1.0, %v7904
    %v7906 = vrcp.pop %v7832
    %v7907 = vmul.f32 1.0, %v7906
    %v7908 = vrcp.pop %v7833
    %v7909 = vmul.f32 1.0, %v7908
    %v7910 = vrcp.pop %v7834
    %v7911 = vmul.f32 1.0, %v7910
    %v7912 = vrcp.pop %v7835
    %v7913 = vmul.f32 1.0, %v7912
    %v7914 = vrcp.pop %v7836
    %v7915 = vmul.f32 1.0, %v7914
    %v7916 = vrcp.pop %v7837
    %v7917 = vmul.f32 1.0, %v7916
    %v7918 = vrcp.pop %v7838
    %v7919 = vmul.f32 1.0, %v7918
    %v7920 = vrcp.pop %v7839
    %v7921 = vmul.f32 1.0, %v7920
    %v7922 = vrcp.pop %v7840
    %v7923 = vmul.f32 1.0, %v7922
    %v7924 = vrcp.pop %v7841
    %v7925 = vmul.f32 1.0, %v7924
    %v7926 = vrcp.pop %v7842
    %v7927 = vmul.f32 1.0, %v7926
    %v7928 = vrcp.pop %v7843
    %v7929 = vmul.f32 1.0, %v7928
    %v7930 = vrcp.pop %v7844
    %v7931 = vmul.f32 1.0, %v7930
    %v7932 = vrcp.pop %v7845
    %v7933 = vmul.f32 1.0, %v7932
    %v7934 = vrcp.pop %v7846
    %v7935 = vmul.f32 1.0, %v7934
    %v7936 = vrcp.pop %v7847
    %v7937 = vmul.f32 1.0, %v7936
    %v7938 = vrcp.pop %v7848
    %v7939 = vmul.f32 1.0, %v7938
    %v7940 = vrcp.pop %v7849
    %v7941 = vmul.f32 1.0, %v7940
    %v7942 = vrcp.pop %v7850
    %v7943 = vmul.f32 1.0, %v7942
    %v7944 = vrcp.pop %v7851
    %v7945 = vmul.f32 1.0, %v7944
    %v7946 = vrcp.pop %v7852
    %v7947 = vmul.f32 1.0, %v7946
    %v7948 = vrcp.pop %v7853
    %v7949 = vmul.f32 1.0, %v7948
    %v7950 = vrcp.pop %v7854
    %v7951 = vmul.f32 1.0, %v7950
    %v7952 = vrcp.pop %v7855
    %v7953 = vmul.f32 1.0, %v7952
    %v7954 = vrcp.pop %v7856
    %v7955 = vmul.f32 1.0, %v7954
    %v7956 = vrcp.pop %v7857
    %v7957 = vmul.f32 1.0, %v7956
    %v7958 = vrcp.pop %v7858
    %v7959 = vmul.f32 1.0, %v7958
    %v7960 = vrcp.pop %v7859
    %v7961 = vmul.f32 1.0, %v7960
    %v7962 = vrcp.pop %v7860
    %v7963 = vmul.f32 1.0, %v7962
    %v7964 = vrcp.pop %v7861
    %v7965 = vmul.f32 1.0, %v7964
    %v7966 = vrcp.pop %v7862
    %v7967 = vmul.f32 1.0, %v7966
    %v7968 = vrcp.pop %v7863
    %v7969 = vmul.f32 1.0, %v7968
    %v7970 = vrcp.pop %v7864
    %v7971 = vmul.f32 1.0, %v7970
    %v7972 = vrcp.pop %v7865
    %v7973 = vmul.f32 1.0, %v7972
    %v7974 = vrcp.pop %v7866
    %v7975 = vmul.f32 1.0, %v7974
    %v7976 = vrcp.pop %v7867
    %v7977 = vmul.f32 1.0, %v7976
    %v7978 = vrcp.pop %v7868
    %v7979 = vmul.f32 1.0, %v7978
    %v7980 = vrcp.pop %v7869
    %v7981 = vmul.f32 1.0, %v7980
    %v7982 = vrcp.pop %v7870
    %v7983 = vmul.f32 1.0, %v7982
    %v7984 = vrcp.pop %v7871
    %v7985 = vmul.f32 1.0, %v7984
    %v7986 = vrcp.pop %v7872
    %v7987 = vmul.f32 1.0, %v7986
    %v7988 = vrcp.pop %v7873
    %v7989 = vmul.f32 1.0, %v7988
    %v7990 = vrcp.pop %v7874
    %v7991 = vmul.f32 1.0, %v7990
    %v7992 = vrcp.pop %v7875
    %v7993 = vmul.f32 1.0, %v7992
    %v7994 = vrcp.pop %v7876
    %v7995 = vmul.f32 1.0, %v7994
    %v7996 = vrcp.pop %v7877
    %v7997 = vmul.f32 1.0, %v7996
    %v7998 = vrcp.pop %v7878
    %v7999 = vmul.f32 1.0, %v7998
    %v8000 = vrcp.pop %v7879
    %v8001 = vmul.f32 1.0, %v8000
    %v8002 = vrcp.pop %v7880
    %v8003 = vmul.f32 1.0, %v8002
    %v8004 = vrcp.pop %v7881
    %v8005 = vmul.f32 1.0, %v8004
    %v8006 = vrcp.pop %v7882
    %v8007 = vmul.f32 1.0, %v8006
    %v8008 = vrcp.pop %v7883
    %v8009 = vmul.f32 1.0, %v8008
    %v8010 = vrcp.pop %v7884
    %v8011 = vmul.f32 1.0, %v8010
    %v8012 = vrcp.pop %v7885
    %v8013 = vmul.f32 1.0, %v8012
    %v8014 = vtanh.pop %v7376
    %v8015 = vtanh.pop %v7379
    %v8016 = vtanh.pop %v7384
    %v8017 = vtanh.pop %v7387
    %v8018 = vtanh.pop %v7392
    %v8019 = vtanh.pop %v7395
    %v8020 = vtanh.pop %v7400
    %v8021 = vtanh.pop %v7403
    %v8022 = vtanh.pop %v7408
    %v8023 = vtanh.pop %v7411
    %v8024 = vtanh.pop %v7416
    %v8025 = vtanh.pop %v7419
    %v8026 = vtanh.pop %v7424
    %v8027 = vtanh.pop %v7427
    %v8028 = vtanh.pop %v7432
    %v8029 = vtanh.pop %v7435
    %v8030 = vtanh.pop %v7440
    %v8031 = vtanh.pop %v7443
    %v8032 = vtanh.pop %v7448
    %v8033 = vtanh.pop %v7451
    %v8034 = vtanh.pop %v7456
    %v8035 = vtanh.pop %v7459
    %v8036 = vtanh.pop %v7464
    %v8037 = vtanh.pop %v7467
    %v8038 = vtanh.pop %v7472
    %v8039 = vtanh.pop %v7475
    %v8040 = vtanh.pop %v7480
    %v8041 = vtanh.pop %v7483
    %v8042 = vtanh.pop %v7488
    %v8043 = vtanh.pop %v7491
    %v8044 = vtanh.pop %v7496
    %v8045 = vtanh.pop %v7499
    %v8046 = vtanh.pop %v7504
    %v8047 = vtanh.pop %v7507
    %v8048 = vtanh.pop %v7512
    %v8049 = vtanh.pop %v7515
    %v8050 = vtanh.pop %v7520
    %v8051 = vtanh.pop %v7523
    %v8052 = vtanh.pop %v7528
    %v8053 = vtanh.pop %v7531
    %v8054 = vtanh.pop %v7536
    %v8055 = vtanh.pop %v7539
    %v8056 = vtanh.pop %v7544
    %v8057 = vtanh.pop %v7547
    %v8058 = vtanh.pop %v7552
    %v8059 = vtanh.pop %v7555
    %v8060 = vtanh.pop %v7560
    %v8061 = vtanh.pop %v7563
    %v8062 = vtanh.pop %v7568
    %v8063 = vtanh.pop %v7571
    %v8064 = vtanh.pop %v7576
    %v8065 = vtanh.pop %v7579
    %v8066 = vtanh.pop %v7584
    %v8067 = vtanh.pop %v7587
    %v8068 = vtanh.pop %v7592
    %v8069 = vtanh.pop %v7595
    %v8070 = vtanh.pop %v7600
    %v8071 = vtanh.pop %v7603
    %v8072 = vtanh.pop %v7608
    %v8073 = vtanh.pop %v7611
    %v8074 = vtanh.pop %v7616
    %v8075 = vtanh.pop %v7619
    %v8076 = vtanh.pop %v7624
    %v8077 = vtanh.pop %v7627
    %v8078 = vld [vmem:[%s1] sm:$0xff]
    %v8079 = vld [vmem:[%s1 + $0x8] sm:$0xff]
    %v8080 = vld [vmem:[%s1 + $0x10] sm:$0xff]
    %v8081 = vld [vmem:[%s1 + $0x18] sm:$0xff]
    %v8082 = vld [vmem:[%s1 + $0x20] sm:$0xff]
    %v8083 = vld [vmem:[%s1 + $0x28] sm:$0xff]
    %v8084 = vld [vmem:[%s1 + $0x30] sm:$0xff]
    %v8085 = vld [vmem:[%s1 + $0x38] sm:$0xff]
    %v8086 = vld [vmem:[%s1 + $0x40] sm:$0xff]
    %v8087 = vld [vmem:[%s1 + $0x48] sm:$0xff]
    %v8088 = vld [vmem:[%s1 + $0x50] sm:$0xff]
    %v8089 = vld [vmem:[%s1 + $0x58] sm:$0xff]
    %v8090 = vld [vmem:[%s1 + $0x60] sm:$0xff]
    %v8091 = vld [vmem:[%s1 + $0x68] sm:$0xff]
    %v8092 = vld [vmem:[%s1 + $0x70] sm:$0xff]
    %v8093 = vld [vmem:[%s1 + $0x78] sm:$0xff]
    %v8094 = vld [vmem:[%s1 + $0x80] sm:$0xff]
    %v8095 = vld [vmem:[%s1 + $0x88] sm:$0xff]
    %v8096 = vld [vmem:[%s1 + $0x90] sm:$0xff]
    %v8097 = vld [vmem:[%s1 + $0x98] sm:$0xff]
    %v8098 = vld [vmem:[%s1 + $0xa0] sm:$0xff]
    %v8099 = vld [vmem:[%s1 + $0xa8] sm:$0xff]
    %v8100 = vld [vmem:[%s1 + $0xb0] sm:$0xff]
    %v8101 = vld [vmem:[%s1 + $0xb8] sm:$0xff]
    %v8102 = vld [vmem:[%s1 + $0xc0] sm:$0xff]
    %v8103 = vld [vmem:[%s1 + $0xc8] sm:$0xff]
    %v8104 = vld [vmem:[%s1 + $0xd0] sm:$0xff]
    %v8105 = vld [vmem:[%s1 + $0xd8] sm:$0xff]
    %v8106 = vld [vmem:[%s1 + $0xe0] sm:$0xff]
    %v8107 = vld [vmem:[%s1 + $0xe8] sm:$0xff]
    %v8108 = vld [vmem:[%s1 + $0xf0] sm:$0xff]
    %v8109 = vld [vmem:[%s1 + $0xf8] sm:$0xff]
    %v8110 = vld [vmem:[%s1 + $0x100] sm:$0xff]
    %v8111 = vld [vmem:[%s1 + $0x108] sm:$0xff]
    %v8112 = vld [vmem:[%s1 + $0x110] sm:$0xff]
    %v8113 = vld [vmem:[%s1 + $0x118] sm:$0xff]
    %v8114 = vld [vmem:[%s1 + $0x120] sm:$0xff]
    %v8115 = vld [vmem:[%s1 + $0x128] sm:$0xff]
    %v8116 = vld [vmem:[%s1 + $0x130] sm:$0xff]
    %v8117 = vld [vmem:[%s1 + $0x138] sm:$0xff]
    %v8118 = vld [vmem:[%s1 + $0x140] sm:$0xff]
    %v8119 = vld [vmem:[%s1 + $0x148] sm:$0xff]
    %v8120 = vld [vmem:[%s1 + $0x150] sm:$0xff]
    %v8121 = vld [vmem:[%s1 + $0x158] sm:$0xff]
    %v8122 = vld [vmem:[%s1 + $0x160] sm:$0xff]
    %v8123 = vld [vmem:[%s1 + $0x168] sm:$0xff]
    %v8124 = vld [vmem:[%s1 + $0x170] sm:$0xff]
    %v8125 = vld [vmem:[%s1 + $0x178] sm:$0xff]
    %v8126 = vld [vmem:[%s1 + $0x180] sm:$0xff]
    %v8127 = vld [vmem:[%s1 + $0x188] sm:$0xff]
    %v8128 = vld [vmem:[%s1 + $0x190] sm:$0xff]
    %v8129 = vld [vmem:[%s1 + $0x198] sm:$0xff]
    %v8130 = vld [vmem:[%s1 + $0x1a0] sm:$0xff]
    %v8131 = vld [vmem:[%s1 + $0x1a8] sm:$0xff]
    %v8132 = vld [vmem:[%s1 + $0x1b0] sm:$0xff]
    %v8133 = vld [vmem:[%s1 + $0x1b8] sm:$0xff]
    %v8134 = vld [vmem:[%s1 + $0x1c0] sm:$0xff]
    %v8135 = vld [vmem:[%s1 + $0x1c8] sm:$0xff]
    %v8136 = vld [vmem:[%s1 + $0x1d0] sm:$0xff]
    %v8137 = vld [vmem:[%s1 + $0x1d8] sm:$0xff]
    %v8138 = vld [vmem:[%s1 + $0x1e0] sm:$0xff]
    %v8139 = vld [vmem:[%s1 + $0x1e8] sm:$0xff]
    %v8140 = vld [vmem:[%s1 + $0x1f0] sm:$0xff]
    %v8141 = vld [vmem:[%s1 + $0x1f8] sm:$0xff]
    %8206 = vrot.lane.b32.xlu0 %v8078, 32
    %v8207 = vpop.permute.xlu0 %8206
    %8208 = vrot.lane.b32.xlu0 %v8079, 32
    %v8209 = vpop.permute.xlu0 %8208
    %8210 = vrot.lane.b32.xlu0 %v8080, 32
    %v8211 = vpop.permute.xlu0 %8210
    %8212 = vrot.lane.b32.xlu0 %v8081, 32
    %v8213 = vpop.permute.xlu0 %8212
    %8214 = vrot.lane.b32.xlu0 %v8082, 32
    %v8215 = vpop.permute.xlu0 %8214
    %8216 = vrot.lane.b32.xlu0 %v8083, 32
    %v8217 = vpop.permute.xlu0 %8216
    %8218 = vrot.lane.b32.xlu0 %v8084, 32
    %v8219 = vpop.permute.xlu0 %8218
    %8220 = vrot.lane.b32.xlu0 %v8085, 32
    %v8221 = vpop.permute.xlu0 %8220
    %8222 = vrot.lane.b32.xlu0 %v8086, 32
    %v8223 = vpop.permute.xlu0 %8222
    %8224 = vrot.lane.b32.xlu0 %v8087, 32
    %v8225 = vpop.permute.xlu0 %8224
    %8226 = vrot.lane.b32.xlu0 %v8088, 32
    %v8227 = vpop.permute.xlu0 %8226
    %8228 = vrot.lane.b32.xlu0 %v8089, 32
    %v8229 = vpop.permute.xlu0 %8228
    %8230 = vrot.lane.b32.xlu0 %v8090, 32
    %v8231 = vpop.permute.xlu0 %8230
    %8232 = vrot.lane.b32.xlu0 %v8091, 32
    %v8233 = vpop.permute.xlu0 %8232
    %8234 = vrot.lane.b32.xlu0 %v8092, 32
    %v8235 = vpop.permute.xlu0 %8234
    %8236 = vrot.lane.b32.xlu0 %v8093, 32
    %v8237 = vpop.permute.xlu0 %8236
    %8238 = vrot.lane.b32.xlu0 %v8094, 32
    %v8239 = vpop.permute.xlu0 %8238
    %8240 = vrot.lane.b32.xlu0 %v8095, 32
    %v8241 = vpop.permute.xlu0 %8240
    %8242 = vrot.lane.b32.xlu0 %v8096, 32
    %v8243 = vpop.permute.xlu0 %8242
    %8244 = vrot.lane.b32.xlu0 %v8097, 32
    %v8245 = vpop.permute.xlu0 %8244
    %8246 = vrot.lane.b32.xlu0 %v8098, 32
    %v8247 = vpop.permute.xlu0 %8246
    %8248 = vrot.lane.b32.xlu0 %v8099, 32
    %v8249 = vpop.permute.xlu0 %8248
    %8250 = vrot.lane.b32.xlu0 %v8100, 32
    %v8251 = vpop.permute.xlu0 %8250
    %8252 = vrot.lane.b32.xlu0 %v8101, 32
    %v8253 = vpop.permute.xlu0 %8252
    %8254 = vrot.lane.b32.xlu0 %v8102, 32
    %v8255 = vpop.permute.xlu0 %8254
    %8256 = vrot.lane.b32.xlu0 %v8103, 32
    %v8257 = vpop.permute.xlu0 %8256
    %8258 = vrot.lane.b32.xlu0 %v8104, 32
    %v8259 = vpop.permute.xlu0 %8258
    %8260 = vrot.lane.b32.xlu0 %v8105, 32
    %v8261 = vpop.permute.xlu0 %8260
    %8262 = vrot.lane.b32.xlu0 %v8106, 32
    %v8263 = vpop.permute.xlu0 %8262
    %8264 = vrot.lane.b32.xlu0 %v8107, 32
    %v8265 = vpop.permute.xlu0 %8264
    %8266 = vrot.lane.b32.xlu0 %v8108, 32
    %v8267 = vpop.permute.xlu0 %8266
    %8268 = vrot.lane.b32.xlu0 %v8109, 32
    %v8269 = vpop.permute.xlu0 %8268
    %8270 = vrot.lane.b32.xlu0 %v8110, 32
    %v8271 = vpop.permute.xlu0 %8270
    %8272 = vrot.lane.b32.xlu0 %v8111, 32
    %v8273 = vpop.permute.xlu0 %8272
    %8274 = vrot.lane.b32.xlu0 %v8112, 32
    %v8275 = vpop.permute.xlu0 %8274
    %8276 = vrot.lane.b32.xlu0 %v8113, 32
    %v8277 = vpop.permute.xlu0 %8276
    %8278 = vrot.lane.b32.xlu0 %v8114, 32
    %v8279 = vpop.permute.xlu0 %8278
    %8280 = vrot.lane.b32.xlu0 %v8115, 32
    %v8281 = vpop.permute.xlu0 %8280
    %8282 = vrot.lane.b32.xlu0 %v8116, 32
    %v8283 = vpop.permute.xlu0 %8282
    %8284 = vrot.lane.b32.xlu0 %v8117, 32
    %v8285 = vpop.permute.xlu0 %8284
    %8286 = vrot.lane.b32.xlu0 %v8118, 32
    %v8287 = vpop.permute.xlu0 %8286
    %8288 = vrot.lane.b32.xlu0 %v8119, 32
    %v8289 = vpop.permute.xlu0 %8288
    %8290 = vrot.lane.b32.xlu0 %v8120, 32
    %v8291 = vpop.permute.xlu0 %8290
    %8292 = vrot.lane.b32.xlu0 %v8121, 32
    %v8293 = vpop.permute.xlu0 %8292
    %8294 = vrot.lane.b32.xlu0 %v8122, 32
    %v8295 = vpop.permute.xlu0 %8294
    %8296 = vrot.lane.b32.xlu0 %v8123, 32
    %v8297 = vpop.permute.xlu0 %8296
    %8298 = vrot.lane.b32.xlu0 %v8124, 32
    %v8299 = vpop.permute.xlu0 %8298
    %8300 = vrot.lane.b32.xlu0 %v8125, 32
    %v8301 = vpop.permute.xlu0 %8300
    %8302 = vrot.lane.b32.xlu0 %v8126, 32
    %v8303 = vpop.permute.xlu0 %8302
    %8304 = vrot.lane.b32.xlu0 %v8127, 32
    %v8305 = vpop.permute.xlu0 %8304
    %8306 = vrot.lane.b32.xlu0 %v8128, 32
    %v8307 = vpop.permute.xlu0 %8306
    %8308 = vrot.lane.b32.xlu0 %v8129, 32
    %v8309 = vpop.permute.xlu0 %8308
    %8310 = vrot.lane.b32.xlu0 %v8130, 32
    %v8311 = vpop.permute.xlu0 %8310
    %8312 = vrot.lane.b32.xlu0 %v8131, 32
    %v8313 = vpop.permute.xlu0 %8312
    %8314 = vrot.lane.b32.xlu0 %v8132, 32
    %v8315 = vpop.permute.xlu0 %8314
    %8316 = vrot.lane.b32.xlu0 %v8133, 32
    %v8317 = vpop.permute.xlu0 %8316
    %8318 = vrot.lane.b32.xlu0 %v8134, 32
    %v8319 = vpop.permute.xlu0 %8318
    %8320 = vrot.lane.b32.xlu0 %v8135, 32
    %v8321 = vpop.permute.xlu0 %8320
    %8322 = vrot.lane.b32.xlu0 %v8136, 32
    %v8323 = vpop.permute.xlu0 %8322
    %8324 = vrot.lane.b32.xlu0 %v8137, 32
    %v8325 = vpop.permute.xlu0 %8324
    %8326 = vrot.lane.b32.xlu0 %v8138, 32
    %v8327 = vpop.permute.xlu0 %8326
    %8328 = vrot.lane.b32.xlu0 %v8139, 32
    %v8329 = vpop.permute.xlu0 %8328
    %8330 = vrot.lane.b32.xlu0 %v8140, 32
    %v8331 = vpop.permute.xlu0 %8330
    %8332 = vrot.lane.b32.xlu0 %v8141, 32
    %v8333 = vpop.permute.xlu0 %8332
    %v8398 = vmul.f32 %v7887, %v8207
    %v8399 = vmul.f32 %v7889, %v8209
    %v8400 = vmul.f32 %v7891, %v8211
    %v8401 = vmul.f32 %v7893, %v8213
    %v8402 = vmul.f32 %v7895, %v8215
    %v8403 = vmul.f32 %v7897, %v8217
    %v8404 = vmul.f32 %v7899, %v8219
    %v8405 = vmul.f32 %v7901, %v8221
    %v8406 = vmul.f32 %v7903, %v8223
    %v8407 = vmul.f32 %v7905, %v8225
    %v8408 = vmul.f32 %v7907, %v8227
    %v8409 = vmul.f32 %v7909, %v8229
    %v8410 = vmul.f32 %v7911, %v8231
    %v8411 = vmul.f32 %v7913, %v8233
    %v8412 = vmul.f32 %v7915, %v8235
    %v8413 = vmul.f32 %v7917, %v8237
    %v8414 = vmul.f32 %v7919, %v8239
    %v8415 = vmul.f32 %v7921, %v8241
    %v8416 = vmul.f32 %v7923, %v8243
    %v8417 = vmul.f32 %v7925, %v8245
    %v8418 = vmul.f32 %v7927, %v8247
    %v8419 = vmul.f32 %v7929, %v8249
    %v8420 = vmul.f32 %v7931, %v8251
    %v8421 = vmul.f32 %v7933, %v8253
    %v8422 = vmul.f32 %v7935, %v8255
    %v8423 = vmul.f32 %v7937, %v8257
    %v8424 = vmul.f32 %v7939, %v8259
    %v8425 = vmul.f32 %v7941, %v8261
    %v8426 = vmul.f32 %v7943, %v8263
    %v8427 = vmul.f32 %v7945, %v8265
    %v8428 = vmul.f32 %v7947, %v8267
    %v8429 = vmul.f32 %v7949, %v8269
    %v8430 = vmul.f32 %v7951, %v8271
    %v8431 = vmul.f32 %v7953, %v8273
    %v8432 = vmul.f32 %v7955, %v8275
    %v8433 = vmul.f32 %v7957, %v8277
    %v8434 = vmul.f32 %v7959, %v8279
    %v8435 = vmul.f32 %v7961, %v8281
    %v8436 = vmul.f32 %v7963, %v8283
    %v8437 = vmul.f32 %v7965, %v8285
    %v8438 = vmul.f32 %v7967, %v8287
    %v8439 = vmul.f32 %v7969, %v8289
    %v8440 = vmul.f32 %v7971, %v8291
    %v8441 = vmul.f32 %v7973, %v8293
    %v8442 = vmul.f32 %v7975, %v8295
    %v8443 = vmul.f32 %v7977, %v8297
    %v8444 = vmul.f32 %v7979, %v8299
    %v8445 = vmul.f32 %v7981, %v8301
    %v8446 = vmul.f32 %v7983, %v8303
    %v8447 = vmul.f32 %v7985, %v8305
    %v8448 = vmul.f32 %v7987, %v8307
    %v8449 = vmul.f32 %v7989, %v8309
    %v8450 = vmul.f32 %v7991, %v8311
    %v8451 = vmul.f32 %v7993, %v8313
    %v8452 = vmul.f32 %v7995, %v8315
    %v8453 = vmul.f32 %v7997, %v8317
    %v8454 = vmul.f32 %v7999, %v8319
    %v8455 = vmul.f32 %v8001, %v8321
    %v8456 = vmul.f32 %v8003, %v8323
    %v8457 = vmul.f32 %v8005, %v8325
    %v8458 = vmul.f32 %v8007, %v8327
    %v8459 = vmul.f32 %v8009, %v8329
    %v8460 = vmul.f32 %v8011, %v8331
    %v8461 = vmul.f32 %v8013, %v8333
    %8526 = vrot.lane.b32.xlu0 %v8014, 32
    %v8527 = vpop.permute.xlu0 %8526
    %8528 = vrot.lane.b32.xlu0 %v8015, 32
    %v8529 = vpop.permute.xlu0 %8528
    %8530 = vrot.lane.b32.xlu0 %v8016, 32
    %v8531 = vpop.permute.xlu0 %8530
    %8532 = vrot.lane.b32.xlu0 %v8017, 32
    %v8533 = vpop.permute.xlu0 %8532
    %8534 = vrot.lane.b32.xlu0 %v8018, 32
    %v8535 = vpop.permute.xlu0 %8534
    %8536 = vrot.lane.b32.xlu0 %v8019, 32
    %v8537 = vpop.permute.xlu0 %8536
    %8538 = vrot.lane.b32.xlu0 %v8020, 32
    %v8539 = vpop.permute.xlu0 %8538
    %8540 = vrot.lane.b32.xlu0 %v8021, 32
    %v8541 = vpop.permute.xlu0 %8540
    %8542 = vrot.lane.b32.xlu0 %v8022, 32
    %v8543 = vpop.permute.xlu0 %8542
    %8544 = vrot.lane.b32.xlu0 %v8023, 32
    %v8545 = vpop.permute.xlu0 %8544
    %8546 = vrot.lane.b32.xlu0 %v8024, 32
    %v8547 = vpop.permute.xlu0 %8546
    %8548 = vrot.lane.b32.xlu0 %v8025, 32
    %v8549 = vpop.permute.xlu0 %8548
    %8550 = vrot.lane.b32.xlu0 %v8026, 32
    %v8551 = vpop.permute.xlu0 %8550
    %8552 = vrot.lane.b32.xlu0 %v8027, 32
    %v8553 = vpop.permute.xlu0 %8552
    %8554 = vrot.lane.b32.xlu0 %v8028, 32
    %v8555 = vpop.permute.xlu0 %8554
    %8556 = vrot.lane.b32.xlu0 %v8029, 32
    %v8557 = vpop.permute.xlu0 %8556
    %8558 = vrot.lane.b32.xlu0 %v8030, 32
    %v8559 = vpop.permute.xlu0 %8558
    %8560 = vrot.lane.b32.xlu0 %v8031, 32
    %v8561 = vpop.permute.xlu0 %8560
    %8562 = vrot.lane.b32.xlu0 %v8032, 32
    %v8563 = vpop.permute.xlu0 %8562
    %8564 = vrot.lane.b32.xlu0 %v8033, 32
    %v8565 = vpop.permute.xlu0 %8564
    %8566 = vrot.lane.b32.xlu0 %v8034, 32
    %v8567 = vpop.permute.xlu0 %8566
    %8568 = vrot.lane.b32.xlu0 %v8035, 32
    %v8569 = vpop.permute.xlu0 %8568
    %8570 = vrot.lane.b32.xlu0 %v8036, 32
    %v8571 = vpop.permute.xlu0 %8570
    %8572 = vrot.lane.b32.xlu0 %v8037, 32
    %v8573 = vpop.permute.xlu0 %8572
    %8574 = vrot.lane.b32.xlu0 %v8038, 32
    %v8575 = vpop.permute.xlu0 %8574
    %8576 = vrot.lane.b32.xlu0 %v8039, 32
    %v8577 = vpop.permute.xlu0 %8576
    %8578 = vrot.lane.b32.xlu0 %v8040, 32
    %v8579 = vpop.permute.xlu0 %8578
    %8580 = vrot.lane.b32.xlu0 %v8041, 32
    %v8581 = vpop.permute.xlu0 %8580
    %8582 = vrot.lane.b32.xlu0 %v8042, 32
    %v8583 = vpop.permute.xlu0 %8582
    %8584 = vrot.lane.b32.xlu0 %v8043, 32
    %v8585 = vpop.permute.xlu0 %8584
    %8586 = vrot.lane.b32.xlu0 %v8044, 32
    %v8587 = vpop.permute.xlu0 %8586
    %8588 = vrot.lane.b32.xlu0 %v8045, 32
    %v8589 = vpop.permute.xlu0 %8588
    %8590 = vrot.lane.b32.xlu0 %v8046, 32
    %v8591 = vpop.permute.xlu0 %8590
    %8592 = vrot.lane.b32.xlu0 %v8047, 32
    %v8593 = vpop.permute.xlu0 %8592
    %8594 = vrot.lane.b32.xlu0 %v8048, 32
    %v8595 = vpop.permute.xlu0 %8594
    %8596 = vrot.lane.b32.xlu0 %v8049, 32
    %v8597 = vpop.permute.xlu0 %8596
    %8598 = vrot.lane.b32.xlu0 %v8050, 32
    %v8599 = vpop.permute.xlu0 %8598
    %8600 = vrot.lane.b32.xlu0 %v8051, 32
    %v8601 = vpop.permute.xlu0 %8600
    %8602 = vrot.lane.b32.xlu0 %v8052, 32
    %v8603 = vpop.permute.xlu0 %8602
    %8604 = vrot.lane.b32.xlu0 %v8053, 32
    %v8605 = vpop.permute.xlu0 %8604
    %8606 = vrot.lane.b32.xlu0 %v8054, 32
    %v8607 = vpop.permute.xlu0 %8606
    %8608 = vrot.lane.b32.xlu0 %v8055, 32
    %v8609 = vpop.permute.xlu0 %8608
    %8610 = vrot.lane.b32.xlu0 %v8056, 32
    %v8611 = vpop.permute.xlu0 %8610
    %8612 = vrot.lane.b32.xlu0 %v8057, 32
    %v8613 = vpop.permute.xlu0 %8612
    %8614 = vrot.lane.b32.xlu0 %v8058, 32
    %v8615 = vpop.permute.xlu0 %8614
    %8616 = vrot.lane.b32.xlu0 %v8059, 32
    %v8617 = vpop.permute.xlu0 %8616
    %8618 = vrot.lane.b32.xlu0 %v8060, 32
    %v8619 = vpop.permute.xlu0 %8618
    %8620 = vrot.lane.b32.xlu0 %v8061, 32
    %v8621 = vpop.permute.xlu0 %8620
    %8622 = vrot.lane.b32.xlu0 %v8062, 32
    %v8623 = vpop.permute.xlu0 %8622
    %8624 = vrot.lane.b32.xlu0 %v8063, 32
    %v8625 = vpop.permute.xlu0 %8624
    %8626 = vrot.lane.b32.xlu0 %v8064, 32
    %v8627 = vpop.permute.xlu0 %8626
    %8628 = vrot.lane.b32.xlu0 %v8065, 32
    %v8629 = vpop.permute.xlu0 %8628
    %8630 = vrot.lane.b32.xlu0 %v8066, 32
    %v8631 = vpop.permute.xlu0 %8630
    %8632 = vrot.lane.b32.xlu0 %v8067, 32
    %v8633 = vpop.permute.xlu0 %8632
    %8634 = vrot.lane.b32.xlu0 %v8068, 32
    %v8635 = vpop.permute.xlu0 %8634
    %8636 = vrot.lane.b32.xlu0 %v8069, 32
    %v8637 = vpop.permute.xlu0 %8636
    %8638 = vrot.lane.b32.xlu0 %v8070, 32
    %v8639 = vpop.permute.xlu0 %8638
    %8640 = vrot.lane.b32.xlu0 %v8071, 32
    %v8641 = vpop.permute.xlu0 %8640
    %8642 = vrot.lane.b32.xlu0 %v8072, 32
    %v8643 = vpop.permute.xlu0 %8642
    %8644 = vrot.lane.b32.xlu0 %v8073, 32
    %v8645 = vpop.permute.xlu0 %8644
    %8646 = vrot.lane.b32.xlu0 %v8074, 32
    %v8647 = vpop.permute.xlu0 %8646
    %8648 = vrot.lane.b32.xlu0 %v8075, 32
    %v8649 = vpop.permute.xlu0 %8648
    %8650 = vrot.lane.b32.xlu0 %v8076, 32
    %v8651 = vpop.permute.xlu0 %8650
    %8652 = vrot.lane.b32.xlu0 %v8077, 32
    %v8653 = vpop.permute.xlu0 %8652
    %v8718 = vmul.f32 %v7887, %v8527
    %v8719 = vmul.f32 %v7889, %v8529
    %v8720 = vmul.f32 %v7891, %v8531
    %v8721 = vmul.f32 %v7893, %v8533
    %v8722 = vmul.f32 %v7895, %v8535
    %v8723 = vmul.f32 %v7897, %v8537
    %v8724 = vmul.f32 %v7899, %v8539
    %v8725 = vmul.f32 %v7901, %v8541
    %v8726 = vmul.f32 %v7903, %v8543
    %v8727 = vmul.f32 %v7905, %v8545
    %v8728 = vmul.f32 %v7907, %v8547
    %v8729 = vmul.f32 %v7909, %v8549
    %v8730 = vmul.f32 %v7911, %v8551
    %v8731 = vmul.f32 %v7913, %v8553
    %v8732 = vmul.f32 %v7915, %v8555
    %v8733 = vmul.f32 %v7917, %v8557
    %v8734 = vmul.f32 %v7919, %v8559
    %v8735 = vmul.f32 %v7921, %v8561
    %v8736 = vmul.f32 %v7923, %v8563
    %v8737 = vmul.f32 %v7925, %v8565
    %v8738 = vmul.f32 %v7927, %v8567
    %v8739 = vmul.f32 %v7929, %v8569
    %v8740 = vmul.f32 %v7931, %v8571
    %v8741 = vmul.f32 %v7933, %v8573
    %v8742 = vmul.f32 %v7935, %v8575
    %v8743 = vmul.f32 %v7937, %v8577
    %v8744 = vmul.f32 %v7939, %v8579
    %v8745 = vmul.f32 %v7941, %v8581
    %v8746 = vmul.f32 %v7943, %v8583
    %v8747 = vmul.f32 %v7945, %v8585
    %v8748 = vmul.f32 %v7947, %v8587
    %v8749 = vmul.f32 %v7949, %v8589
    %v8750 = vmul.f32 %v7951, %v8591
    %v8751 = vmul.f32 %v7953, %v8593
    %v8752 = vmul.f32 %v7955, %v8595
    %v8753 = vmul.f32 %v7957, %v8597
    %v8754 = vmul.f32 %v7959, %v8599
    %v8755 = vmul.f32 %v7961, %v8601
    %v8756 = vmul.f32 %v7963, %v8603
    %v8757 = vmul.f32 %v7965, %v8605
    %v8758 = vmul.f32 %v7967, %v8607
    %v8759 = vmul.f32 %v7969, %v8609
    %v8760 = vmul.f32 %v7971, %v8611
    %v8761 = vmul.f32 %v7973, %v8613
    %v8762 = vmul.f32 %v7975, %v8615
    %v8763 = vmul.f32 %v7977, %v8617
    %v8764 = vmul.f32 %v7979, %v8619
    %v8765 = vmul.f32 %v7981, %v8621
    %v8766 = vmul.f32 %v7983, %v8623
    %v8767 = vmul.f32 %v7985, %v8625
    %v8768 = vmul.f32 %v7987, %v8627
    %v8769 = vmul.f32 %v7989, %v8629
    %v8770 = vmul.f32 %v7991, %v8631
    %v8771 = vmul.f32 %v7993, %v8633
    %v8772 = vmul.f32 %v7995, %v8635
    %v8773 = vmul.f32 %v7997, %v8637
    %v8774 = vmul.f32 %v7999, %v8639
    %v8775 = vmul.f32 %v8001, %v8641
    %v8776 = vmul.f32 %v8003, %v8643
    %v8777 = vmul.f32 %v8005, %v8645
    %v8778 = vmul.f32 %v8007, %v8647
    %v8779 = vmul.f32 %v8009, %v8649
    %v8780 = vmul.f32 %v8011, %v8651
    %v8781 = vmul.f32 %v8013, %v8653
    %8846 = vrot.lane.b32.xlu0 %v8718, 32
    %v8847 = vpop.permute.xlu0 %8846
    %8848 = vrot.lane.b32.xlu0 %v8719, 32
    %v8849 = vpop.permute.xlu0 %8848
    %8850 = vrot.lane.b32.xlu0 %v8720, 32
    %v8851 = vpop.permute.xlu0 %8850
    %8852 = vrot.lane.b32.xlu0 %v8721, 32
    %v8853 = vpop.permute.xlu0 %8852
    %8854 = vrot.lane.b32.xlu0 %v8722, 32
    %v8855 = vpop.permute.xlu0 %8854
    %8856 = vrot.lane.b32.xlu0 %v8723, 32
    %v8857 = vpop.permute.xlu0 %8856
    %8858 = vrot.lane.b32.xlu0 %v8724, 32
    %v8859 = vpop.permute.xlu0 %8858
    %8860 = vrot.lane.b32.xlu0 %v8725, 32
    %v8861 = vpop.permute.xlu0 %8860
    %8862 = vrot.lane.b32.xlu0 %v8726, 32
    %v8863 = vpop.permute.xlu0 %8862
    %8864 = vrot.lane.b32.xlu0 %v8727, 32
    %v8865 = vpop.permute.xlu0 %8864
    %8866 = vrot.lane.b32.xlu0 %v8728, 32
    %v8867 = vpop.permute.xlu0 %8866
    %8868 = vrot.lane.b32.xlu0 %v8729, 32
    %v8869 = vpop.permute.xlu0 %8868
    %8870 = vrot.lane.b32.xlu0 %v8730, 32
    %v8871 = vpop.permute.xlu0 %8870
    %8872 = vrot.lane.b32.xlu0 %v8731, 32
    %v8873 = vpop.permute.xlu0 %8872
    %8874 = vrot.lane.b32.xlu0 %v8732, 32
    %v8875 = vpop.permute.xlu0 %8874
    %8876 = vrot.lane.b32.xlu0 %v8733, 32
    %v8877 = vpop.permute.xlu0 %8876
    %8878 = vrot.lane.b32.xlu0 %v8734, 32
    %v8879 = vpop.permute.xlu0 %8878
    %8880 = vrot.lane.b32.xlu0 %v8735, 32
    %v8881 = vpop.permute.xlu0 %8880
    %8882 = vrot.lane.b32.xlu0 %v8736, 32
    %v8883 = vpop.permute.xlu0 %8882
    %8884 = vrot.lane.b32.xlu0 %v8737, 32
    %v8885 = vpop.permute.xlu0 %8884
    %8886 = vrot.lane.b32.xlu0 %v8738, 32
    %v8887 = vpop.permute.xlu0 %8886
    %8888 = vrot.lane.b32.xlu0 %v8739, 32
    %v8889 = vpop.permute.xlu0 %8888
    %8890 = vrot.lane.b32.xlu0 %v8740, 32
    %v8891 = vpop.permute.xlu0 %8890
    %8892 = vrot.lane.b32.xlu0 %v8741, 32
    %v8893 = vpop.permute.xlu0 %8892
    %8894 = vrot.lane.b32.xlu0 %v8742, 32
    %v8895 = vpop.permute.xlu0 %8894
    %8896 = vrot.lane.b32.xlu0 %v8743, 32
    %v8897 = vpop.permute.xlu0 %8896
    %8898 = vrot.lane.b32.xlu0 %v8744, 32
    %v8899 = vpop.permute.xlu0 %8898
    %8900 = vrot.lane.b32.xlu0 %v8745, 32
    %v8901 = vpop.permute.xlu0 %8900
    %8902 = vrot.lane.b32.xlu0 %v8746, 32
    %v8903 = vpop.permute.xlu0 %8902
    %8904 = vrot.lane.b32.xlu0 %v8747, 32
    %v8905 = vpop.permute.xlu0 %8904
    %8906 = vrot.lane.b32.xlu0 %v8748, 32
    %v8907 = vpop.permute.xlu0 %8906
    %8908 = vrot.lane.b32.xlu0 %v8749, 32
    %v8909 = vpop.permute.xlu0 %8908
    %8910 = vrot.lane.b32.xlu0 %v8750, 32
    %v8911 = vpop.permute.xlu0 %8910
    %8912 = vrot.lane.b32.xlu0 %v8751, 32
    %v8913 = vpop.permute.xlu0 %8912
    %8914 = vrot.lane.b32.xlu0 %v8752, 32
    %v8915 = vpop.permute.xlu0 %8914
    %8916 = vrot.lane.b32.xlu0 %v8753, 32
    %v8917 = vpop.permute.xlu0 %8916
    %8918 = vrot.lane.b32.xlu0 %v8754, 32
    %v8919 = vpop.permute.xlu0 %8918
    %8920 = vrot.lane.b32.xlu0 %v8755, 32
    %v8921 = vpop.permute.xlu0 %8920
    %8922 = vrot.lane.b32.xlu0 %v8756, 32
    %v8923 = vpop.permute.xlu0 %8922
    %8924 = vrot.lane.b32.xlu0 %v8757, 32
    %v8925 = vpop.permute.xlu0 %8924
    %8926 = vrot.lane.b32.xlu0 %v8758, 32
    %v8927 = vpop.permute.xlu0 %8926
    %8928 = vrot.lane.b32.xlu0 %v8759, 32
    %v8929 = vpop.permute.xlu0 %8928
    %8930 = vrot.lane.b32.xlu0 %v8760, 32
    %v8931 = vpop.permute.xlu0 %8930
    %8932 = vrot.lane.b32.xlu0 %v8761, 32
    %v8933 = vpop.permute.xlu0 %8932
    %8934 = vrot.lane.b32.xlu0 %v8762, 32
    %v8935 = vpop.permute.xlu0 %8934
    %8936 = vrot.lane.b32.xlu0 %v8763, 32
    %v8937 = vpop.permute.xlu0 %8936
    %8938 = vrot.lane.b32.xlu0 %v8764, 32
    %v8939 = vpop.permute.xlu0 %8938
    %8940 = vrot.lane.b32.xlu0 %v8765, 32
    %v8941 = vpop.permute.xlu0 %8940
    %8942 = vrot.lane.b32.xlu0 %v8766, 32
    %v8943 = vpop.permute.xlu0 %8942
    %8944 = vrot.lane.b32.xlu0 %v8767, 32
    %v8945 = vpop.permute.xlu0 %8944
    %8946 = vrot.lane.b32.xlu0 %v8768, 32
    %v8947 = vpop.permute.xlu0 %8946
    %8948 = vrot.lane.b32.xlu0 %v8769, 32
    %v8949 = vpop.permute.xlu0 %8948
    %8950 = vrot.lane.b32.xlu0 %v8770, 32
    %v8951 = vpop.permute.xlu0 %8950
    %8952 = vrot.lane.b32.xlu0 %v8771, 32
    %v8953 = vpop.permute.xlu0 %8952
    %8954 = vrot.lane.b32.xlu0 %v8772, 32
    %v8955 = vpop.permute.xlu0 %8954
    %8956 = vrot.lane.b32.xlu0 %v8773, 32
    %v8957 = vpop.permute.xlu0 %8956
    %8958 = vrot.lane.b32.xlu0 %v8774, 32
    %v8959 = vpop.permute.xlu0 %8958
    %8960 = vrot.lane.b32.xlu0 %v8775, 32
    %v8961 = vpop.permute.xlu0 %8960
    %8962 = vrot.lane.b32.xlu0 %v8776, 32
    %v8963 = vpop.permute.xlu0 %8962
    %8964 = vrot.lane.b32.xlu0 %v8777, 32
    %v8965 = vpop.permute.xlu0 %8964
    %8966 = vrot.lane.b32.xlu0 %v8778, 32
    %v8967 = vpop.permute.xlu0 %8966
    %8968 = vrot.lane.b32.xlu0 %v8779, 32
    %v8969 = vpop.permute.xlu0 %8968
    %8970 = vrot.lane.b32.xlu0 %v8780, 32
    %v8971 = vpop.permute.xlu0 %8970
    %8972 = vrot.lane.b32.xlu0 %v8781, 32
    %v8973 = vpop.permute.xlu0 %8972
    %v9038 = vadd.f32 %v8398, %v8847
    %v9039 = vadd.f32 %v8399, %v8849
    %v9040 = vadd.f32 %v8400, %v8851
    %v9041 = vadd.f32 %v8401, %v8853
    %v9042 = vadd.f32 %v8402, %v8855
    %v9043 = vadd.f32 %v8403, %v8857
    %v9044 = vadd.f32 %v8404, %v8859
    %v9045 = vadd.f32 %v8405, %v8861
    %v9046 = vadd.f32 %v8406, %v8863
    %v9047 = vadd.f32 %v8407, %v8865
    %v9048 = vadd.f32 %v8408, %v8867
    %v9049 = vadd.f32 %v8409, %v8869
    %v9050 = vadd.f32 %v8410, %v8871
    %v9051 = vadd.f32 %v8411, %v8873
    %v9052 = vadd.f32 %v8412, %v8875
    %v9053 = vadd.f32 %v8413, %v8877
    %v9054 = vadd.f32 %v8414, %v8879
    %v9055 = vadd.f32 %v8415, %v8881
    %v9056 = vadd.f32 %v8416, %v8883
    %v9057 = vadd.f32 %v8417, %v8885
    %v9058 = vadd.f32 %v8418, %v8887
    %v9059 = vadd.f32 %v8419, %v8889
    %v9060 = vadd.f32 %v8420, %v8891
    %v9061 = vadd.f32 %v8421, %v8893
    %v9062 = vadd.f32 %v8422, %v8895
    %v9063 = vadd.f32 %v8423, %v8897
    %v9064 = vadd.f32 %v8424, %v8899
    %v9065 = vadd.f32 %v8425, %v8901
    %v9066 = vadd.f32 %v8426, %v8903
    %v9067 = vadd.f32 %v8427, %v8905
    %v9068 = vadd.f32 %v8428, %v8907
    %v9069 = vadd.f32 %v8429, %v8909
    %v9070 = vadd.f32 %v8430, %v8911
    %v9071 = vadd.f32 %v8431, %v8913
    %v9072 = vadd.f32 %v8432, %v8915
    %v9073 = vadd.f32 %v8433, %v8917
    %v9074 = vadd.f32 %v8434, %v8919
    %v9075 = vadd.f32 %v8435, %v8921
    %v9076 = vadd.f32 %v8436, %v8923
    %v9077 = vadd.f32 %v8437, %v8925
    %v9078 = vadd.f32 %v8438, %v8927
    %v9079 = vadd.f32 %v8439, %v8929
    %v9080 = vadd.f32 %v8440, %v8931
    %v9081 = vadd.f32 %v8441, %v8933
    %v9082 = vadd.f32 %v8442, %v8935
    %v9083 = vadd.f32 %v8443, %v8937
    %v9084 = vadd.f32 %v8444, %v8939
    %v9085 = vadd.f32 %v8445, %v8941
    %v9086 = vadd.f32 %v8446, %v8943
    %v9087 = vadd.f32 %v8447, %v8945
    %v9088 = vadd.f32 %v8448, %v8947
    %v9089 = vadd.f32 %v8449, %v8949
    %v9090 = vadd.f32 %v8450, %v8951
    %v9091 = vadd.f32 %v8451, %v8953
    %v9092 = vadd.f32 %v8452, %v8955
    %v9093 = vadd.f32 %v8453, %v8957
    %v9094 = vadd.f32 %v8454, %v8959
    %v9095 = vadd.f32 %v8455, %v8961
    %v9096 = vadd.f32 %v8456, %v8963
    %v9097 = vadd.f32 %v8457, %v8965
    %v9098 = vadd.f32 %v8458, %v8967
    %v9099 = vadd.f32 %v8459, %v8969
    %v9100 = vadd.f32 %v8460, %v8971
    %v9101 = vadd.f32 %v8461, %v8973
    %v9102 = vtanh.pop %v9038
    %v9103 = vtanh.pop %v9039
    %v9104 = vtanh.pop %v9040
    %v9105 = vtanh.pop %v9041
    %v9106 = vtanh.pop %v9042
    %v9107 = vtanh.pop %v9043
    %v9108 = vtanh.pop %v9044
    %v9109 = vtanh.pop %v9045
    %v9110 = vtanh.pop %v9046
    %v9111 = vtanh.pop %v9047
    %v9112 = vtanh.pop %v9048
    %v9113 = vtanh.pop %v9049
    %v9114 = vtanh.pop %v9050
    %v9115 = vtanh.pop %v9051
    %v9116 = vtanh.pop %v9052
    %v9117 = vtanh.pop %v9053
    %v9118 = vtanh.pop %v9054
    %v9119 = vtanh.pop %v9055
    %v9120 = vtanh.pop %v9056
    %v9121 = vtanh.pop %v9057
    %v9122 = vtanh.pop %v9058
    %v9123 = vtanh.pop %v9059
    %v9124 = vtanh.pop %v9060
    %v9125 = vtanh.pop %v9061
    %v9126 = vtanh.pop %v9062
    %v9127 = vtanh.pop %v9063
    %v9128 = vtanh.pop %v9064
    %v9129 = vtanh.pop %v9065
    %v9130 = vtanh.pop %v9066
    %v9131 = vtanh.pop %v9067
    %v9132 = vtanh.pop %v9068
    %v9133 = vtanh.pop %v9069
    %v9134 = vtanh.pop %v9070
    %v9135 = vtanh.pop %v9071
    %v9136 = vtanh.pop %v9072
    %v9137 = vtanh.pop %v9073
    %v9138 = vtanh.pop %v9074
    %v9139 = vtanh.pop %v9075
    %v9140 = vtanh.pop %v9076
    %v9141 = vtanh.pop %v9077
    %v9142 = vtanh.pop %v9078
    %v9143 = vtanh.pop %v9079
    %v9144 = vtanh.pop %v9080
    %v9145 = vtanh.pop %v9081
    %v9146 = vtanh.pop %v9082
    %v9147 = vtanh.pop %v9083
    %v9148 = vtanh.pop %v9084
    %v9149 = vtanh.pop %v9085
    %v9150 = vtanh.pop %v9086
    %v9151 = vtanh.pop %v9087
    %v9152 = vtanh.pop %v9088
    %v9153 = vtanh.pop %v9089
    %v9154 = vtanh.pop %v9090
    %v9155 = vtanh.pop %v9091
    %v9156 = vtanh.pop %v9092
    %v9157 = vtanh.pop %v9093
    %v9158 = vtanh.pop %v9094
    %v9159 = vtanh.pop %v9095
    %v9160 = vtanh.pop %v9096
    %v9161 = vtanh.pop %v9097
    %v9162 = vtanh.pop %v9098
    %v9163 = vtanh.pop %v9099
    %v9164 = vtanh.pop %v9100
    %v9165 = vtanh.pop %v9101
    %9230 = vrot.lane.b32.xlu0 %v9102, 32
    %v9231 = vpop.permute.xlu0 %9230
    %9232 = vrot.lane.b32.xlu0 %v9103, 32
    %v9233 = vpop.permute.xlu0 %9232
    %9234 = vrot.lane.b32.xlu0 %v9104, 32
    %v9235 = vpop.permute.xlu0 %9234
    %9236 = vrot.lane.b32.xlu0 %v9105, 32
    %v9237 = vpop.permute.xlu0 %9236
    %9238 = vrot.lane.b32.xlu0 %v9106, 32
    %v9239 = vpop.permute.xlu0 %9238
    %9240 = vrot.lane.b32.xlu0 %v9107, 32
    %v9241 = vpop.permute.xlu0 %9240
    %9242 = vrot.lane.b32.xlu0 %v9108, 32
    %v9243 = vpop.permute.xlu0 %9242
    %9244 = vrot.lane.b32.xlu0 %v9109, 32
    %v9245 = vpop.permute.xlu0 %9244
    %9246 = vrot.lane.b32.xlu0 %v9110, 32
    %v9247 = vpop.permute.xlu0 %9246
    %9248 = vrot.lane.b32.xlu0 %v9111, 32
    %v9249 = vpop.permute.xlu0 %9248
    %9250 = vrot.lane.b32.xlu0 %v9112, 32
    %v9251 = vpop.permute.xlu0 %9250
    %9252 = vrot.lane.b32.xlu0 %v9113, 32
    %v9253 = vpop.permute.xlu0 %9252
    %9254 = vrot.lane.b32.xlu0 %v9114, 32
    %v9255 = vpop.permute.xlu0 %9254
    %9256 = vrot.lane.b32.xlu0 %v9115, 32
    %v9257 = vpop.permute.xlu0 %9256
    %9258 = vrot.lane.b32.xlu0 %v9116, 32
    %v9259 = vpop.permute.xlu0 %9258
    %9260 = vrot.lane.b32.xlu0 %v9117, 32
    %v9261 = vpop.permute.xlu0 %9260
    %9262 = vrot.lane.b32.xlu0 %v9118, 32
    %v9263 = vpop.permute.xlu0 %9262
    %9264 = vrot.lane.b32.xlu0 %v9119, 32
    %v9265 = vpop.permute.xlu0 %9264
    %9266 = vrot.lane.b32.xlu0 %v9120, 32
    %v9267 = vpop.permute.xlu0 %9266
    %9268 = vrot.lane.b32.xlu0 %v9121, 32
    %v9269 = vpop.permute.xlu0 %9268
    %9270 = vrot.lane.b32.xlu0 %v9122, 32
    %v9271 = vpop.permute.xlu0 %9270
    %9272 = vrot.lane.b32.xlu0 %v9123, 32
    %v9273 = vpop.permute.xlu0 %9272
    %9274 = vrot.lane.b32.xlu0 %v9124, 32
    %v9275 = vpop.permute.xlu0 %9274
    %9276 = vrot.lane.b32.xlu0 %v9125, 32
    %v9277 = vpop.permute.xlu0 %9276
    %9278 = vrot.lane.b32.xlu0 %v9126, 32
    %v9279 = vpop.permute.xlu0 %9278
    %9280 = vrot.lane.b32.xlu0 %v9127, 32
    %v9281 = vpop.permute.xlu0 %9280
    %9282 = vrot.lane.b32.xlu0 %v9128, 32
    %v9283 = vpop.permute.xlu0 %9282
    %9284 = vrot.lane.b32.xlu0 %v9129, 32
    %v9285 = vpop.permute.xlu0 %9284
    %9286 = vrot.lane.b32.xlu0 %v9130, 32
    %v9287 = vpop.permute.xlu0 %9286
    %9288 = vrot.lane.b32.xlu0 %v9131, 32
    %v9289 = vpop.permute.xlu0 %9288
    %9290 = vrot.lane.b32.xlu0 %v9132, 32
    %v9291 = vpop.permute.xlu0 %9290
    %9292 = vrot.lane.b32.xlu0 %v9133, 32
    %v9293 = vpop.permute.xlu0 %9292
    %9294 = vrot.lane.b32.xlu0 %v9134, 32
    %v9295 = vpop.permute.xlu0 %9294
    %9296 = vrot.lane.b32.xlu0 %v9135, 32
    %v9297 = vpop.permute.xlu0 %9296
    %9298 = vrot.lane.b32.xlu0 %v9136, 32
    %v9299 = vpop.permute.xlu0 %9298
    %9300 = vrot.lane.b32.xlu0 %v9137, 32
    %v9301 = vpop.permute.xlu0 %9300
    %9302 = vrot.lane.b32.xlu0 %v9138, 32
    %v9303 = vpop.permute.xlu0 %9302
    %9304 = vrot.lane.b32.xlu0 %v9139, 32
    %v9305 = vpop.permute.xlu0 %9304
    %9306 = vrot.lane.b32.xlu0 %v9140, 32
    %v9307 = vpop.permute.xlu0 %9306
    %9308 = vrot.lane.b32.xlu0 %v9141, 32
    %v9309 = vpop.permute.xlu0 %9308
    %9310 = vrot.lane.b32.xlu0 %v9142, 32
    %v9311 = vpop.permute.xlu0 %9310
    %9312 = vrot.lane.b32.xlu0 %v9143, 32
    %v9313 = vpop.permute.xlu0 %9312
    %9314 = vrot.lane.b32.xlu0 %v9144, 32
    %v9315 = vpop.permute.xlu0 %9314
    %9316 = vrot.lane.b32.xlu0 %v9145, 32
    %v9317 = vpop.permute.xlu0 %9316
    %9318 = vrot.lane.b32.xlu0 %v9146, 32
    %v9319 = vpop.permute.xlu0 %9318
    %9320 = vrot.lane.b32.xlu0 %v9147, 32
    %v9321 = vpop.permute.xlu0 %9320
    %9322 = vrot.lane.b32.xlu0 %v9148, 32
    %v9323 = vpop.permute.xlu0 %9322
    %9324 = vrot.lane.b32.xlu0 %v9149, 32
    %v9325 = vpop.permute.xlu0 %9324
    %9326 = vrot.lane.b32.xlu0 %v9150, 32
    %v9327 = vpop.permute.xlu0 %9326
    %9328 = vrot.lane.b32.xlu0 %v9151, 32
    %v9329 = vpop.permute.xlu0 %9328
    %9330 = vrot.lane.b32.xlu0 %v9152, 32
    %v9331 = vpop.permute.xlu0 %9330
    %9332 = vrot.lane.b32.xlu0 %v9153, 32
    %v9333 = vpop.permute.xlu0 %9332
    %9334 = vrot.lane.b32.xlu0 %v9154, 32
    %v9335 = vpop.permute.xlu0 %9334
    %9336 = vrot.lane.b32.xlu0 %v9155, 32
    %v9337 = vpop.permute.xlu0 %9336
    %9338 = vrot.lane.b32.xlu0 %v9156, 32
    %v9339 = vpop.permute.xlu0 %9338
    %9340 = vrot.lane.b32.xlu0 %v9157, 32
    %v9341 = vpop.permute.xlu0 %9340
    %9342 = vrot.lane.b32.xlu0 %v9158, 32
    %v9343 = vpop.permute.xlu0 %9342
    %9344 = vrot.lane.b32.xlu0 %v9159, 32
    %v9345 = vpop.permute.xlu0 %9344
    %9346 = vrot.lane.b32.xlu0 %v9160, 32
    %v9347 = vpop.permute.xlu0 %9346
    %9348 = vrot.lane.b32.xlu0 %v9161, 32
    %v9349 = vpop.permute.xlu0 %9348
    %9350 = vrot.lane.b32.xlu0 %v9162, 32
    %v9351 = vpop.permute.xlu0 %9350
    %9352 = vrot.lane.b32.xlu0 %v9163, 32
    %v9353 = vpop.permute.xlu0 %9352
    %9354 = vrot.lane.b32.xlu0 %v9164, 32
    %v9355 = vpop.permute.xlu0 %9354
    %9356 = vrot.lane.b32.xlu0 %v9165, 32
    %v9357 = vpop.permute.xlu0 %9356
    %v9422 = vmul.f32 %v7887, %v9231
    %v9423 = vmul.f32 %v7889, %v9233
    %v9424 = vmul.f32 %v7891, %v9235
    %v9425 = vmul.f32 %v7893, %v9237
    %v9426 = vmul.f32 %v7895, %v9239
    %v9427 = vmul.f32 %v7897, %v9241
    %v9428 = vmul.f32 %v7899, %v9243
    %v9429 = vmul.f32 %v7901, %v9245
    %v9430 = vmul.f32 %v7903, %v9247
    %v9431 = vmul.f32 %v7905, %v9249
    %v9432 = vmul.f32 %v7907, %v9251
    %v9433 = vmul.f32 %v7909, %v9253
    %v9434 = vmul.f32 %v7911, %v9255
    %v9435 = vmul.f32 %v7913, %v9257
    %v9436 = vmul.f32 %v7915, %v9259
    %v9437 = vmul.f32 %v7917, %v9261
    %v9438 = vmul.f32 %v7919, %v9263
    %v9439 = vmul.f32 %v7921, %v9265
    %v9440 = vmul.f32 %v7923, %v9267
    %v9441 = vmul.f32 %v7925, %v9269
    %v9442 = vmul.f32 %v7927, %v9271
    %v9443 = vmul.f32 %v7929, %v9273
    %v9444 = vmul.f32 %v7931, %v9275
    %v9445 = vmul.f32 %v7933, %v9277
    %v9446 = vmul.f32 %v7935, %v9279
    %v9447 = vmul.f32 %v7937, %v9281
    %v9448 = vmul.f32 %v7939, %v9283
    %v9449 = vmul.f32 %v7941, %v9285
    %v9450 = vmul.f32 %v7943, %v9287
    %v9451 = vmul.f32 %v7945, %v9289
    %v9452 = vmul.f32 %v7947, %v9291
    %v9453 = vmul.f32 %v7949, %v9293
    %v9454 = vmul.f32 %v7951, %v9295
    %v9455 = vmul.f32 %v7953, %v9297
    %v9456 = vmul.f32 %v7955, %v9299
    %v9457 = vmul.f32 %v7957, %v9301
    %v9458 = vmul.f32 %v7959, %v9303
    %v9459 = vmul.f32 %v7961, %v9305
    %v9460 = vmul.f32 %v7963, %v9307
    %v9461 = vmul.f32 %v7965, %v9309
    %v9462 = vmul.f32 %v7967, %v9311
    %v9463 = vmul.f32 %v7969, %v9313
    %v9464 = vmul.f32 %v7971, %v9315
    %v9465 = vmul.f32 %v7973, %v9317
    %v9466 = vmul.f32 %v7975, %v9319
    %v9467 = vmul.f32 %v7977, %v9321
    %v9468 = vmul.f32 %v7979, %v9323
    %v9469 = vmul.f32 %v7981, %v9325
    %v9470 = vmul.f32 %v7983, %v9327
    %v9471 = vmul.f32 %v7985, %v9329
    %v9472 = vmul.f32 %v7987, %v9331
    %v9473 = vmul.f32 %v7989, %v9333
    %v9474 = vmul.f32 %v7991, %v9335
    %v9475 = vmul.f32 %v7993, %v9337
    %v9476 = vmul.f32 %v7995, %v9339
    %v9477 = vmul.f32 %v7997, %v9341
    %v9478 = vmul.f32 %v7999, %v9343
    %v9479 = vmul.f32 %v8001, %v9345
    %v9480 = vmul.f32 %v8003, %v9347
    %v9481 = vmul.f32 %v8005, %v9349
    %v9482 = vmul.f32 %v8007, %v9351
    %v9483 = vmul.f32 %v8009, %v9353
    %v9484 = vmul.f32 %v8011, %v9355
    %v9485 = vmul.f32 %v8013, %v9357
    %9550 = vrot.lane.b32.xlu0 %v9038, 96
    %v9551 = vpop.permute.xlu0 %9550
    %9552 = vrot.lane.b32.xlu0 %v9039, 96
    %v9553 = vpop.permute.xlu0 %9552
    %9554 = vrot.lane.b32.xlu0 %v9040, 96
    %v9555 = vpop.permute.xlu0 %9554
    %9556 = vrot.lane.b32.xlu0 %v9041, 96
    %v9557 = vpop.permute.xlu0 %9556
    %9558 = vrot.lane.b32.xlu0 %v9042, 96
    %v9559 = vpop.permute.xlu0 %9558
    %9560 = vrot.lane.b32.xlu0 %v9043, 96
    %v9561 = vpop.permute.xlu0 %9560
    %9562 = vrot.lane.b32.xlu0 %v9044, 96
    %v9563 = vpop.permute.xlu0 %9562
    %9564 = vrot.lane.b32.xlu0 %v9045, 96
    %v9565 = vpop.permute.xlu0 %9564
    %9566 = vrot.lane.b32.xlu0 %v9046, 96
    %v9567 = vpop.permute.xlu0 %9566
    %9568 = vrot.lane.b32.xlu0 %v9047, 96
    %v9569 = vpop.permute.xlu0 %9568
    %9570 = vrot.lane.b32.xlu0 %v9048, 96
    %v9571 = vpop.permute.xlu0 %9570
    %9572 = vrot.lane.b32.xlu0 %v9049, 96
    %v9573 = vpop.permute.xlu0 %9572
    %9574 = vrot.lane.b32.xlu0 %v9050, 96
    %v9575 = vpop.permute.xlu0 %9574
    %9576 = vrot.lane.b32.xlu0 %v9051, 96
    %v9577 = vpop.permute.xlu0 %9576
    %9578 = vrot.lane.b32.xlu0 %v9052, 96
    %v9579 = vpop.permute.xlu0 %9578
    %9580 = vrot.lane.b32.xlu0 %v9053, 96
    %v9581 = vpop.permute.xlu0 %9580
    %9582 = vrot.lane.b32.xlu0 %v9054, 96
    %v9583 = vpop.permute.xlu0 %9582
    %9584 = vrot.lane.b32.xlu0 %v9055, 96
    %v9585 = vpop.permute.xlu0 %9584
    %9586 = vrot.lane.b32.xlu0 %v9056, 96
    %v9587 = vpop.permute.xlu0 %9586
    %9588 = vrot.lane.b32.xlu0 %v9057, 96
    %v9589 = vpop.permute.xlu0 %9588
    %9590 = vrot.lane.b32.xlu0 %v9058, 96
    %v9591 = vpop.permute.xlu0 %9590
    %9592 = vrot.lane.b32.xlu0 %v9059, 96
    %v9593 = vpop.permute.xlu0 %9592
    %9594 = vrot.lane.b32.xlu0 %v9060, 96
    %v9595 = vpop.permute.xlu0 %9594
    %9596 = vrot.lane.b32.xlu0 %v9061, 96
    %v9597 = vpop.permute.xlu0 %9596
    %9598 = vrot.lane.b32.xlu0 %v9062, 96
    %v9599 = vpop.permute.xlu0 %9598
    %9600 = vrot.lane.b32.xlu0 %v9063, 96
    %v9601 = vpop.permute.xlu0 %9600
    %9602 = vrot.lane.b32.xlu0 %v9064, 96
    %v9603 = vpop.permute.xlu0 %9602
    %9604 = vrot.lane.b32.xlu0 %v9065, 96
    %v9605 = vpop.permute.xlu0 %9604
    %9606 = vrot.lane.b32.xlu0 %v9066, 96
    %v9607 = vpop.permute.xlu0 %9606
    %9608 = vrot.lane.b32.xlu0 %v9067, 96
    %v9609 = vpop.permute.xlu0 %9608
    %9610 = vrot.lane.b32.xlu0 %v9068, 96
    %v9611 = vpop.permute.xlu0 %9610
    %9612 = vrot.lane.b32.xlu0 %v9069, 96
    %v9613 = vpop.permute.xlu0 %9612
    %9614 = vrot.lane.b32.xlu0 %v9070, 96
    %v9615 = vpop.permute.xlu0 %9614
    %9616 = vrot.lane.b32.xlu0 %v9071, 96
    %v9617 = vpop.permute.xlu0 %9616
    %9618 = vrot.lane.b32.xlu0 %v9072, 96
    %v9619 = vpop.permute.xlu0 %9618
    %9620 = vrot.lane.b32.xlu0 %v9073, 96
    %v9621 = vpop.permute.xlu0 %9620
    %9622 = vrot.lane.b32.xlu0 %v9074, 96
    %v9623 = vpop.permute.xlu0 %9622
    %9624 = vrot.lane.b32.xlu0 %v9075, 96
    %v9625 = vpop.permute.xlu0 %9624
    %9626 = vrot.lane.b32.xlu0 %v9076, 96
    %v9627 = vpop.permute.xlu0 %9626
    %9628 = vrot.lane.b32.xlu0 %v9077, 96
    %v9629 = vpop.permute.xlu0 %9628
    %9630 = vrot.lane.b32.xlu0 %v9078, 96
    %v9631 = vpop.permute.xlu0 %9630
    %9632 = vrot.lane.b32.xlu0 %v9079, 96
    %v9633 = vpop.permute.xlu0 %9632
    %9634 = vrot.lane.b32.xlu0 %v9080, 96
    %v9635 = vpop.permute.xlu0 %9634
    %9636 = vrot.lane.b32.xlu0 %v9081, 96
    %v9637 = vpop.permute.xlu0 %9636
    %9638 = vrot.lane.b32.xlu0 %v9082, 96
    %v9639 = vpop.permute.xlu0 %9638
    %9640 = vrot.lane.b32.xlu0 %v9083, 96
    %v9641 = vpop.permute.xlu0 %9640
    %9642 = vrot.lane.b32.xlu0 %v9084, 96
    %v9643 = vpop.permute.xlu0 %9642
    %9644 = vrot.lane.b32.xlu0 %v9085, 96
    %v9645 = vpop.permute.xlu0 %9644
    %9646 = vrot.lane.b32.xlu0 %v9086, 96
    %v9647 = vpop.permute.xlu0 %9646
    %9648 = vrot.lane.b32.xlu0 %v9087, 96
    %v9649 = vpop.permute.xlu0 %9648
    %9650 = vrot.lane.b32.xlu0 %v9088, 96
    %v9651 = vpop.permute.xlu0 %9650
    %9652 = vrot.lane.b32.xlu0 %v9089, 96
    %v9653 = vpop.permute.xlu0 %9652
    %9654 = vrot.lane.b32.xlu0 %v9090, 96
    %v9655 = vpop.permute.xlu0 %9654
    %9656 = vrot.lane.b32.xlu0 %v9091, 96
    %v9657 = vpop.permute.xlu0 %9656
    %9658 = vrot.lane.b32.xlu0 %v9092, 96
    %v9659 = vpop.permute.xlu0 %9658
    %9660 = vrot.lane.b32.xlu0 %v9093, 96
    %v9661 = vpop.permute.xlu0 %9660
    %9662 = vrot.lane.b32.xlu0 %v9094, 96
    %v9663 = vpop.permute.xlu0 %9662
    %9664 = vrot.lane.b32.xlu0 %v9095, 96
    %v9665 = vpop.permute.xlu0 %9664
    %9666 = vrot.lane.b32.xlu0 %v9096, 96
    %v9667 = vpop.permute.xlu0 %9666
    %9668 = vrot.lane.b32.xlu0 %v9097, 96
    %v9669 = vpop.permute.xlu0 %9668
    %9670 = vrot.lane.b32.xlu0 %v9098, 96
    %v9671 = vpop.permute.xlu0 %9670
    %9672 = vrot.lane.b32.xlu0 %v9099, 96
    %v9673 = vpop.permute.xlu0 %9672
    %9674 = vrot.lane.b32.xlu0 %v9100, 96
    %v9675 = vpop.permute.xlu0 %9674
    %9676 = vrot.lane.b32.xlu0 %v9101, 96
    %v9677 = vpop.permute.xlu0 %9676
    %9742 = vst.msk [vmem:[#allocation5] sm:$0xff] %vm6747, %v9551
    %9743 = vst.msk [vmem:[#allocation5 + $0x8] sm:$0xff] %vm6747, %v9553
    %9744 = vst.msk [vmem:[#allocation5 + $0x10] sm:$0xff] %vm6747, %v9555
    %9745 = vst.msk [vmem:[#allocation5 + $0x18] sm:$0xff] %vm6747, %v9557
    %9746 = vst.msk [vmem:[#allocation5 + $0x20] sm:$0xff] %vm6747, %v9559
    %9747 = vst.msk [vmem:[#allocation5 + $0x28] sm:$0xff] %vm6747, %v9561
    %9748 = vst.msk [vmem:[#allocation5 + $0x30] sm:$0xff] %vm6747, %v9563
    %9749 = vst.msk [vmem:[#allocation5 + $0x38] sm:$0xff] %vm6747, %v9565
    %9750 = vst.msk [vmem:[#allocation5 + $0x40] sm:$0xff] %vm6747, %v9567
    %9751 = vst.msk [vmem:[#allocation5 + $0x48] sm:$0xff] %vm6747, %v9569
    %9752 = vst.msk [vmem:[#allocation5 + $0x50] sm:$0xff] %vm6747, %v9571
    %9753 = vst.msk [vmem:[#allocation5 + $0x58] sm:$0xff] %vm6747, %v9573
    %9754 = vst.msk [vmem:[#allocation5 + $0x60] sm:$0xff] %vm6747, %v9575
    %9755 = vst.msk [vmem:[#allocation5 + $0x68] sm:$0xff] %vm6747, %v9577
    %9756 = vst.msk [vmem:[#allocation5 + $0x70] sm:$0xff] %vm6747, %v9579
    %9757 = vst.msk [vmem:[#allocation5 + $0x78] sm:$0xff] %vm6747, %v9581
    %9758 = vst.msk [vmem:[#allocation5 + $0x80] sm:$0xff] %vm6747, %v9583
    %9759 = vst.msk [vmem:[#allocation5 + $0x88] sm:$0xff] %vm6747, %v9585
    %9760 = vst.msk [vmem:[#allocation5 + $0x90] sm:$0xff] %vm6747, %v9587
    %9761 = vst.msk [vmem:[#allocation5 + $0x98] sm:$0xff] %vm6747, %v9589
    %9762 = vst.msk [vmem:[#allocation5 + $0xa0] sm:$0xff] %vm6747, %v9591
    %9763 = vst.msk [vmem:[#allocation5 + $0xa8] sm:$0xff] %vm6747, %v9593
    %9764 = vst.msk [vmem:[#allocation5 + $0xb0] sm:$0xff] %vm6747, %v9595
    %9765 = vst.msk [vmem:[#allocation5 + $0xb8] sm:$0xff] %vm6747, %v9597
    %9766 = vst.msk [vmem:[#allocation5 + $0xc0] sm:$0xff] %vm6747, %v9599
    %9767 = vst.msk [vmem:[#allocation5 + $0xc8] sm:$0xff] %vm6747, %v9601
    %9768 = vst.msk [vmem:[#allocation5 + $0xd0] sm:$0xff] %vm6747, %v9603
    %9769 = vst.msk [vmem:[#allocation5 + $0xd8] sm:$0xff] %vm6747, %v9605
    %9770 = vst.msk [vmem:[#allocation5 + $0xe0] sm:$0xff] %vm6747, %v9607
    %9771 = vst.msk [vmem:[#allocation5 + $0xe8] sm:$0xff] %vm6747, %v9609
    %9772 = vst.msk [vmem:[#allocation5 + $0xf0] sm:$0xff] %vm6747, %v9611
    %9773 = vst.msk [vmem:[#allocation5 + $0xf8] sm:$0xff] %vm6747, %v9613
    %9774 = vst.msk [vmem:[#allocation5 + $0x100] sm:$0xff] %vm6747, %v9615
    %9775 = vst.msk [vmem:[#allocation5 + $0x108] sm:$0xff] %vm6747, %v9617
    %9776 = vst.msk [vmem:[#allocation5 + $0x110] sm:$0xff] %vm6747, %v9619
    %9777 = vst.msk [vmem:[#allocation5 + $0x118] sm:$0xff] %vm6747, %v9621
    %9778 = vst.msk [vmem:[#allocation5 + $0x120] sm:$0xff] %vm6747, %v9623
    %9779 = vst.msk [vmem:[#allocation5 + $0x128] sm:$0xff] %vm6747, %v9625
    %9780 = vst.msk [vmem:[#allocation5 + $0x130] sm:$0xff] %vm6747, %v9627
    %9781 = vst.msk [vmem:[#allocation5 + $0x138] sm:$0xff] %vm6747, %v9629
    %9782 = vst.msk [vmem:[#allocation5 + $0x140] sm:$0xff] %vm6747, %v9631
    %9783 = vst.msk [vmem:[#allocation5 + $0x148] sm:$0xff] %vm6747, %v9633
    %9784 = vst.msk [vmem:[#allocation5 + $0x150] sm:$0xff] %vm6747, %v9635
    %9785 = vst.msk [vmem:[#allocation5 + $0x158] sm:$0xff] %vm6747, %v9637
    %9786 = vst.msk [vmem:[#allocation5 + $0x160] sm:$0xff] %vm6747, %v9639
    %9787 = vst.msk [vmem:[#allocation5 + $0x168] sm:$0xff] %vm6747, %v9641
    %9788 = vst.msk [vmem:[#allocation5 + $0x170] sm:$0xff] %vm6747, %v9643
    %9789 = vst.msk [vmem:[#allocation5 + $0x178] sm:$0xff] %vm6747, %v9645
    %9790 = vst.msk [vmem:[#allocation5 + $0x180] sm:$0xff] %vm6747, %v9647
    %9791 = vst.msk [vmem:[#allocation5 + $0x188] sm:$0xff] %vm6747, %v9649
    %9792 = vst.msk [vmem:[#allocation5 + $0x190] sm:$0xff] %vm6747, %v9651
    %9793 = vst.msk [vmem:[#allocation5 + $0x198] sm:$0xff] %vm6747, %v9653
    %9794 = vst.msk [vmem:[#allocation5 + $0x1a0] sm:$0xff] %vm6747, %v9655
    %9795 = vst.msk [vmem:[#allocation5 + $0x1a8] sm:$0xff] %vm6747, %v9657
    %9796 = vst.msk [vmem:[#allocation5 + $0x1b0] sm:$0xff] %vm6747, %v9659
    %9797 = vst.msk [vmem:[#allocation5 + $0x1b8] sm:$0xff] %vm6747, %v9661
    %9798 = vst.msk [vmem:[#allocation5 + $0x1c0] sm:$0xff] %vm6747, %v9663
    %9799 = vst.msk [vmem:[#allocation5 + $0x1c8] sm:$0xff] %vm6747, %v9665
    %9800 = vst.msk [vmem:[#allocation5 + $0x1d0] sm:$0xff] %vm6747, %v9667
    %9801 = vst.msk [vmem:[#allocation5 + $0x1d8] sm:$0xff] %vm6747, %v9669
    %9802 = vst.msk [vmem:[#allocation5 + $0x1e0] sm:$0xff] %vm6747, %v9671
    %9803 = vst.msk [vmem:[#allocation5 + $0x1e8] sm:$0xff] %vm6747, %v9673
    %9804 = vst.msk [vmem:[#allocation5 + $0x1f0] sm:$0xff] %vm6747, %v9675
    %9805 = vst.msk [vmem:[#allocation5 + $0x1f8] sm:$0xff] %vm6747, %v9677
    %9870 = vrot.lane.b32.xlu0 %v9422, 64
    %v9871 = vpop.permute.xlu0 %9870
    %9872 = vrot.lane.b32.xlu0 %v9423, 64
    %v9873 = vpop.permute.xlu0 %9872
    %9874 = vrot.lane.b32.xlu0 %v9424, 64
    %v9875 = vpop.permute.xlu0 %9874
    %9876 = vrot.lane.b32.xlu0 %v9425, 64
    %v9877 = vpop.permute.xlu0 %9876
    %9878 = vrot.lane.b32.xlu0 %v9426, 64
    %v9879 = vpop.permute.xlu0 %9878
    %9880 = vrot.lane.b32.xlu0 %v9427, 64
    %v9881 = vpop.permute.xlu0 %9880
    %9882 = vrot.lane.b32.xlu0 %v9428, 64
    %v9883 = vpop.permute.xlu0 %9882
    %9884 = vrot.lane.b32.xlu0 %v9429, 64
    %v9885 = vpop.permute.xlu0 %9884
    %9886 = vrot.lane.b32.xlu0 %v9430, 64
    %v9887 = vpop.permute.xlu0 %9886
    %9888 = vrot.lane.b32.xlu0 %v9431, 64
    %v9889 = vpop.permute.xlu0 %9888
    %9890 = vrot.lane.b32.xlu0 %v9432, 64
    %v9891 = vpop.permute.xlu0 %9890
    %9892 = vrot.lane.b32.xlu0 %v9433, 64
    %v9893 = vpop.permute.xlu0 %9892
    %9894 = vrot.lane.b32.xlu0 %v9434, 64
    %v9895 = vpop.permute.xlu0 %9894
    %9896 = vrot.lane.b32.xlu0 %v9435, 64
    %v9897 = vpop.permute.xlu0 %9896
    %9898 = vrot.lane.b32.xlu0 %v9436, 64
    %v9899 = vpop.permute.xlu0 %9898
    %9900 = vrot.lane.b32.xlu0 %v9437, 64
    %v9901 = vpop.permute.xlu0 %9900
    %9902 = vrot.lane.b32.xlu0 %v9438, 64
    %v9903 = vpop.permute.xlu0 %9902
    %9904 = vrot.lane.b32.xlu0 %v9439, 64
    %v9905 = vpop.permute.xlu0 %9904
    %9906 = vrot.lane.b32.xlu0 %v9440, 64
    %v9907 = vpop.permute.xlu0 %9906
    %9908 = vrot.lane.b32.xlu0 %v9441, 64
    %v9909 = vpop.permute.xlu0 %9908
    %9910 = vrot.lane.b32.xlu0 %v9442, 64
    %v9911 = vpop.permute.xlu0 %9910
    %9912 = vrot.lane.b32.xlu0 %v9443, 64
    %v9913 = vpop.permute.xlu0 %9912
    %9914 = vrot.lane.b32.xlu0 %v9444, 64
    %v9915 = vpop.permute.xlu0 %9914
    %9916 = vrot.lane.b32.xlu0 %v9445, 64
    %v9917 = vpop.permute.xlu0 %9916
    %9918 = vrot.lane.b32.xlu0 %v9446, 64
    %v9919 = vpop.permute.xlu0 %9918
    %9920 = vrot.lane.b32.xlu0 %v9447, 64
    %v9921 = vpop.permute.xlu0 %9920
    %9922 = vrot.lane.b32.xlu0 %v9448, 64
    %v9923 = vpop.permute.xlu0 %9922
    %9924 = vrot.lane.b32.xlu0 %v9449, 64
    %v9925 = vpop.permute.xlu0 %9924
    %9926 = vrot.lane.b32.xlu0 %v9450, 64
    %v9927 = vpop.permute.xlu0 %9926
    %9928 = vrot.lane.b32.xlu0 %v9451, 64
    %v9929 = vpop.permute.xlu0 %9928
    %9930 = vrot.lane.b32.xlu0 %v9452, 64
    %v9931 = vpop.permute.xlu0 %9930
    %9932 = vrot.lane.b32.xlu0 %v9453, 64
    %v9933 = vpop.permute.xlu0 %9932
    %9934 = vrot.lane.b32.xlu0 %v9454, 64
    %v9935 = vpop.permute.xlu0 %9934
    %9936 = vrot.lane.b32.xlu0 %v9455, 64
    %v9937 = vpop.permute.xlu0 %9936
    %9938 = vrot.lane.b32.xlu0 %v9456, 64
    %v9939 = vpop.permute.xlu0 %9938
    %9940 = vrot.lane.b32.xlu0 %v9457, 64
    %v9941 = vpop.permute.xlu0 %9940
    %9942 = vrot.lane.b32.xlu0 %v9458, 64
    %v9943 = vpop.permute.xlu0 %9942
    %9944 = vrot.lane.b32.xlu0 %v9459, 64
    %v9945 = vpop.permute.xlu0 %9944
    %9946 = vrot.lane.b32.xlu0 %v9460, 64
    %v9947 = vpop.permute.xlu0 %9946
    %9948 = vrot.lane.b32.xlu0 %v9461, 64
    %v9949 = vpop.permute.xlu0 %9948
    %9950 = vrot.lane.b32.xlu0 %v9462, 64
    %v9951 = vpop.permute.xlu0 %9950
    %9952 = vrot.lane.b32.xlu0 %v9463, 64
    %v9953 = vpop.permute.xlu0 %9952
    %9954 = vrot.lane.b32.xlu0 %v9464, 64
    %v9955 = vpop.permute.xlu0 %9954
    %9956 = vrot.lane.b32.xlu0 %v9465, 64
    %v9957 = vpop.permute.xlu0 %9956
    %9958 = vrot.lane.b32.xlu0 %v9466, 64
    %v9959 = vpop.permute.xlu0 %9958
    %9960 = vrot.lane.b32.xlu0 %v9467, 64
    %v9961 = vpop.permute.xlu0 %9960
    %9962 = vrot.lane.b32.xlu0 %v9468, 64
    %v9963 = vpop.permute.xlu0 %9962
    %9964 = vrot.lane.b32.xlu0 %v9469, 64
    %v9965 = vpop.permute.xlu0 %9964
    %9966 = vrot.lane.b32.xlu0 %v9470, 64
    %v9967 = vpop.permute.xlu0 %9966
    %9968 = vrot.lane.b32.xlu0 %v9471, 64
    %v9969 = vpop.permute.xlu0 %9968
    %9970 = vrot.lane.b32.xlu0 %v9472, 64
    %v9971 = vpop.permute.xlu0 %9970
    %9972 = vrot.lane.b32.xlu0 %v9473, 64
    %v9973 = vpop.permute.xlu0 %9972
    %9974 = vrot.lane.b32.xlu0 %v9474, 64
    %v9975 = vpop.permute.xlu0 %9974
    %9976 = vrot.lane.b32.xlu0 %v9475, 64
    %v9977 = vpop.permute.xlu0 %9976
    %9978 = vrot.lane.b32.xlu0 %v9476, 64
    %v9979 = vpop.permute.xlu0 %9978
    %9980 = vrot.lane.b32.xlu0 %v9477, 64
    %v9981 = vpop.permute.xlu0 %9980
    %9982 = vrot.lane.b32.xlu0 %v9478, 64
    %v9983 = vpop.permute.xlu0 %9982
    %9984 = vrot.lane.b32.xlu0 %v9479, 64
    %v9985 = vpop.permute.xlu0 %9984
    %9986 = vrot.lane.b32.xlu0 %v9480, 64
    %v9987 = vpop.permute.xlu0 %9986
    %9988 = vrot.lane.b32.xlu0 %v9481, 64
    %v9989 = vpop.permute.xlu0 %9988
    %9990 = vrot.lane.b32.xlu0 %v9482, 64
    %v9991 = vpop.permute.xlu0 %9990
    %9992 = vrot.lane.b32.xlu0 %v9483, 64
    %v9993 = vpop.permute.xlu0 %9992
    %9994 = vrot.lane.b32.xlu0 %v9484, 64
    %v9995 = vpop.permute.xlu0 %9994
    %9996 = vrot.lane.b32.xlu0 %v9485, 64
    %v9997 = vpop.permute.xlu0 %9996
    %10062 = vst.msk [vmem:[#allocation3] sm:$0xff] %vm6747, %v9871
    %10063 = vst.msk [vmem:[#allocation3 + $0x8] sm:$0xff] %vm6747, %v9873
    %10064 = vst.msk [vmem:[#allocation3 + $0x10] sm:$0xff] %vm6747, %v9875
    %10065 = vst.msk [vmem:[#allocation3 + $0x18] sm:$0xff] %vm6747, %v9877
    %10066 = vst.msk [vmem:[#allocation3 + $0x20] sm:$0xff] %vm6747, %v9879
    %10067 = vst.msk [vmem:[#allocation3 + $0x28] sm:$0xff] %vm6747, %v9881
    %10068 = vst.msk [vmem:[#allocation3 + $0x30] sm:$0xff] %vm6747, %v9883
    %10069 = vst.msk [vmem:[#allocation3 + $0x38] sm:$0xff] %vm6747, %v9885
    %10070 = vst.msk [vmem:[#allocation3 + $0x40] sm:$0xff] %vm6747, %v9887
    %10071 = vst.msk [vmem:[#allocation3 + $0x48] sm:$0xff] %vm6747, %v9889
    %10072 = vst.msk [vmem:[#allocation3 + $0x50] sm:$0xff] %vm6747, %v9891
    %10073 = vst.msk [vmem:[#allocation3 + $0x58] sm:$0xff] %vm6747, %v9893
    %10074 = vst.msk [vmem:[#allocation3 + $0x60] sm:$0xff] %vm6747, %v9895
    %10075 = vst.msk [vmem:[#allocation3 + $0x68] sm:$0xff] %vm6747, %v9897
    %10076 = vst.msk [vmem:[#allocation3 + $0x70] sm:$0xff] %vm6747, %v9899
    %10077 = vst.msk [vmem:[#allocation3 + $0x78] sm:$0xff] %vm6747, %v9901
    %10078 = vst.msk [vmem:[#allocation3 + $0x80] sm:$0xff] %vm6747, %v9903
    %10079 = vst.msk [vmem:[#allocation3 + $0x88] sm:$0xff] %vm6747, %v9905
    %10080 = vst.msk [vmem:[#allocation3 + $0x90] sm:$0xff] %vm6747, %v9907
    %10081 = vst.msk [vmem:[#allocation3 + $0x98] sm:$0xff] %vm6747, %v9909
    %10082 = vst.msk [vmem:[#allocation3 + $0xa0] sm:$0xff] %vm6747, %v9911
    %10083 = vst.msk [vmem:[#allocation3 + $0xa8] sm:$0xff] %vm6747, %v9913
    %10084 = vst.msk [vmem:[#allocation3 + $0xb0] sm:$0xff] %vm6747, %v9915
    %10085 = vst.msk [vmem:[#allocation3 + $0xb8] sm:$0xff] %vm6747, %v9917
    %10086 = vst.msk [vmem:[#allocation3 + $0xc0] sm:$0xff] %vm6747, %v9919
    %10087 = vst.msk [vmem:[#allocation3 + $0xc8] sm:$0xff] %vm6747, %v9921
    %10088 = vst.msk [vmem:[#allocation3 + $0xd0] sm:$0xff] %vm6747, %v9923
    %10089 = vst.msk [vmem:[#allocation3 + $0xd8] sm:$0xff] %vm6747, %v9925
    %10090 = vst.msk [vmem:[#allocation3 + $0xe0] sm:$0xff] %vm6747, %v9927
    %10091 = vst.msk [vmem:[#allocation3 + $0xe8] sm:$0xff] %vm6747, %v9929
    %10092 = vst.msk [vmem:[#allocation3 + $0xf0] sm:$0xff] %vm6747, %v9931
    %10093 = vst.msk [vmem:[#allocation3 + $0xf8] sm:$0xff] %vm6747, %v9933
    %10094 = vst.msk [vmem:[#allocation3 + $0x100] sm:$0xff] %vm6747, %v9935
    %10095 = vst.msk [vmem:[#allocation3 + $0x108] sm:$0xff] %vm6747, %v9937
    %10096 = vst.msk [vmem:[#allocation3 + $0x110] sm:$0xff] %vm6747, %v9939
    %10097 = vst.msk [vmem:[#allocation3 + $0x118] sm:$0xff] %vm6747, %v9941
    %10098 = vst.msk [vmem:[#allocation3 + $0x120] sm:$0xff] %vm6747, %v9943
    %10099 = vst.msk [vmem:[#allocation3 + $0x128] sm:$0xff] %vm6747, %v9945
    %10100 = vst.msk [vmem:[#allocation3 + $0x130] sm:$0xff] %vm6747, %v9947
    %10101 = vst.msk [vmem:[#allocation3 + $0x138] sm:$0xff] %vm6747, %v9949
    %10102 = vst.msk [vmem:[#allocation3 + $0x140] sm:$0xff] %vm6747, %v9951
    %10103 = vst.msk [vmem:[#allocation3 + $0x148] sm:$0xff] %vm6747, %v9953
    %10104 = vst.msk [vmem:[#allocation3 + $0x150] sm:$0xff] %vm6747, %v9955
    %10105 = vst.msk [vmem:[#allocation3 + $0x158] sm:$0xff] %vm6747, %v9957
    %10106 = vst.msk [vmem:[#allocation3 + $0x160] sm:$0xff] %vm6747, %v9959
    %10107 = vst.msk [vmem:[#allocation3 + $0x168] sm:$0xff] %vm6747, %v9961
    %10108 = vst.msk [vmem:[#allocation3 + $0x170] sm:$0xff] %vm6747, %v9963
    %10109 = vst.msk [vmem:[#allocation3 + $0x178] sm:$0xff] %vm6747, %v9965
    %10110 = vst.msk [vmem:[#allocation3 + $0x180] sm:$0xff] %vm6747, %v9967
    %10111 = vst.msk [vmem:[#allocation3 + $0x188] sm:$0xff] %vm6747, %v9969
    %10112 = vst.msk [vmem:[#allocation3 + $0x190] sm:$0xff] %vm6747, %v9971
    %10113 = vst.msk [vmem:[#allocation3 + $0x198] sm:$0xff] %vm6747, %v9973
    %10114 = vst.msk [vmem:[#allocation3 + $0x1a0] sm:$0xff] %vm6747, %v9975
    %10115 = vst.msk [vmem:[#allocation3 + $0x1a8] sm:$0xff] %vm6747, %v9977
    %10116 = vst.msk [vmem:[#allocation3 + $0x1b0] sm:$0xff] %vm6747, %v9979
    %10117 = vst.msk [vmem:[#allocation3 + $0x1b8] sm:$0xff] %vm6747, %v9981
    %10118 = vst.msk [vmem:[#allocation3 + $0x1c0] sm:$0xff] %vm6747, %v9983
    %10119 = vst.msk [vmem:[#allocation3 + $0x1c8] sm:$0xff] %vm6747, %v9985
    %10120 = vst.msk [vmem:[#allocation3 + $0x1d0] sm:$0xff] %vm6747, %v9987
    %10121 = vst.msk [vmem:[#allocation3 + $0x1d8] sm:$0xff] %vm6747, %v9989
    %10122 = vst.msk [vmem:[#allocation3 + $0x1e0] sm:$0xff] %vm6747, %v9991
    %10123 = vst.msk [vmem:[#allocation3 + $0x1e8] sm:$0xff] %vm6747, %v9993
    %10124 = vst.msk [vmem:[#allocation3 + $0x1f0] sm:$0xff] %vm6747, %v9995
    %10125 = vst.msk [vmem:[#allocation3 + $0x1f8] sm:$0xff] %vm6747, %v9997
    // Predicated region
    $region18: #{convlstm_cell_forward.1} parent=1 // pred_check
      _
    $region19: #{convlstm_cell_forward.1} parent=1 // pred_check_branch
      %10127 = sbr.rel (0) target = $region21
    $region20: #{convlstm_cell_forward.1} parent=1 // pred_region
      %s10129 = ssub.s32 8192, 8192
      %10130 = vsyncadd [#allocation4], %s10129
      %s10131 = sshll.u32 [#allocation3], 4
      %s10132 = int_to_ptr.vmem [resolvable:$true] %s10131
      %10137 = dma.vmem_to_hbm [thread:$0]  %s10132, 8192, %s4, [#allocation4], 128, 128, 8
    $region21: #{convlstm_cell_forward.1} parent=1 // pred_fallthru
      _
    // Predicated region
    $region22: #{convlstm_cell_forward.1} parent=1 // pred_check
      _
    $region23: #{convlstm_cell_forward.1} parent=1 // pred_check_branch
      %10139 = sbr.rel (0) target = $region25
    $region24: #{convlstm_cell_forward.1} parent=1 // pred_region
      %s10141 = ssub.s32 8192, 8192
      %10142 = vsyncadd [#allocation6], %s10141
      %s10143 = sshll.u32 [#allocation5], 4
      %s10144 = int_to_ptr.vmem [resolvable:$true] %s10143
      %10149 = dma.vmem_to_hbm [thread:$0]  %s10144, 8192, %s5, [#allocation6], 128, 128, 8
    $region25: #{convlstm_cell_forward.1} parent=1 // pred_fallthru
      _
    // Predicated region
    $region26: #{convlstm_cell_forward.1} parent=1 // pred_check
      _
    $region27: #{convlstm_cell_forward.1} parent=1 // pred_check_branch
      %10151 = sbr.rel (0) target = $region29
    $region28: #{convlstm_cell_forward.1} parent=1 // pred_region
      %10152 = dma.done [#allocation4], 8192
    $region29: #{convlstm_cell_forward.1} parent=1 // pred_fallthru
      _
    // Predicated region
    $region30: #{convlstm_cell_forward.1} parent=1 // pred_check
      _
    $region31: #{convlstm_cell_forward.1} parent=1 // pred_check_branch
      %10154 = sbr.rel (0) target = $region33
    $region32: #{convlstm_cell_forward.1} parent=1 // pred_region
      %10155 = dma.done [#allocation6], 8192
    $region33: #{convlstm_cell_forward.1} parent=1 // pred_fallthru
      _
    %10156 = vsyncpa [#allocation4], 1
    %10157 = vsyncpa [#allocation6], 1

</llo_original>
